<compile_context>
chip_gen: v7x
topology: tpu7x:2x2x1
jax: 0.10.0
libtpu: 0.0.40
codegen_flags: <defaults>
</compile_context>

<pallas_src>
import functools

import jax
import jax.numpy as jnp
from jax.experimental import pallas as pl
from jax.experimental.pallas import tpu as pltpu


_LANE = 128


def _round_up(x, m):
    return (x + m - 1) // m * m


_VMEM_LIMIT_CACHE = None


def _vmem_limit_bytes():
    """Generation-aware scoped-VMEM limit (<= phys/2, capped at 40 MiB)."""
    global _VMEM_LIMIT_CACHE
    if _VMEM_LIMIT_CACHE is None:
        try:
            phys = int(pltpu.get_tpu_info().vmem_capacity_bytes)
            _VMEM_LIMIT_CACHE = int(min(phys // 2, 40 * 1024 * 1024))
        except Exception:
            _VMEM_LIMIT_CACHE = 32 * 1024 * 1024
    return _VMEM_LIMIT_CACHE


def _pick_row_tile(ho, wo):
    """Output-row tile: target ~512 im2col rows per grid step, must divide Ho."""
    th = min(ho, max(1, 512 // max(wo, 1)))
    while ho % th:
        th -= 1
    return th


# ----------------------------------------------------------------------------
# Pallas kernel: fused 3x3 / stride-2 conv + bias + ReLU for one row tile.
# ----------------------------------------------------------------------------
def _conv3x3s2_bias_relu_kernel(x_ref, w_ref, b_ref, o_ref):
    """One (image, output-row-tile) grid step.

    x_ref: (1, Ho+1, Wo+1, 4*Cin)  bf16  packed, spatially padded activation
    w_ref: (9*Cin, Coutp)          bf16  im2col weights, (kh, kw) row-major taps
    b_ref: (1, Coutp)              f32
    o_ref: (1, TH, Wo, Coutp)      bf16  (Coutp is a multiple of 128)
    """
    th = o_ref.shape[1]
    wo = o_ref.shape[2]
    coutp = o_ref.shape[3]
    c = x_ref.shape[3] // 4
    y0 = pl.program_id(1) * th

    # Packed layout: x_packed[yg, xg, (2*hs + ws)*Cin + cc] = x_pad[2*yg+hs, 2*xg+ws, cc]
    # Output pixel (y, x) tap (kh, kw) reads x_pad[2y+kh, 2x+kw]:
    #   kh -> (dy, hs) = (kh // 2, kh % 2);  kw -> (dx, ws) = (kw // 2, kw % 2)
    pieces = []
    for kh in range(3):
        dy, hs = kh // 2, kh % 2
        for kw in range(3):
            dx, ws = kw // 2, kw % 2
            cs = (2 * hs + ws) * c
            pieces.append(
                x_ref[0, pl.ds(y0 + dy, th), pl.ds(dx, wo), pl.ds(cs, c)])
    # True 9*Cin im2col slab, built entirely in VMEM (never hits HBM).
    lhs = jnp.concatenate(pieces, axis=-1).reshape(th * wo, 9 * c)

    acc = jnp.dot(lhs, w_ref[...], preferred_element_type=jnp.float32)
    acc = jnp.maximum(acc + b_ref[...], 0.0)
    o_ref[...] = acc.reshape(1, th, wo, coutp).astype(o_ref.dtype)


def _conv3x3s2_bias_relu(x_nhwc, w_packed, b_packed):
    """x_nhwc: (N, H, W, Cin) bf16, H/W even. Returns (N, H//2, W//2, Coutp) bf16."""
    n, h, w, cinp = x_nhwc.shape
    assert h % 2 == 0 and w % 2 == 0, "stride-2 stages need even spatial dims"
    ho, wo = h // 2, w // 2
    c4 = 4 * cinp
    coutp = w_packed.shape[-1]
    assert w_packed.shape[0] == 9 * cinp

    xb = x_nhwc.astype(jnp.bfloat16)
    xp = jnp.pad(xb, ((0, 0), (1, 1), (1, 1), (0, 0)))      # (n, h+2, w+2, c)
    # Fold stride-2 sub-row / sub-col axes into channels: lane dim = 4*Cin.
    xr = xp.reshape(n, ho + 1, 2, wo + 1, 2, cinp)
    xr = jnp.transpose(xr, (0, 1, 3, 2, 4, 5)).reshape(n, ho + 1, wo + 1, c4)

    th = _pick_row_tile(ho, wo)
    grid = (n, ho // th)

    return pl.pallas_call(
        _conv3x3s2_bias_relu_kernel,
        out_shape=jax.ShapeDtypeStruct((n, ho, wo, coutp), jnp.bfloat16),
        grid_spec=pltpu.PrefetchScalarGridSpec(
            num_scalar_prefetch=0,
            grid=grid,
            in_specs=[
                # Whole packed image per batch element; block index depends only
                # on the batch axis so it is fetched once across the ih axis.
                # TODO(synk): halo-tiled input DMA for very large images.
                pl.BlockSpec((1, ho + 1, wo + 1, c4),
                             lambda i, ih: (i, 0, 0, 0)),
                pl.BlockSpec((9 * cinp, coutp), lambda i, ih: (0, 0)),
                pl.BlockSpec((1, coutp), lambda i, ih: (0, 0)),
            ],
            out_specs=pl.BlockSpec((1, th, wo, coutp),
                                   lambda i, ih: (i, ih, 0, 0)),
        ),
        compiler_params=pltpu.CompilerParams(
            dimension_semantics=("parallel", "parallel"),
            vmem_limit_bytes=_vmem_limit_bytes(),
        ),
    )(xr, w_packed, b_packed)


# ----------------------------------------------------------------------------
# Concrete backbone implementing the BackboneBase contract
# ----------------------------------------------------------------------------
class PallasBackbone:
    """Minimal concrete BackboneBase: stack of 3x3/s2 conv + ReLU stages.

    forward(x: NCHW) -> {"C2": NCHW, "C3": NCHW, ...} (float32 features)
    """

    def __init__(self, in_channels=3, out_channels=(16, 32, 64, 128),
                 pretrained=True, freeze_layers=0, seed=0):
        self.pretrained = pretrained          # no forward effect
        self.freeze_layers = freeze_layers    # training-only, no forward effect
        self._out_channels = list(out_channels)

        key = jax.random.PRNGKey(seed)
        self.ref_weights = []       # (3, 3, Cin, Cout) f32 HWIO (reference conv)
        self.ref_biases = []        # (Cout,) f32
        self.packed_weights = []    # (9*Cinp, Coutp) bf16 im2col weights
        self.packed_biases = []     # (1, Coutp) f32

        cin_real = in_channels
        cinp = in_channels          # padded input channels carried from prev layer
        for lvl, cout in enumerate(self._out_channels):
            kkey = jax.random.fold_in(key, lvl)
            fan_in = 3 * 3 * cin_real
            w = jax.random.normal(kkey, (3, 3, cin_real, cout), jnp.float32)
            w = w * jnp.sqrt(2.0 / fan_in)
            b = jnp.zeros((cout,), jnp.float32)
            self.ref_weights.append(w)
            self.ref_biases.append(b)

            # Flatten taps (kh, kw) row-major into a (9*Cinp, Coutp) matrix.
            # Rows for carried-in channel padding and columns for Cout lane
            # padding are zero; Coutp multiple of 128 -> lane-dense stores.
            # (Note: when extending to Cout >= 256 keep Coutp a multiple of 256
            #  for full v6e/v7x MXU width.)
            coutp = _round_up(cout, _LANE)
            wfull = jnp.zeros((3, 3, cinp, coutp), jnp.float32)
            wfull = wfull.at[:, :, :cin_real, :cout].set(w)
            wp = wfull.reshape(9 * cinp, coutp)
            self.packed_weights.append(wp.astype(jnp.bfloat16))
            bp = jnp.pad(b, (0, coutp - cout)).reshape(1, coutp)
            self.packed_biases.append(bp.astype(jnp.float32))

            cin_real = cout
            cinp = coutp            # carry lane padding into the next layer

    @property
    def out_channels(self):
        return self._out_channels

    def get_feature_info(self):
        return {f"C{i + 2}": c for i, c in enumerate(self.out_channels)}

    def freeze_backbone_layers(self, num_layers: int):
        # TODO(synk): requires_grad bookkeeping has no JAX-array equivalent here.
        pass

    @functools.partial(jax.jit, static_argnums=0)
    def forward(self, x_nchw):
        # layout: NCHW in/out (PyTorch convention); bf16 NHWC with padded
        # channels between layers (padded channels are exactly zero).
        feats = {}
        cur = jnp.transpose(x_nchw, (0, 2, 3, 1)).astype(jnp.bfloat16)  # NHWC
        for lvl, cout in enumerate(self._out_channels):
            cur = _conv3x3s2_bias_relu(cur, self.packed_weights[lvl],
                                       self.packed_biases[lvl])
            # slice / cast / transpose only for the returned dict
            feats[f"C{lvl + 2}"] = jnp.transpose(
                cur[..., :cout], (0, 3, 1, 2)).astype(jnp.float32)
        return feats

    __call__ = forward


# ----------------------------------------------------------------------------
# Reference check + demo
# ----------------------------------------------------------------------------
def _reference_forward(backbone, x_nchw):
    """Pure-JAX reference (lax conv) mimicking the kernel's bf16 carries."""
    feats = {}
    cur = jnp.transpose(x_nchw, (0, 2, 3, 1)).astype(jnp.bfloat16).astype(jnp.float32)
    for lvl, (w_hwio, b) in enumerate(zip(backbone.ref_weights,
                                          backbone.ref_biases)):
        w_b = w_hwio.astype(jnp.bfloat16).astype(jnp.float32)
        y = jax.lax.conv_general_dilated(
            cur, w_b, window_strides=(2, 2), padding=((1, 1), (1, 1)),
            dimension_numbers=("NHWC", "HWIO", "NHWC"),
            precision=jax.lax.Precision.HIGHEST)
        y = jnp.maximum(y + b, 0.0)
        y_b = y.astype(jnp.bfloat16)               # mimic bf16 activation carry
        feats[f"C{lvl + 2}"] = jnp.transpose(y_b.astype(jnp.float32), (0, 3, 1, 2))
        cur = y_b.astype(jnp.float32)
    return feats


if __name__ == "__main__":
    key = jax.random.PRNGKey(0)
    # NCHW input: batch=2, 3 channels, 64x64 spatial
    # (4 stride-2 stages -> 32, 16, 8, 4; layer 1 exercises the Ho grid axis).
    x = jax.random.normal(key, (2, 3, 64, 64), jnp.float32)

    backbone = PallasBackbone(in_channels=3, out_channels=(16, 32, 64, 128),
                              pretrained=False, freeze_layers=0, seed=0)

    feats = backbone(x)
    jax.block_until_ready(feats)

    # Validate against the pure-JAX reference (bf16 MXU inputs / bf16 carries).
    ref = _reference_forward(backbone, x)
    for name in feats:
        assert feats[name].shape == ref[name].shape, (
            name, feats[name].shape, ref[name].shape)
        assert jnp.allclose(feats[name], ref[name], atol=3e-2, rtol=3e-2), name

    # Sanity: channels match out_channels / get_feature_info contract.
    info = backbone.get_feature_info()
    for name, c in info.items():
        assert feats[name].shape[1] == c

    print("KERNEL_OK")
</pallas_src>

<mosaic_0001>
module attributes {stable_mosaic.version = 11 : i64} {
  func.func @_conv3x3s2_bias_relu_kernel(%arg0: i32, %arg1: i32, %arg2: memref<1x33x33x12xbf16, #tpu.memory_space<vmem>>, %arg3: memref<27x128xbf16, #tpu.memory_space<vmem>>, %arg4: memref<1x128xf32, #tpu.memory_space<vmem>>, %arg5: memref<1x16x32x128xbf16, #tpu.memory_space<vmem>>) attributes {dimension_semantics = [#tpu.dimension_semantics<parallel>, #tpu.dimension_semantics<parallel>], iteration_bounds = array<i64: 2, 2>, scalar_prefetch = 0 : i64, scratch_operands = 0 : i64, tpu.core_type = #tpu.core_type<tc>, window_params = [{transform_indices = @transform_0, window_bounds = array<i64: 1, 33, 33, 12>}, {pipeline_mode = #tpu.pipeline_mode<synchronous>, transform_indices = @transform_1, window_bounds = array<i64: 27, 128>}, {pipeline_mode = #tpu.pipeline_mode<synchronous>, transform_indices = @transform_2, window_bounds = array<i64: 1, 128>}, {transform_indices = @transform_3, window_bounds = array<i64: 1, 16, 32, 128>}]} {
    %c16_i32 = arith.constant 16 : i32
    %0 = arith.muli %arg1, %c16_i32 : i32
    %c0_i32 = arith.constant 0 : i32
    %1 = arith.addi %0, %c0_i32 : i32
    %c0 = arith.constant 0 : index
    %2 = arith.index_cast %1 : i32 to index
    %c0_0 = arith.constant 0 : index
    %c0_1 = arith.constant 0 : index
    %3 = vector.load %arg2[%c0, %2, %c0_0, %c0_1] : memref<1x33x33x12xbf16, #tpu.memory_space<vmem>>, vector<1x16x32x3xbf16>
    %4 = vector.shape_cast %3 : vector<1x16x32x3xbf16> to vector<16x32x3xbf16>
    %c0_i32_2 = arith.constant 0 : i32
    %5 = arith.addi %0, %c0_i32_2 : i32
    %c0_3 = arith.constant 0 : index
    %6 = arith.index_cast %5 : i32 to index
    %c0_4 = arith.constant 0 : index
    %c3 = arith.constant 3 : index
    %7 = vector.load %arg2[%c0_3, %6, %c0_4, %c3] : memref<1x33x33x12xbf16, #tpu.memory_space<vmem>>, vector<1x16x32x3xbf16>
    %8 = vector.shape_cast %7 : vector<1x16x32x3xbf16> to vector<16x32x3xbf16>
    %c0_i32_5 = arith.constant 0 : i32
    %9 = arith.addi %0, %c0_i32_5 : i32
    %c0_6 = arith.constant 0 : index
    %10 = arith.index_cast %9 : i32 to index
    %c1 = arith.constant 1 : index
    %c0_7 = arith.constant 0 : index
    %11 = vector.load %arg2[%c0_6, %10, %c1, %c0_7] : memref<1x33x33x12xbf16, #tpu.memory_space<vmem>>, vector<1x16x32x3xbf16>
    %12 = vector.shape_cast %11 : vector<1x16x32x3xbf16> to vector<16x32x3xbf16>
    %c0_i32_8 = arith.constant 0 : i32
    %13 = arith.addi %0, %c0_i32_8 : i32
    %c0_9 = arith.constant 0 : index
    %14 = arith.index_cast %13 : i32 to index
    %c0_10 = arith.constant 0 : index
    %c6 = arith.constant 6 : index
    %15 = vector.load %arg2[%c0_9, %14, %c0_10, %c6] : memref<1x33x33x12xbf16, #tpu.memory_space<vmem>>, vector<1x16x32x3xbf16>
    %16 = vector.shape_cast %15 : vector<1x16x32x3xbf16> to vector<16x32x3xbf16>
    %c0_i32_11 = arith.constant 0 : i32
    %17 = arith.addi %0, %c0_i32_11 : i32
    %c0_12 = arith.constant 0 : index
    %18 = arith.index_cast %17 : i32 to index
    %c0_13 = arith.constant 0 : index
    %c9 = arith.constant 9 : index
    %19 = vector.load %arg2[%c0_12, %18, %c0_13, %c9] : memref<1x33x33x12xbf16, #tpu.memory_space<vmem>>, vector<1x16x32x3xbf16>
    %20 = vector.shape_cast %19 : vector<1x16x32x3xbf16> to vector<16x32x3xbf16>
    %c0_i32_14 = arith.constant 0 : i32
    %21 = arith.addi %0, %c0_i32_14 : i32
    %c0_15 = arith.constant 0 : index
    %22 = arith.index_cast %21 : i32 to index
    %c1_16 = arith.constant 1 : index
    %c6_17 = arith.constant 6 : index
    %23 = vector.load %arg2[%c0_15, %22, %c1_16, %c6_17] : memref<1x33x33x12xbf16, #tpu.memory_space<vmem>>, vector<1x16x32x3xbf16>
    %24 = vector.shape_cast %23 : vector<1x16x32x3xbf16> to vector<16x32x3xbf16>
    %c1_i32 = arith.constant 1 : i32
    %25 = arith.addi %0, %c1_i32 : i32
    %c0_18 = arith.constant 0 : index
    %26 = arith.index_cast %25 : i32 to index
    %c0_19 = arith.constant 0 : index
    %c0_20 = arith.constant 0 : index
    %27 = vector.load %arg2[%c0_18, %26, %c0_19, %c0_20] : memref<1x33x33x12xbf16, #tpu.memory_space<vmem>>, vector<1x16x32x3xbf16>
    %28 = vector.shape_cast %27 : vector<1x16x32x3xbf16> to vector<16x32x3xbf16>
    %c1_i32_21 = arith.constant 1 : i32
    %29 = arith.addi %0, %c1_i32_21 : i32
    %c0_22 = arith.constant 0 : index
    %30 = arith.index_cast %29 : i32 to index
    %c0_23 = arith.constant 0 : index
    %c3_24 = arith.constant 3 : index
    %31 = vector.load %arg2[%c0_22, %30, %c0_23, %c3_24] : memref<1x33x33x12xbf16, #tpu.memory_space<vmem>>, vector<1x16x32x3xbf16>
    %32 = vector.shape_cast %31 : vector<1x16x32x3xbf16> to vector<16x32x3xbf16>
    %c1_i32_25 = arith.constant 1 : i32
    %33 = arith.addi %0, %c1_i32_25 : i32
    %c0_26 = arith.constant 0 : index
    %34 = arith.index_cast %33 : i32 to index
    %c1_27 = arith.constant 1 : index
    %c0_28 = arith.constant 0 : index
    %35 = vector.load %arg2[%c0_26, %34, %c1_27, %c0_28] : memref<1x33x33x12xbf16, #tpu.memory_space<vmem>>, vector<1x16x32x3xbf16>
    %36 = vector.shape_cast %35 : vector<1x16x32x3xbf16> to vector<16x32x3xbf16>
    %37 = tpu.concatenate %4, %8, %12, %16, %20, %24, %28, %32, %36 in 2 : vector<16x32x3xbf16>, vector<16x32x3xbf16>, vector<16x32x3xbf16>, vector<16x32x3xbf16>, vector<16x32x3xbf16>, vector<16x32x3xbf16>, vector<16x32x3xbf16>, vector<16x32x3xbf16>, vector<16x32x3xbf16> -> vector<16x32x27xbf16>
    %38 = vector.shape_cast %37 : vector<16x32x27xbf16> to vector<512x27xbf16>
    %c0_29 = arith.constant 0 : index
    %c0_30 = arith.constant 0 : index
    %39 = vector.load %arg3[%c0_29, %c0_30] : memref<27x128xbf16, #tpu.memory_space<vmem>>, vector<27x128xbf16>
    %cst = arith.constant dense<0.000000e+00> : vector<512x128xf32>
    %40 = tpu.matmul %38, %39, %cst {dimension_numbers = #tpu.dot_dimension_numbers<[1], [0], [0], [1], [0, 0, 1, 1], [], []>} : vector<512x27xbf16>, vector<27x128xbf16>, vector<512x128xf32> -> vector<512x128xf32>
    %c0_31 = arith.constant 0 : index
    %c0_32 = arith.constant 0 : index
    %41 = vector.load %arg4[%c0_31, %c0_32] : memref<1x128xf32, #tpu.memory_space<vmem>>, vector<1x128xf32>
    %42 = vector.broadcast %41 : vector<1x128xf32> to vector<512x128xf32>
    %43 = arith.addf %40, %42 : vector<512x128xf32>
    %cst_33 = arith.constant 0.000000e+00 : f32
    %44 = vector.broadcast %cst_33 : f32 to vector<512x128xf32>
    %45 = arith.maximumf %43, %44 : vector<512x128xf32>
    %46 = vector.shape_cast %45 : vector<512x128xf32> to vector<1x16x32x128xf32>
    %47 = arith.truncf %46 : vector<1x16x32x128xf32> to vector<1x16x32x128xbf16>
    %c0_34 = arith.constant 0 : index
    %c0_35 = arith.constant 0 : index
    %c0_36 = arith.constant 0 : index
    %c0_37 = arith.constant 0 : index
    %48 = vector.load %arg5[%c0_34, %c0_35, %c0_36, %c0_37] : memref<1x16x32x128xbf16, #tpu.memory_space<vmem>>, vector<1x16x32x128xbf16>
    tpu.vector_store %arg5[%c0_34, %c0_35, %c0_36, %c0_37], %47 {strides = array<i32>} : memref<1x16x32x128xbf16, #tpu.memory_space<vmem>>, vector<1x16x32x128xbf16>,
    return
  }
  func.func @transform_0(%arg0: i32, %arg1: i32) -> (i32, i32, i32, i32) {
    %c0_i32 = arith.constant 0 : i32
    %c0_i32_0 = arith.constant 0 : i32
    %c0_i32_1 = arith.constant 0 : i32
    %c0_i32_2 = arith.constant 0 : i32
    return %arg0, %c0_i32, %c0_i32_0, %c0_i32_1 : i32, i32, i32, i32
  }
  func.func @transform_1(%arg0: i32, %arg1: i32) -> (i32, i32) {
    %c0_i32 = arith.constant 0 : i32
    %c0_i32_0 = arith.constant 0 : i32
    %c0_i32_1 = arith.constant 0 : i32
    return %c0_i32, %c0_i32_0 : i32, i32
  }
  func.func @transform_2(%arg0: i32, %arg1: i32) -> (i32, i32) {
    %c0_i32 = arith.constant 0 : i32
    %c0_i32_0 = arith.constant 0 : i32
    %c0_i32_1 = arith.constant 0 : i32
    return %c0_i32, %c0_i32_0 : i32, i32
  }
  func.func @transform_3(%arg0: i32, %arg1: i32) -> (i32, i32, i32, i32) {
    %c0_i32 = arith.constant 0 : i32
    %c0_i32_0 = arith.constant 0 : i32
    %c0_i32_1 = arith.constant 0 : i32
    return %arg0, %arg1, %c0_i32, %c0_i32_0 : i32, i32, i32, i32
  }
}

module attributes {stable_mosaic.version = 11 : i64} {
  func.func @_conv3x3s2_bias_relu_kernel(%arg0: i32, %arg1: i32, %arg2: memref<1x17x17x512xbf16, #tpu.memory_space<vmem>>, %arg3: memref<1152x128xbf16, #tpu.memory_space<vmem>>, %arg4: memref<1x128xf32, #tpu.memory_space<vmem>>, %arg5: memref<1x16x16x128xbf16, #tpu.memory_space<vmem>>) attributes {dimension_semantics = [#tpu.dimension_semantics<parallel>, #tpu.dimension_semantics<parallel>], iteration_bounds = array<i64: 2, 1>, scalar_prefetch = 0 : i64, scratch_operands = 0 : i64, tpu.core_type = #tpu.core_type<tc>, window_params = [{transform_indices = @transform_0, window_bounds = array<i64: 1, 17, 17, 512>}, {pipeline_mode = #tpu.pipeline_mode<synchronous>, transform_indices = @transform_1, window_bounds = array<i64: 1152, 128>}, {pipeline_mode = #tpu.pipeline_mode<synchronous>, transform_indices = @transform_2, window_bounds = array<i64: 1, 128>}, {transform_indices = @transform_3, window_bounds = array<i64: 1, 16, 16, 128>}]} {
    %c16_i32 = arith.constant 16 : i32
    %0 = arith.muli %arg1, %c16_i32 : i32
    %c0_i32 = arith.constant 0 : i32
    %1 = arith.addi %0, %c0_i32 : i32
    %c0 = arith.constant 0 : index
    %2 = arith.index_cast %1 : i32 to index
    %c0_0 = arith.constant 0 : index
    %c0_1 = arith.constant 0 : index
    %3 = vector.load %arg2[%c0, %2, %c0_0, %c0_1] : memref<1x17x17x512xbf16, #tpu.memory_space<vmem>>, vector<1x16x16x128xbf16>
    %4 = vector.shape_cast %3 : vector<1x16x16x128xbf16> to vector<16x16x128xbf16>
    %c0_i32_2 = arith.constant 0 : i32
    %5 = arith.addi %0, %c0_i32_2 : i32
    %c0_3 = arith.constant 0 : index
    %6 = arith.index_cast %5 : i32 to index
    %c0_4 = arith.constant 0 : index
    %c128 = arith.constant 128 : index
    %7 = vector.load %arg2[%c0_3, %6, %c0_4, %c128] : memref<1x17x17x512xbf16, #tpu.memory_space<vmem>>, vector<1x16x16x128xbf16>
    %8 = vector.shape_cast %7 : vector<1x16x16x128xbf16> to vector<16x16x128xbf16>
    %c0_i32_5 = arith.constant 0 : i32
    %9 = arith.addi %0, %c0_i32_5 : i32
    %c0_6 = arith.constant 0 : index
    %10 = arith.index_cast %9 : i32 to index
    %c1 = arith.constant 1 : index
    %c0_7 = arith.constant 0 : index
    %11 = vector.load %arg2[%c0_6, %10, %c1, %c0_7] : memref<1x17x17x512xbf16, #tpu.memory_space<vmem>>, vector<1x16x16x128xbf16>
    %12 = vector.shape_cast %11 : vector<1x16x16x128xbf16> to vector<16x16x128xbf16>
    %c0_i32_8 = arith.constant 0 : i32
    %13 = arith.addi %0, %c0_i32_8 : i32
    %c0_9 = arith.constant 0 : index
    %14 = arith.index_cast %13 : i32 to index
    %c0_10 = arith.constant 0 : index
    %c256 = arith.constant 256 : index
    %15 = vector.load %arg2[%c0_9, %14, %c0_10, %c256] : memref<1x17x17x512xbf16, #tpu.memory_space<vmem>>, vector<1x16x16x128xbf16>
    %16 = vector.shape_cast %15 : vector<1x16x16x128xbf16> to vector<16x16x128xbf16>
    %c0_i32_11 = arith.constant 0 : i32
    %17 = arith.addi %0, %c0_i32_11 : i32
    %c0_12 = arith.constant 0 : index
    %18 = arith.index_cast %17 : i32 to index
    %c0_13 = arith.constant 0 : index
    %c384 = arith.constant 384 : index
    %19 = vector.load %arg2[%c0_12, %18, %c0_13, %c384] : memref<1x17x17x512xbf16, #tpu.memory_space<vmem>>, vector<1x16x16x128xbf16>
    %20 = vector.shape_cast %19 : vector<1x16x16x128xbf16> to vector<16x16x128xbf16>
    %c0_i32_14 = arith.constant 0 : i32
    %21 = arith.addi %0, %c0_i32_14 : i32
    %c0_15 = arith.constant 0 : index
    %22 = arith.index_cast %21 : i32 to index
    %c1_16 = arith.constant 1 : index
    %c256_17 = arith.constant 256 : index
    %23 = vector.load %arg2[%c0_15, %22, %c1_16, %c256_17] : memref<1x17x17x512xbf16, #tpu.memory_space<vmem>>, vector<1x16x16x128xbf16>
    %24 = vector.shape_cast %23 : vector<1x16x16x128xbf16> to vector<16x16x128xbf16>
    %c1_i32 = arith.constant 1 : i32
    %25 = arith.addi %0, %c1_i32 : i32
    %c0_18 = arith.constant 0 : index
    %26 = arith.index_cast %25 : i32 to index
    %c0_19 = arith.constant 0 : index
    %c0_20 = arith.constant 0 : index
    %27 = vector.load %arg2[%c0_18, %26, %c0_19, %c0_20] : memref<1x17x17x512xbf16, #tpu.memory_space<vmem>>, vector<1x16x16x128xbf16>
    %28 = vector.shape_cast %27 : vector<1x16x16x128xbf16> to vector<16x16x128xbf16>
    %c1_i32_21 = arith.constant 1 : i32
    %29 = arith.addi %0, %c1_i32_21 : i32
    %c0_22 = arith.constant 0 : index
    %30 = arith.index_cast %29 : i32 to index
    %c0_23 = arith.constant 0 : index
    %c128_24 = arith.constant 128 : index
    %31 = vector.load %arg2[%c0_22, %30, %c0_23, %c128_24] : memref<1x17x17x512xbf16, #tpu.memory_space<vmem>>, vector<1x16x16x128xbf16>
    %32 = vector.shape_cast %31 : vector<1x16x16x128xbf16> to vector<16x16x128xbf16>
    %c1_i32_25 = arith.constant 1 : i32
    %33 = arith.addi %0, %c1_i32_25 : i32
    %c0_26 = arith.constant 0 : index
    %34 = arith.index_cast %33 : i32 to index
    %c1_27 = arith.constant 1 : index
    %c0_28 = arith.constant 0 : index
    %35 = vector.load %arg2[%c0_26, %34, %c1_27, %c0_28] : memref<1x17x17x512xbf16, #tpu.memory_space<vmem>>, vector<1x16x16x128xbf16>
    %36 = vector.shape_cast %35 : vector<1x16x16x128xbf16> to vector<16x16x128xbf16>
    %37 = tpu.concatenate %4, %8, %12, %16, %20, %24, %28, %32, %36 in 2 : vector<16x16x128xbf16>, vector<16x16x128xbf16>, vector<16x16x128xbf16>, vector<16x16x128xbf16>, vector<16x16x128xbf16>, vector<16x16x128xbf16>, vector<16x16x128xbf16>, vector<16x16x128xbf16>, vector<16x16x128xbf16> -> vector<16x16x1152xbf16>
    %38 = vector.shape_cast %37 : vector<16x16x1152xbf16> to vector<256x1152xbf16>
    %c0_29 = arith.constant 0 : index
    %c0_30 = arith.constant 0 : index
    %39 = vector.load %arg3[%c0_29, %c0_30] : memref<1152x128xbf16, #tpu.memory_space<vmem>>, vector<1152x128xbf16>
    %cst = arith.constant dense<0.000000e+00> : vector<256x128xf32>
    %40 = tpu.matmul %38, %39, %cst {dimension_numbers = #tpu.dot_dimension_numbers<[1], [0], [0], [1], [0, 0, 1, 1], [], []>} : vector<256x1152xbf16>, vector<1152x128xbf16>, vector<256x128xf32> -> vector<256x128xf32>
    %c0_31 = arith.constant 0 : index
    %c0_32 = arith.constant 0 : index
    %41 = vector.load %arg4[%c0_31, %c0_32] : memref<1x128xf32, #tpu.memory_space<vmem>>, vector<1x128xf32>
    %42 = vector.broadcast %41 : vector<1x128xf32> to vector<256x128xf32>
    %43 = arith.addf %40, %42 : vector<256x128xf32>
    %cst_33 = arith.constant 0.000000e+00 : f32
    %44 = vector.broadcast %cst_33 : f32 to vector<256x128xf32>
    %45 = arith.maximumf %43, %44 : vector<256x128xf32>
    %46 = vector.shape_cast %45 : vector<256x128xf32> to vector<1x16x16x128xf32>
    %47 = arith.truncf %46 : vector<1x16x16x128xf32> to vector<1x16x16x128xbf16>
    %c0_34 = arith.constant 0 : index
    %c0_35 = arith.constant 0 : index
    %c0_36 = arith.constant 0 : index
    %c0_37 = arith.constant 0 : index
    %48 = vector.load %arg5[%c0_34, %c0_35, %c0_36, %c0_37] : memref<1x16x16x128xbf16, #tpu.memory_space<vmem>>, vector<1x16x16x128xbf16>
    tpu.vector_store %arg5[%c0_34, %c0_35, %c0_36, %c0_37], %47 {strides = array<i32>} : memref<1x16x16x128xbf16, #tpu.memory_space<vmem>>, vector<1x16x16x128xbf16>,
    return
  }
  func.func @transform_0(%arg0: i32, %arg1: i32) -> (i32, i32, i32, i32) {
    %c0_i32 = arith.constant 0 : i32
    %c0_i32_0 = arith.constant 0 : i32
    %c0_i32_1 = arith.constant 0 : i32
    %c0_i32_2 = arith.constant 0 : i32
    return %arg0, %c0_i32, %c0_i32_0, %c0_i32_1 : i32, i32, i32, i32
  }
  func.func @transform_1(%arg0: i32, %arg1: i32) -> (i32, i32) {
    %c0_i32 = arith.constant 0 : i32
    %c0_i32_0 = arith.constant 0 : i32
    %c0_i32_1 = arith.constant 0 : i32
    return %c0_i32, %c0_i32_0 : i32, i32
  }
  func.func @transform_2(%arg0: i32, %arg1: i32) -> (i32, i32) {
    %c0_i32 = arith.constant 0 : i32
    %c0_i32_0 = arith.constant 0 : i32
    %c0_i32_1 = arith.constant 0 : i32
    return %c0_i32, %c0_i32_0 : i32, i32
  }
  func.func @transform_3(%arg0: i32, %arg1: i32) -> (i32, i32, i32, i32) {
    %c0_i32 = arith.constant 0 : i32
    %c0_i32_0 = arith.constant 0 : i32
    %c0_i32_1 = arith.constant 0 : i32
    return %arg0, %arg1, %c0_i32, %c0_i32_0 : i32, i32, i32, i32
  }
}

module attributes {stable_mosaic.version = 11 : i64} {
  func.func @_conv3x3s2_bias_relu_kernel(%arg0: i32, %arg1: i32, %arg2: memref<1x9x9x512xbf16, #tpu.memory_space<vmem>>, %arg3: memref<1152x128xbf16, #tpu.memory_space<vmem>>, %arg4: memref<1x128xf32, #tpu.memory_space<vmem>>, %arg5: memref<1x8x8x128xbf16, #tpu.memory_space<vmem>>) attributes {dimension_semantics = [#tpu.dimension_semantics<parallel>, #tpu.dimension_semantics<parallel>], iteration_bounds = array<i64: 2, 1>, scalar_prefetch = 0 : i64, scratch_operands = 0 : i64, tpu.core_type = #tpu.core_type<tc>, window_params = [{transform_indices = @transform_0, window_bounds = array<i64: 1, 9, 9, 512>}, {pipeline_mode = #tpu.pipeline_mode<synchronous>, transform_indices = @transform_1, window_bounds = array<i64: 1152, 128>}, {pipeline_mode = #tpu.pipeline_mode<synchronous>, transform_indices = @transform_2, window_bounds = array<i64: 1, 128>}, {transform_indices = @transform_3, window_bounds = array<i64: 1, 8, 8, 128>}]} {
    %c8_i32 = arith.constant 8 : i32
    %0 = arith.muli %arg1, %c8_i32 : i32
    %c0_i32 = arith.constant 0 : i32
    %1 = arith.addi %0, %c0_i32 : i32
    %c0 = arith.constant 0 : index
    %2 = arith.index_cast %1 : i32 to index
    %c0_0 = arith.constant 0 : index
    %c0_1 = arith.constant 0 : index
    %3 = vector.load %arg2[%c0, %2, %c0_0, %c0_1] : memref<1x9x9x512xbf16, #tpu.memory_space<vmem>>, vector<1x8x8x128xbf16>
    %4 = vector.shape_cast %3 : vector<1x8x8x128xbf16> to vector<8x8x128xbf16>
    %c0_i32_2 = arith.constant 0 : i32
    %5 = arith.addi %0, %c0_i32_2 : i32
    %c0_3 = arith.constant 0 : index
    %6 = arith.index_cast %5 : i32 to index
    %c0_4 = arith.constant 0 : index
    %c128 = arith.constant 128 : index
    %7 = vector.load %arg2[%c0_3, %6, %c0_4, %c128] : memref<1x9x9x512xbf16, #tpu.memory_space<vmem>>, vector<1x8x8x128xbf16>
    %8 = vector.shape_cast %7 : vector<1x8x8x128xbf16> to vector<8x8x128xbf16>
    %c0_i32_5 = arith.constant 0 : i32
    %9 = arith.addi %0, %c0_i32_5 : i32
    %c0_6 = arith.constant 0 : index
    %10 = arith.index_cast %9 : i32 to index
    %c1 = arith.constant 1 : index
    %c0_7 = arith.constant 0 : index
    %11 = vector.load %arg2[%c0_6, %10, %c1, %c0_7] : memref<1x9x9x512xbf16, #tpu.memory_space<vmem>>, vector<1x8x8x128xbf16>
    %12 = vector.shape_cast %11 : vector<1x8x8x128xbf16> to vector<8x8x128xbf16>
    %c0_i32_8 = arith.constant 0 : i32
    %13 = arith.addi %0, %c0_i32_8 : i32
    %c0_9 = arith.constant 0 : index
    %14 = arith.index_cast %13 : i32 to index
    %c0_10 = arith.constant 0 : index
    %c256 = arith.constant 256 : index
    %15 = vector.load %arg2[%c0_9, %14, %c0_10, %c256] : memref<1x9x9x512xbf16, #tpu.memory_space<vmem>>, vector<1x8x8x128xbf16>
    %16 = vector.shape_cast %15 : vector<1x8x8x128xbf16> to vector<8x8x128xbf16>
    %c0_i32_11 = arith.constant 0 : i32
    %17 = arith.addi %0, %c0_i32_11 : i32
    %c0_12 = arith.constant 0 : index
    %18 = arith.index_cast %17 : i32 to index
    %c0_13 = arith.constant 0 : index
    %c384 = arith.constant 384 : index
    %19 = vector.load %arg2[%c0_12, %18, %c0_13, %c384] : memref<1x9x9x512xbf16, #tpu.memory_space<vmem>>, vector<1x8x8x128xbf16>
    %20 = vector.shape_cast %19 : vector<1x8x8x128xbf16> to vector<8x8x128xbf16>
    %c0_i32_14 = arith.constant 0 : i32
    %21 = arith.addi %0, %c0_i32_14 : i32
    %c0_15 = arith.constant 0 : index
    %22 = arith.index_cast %21 : i32 to index
    %c1_16 = arith.constant 1 : index
    %c256_17 = arith.constant 256 : index
    %23 = vector.load %arg2[%c0_15, %22, %c1_16, %c256_17] : memref<1x9x9x512xbf16, #tpu.memory_space<vmem>>, vector<1x8x8x128xbf16>
    %24 = vector.shape_cast %23 : vector<1x8x8x128xbf16> to vector<8x8x128xbf16>
    %c1_i32 = arith.constant 1 : i32
    %25 = arith.addi %0, %c1_i32 : i32
    %c0_18 = arith.constant 0 : index
    %26 = arith.index_cast %25 : i32 to index
    %c0_19 = arith.constant 0 : index
    %c0_20 = arith.constant 0 : index
    %27 = vector.load %arg2[%c0_18, %26, %c0_19, %c0_20] : memref<1x9x9x512xbf16, #tpu.memory_space<vmem>>, vector<1x8x8x128xbf16>
    %28 = vector.shape_cast %27 : vector<1x8x8x128xbf16> to vector<8x8x128xbf16>
    %c1_i32_21 = arith.constant 1 : i32
    %29 = arith.addi %0, %c1_i32_21 : i32
    %c0_22 = arith.constant 0 : index
    %30 = arith.index_cast %29 : i32 to index
    %c0_23 = arith.constant 0 : index
    %c128_24 = arith.constant 128 : index
    %31 = vector.load %arg2[%c0_22, %30, %c0_23, %c128_24] : memref<1x9x9x512xbf16, #tpu.memory_space<vmem>>, vector<1x8x8x128xbf16>
    %32 = vector.shape_cast %31 : vector<1x8x8x128xbf16> to vector<8x8x128xbf16>
    %c1_i32_25 = arith.constant 1 : i32
    %33 = arith.addi %0, %c1_i32_25 : i32
    %c0_26 = arith.constant 0 : index
    %34 = arith.index_cast %33 : i32 to index
    %c1_27 = arith.constant 1 : index
    %c0_28 = arith.constant 0 : index
    %35 = vector.load %arg2[%c0_26, %34, %c1_27, %c0_28] : memref<1x9x9x512xbf16, #tpu.memory_space<vmem>>, vector<1x8x8x128xbf16>
    %36 = vector.shape_cast %35 : vector<1x8x8x128xbf16> to vector<8x8x128xbf16>
    %37 = tpu.concatenate %4, %8, %12, %16, %20, %24, %28, %32, %36 in 2 : vector<8x8x128xbf16>, vector<8x8x128xbf16>, vector<8x8x128xbf16>, vector<8x8x128xbf16>, vector<8x8x128xbf16>, vector<8x8x128xbf16>, vector<8x8x128xbf16>, vector<8x8x128xbf16>, vector<8x8x128xbf16> -> vector<8x8x1152xbf16>
    %38 = vector.shape_cast %37 : vector<8x8x1152xbf16> to vector<64x1152xbf16>
    %c0_29 = arith.constant 0 : index
    %c0_30 = arith.constant 0 : index
    %39 = vector.load %arg3[%c0_29, %c0_30] : memref<1152x128xbf16, #tpu.memory_space<vmem>>, vector<1152x128xbf16>
    %cst = arith.constant dense<0.000000e+00> : vector<64x128xf32>
    %40 = tpu.matmul %38, %39, %cst {dimension_numbers = #tpu.dot_dimension_numbers<[1], [0], [0], [1], [0, 0, 1, 1], [], []>} : vector<64x1152xbf16>, vector<1152x128xbf16>, vector<64x128xf32> -> vector<64x128xf32>
    %c0_31 = arith.constant 0 : index
    %c0_32 = arith.constant 0 : index
    %41 = vector.load %arg4[%c0_31, %c0_32] : memref<1x128xf32, #tpu.memory_space<vmem>>, vector<1x128xf32>
    %42 = vector.broadcast %41 : vector<1x128xf32> to vector<64x128xf32>
    %43 = arith.addf %40, %42 : vector<64x128xf32>
    %cst_33 = arith.constant 0.000000e+00 : f32
    %44 = vector.broadcast %cst_33 : f32 to vector<64x128xf32>
    %45 = arith.maximumf %43, %44 : vector<64x128xf32>
    %46 = vector.shape_cast %45 : vector<64x128xf32> to vector<1x8x8x128xf32>
    %47 = arith.truncf %46 : vector<1x8x8x128xf32> to vector<1x8x8x128xbf16>
    %c0_34 = arith.constant 0 : index
    %c0_35 = arith.constant 0 : index
    %c0_36 = arith.constant 0 : index
    %c0_37 = arith.constant 0 : index
    %48 = vector.load %arg5[%c0_34, %c0_35, %c0_36, %c0_37] : memref<1x8x8x128xbf16, #tpu.memory_space<vmem>>, vector<1x8x8x128xbf16>
    tpu.vector_store %arg5[%c0_34, %c0_35, %c0_36, %c0_37], %47 {strides = array<i32>} : memref<1x8x8x128xbf16, #tpu.memory_space<vmem>>, vector<1x8x8x128xbf16>,
    return
  }
  func.func @transform_0(%arg0: i32, %arg1: i32) -> (i32, i32, i32, i32) {
    %c0_i32 = arith.constant 0 : i32
    %c0_i32_0 = arith.constant 0 : i32
    %c0_i32_1 = arith.constant 0 : i32
    %c0_i32_2 = arith.constant 0 : i32
    return %arg0, %c0_i32, %c0_i32_0, %c0_i32_1 : i32, i32, i32, i32
  }
  func.func @transform_1(%arg0: i32, %arg1: i32) -> (i32, i32) {
    %c0_i32 = arith.constant 0 : i32
    %c0_i32_0 = arith.constant 0 : i32
    %c0_i32_1 = arith.constant 0 : i32
    return %c0_i32, %c0_i32_0 : i32, i32
  }
  func.func @transform_2(%arg0: i32, %arg1: i32) -> (i32, i32) {
    %c0_i32 = arith.constant 0 : i32
    %c0_i32_0 = arith.constant 0 : i32
    %c0_i32_1 = arith.constant 0 : i32
    return %c0_i32, %c0_i32_0 : i32, i32
  }
  func.func @transform_3(%arg0: i32, %arg1: i32) -> (i32, i32, i32, i32) {
    %c0_i32 = arith.constant 0 : i32
    %c0_i32_0 = arith.constant 0 : i32
    %c0_i32_1 = arith.constant 0 : i32
    return %arg0, %arg1, %c0_i32, %c0_i32_0 : i32, i32, i32, i32
  }
}

module attributes {stable_mosaic.version = 11 : i64} {
  func.func @_conv3x3s2_bias_relu_kernel(%arg0: i32, %arg1: i32, %arg2: memref<1x5x5x512xbf16, #tpu.memory_space<vmem>>, %arg3: memref<1152x128xbf16, #tpu.memory_space<vmem>>, %arg4: memref<1x128xf32, #tpu.memory_space<vmem>>, %arg5: memref<1x4x4x128xbf16, #tpu.memory_space<vmem>>) attributes {dimension_semantics = [#tpu.dimension_semantics<parallel>, #tpu.dimension_semantics<parallel>], iteration_bounds = array<i64: 2, 1>, scalar_prefetch = 0 : i64, scratch_operands = 0 : i64, tpu.core_type = #tpu.core_type<tc>, window_params = [{transform_indices = @transform_0, window_bounds = array<i64: 1, 5, 5, 512>}, {pipeline_mode = #tpu.pipeline_mode<synchronous>, transform_indices = @transform_1, window_bounds = array<i64: 1152, 128>}, {pipeline_mode = #tpu.pipeline_mode<synchronous>, transform_indices = @transform_2, window_bounds = array<i64: 1, 128>}, {transform_indices = @transform_3, window_bounds = array<i64: 1, 4, 4, 128>}]} {
    %c4_i32 = arith.constant 4 : i32
    %0 = arith.muli %arg1, %c4_i32 : i32
    %c0_i32 = arith.constant 0 : i32
    %1 = arith.addi %0, %c0_i32 : i32
    %c0 = arith.constant 0 : index
    %2 = arith.index_cast %1 : i32 to index
    %c0_0 = arith.constant 0 : index
    %c0_1 = arith.constant 0 : index
    %3 = vector.load %arg2[%c0, %2, %c0_0, %c0_1] : memref<1x5x5x512xbf16, #tpu.memory_space<vmem>>, vector<1x4x4x128xbf16>
    %4 = vector.shape_cast %3 : vector<1x4x4x128xbf16> to vector<4x4x128xbf16>
    %c0_i32_2 = arith.constant 0 : i32
    %5 = arith.addi %0, %c0_i32_2 : i32
    %c0_3 = arith.constant 0 : index
    %6 = arith.index_cast %5 : i32 to index
    %c0_4 = arith.constant 0 : index
    %c128 = arith.constant 128 : index
    %7 = vector.load %arg2[%c0_3, %6, %c0_4, %c128] : memref<1x5x5x512xbf16, #tpu.memory_space<vmem>>, vector<1x4x4x128xbf16>
    %8 = vector.shape_cast %7 : vector<1x4x4x128xbf16> to vector<4x4x128xbf16>
    %c0_i32_5 = arith.constant 0 : i32
    %9 = arith.addi %0, %c0_i32_5 : i32
    %c0_6 = arith.constant 0 : index
    %10 = arith.index_cast %9 : i32 to index
    %c1 = arith.constant 1 : index
    %c0_7 = arith.constant 0 : index
    %11 = vector.load %arg2[%c0_6, %10, %c1, %c0_7] : memref<1x5x5x512xbf16, #tpu.memory_space<vmem>>, vector<1x4x4x128xbf16>
    %12 = vector.shape_cast %11 : vector<1x4x4x128xbf16> to vector<4x4x128xbf16>
    %c0_i32_8 = arith.constant 0 : i32
    %13 = arith.addi %0, %c0_i32_8 : i32
    %c0_9 = arith.constant 0 : index
    %14 = arith.index_cast %13 : i32 to index
    %c0_10 = arith.constant 0 : index
    %c256 = arith.constant 256 : index
    %15 = vector.load %arg2[%c0_9, %14, %c0_10, %c256] : memref<1x5x5x512xbf16, #tpu.memory_space<vmem>>, vector<1x4x4x128xbf16>
    %16 = vector.shape_cast %15 : vector<1x4x4x128xbf16> to vector<4x4x128xbf16>
    %c0_i32_11 = arith.constant 0 : i32
    %17 = arith.addi %0, %c0_i32_11 : i32
    %c0_12 = arith.constant 0 : index
    %18 = arith.index_cast %17 : i32 to index
    %c0_13 = arith.constant 0 : index
    %c384 = arith.constant 384 : index
    %19 = vector.load %arg2[%c0_12, %18, %c0_13, %c384] : memref<1x5x5x512xbf16, #tpu.memory_space<vmem>>, vector<1x4x4x128xbf16>
    %20 = vector.shape_cast %19 : vector<1x4x4x128xbf16> to vector<4x4x128xbf16>
    %c0_i32_14 = arith.constant 0 : i32
    %21 = arith.addi %0, %c0_i32_14 : i32
    %c0_15 = arith.constant 0 : index
    %22 = arith.index_cast %21 : i32 to index
    %c1_16 = arith.constant 1 : index
    %c256_17 = arith.constant 256 : index
    %23 = vector.load %arg2[%c0_15, %22, %c1_16, %c256_17] : memref<1x5x5x512xbf16, #tpu.memory_space<vmem>>, vector<1x4x4x128xbf16>
    %24 = vector.shape_cast %23 : vector<1x4x4x128xbf16> to vector<4x4x128xbf16>
    %c1_i32 = arith.constant 1 : i32
    %25 = arith.addi %0, %c1_i32 : i32
    %c0_18 = arith.constant 0 : index
    %26 = arith.index_cast %25 : i32 to index
    %c0_19 = arith.constant 0 : index
    %c0_20 = arith.constant 0 : index
    %27 = vector.load %arg2[%c0_18, %26, %c0_19, %c0_20] : memref<1x5x5x512xbf16, #tpu.memory_space<vmem>>, vector<1x4x4x128xbf16>
    %28 = vector.shape_cast %27 : vector<1x4x4x128xbf16> to vector<4x4x128xbf16>
    %c1_i32_21 = arith.constant 1 : i32
    %29 = arith.addi %0, %c1_i32_21 : i32
    %c0_22 = arith.constant 0 : index
    %30 = arith.index_cast %29 : i32 to index
    %c0_23 = arith.constant 0 : index
    %c128_24 = arith.constant 128 : index
    %31 = vector.load %arg2[%c0_22, %30, %c0_23, %c128_24] : memref<1x5x5x512xbf16, #tpu.memory_space<vmem>>, vector<1x4x4x128xbf16>
    %32 = vector.shape_cast %31 : vector<1x4x4x128xbf16> to vector<4x4x128xbf16>
    %c1_i32_25 = arith.constant 1 : i32
    %33 = arith.addi %0, %c1_i32_25 : i32
    %c0_26 = arith.constant 0 : index
    %34 = arith.index_cast %33 : i32 to index
    %c1_27 = arith.constant 1 : index
    %c0_28 = arith.constant 0 : index
    %35 = vector.load %arg2[%c0_26, %34, %c1_27, %c0_28] : memref<1x5x5x512xbf16, #tpu.memory_space<vmem>>, vector<1x4x4x128xbf16>
    %36 = vector.shape_cast %35 : vector<1x4x4x128xbf16> to vector<4x4x128xbf16>
    %37 = tpu.concatenate %4, %8, %12, %16, %20, %24, %28, %32, %36 in 2 : vector<4x4x128xbf16>, vector<4x4x128xbf16>, vector<4x4x128xbf16>, vector<4x4x128xbf16>, vector<4x4x128xbf16>, vector<4x4x128xbf16>, vector<4x4x128xbf16>, vector<4x4x128xbf16>, vector<4x4x128xbf16> -> vector<4x4x1152xbf16>
    %38 = vector.shape_cast %37 : vector<4x4x1152xbf16> to vector<16x1152xbf16>
    %c0_29 = arith.constant 0 : index
    %c0_30 = arith.constant 0 : index
    %39 = vector.load %arg3[%c0_29, %c0_30] : memref<1152x128xbf16, #tpu.memory_space<vmem>>, vector<1152x128xbf16>
    %cst = arith.constant dense<0.000000e+00> : vector<16x128xf32>
    %40 = tpu.matmul %38, %39, %cst {dimension_numbers = #tpu.dot_dimension_numbers<[1], [0], [0], [1], [0, 0, 1, 1], [], []>} : vector<16x1152xbf16>, vector<1152x128xbf16>, vector<16x128xf32> -> vector<16x128xf32>
    %c0_31 = arith.constant 0 : index
    %c0_32 = arith.constant 0 : index
    %41 = vector.load %arg4[%c0_31, %c0_32] : memref<1x128xf32, #tpu.memory_space<vmem>>, vector<1x128xf32>
    %42 = vector.broadcast %41 : vector<1x128xf32> to vector<16x128xf32>
    %43 = arith.addf %40, %42 : vector<16x128xf32>
    %cst_33 = arith.constant 0.000000e+00 : f32
    %44 = vector.broadcast %cst_33 : f32 to vector<16x128xf32>
    %45 = arith.maximumf %43, %44 : vector<16x128xf32>
    %46 = vector.shape_cast %45 : vector<16x128xf32> to vector<1x4x4x128xf32>
    %47 = arith.truncf %46 : vector<1x4x4x128xf32> to vector<1x4x4x128xbf16>
    %c0_34 = arith.constant 0 : index
    %c0_35 = arith.constant 0 : index
    %c0_36 = arith.constant 0 : index
    %c0_37 = arith.constant 0 : index
    %48 = vector.load %arg5[%c0_34, %c0_35, %c0_36, %c0_37] : memref<1x4x4x128xbf16, #tpu.memory_space<vmem>>, vector<1x4x4x128xbf16>
    tpu.vector_store %arg5[%c0_34, %c0_35, %c0_36, %c0_37], %47 {strides = array<i32>} : memref<1x4x4x128xbf16, #tpu.memory_space<vmem>>, vector<1x4x4x128xbf16>,
    return
  }
  func.func @transform_0(%arg0: i32, %arg1: i32) -> (i32, i32, i32, i32) {
    %c0_i32 = arith.constant 0 : i32
    %c0_i32_0 = arith.constant 0 : i32
    %c0_i32_1 = arith.constant 0 : i32
    %c0_i32_2 = arith.constant 0 : i32
    return %arg0, %c0_i32, %c0_i32_0, %c0_i32_1 : i32, i32, i32, i32
  }
  func.func @transform_1(%arg0: i32, %arg1: i32) -> (i32, i32) {
    %c0_i32 = arith.constant 0 : i32
    %c0_i32_0 = arith.constant 0 : i32
    %c0_i32_1 = arith.constant 0 : i32
    return %c0_i32, %c0_i32_0 : i32, i32
  }
  func.func @transform_2(%arg0: i32, %arg1: i32) -> (i32, i32) {
    %c0_i32 = arith.constant 0 : i32
    %c0_i32_0 = arith.constant 0 : i32
    %c0_i32_1 = arith.constant 0 : i32
    return %c0_i32, %c0_i32_0 : i32, i32
  }
  func.func @transform_3(%arg0: i32, %arg1: i32) -> (i32, i32, i32, i32) {
    %c0_i32 = arith.constant 0 : i32
    %c0_i32_0 = arith.constant 0 : i32
    %c0_i32_1 = arith.constant 0 : i32
    return %arg0, %arg1, %c0_i32, %c0_i32_0 : i32, i32, i32, i32
  }
}

</mosaic_0001>

<llo_original>
// kernel: forward.4
$region0: #{forward.4}
  #allocation0 [shape = 'u32[]', space=smem, size = 0x4, offset = 0x4, fixed_abs, tag = 'smem constant byte address 0x4 - core index']
  #allocation1 [shape = 'u32[144,128]{1,0:T(1,128)}', space=vmem, size = 0x12000, scoped, tag = 'internal scratch']
  %s0 = inlined_call_operand.vmem [shape: bf16[2,33,33,12], index: 0, kind: input, shape index: {}]
  %s1 = inlined_call_operand.vmem [shape: bf16[27,128], index: 1, kind: input, shape index: {}]
  %s2 = inlined_call_operand.vmem [shape: f32[1,128], index: 2, kind: input, shape index: {}]
  %s3 = inlined_call_operand.vmem [shape: bf16[2,32,32,128], index: 3, kind: output, shape index: {}]
  %s4 = sld [smem:[#allocation0]]
  $region45: #{forward.4} parent=0
    _
  %s6 = ssub.s32 1, %s4
  %s7 = scalar_select 0, %s6, %s4
  loop: start=0, step=1, limit=6
  $region2: #{forward.4} parent=0 // loop_pre_header
    _
  $region3: #{forward.4} parent=0 // loop_header
    %s9 = sphi 0, %s13
    %p10 = scmp.ge.s32.totalorder %s9, 6
    %s16 = sphi 0, %s28
    %s17 = sphi 0, %s24
    %s18 = sphi 0, %s16
    %s19 = sphi 0, %s17
    %s20 = sphi 0, %s18
    %s21 = sphi 0, %s19
    %s31 = sphi 0, %s33
    %s34 = sphi 0, %s31
    %s35 = sphi 0, %s34
    %s51 = sphi 0, %s35
    %s55 = sphi 0, %s55
    %s57 = sphi 0, %s55
    %s58 = sphi 0, %s57
    %s72 = sphi 0, %s58
    %s76 = sphi 0, %s76
    %s78 = sphi 0, %s76
    %s79 = sphi 0, %s78
    %s93 = sphi 0, %s79
    %s101 = sphi 0, %s103
    %s104 = sphi 0, %s101
    %s105 = sphi 0, %s104
    %s121 = sphi 0, %s105
  $region4: #{forward.4} parent=0 // loop_header_branch
    %12 = sbr.rel (%p10) target = $region8
  $region5: #{forward.4} parent=0 // loop_body
    %s14 = ssub.s32 %s9, 1
    %s15 = ssub.s32 %s9, 2
    %s22 = sadd.s32 1, %s17
    %p23 = scmp.ge.s32.totalorder %s22, 2
    %s24 = scalar_select %p23, 0, %s22
    %s25 = sadd.s32 1, %s16
    %s26 = scalar_select %p23, %s25, %s16
    %p27 = scmp.ge.s32.totalorder %s26, 2
    %s28 = scalar_select %p27, 0, %s26
    %s29 = ssub.s32 %s16, %s28
    %p30 = scmp.eq.s32.totalorder %s29, 0
    %s32 = sadd.s32 %s31, 1
    %s33 = scalar_select %p30, %s31, %s32
    %p36 = pneg %p30
    %p37 = scmp.eq.s32.totalorder %s9, 3
    %p38 = por %p36, %p37
    %p39 = scmp.ne.s32.totalorder %s31, %s34
    %p40 = scmp.eq.s32.totalorder %s9, 0
    %p41 = por %p39, %p40
    %p42 = scmp.ne.s32.totalorder %s31, %s34
    %p43 = scmp.eq.s32.totalorder %s14, 3
    %p44 = por %p42, %p43
    %p45 = scmp.ne.s32.totalorder %s34, %s35
    %p46 = scmp.eq.s32.totalorder %s14, 0
    %p47 = por %p45, %p46
    %p48 = scmp.ne.s32.totalorder %s34, %s35
    %p49 = scmp.eq.s32.totalorder %s15, 3
    %p50 = por %p48, %p49
    %p52 = scmp.ne.s32.totalorder %s35, %s51
    %p53 = scmp.eq.s32.totalorder %s15, 0
    %p54 = por %p52, %p53
    %s56 = sadd.s32 %s55, 1
    %p59 = scmp.eq.s32.totalorder %s9, 3
    %p60 = scmp.ne.s32.totalorder %s55, %s57
    %p61 = scmp.eq.s32.totalorder %s9, 0
    %p62 = por %p60, %p61
    %p63 = scmp.ne.s32.totalorder %s55, %s57
    %p64 = scmp.eq.s32.totalorder %s14, 3
    %p65 = por %p63, %p64
    %p66 = scmp.ne.s32.totalorder %s57, %s58
    %p67 = scmp.eq.s32.totalorder %s14, 0
    %p68 = por %p66, %p67
    %p69 = scmp.ne.s32.totalorder %s57, %s58
    %p70 = scmp.eq.s32.totalorder %s15, 3
    %p71 = por %p69, %p70
    %p73 = scmp.ne.s32.totalorder %s58, %s72
    %p74 = scmp.eq.s32.totalorder %s15, 0
    %p75 = por %p73, %p74
    %s77 = sadd.s32 %s76, 1
    %p80 = scmp.eq.s32.totalorder %s9, 3
    %p81 = scmp.ne.s32.totalorder %s76, %s78
    %p82 = scmp.eq.s32.totalorder %s9, 0
    %p83 = por %p81, %p82
    %p84 = scmp.ne.s32.totalorder %s76, %s78
    %p85 = scmp.eq.s32.totalorder %s14, 3
    %p86 = por %p84, %p85
    %p87 = scmp.ne.s32.totalorder %s78, %s79
    %p88 = scmp.eq.s32.totalorder %s14, 0
    %p89 = por %p87, %p88
    %p90 = scmp.ne.s32.totalorder %s78, %s79
    %p91 = scmp.eq.s32.totalorder %s15, 3
    %p92 = por %p90, %p91
    %p94 = scmp.ne.s32.totalorder %s79, %s93
    %p95 = scmp.eq.s32.totalorder %s15, 0
    %p96 = por %p94, %p95
    %s97 = ssub.s32 %s16, %s28
    %s98 = ssub.s32 %s17, %s24
    %s99 = sor.u32 %s97, %s98
    %p100 = scmp.eq.s32.totalorder %s99, 0
    %s102 = sadd.s32 %s101, 1
    %s103 = scalar_select %p100, %s101, %s102
    %p106 = pneg %p100
    %p107 = scmp.eq.s32.totalorder %s9, 3
    %p108 = por %p106, %p107
    %p109 = scmp.ne.s32.totalorder %s101, %s104
    %p110 = scmp.eq.s32.totalorder %s9, 0
    %p111 = por %p109, %p110
    %p112 = scmp.ne.s32.totalorder %s101, %s104
    %p113 = scmp.eq.s32.totalorder %s14, 3
    %p114 = por %p112, %p113
    %p115 = scmp.ne.s32.totalorder %s104, %s105
    %p116 = scmp.eq.s32.totalorder %s14, 0
    %p117 = por %p115, %p116
    %p118 = scmp.ne.s32.totalorder %s104, %s105
    %p119 = scmp.eq.s32.totalorder %s15, 3
    %p120 = por %p118, %p119
    %p122 = scmp.ne.s32.totalorder %s105, %s121
    %p123 = scmp.eq.s32.totalorder %s15, 0
    %p124 = por %p122, %p123
    %p125 = scmp.le.s32.totalorder 1, %s9
    %p126 = scmp.lt.s32.totalorder %s9, 5
    %p127 = pnand %p125, %p126
    %p128 = pneg %p127
    // Predicated region
    $region9: #{forward.4} parent=5 // pred_check
      _
    $region10: #{forward.4} parent=5 // pred_check_branch
      %130 = sbr.rel (%p127) target = $region12
    $region11: #{forward.4} parent=5 // pred_region
      %s131 = ssub.s32 %s9, 1
      // Predicated region
      $region13: #{forward.4} parent=11 // pred_check
        %p132 = pneg %p68
      $region14: #{forward.4} parent=11 // pred_check_branch
        %134 = sbr.rel (%p132) target = $region16
      $region15: #{forward.4} parent=11 // pred_region
        _
      $region16: #{forward.4} parent=11 // pred_fallthru
        _
      // Predicated region
      $region17: #{forward.4} parent=11 // pred_check
        %p135 = pneg %p89
      $region18: #{forward.4} parent=11 // pred_check_branch
        %137 = sbr.rel (%p135) target = $region20
      $region19: #{forward.4} parent=11 // pred_region
        _
      $region20: #{forward.4} parent=11 // pred_fallthru
        _
    $region12: #{forward.4} parent=5 // pred_fallthru
      _
    %p138 = scmp.lt.s32.totalorder %s9, 4
    // Predicated region
    $region21: #{forward.4} parent=5 // pred_check
      %p139 = pneg %p138
    $region22: #{forward.4} parent=5 // pred_check_branch
      %141 = sbr.rel (%p139) target = $region24
    $region23: #{forward.4} parent=5 // pred_region
      // Predicated region
      $region25: #{forward.4} parent=23 // pred_check
        %p142 = pneg %p41
      $region26: #{forward.4} parent=23 // pred_check_branch
        %144 = sbr.rel (%p142) target = $region28
      $region27: #{forward.4} parent=23 // pred_region
        %p145 = scmp.lt.s32.totalorder %s16, 1
        %s146 = scalar_select %p145, %s16, 1
        %s147 = smul.addr %s146, 165
        %s148 = smul.addr %s147, 4
        %s149 = scalar_lea.vmem %s0, %s148
      $region28: #{forward.4} parent=23 // pred_fallthru
        _
    $region24: #{forward.4} parent=5 // pred_fallthru
      _
    %p150 = scmp.le.s32.totalorder 1, %s9
    %p151 = scmp.lt.s32.totalorder %s9, 5
    %p152 = pnand %p150, %p151
    %p153 = pneg %p152
    // Predicated region
    $region29: #{forward.4} parent=5 // pred_check
      _
    $region30: #{forward.4} parent=5 // pred_check_branch
      %155 = sbr.rel (%p152) target = $region32
    $region31: #{forward.4} parent=5 // pred_region
      %s156 = ssub.s32 %s9, 1
      %p157 = scmp.lt.s32.totalorder %s18, 1
      %s158 = scalar_select %p157, %s18, 1
      %s159 = smul.addr %s158, 165
      %s160 = smul.addr %s159, 4
      %s161 = scalar_lea.vmem %s0, %s160
      %p162 = pneg %p47
      %p163 = pneg %p44
      %p164 = pneg %p68
      %p165 = pneg %p65
      %p166 = pneg %p89
      %p167 = pneg %p86
      %p168 = pneg %p117
      %p169 = pneg %p114
      %s170 = smul.u32 16, %s19
      %p171 = scmp.lt.s32.totalorder %s18, 1
      %s172 = scalar_select %p171, %s18, 1
      %p173 = scmp.lt.s32.totalorder %s170, 31
      %s174 = scalar_select %p173, %s170, 31
      %s175 = smul.addr %s174, 4
      %s176 = smul.addr %s172, 128
      %s177 = sadd.s32 %s175, %s176
      %s178 = smul.addr %s177, 4
      %s179 = scalar_lea.vmem %s3, %s178
      %p180 = scmp.lt.s32.totalorder %s18, 1
      %s181 = scalar_select %p180, %s18, 1
      %s182 = smul.addr %s181, 165
      %s183 = smul.addr %s182, 4
      %s184 = scalar_lea.vmem %s0, %s183
      %s185 = smul.u32 16, %s19
      %p186 = scmp.lt.s32.totalorder %s18, 1
      %s187 = scalar_select %p186, %s18, 1
      %p188 = scmp.lt.s32.totalorder %s185, 31
      %s189 = scalar_select %p188, %s185, 31
      %s190 = smul.addr %s189, 4
      %s191 = smul.addr %s187, 128
      %s192 = sadd.s32 %s190, %s191
      %s193 = smul.addr %s192, 4
      %s194 = scalar_lea.vmem %s3, %s193
      %s195 = smul.u32 16, %s19
      %s197 = smul.u32 %s19, 16
      %s198 = smul.u32 %s197, 5
      %s199 = smul.addr %s198, 4
      %s200 = scalar_lea.vmem %s184, %s199
      %v201 = vld [vmem:[%s200] sm:$0xf]
      %v202 = vld [vmem:[%s200 + $0x4] sm:$0xf]
      %v203 = vld [vmem:[%s200 + $0x8] sm:$0xf]
      %v204 = vld [vmem:[%s200 + $0xc] sm:$0xf]
      %v205 = vld [vmem:[%s200 + $0x14] sm:$0xf]
      %v206 = vld [vmem:[%s200 + $0x18] sm:$0xf]
      %v207 = vld [vmem:[%s200 + $0x1c] sm:$0xf]
      %v208 = vld [vmem:[%s200 + $0x20] sm:$0xf]
      %v209 = vld [vmem:[%s200 + $0x28] sm:$0xf]
      %v210 = vld [vmem:[%s200 + $0x2c] sm:$0xf]
      %v211 = vld [vmem:[%s200 + $0x30] sm:$0xf]
      %v212 = vld [vmem:[%s200 + $0x34] sm:$0xf]
      %v213 = vld [vmem:[%s200 + $0x3c] sm:$0xf]
      %v214 = vld [vmem:[%s200 + $0x40] sm:$0xf]
      %v215 = vld [vmem:[%s200 + $0x44] sm:$0xf]
      %v216 = vld [vmem:[%s200 + $0x48] sm:$0xf]
      %v217 = vld [vmem:[%s200 + $0x50] sm:$0xf]
      %v218 = vld [vmem:[%s200 + $0x54] sm:$0xf]
      %v219 = vld [vmem:[%s200 + $0x58] sm:$0xf]
      %v220 = vld [vmem:[%s200 + $0x5c] sm:$0xf]
      %v221 = vld [vmem:[%s200 + $0x64] sm:$0xf]
      %v222 = vld [vmem:[%s200 + $0x68] sm:$0xf]
      %v223 = vld [vmem:[%s200 + $0x6c] sm:$0xf]
      %v224 = vld [vmem:[%s200 + $0x70] sm:$0xf]
      %v225 = vld [vmem:[%s200 + $0x78] sm:$0xf]
      %v226 = vld [vmem:[%s200 + $0x7c] sm:$0xf]
      %v227 = vld [vmem:[%s200 + $0x80] sm:$0xf]
      %v228 = vld [vmem:[%s200 + $0x84] sm:$0xf]
      %v229 = vld [vmem:[%s200 + $0x8c] sm:$0xf]
      %v230 = vld [vmem:[%s200 + $0x90] sm:$0xf]
      %v231 = vld [vmem:[%s200 + $0x94] sm:$0xf]
      %v232 = vld [vmem:[%s200 + $0x98] sm:$0xf]
      %v233 = vld [vmem:[%s200 + $0xa0] sm:$0xf]
      %v234 = vld [vmem:[%s200 + $0xa4] sm:$0xf]
      %v235 = vld [vmem:[%s200 + $0xa8] sm:$0xf]
      %v236 = vld [vmem:[%s200 + $0xac] sm:$0xf]
      %v237 = vld [vmem:[%s200 + $0xb4] sm:$0xf]
      %v238 = vld [vmem:[%s200 + $0xb8] sm:$0xf]
      %v239 = vld [vmem:[%s200 + $0xbc] sm:$0xf]
      %v240 = vld [vmem:[%s200 + $0xc0] sm:$0xf]
      %v241 = vld [vmem:[%s200 + $0xc8] sm:$0xf]
      %v242 = vld [vmem:[%s200 + $0xcc] sm:$0xf]
      %v243 = vld [vmem:[%s200 + $0xd0] sm:$0xf]
      %v244 = vld [vmem:[%s200 + $0xd4] sm:$0xf]
      %v245 = vld [vmem:[%s200 + $0xdc] sm:$0xf]
      %v246 = vld [vmem:[%s200 + $0xe0] sm:$0xf]
      %v247 = vld [vmem:[%s200 + $0xe4] sm:$0xf]
      %v248 = vld [vmem:[%s200 + $0xe8] sm:$0xf]
      %v249 = vld [vmem:[%s200 + $0xf0] sm:$0xf]
      %v250 = vld [vmem:[%s200 + $0xf4] sm:$0xf]
      %v251 = vld [vmem:[%s200 + $0xf8] sm:$0xf]
      %v252 = vld [vmem:[%s200 + $0xfc] sm:$0xf]
      %v253 = vld [vmem:[%s200 + $0x104] sm:$0xf]
      %v254 = vld [vmem:[%s200 + $0x108] sm:$0xf]
      %v255 = vld [vmem:[%s200 + $0x10c] sm:$0xf]
      %v256 = vld [vmem:[%s200 + $0x110] sm:$0xf]
      %v257 = vld [vmem:[%s200 + $0x118] sm:$0xf]
      %v258 = vld [vmem:[%s200 + $0x11c] sm:$0xf]
      %v259 = vld [vmem:[%s200 + $0x120] sm:$0xf]
      %v260 = vld [vmem:[%s200 + $0x124] sm:$0xf]
      %v261 = vld [vmem:[%s200 + $0x12c] sm:$0xf]
      %v262 = vld [vmem:[%s200 + $0x130] sm:$0xf]
      %v263 = vld [vmem:[%s200 + $0x134] sm:$0xf]
      %v264 = vld [vmem:[%s200 + $0x138] sm:$0xf]
      %v265 = vld [vmem:[%s200 + $0x10] sm:$0x1]
      %v266 = vld [vmem:[%s200 + $0x24] sm:$0x1]
      %v267 = vld [vmem:[%s200 + $0x38] sm:$0x1]
      %v268 = vld [vmem:[%s200 + $0x4c] sm:$0x1]
      %v269 = vld [vmem:[%s200 + $0x60] sm:$0x1]
      %v270 = vld [vmem:[%s200 + $0x74] sm:$0x1]
      %v271 = vld [vmem:[%s200 + $0x88] sm:$0x1]
      %v272 = vld [vmem:[%s200 + $0x9c] sm:$0x1]
      %v273 = vld [vmem:[%s200 + $0xb0] sm:$0x1]
      %v274 = vld [vmem:[%s200 + $0xc4] sm:$0x1]
      %v275 = vld [vmem:[%s200 + $0xd8] sm:$0x1]
      %v276 = vld [vmem:[%s200 + $0xec] sm:$0x1]
      %v277 = vld [vmem:[%s200 + $0x100] sm:$0x1]
      %v278 = vld [vmem:[%s200 + $0x114] sm:$0x1]
      %v279 = vld [vmem:[%s200 + $0x128] sm:$0x1]
      %v280 = vld [vmem:[%s200 + $0x13c] sm:$0x1]
      %s281 = sadd.s32 %s197, 1
      %s282 = smul.u32 %s281, 5
      %s283 = smul.addr %s282, 4
      %s284 = scalar_lea.vmem %s184, %s283
      %v285 = vld [vmem:[%s284] sm:$0xf]
      %v286 = vld [vmem:[%s284 + $0x4] sm:$0xf]
      %v287 = vld [vmem:[%s284 + $0x8] sm:$0xf]
      %v288 = vld [vmem:[%s284 + $0xc] sm:$0xf]
      %v289 = vld [vmem:[%s284 + $0x14] sm:$0xf]
      %v290 = vld [vmem:[%s284 + $0x18] sm:$0xf]
      %v291 = vld [vmem:[%s284 + $0x1c] sm:$0xf]
      %v292 = vld [vmem:[%s284 + $0x20] sm:$0xf]
      %v293 = vld [vmem:[%s284 + $0x28] sm:$0xf]
      %v294 = vld [vmem:[%s284 + $0x2c] sm:$0xf]
      %v295 = vld [vmem:[%s284 + $0x30] sm:$0xf]
      %v296 = vld [vmem:[%s284 + $0x34] sm:$0xf]
      %v297 = vld [vmem:[%s284 + $0x3c] sm:$0xf]
      %v298 = vld [vmem:[%s284 + $0x40] sm:$0xf]
      %v299 = vld [vmem:[%s284 + $0x44] sm:$0xf]
      %v300 = vld [vmem:[%s284 + $0x48] sm:$0xf]
      %v301 = vld [vmem:[%s284 + $0x50] sm:$0xf]
      %v302 = vld [vmem:[%s284 + $0x54] sm:$0xf]
      %v303 = vld [vmem:[%s284 + $0x58] sm:$0xf]
      %v304 = vld [vmem:[%s284 + $0x5c] sm:$0xf]
      %v305 = vld [vmem:[%s284 + $0x64] sm:$0xf]
      %v306 = vld [vmem:[%s284 + $0x68] sm:$0xf]
      %v307 = vld [vmem:[%s284 + $0x6c] sm:$0xf]
      %v308 = vld [vmem:[%s284 + $0x70] sm:$0xf]
      %v309 = vld [vmem:[%s284 + $0x78] sm:$0xf]
      %v310 = vld [vmem:[%s284 + $0x7c] sm:$0xf]
      %v311 = vld [vmem:[%s284 + $0x80] sm:$0xf]
      %v312 = vld [vmem:[%s284 + $0x84] sm:$0xf]
      %v313 = vld [vmem:[%s284 + $0x8c] sm:$0xf]
      %v314 = vld [vmem:[%s284 + $0x90] sm:$0xf]
      %v315 = vld [vmem:[%s284 + $0x94] sm:$0xf]
      %v316 = vld [vmem:[%s284 + $0x98] sm:$0xf]
      %v317 = vld [vmem:[%s284 + $0xa0] sm:$0xf]
      %v318 = vld [vmem:[%s284 + $0xa4] sm:$0xf]
      %v319 = vld [vmem:[%s284 + $0xa8] sm:$0xf]
      %v320 = vld [vmem:[%s284 + $0xac] sm:$0xf]
      %v321 = vld [vmem:[%s284 + $0xb4] sm:$0xf]
      %v322 = vld [vmem:[%s284 + $0xb8] sm:$0xf]
      %v323 = vld [vmem:[%s284 + $0xbc] sm:$0xf]
      %v324 = vld [vmem:[%s284 + $0xc0] sm:$0xf]
      %v325 = vld [vmem:[%s284 + $0xc8] sm:$0xf]
      %v326 = vld [vmem:[%s284 + $0xcc] sm:$0xf]
      %v327 = vld [vmem:[%s284 + $0xd0] sm:$0xf]
      %v328 = vld [vmem:[%s284 + $0xd4] sm:$0xf]
      %v329 = vld [vmem:[%s284 + $0xdc] sm:$0xf]
      %v330 = vld [vmem:[%s284 + $0xe0] sm:$0xf]
      %v331 = vld [vmem:[%s284 + $0xe4] sm:$0xf]
      %v332 = vld [vmem:[%s284 + $0xe8] sm:$0xf]
      %v333 = vld [vmem:[%s284 + $0xf0] sm:$0xf]
      %v334 = vld [vmem:[%s284 + $0xf4] sm:$0xf]
      %v335 = vld [vmem:[%s284 + $0xf8] sm:$0xf]
      %v336 = vld [vmem:[%s284 + $0xfc] sm:$0xf]
      %v337 = vld [vmem:[%s284 + $0x104] sm:$0xf]
      %v338 = vld [vmem:[%s284 + $0x108] sm:$0xf]
      %v339 = vld [vmem:[%s284 + $0x10c] sm:$0xf]
      %v340 = vld [vmem:[%s284 + $0x110] sm:$0xf]
      %v341 = vld [vmem:[%s284 + $0x118] sm:$0xf]
      %v342 = vld [vmem:[%s284 + $0x11c] sm:$0xf]
      %v343 = vld [vmem:[%s284 + $0x120] sm:$0xf]
      %v344 = vld [vmem:[%s284 + $0x124] sm:$0xf]
      %v345 = vld [vmem:[%s284 + $0x12c] sm:$0xf]
      %v346 = vld [vmem:[%s284 + $0x130] sm:$0xf]
      %v347 = vld [vmem:[%s284 + $0x134] sm:$0xf]
      %v348 = vld [vmem:[%s284 + $0x138] sm:$0xf]
      %v349 = vld [vmem:[%s284 + $0x10] sm:$0x1]
      %v350 = vld [vmem:[%s284 + $0x24] sm:$0x1]
      %v351 = vld [vmem:[%s284 + $0x38] sm:$0x1]
      %v352 = vld [vmem:[%s284 + $0x4c] sm:$0x1]
      %v353 = vld [vmem:[%s284 + $0x60] sm:$0x1]
      %v354 = vld [vmem:[%s284 + $0x74] sm:$0x1]
      %v355 = vld [vmem:[%s284 + $0x88] sm:$0x1]
      %v356 = vld [vmem:[%s284 + $0x9c] sm:$0x1]
      %v357 = vld [vmem:[%s284 + $0xb0] sm:$0x1]
      %v358 = vld [vmem:[%s284 + $0xc4] sm:$0x1]
      %v359 = vld [vmem:[%s284 + $0xd8] sm:$0x1]
      %v360 = vld [vmem:[%s284 + $0xec] sm:$0x1]
      %v361 = vld [vmem:[%s284 + $0x100] sm:$0x1]
      %v362 = vld [vmem:[%s284 + $0x114] sm:$0x1]
      %v363 = vld [vmem:[%s284 + $0x128] sm:$0x1]
      %v364 = vld [vmem:[%s284 + $0x13c] sm:$0x1]
      %v429 = vunpack.c.l.b16 %v201
      %v430 = vunpack.c.l.b16 %v202
      %v431 = vunpack.c.l.b16 %v203
      %v432 = vunpack.c.l.b16 %v204
      %v433 = vunpack.c.l.b16 %v205
      %v434 = vunpack.c.l.b16 %v206
      %v435 = vunpack.c.l.b16 %v207
      %v436 = vunpack.c.l.b16 %v208
      %v437 = vunpack.c.l.b16 %v209
      %v438 = vunpack.c.l.b16 %v210
      %v439 = vunpack.c.l.b16 %v211
      %v440 = vunpack.c.l.b16 %v212
      %v441 = vunpack.c.l.b16 %v213
      %v442 = vunpack.c.l.b16 %v214
      %v443 = vunpack.c.l.b16 %v215
      %v444 = vunpack.c.l.b16 %v216
      %v445 = vunpack.c.l.b16 %v217
      %v446 = vunpack.c.l.b16 %v218
      %v447 = vunpack.c.l.b16 %v219
      %v448 = vunpack.c.l.b16 %v220
      %v449 = vunpack.c.l.b16 %v221
      %v450 = vunpack.c.l.b16 %v222
      %v451 = vunpack.c.l.b16 %v223
      %v452 = vunpack.c.l.b16 %v224
      %v453 = vunpack.c.l.b16 %v225
      %v454 = vunpack.c.l.b16 %v226
      %v455 = vunpack.c.l.b16 %v227
      %v456 = vunpack.c.l.b16 %v228
      %v457 = vunpack.c.l.b16 %v229
      %v458 = vunpack.c.l.b16 %v230
      %v459 = vunpack.c.l.b16 %v231
      %v460 = vunpack.c.l.b16 %v232
      %v461 = vunpack.c.l.b16 %v233
      %v462 = vunpack.c.l.b16 %v234
      %v463 = vunpack.c.l.b16 %v235
      %v464 = vunpack.c.l.b16 %v236
      %v465 = vunpack.c.l.b16 %v237
      %v466 = vunpack.c.l.b16 %v238
      %v467 = vunpack.c.l.b16 %v239
      %v468 = vunpack.c.l.b16 %v240
      %v469 = vunpack.c.l.b16 %v241
      %v470 = vunpack.c.l.b16 %v242
      %v471 = vunpack.c.l.b16 %v243
      %v472 = vunpack.c.l.b16 %v244
      %v473 = vunpack.c.l.b16 %v245
      %v474 = vunpack.c.l.b16 %v246
      %v475 = vunpack.c.l.b16 %v247
      %v476 = vunpack.c.l.b16 %v248
      %v477 = vunpack.c.l.b16 %v249
      %v478 = vunpack.c.l.b16 %v250
      %v479 = vunpack.c.l.b16 %v251
      %v480 = vunpack.c.l.b16 %v252
      %v481 = vunpack.c.l.b16 %v253
      %v482 = vunpack.c.l.b16 %v254
      %v483 = vunpack.c.l.b16 %v255
      %v484 = vunpack.c.l.b16 %v256
      %v485 = vunpack.c.l.b16 %v257
      %v486 = vunpack.c.l.b16 %v258
      %v487 = vunpack.c.l.b16 %v259
      %v488 = vunpack.c.l.b16 %v260
      %v489 = vunpack.c.l.b16 %v261
      %v490 = vunpack.c.l.b16 %v262
      %v491 = vunpack.c.l.b16 %v263
      %v492 = vunpack.c.l.b16 %v264
      %v493 = vpack.c.b16 %v430, %v429
      %v494 = vpack.c.b16 %v432, %v431
      %v495 = vpack.c.b16 %v434, %v433
      %v496 = vpack.c.b16 %v436, %v435
      %v497 = vpack.c.b16 %v438, %v437
      %v498 = vpack.c.b16 %v440, %v439
      %v499 = vpack.c.b16 %v442, %v441
      %v500 = vpack.c.b16 %v444, %v443
      %v501 = vpack.c.b16 %v446, %v445
      %v502 = vpack.c.b16 %v448, %v447
      %v503 = vpack.c.b16 %v450, %v449
      %v504 = vpack.c.b16 %v452, %v451
      %v505 = vpack.c.b16 %v454, %v453
      %v506 = vpack.c.b16 %v456, %v455
      %v507 = vpack.c.b16 %v458, %v457
      %v508 = vpack.c.b16 %v460, %v459
      %v509 = vpack.c.b16 %v462, %v461
      %v510 = vpack.c.b16 %v464, %v463
      %v511 = vpack.c.b16 %v466, %v465
      %v512 = vpack.c.b16 %v468, %v467
      %v513 = vpack.c.b16 %v470, %v469
      %v514 = vpack.c.b16 %v472, %v471
      %v515 = vpack.c.b16 %v474, %v473
      %v516 = vpack.c.b16 %v476, %v475
      %v517 = vpack.c.b16 %v478, %v477
      %v518 = vpack.c.b16 %v480, %v479
      %v519 = vpack.c.b16 %v482, %v481
      %v520 = vpack.c.b16 %v484, %v483
      %v521 = vpack.c.b16 %v486, %v485
      %v522 = vpack.c.b16 %v488, %v487
      %v523 = vpack.c.b16 %v490, %v489
      %v524 = vpack.c.b16 %v492, %v491
      %v541 = vunpack.c.l.b16 %v265
      %v542 = vunpack.c.l.b16 %v266
      %v543 = vunpack.c.l.b16 %v267
      %v544 = vunpack.c.l.b16 %v268
      %v545 = vunpack.c.l.b16 %v269
      %v546 = vunpack.c.l.b16 %v270
      %v547 = vunpack.c.l.b16 %v271
      %v548 = vunpack.c.l.b16 %v272
      %v549 = vunpack.c.l.b16 %v273
      %v550 = vunpack.c.l.b16 %v274
      %v551 = vunpack.c.l.b16 %v275
      %v552 = vunpack.c.l.b16 %v276
      %v553 = vunpack.c.l.b16 %v277
      %v554 = vunpack.c.l.b16 %v278
      %v555 = vunpack.c.l.b16 %v279
      %v556 = vunpack.c.l.b16 %v280
      %v557 = vpack.c.b16 %v541, %v541
      %v558 = vpack.c.b16 %v542, %v542
      %v559 = vpack.c.b16 %v543, %v543
      %v560 = vpack.c.b16 %v544, %v544
      %v561 = vpack.c.b16 %v545, %v545
      %v562 = vpack.c.b16 %v546, %v546
      %v563 = vpack.c.b16 %v547, %v547
      %v564 = vpack.c.b16 %v548, %v548
      %v565 = vpack.c.b16 %v549, %v549
      %v566 = vpack.c.b16 %v550, %v550
      %v567 = vpack.c.b16 %v551, %v551
      %v568 = vpack.c.b16 %v552, %v552
      %v569 = vpack.c.b16 %v553, %v553
      %v570 = vpack.c.b16 %v554, %v554
      %v571 = vpack.c.b16 %v555, %v555
      %v572 = vpack.c.b16 %v556, %v556
      %vm573 = vsmask.f32 7424
      %v575 = vshrl.u32 %v493, 16
      %v577 = vshll.u32 %v493, 16
      %v579 = vrot.slane %v577, 1
      %v580 = vor.u32 %v575, %v579
      %v582 = vshll.u32 %v494, 16
      %v584 = vrot.slane %v582, 1
      %v585 = vsel %vm573, %v580, %v584
      %v586 = vshrl.u32 %v494, 16
      %v588 = vor.u32 %v586, %v584
      %v590 = vshll.u32 %v557, 16
      %v592 = vrot.slane %v590, 1
      %v593 = vsel %vm573, %v588, %v592
      %v595 = vshrl.u32 %v495, 16
      %v597 = vshll.u32 %v495, 16
      %v599 = vrot.slane %v597, 1
      %v600 = vor.u32 %v595, %v599
      %v602 = vshll.u32 %v496, 16
      %v604 = vrot.slane %v602, 1
      %v605 = vsel %vm573, %v600, %v604
      %v606 = vshrl.u32 %v496, 16
      %v608 = vor.u32 %v606, %v604
      %v610 = vshll.u32 %v558, 16
      %v612 = vrot.slane %v610, 1
      %v613 = vsel %vm573, %v608, %v612
      %v615 = vshrl.u32 %v497, 16
      %v617 = vshll.u32 %v497, 16
      %v619 = vrot.slane %v617, 1
      %v620 = vor.u32 %v615, %v619
      %v622 = vshll.u32 %v498, 16
      %v624 = vrot.slane %v622, 1
      %v625 = vsel %vm573, %v620, %v624
      %v626 = vshrl.u32 %v498, 16
      %v628 = vor.u32 %v626, %v624
      %v630 = vshll.u32 %v559, 16
      %v632 = vrot.slane %v630, 1
      %v633 = vsel %vm573, %v628, %v632
      %v635 = vshrl.u32 %v499, 16
      %v637 = vshll.u32 %v499, 16
      %v639 = vrot.slane %v637, 1
      %v640 = vor.u32 %v635, %v639
      %v642 = vshll.u32 %v500, 16
      %v644 = vrot.slane %v642, 1
      %v645 = vsel %vm573, %v640, %v644
      %v646 = vshrl.u32 %v500, 16
      %v648 = vor.u32 %v646, %v644
      %v650 = vshll.u32 %v560, 16
      %v652 = vrot.slane %v650, 1
      %v653 = vsel %vm573, %v648, %v652
      %v655 = vshrl.u32 %v501, 16
      %v657 = vshll.u32 %v501, 16
      %v659 = vrot.slane %v657, 1
      %v660 = vor.u32 %v655, %v659
      %v662 = vshll.u32 %v502, 16
      %v664 = vrot.slane %v662, 1
      %v665 = vsel %vm573, %v660, %v664
      %v666 = vshrl.u32 %v502, 16
      %v668 = vor.u32 %v666, %v664
      %v670 = vshll.u32 %v561, 16
      %v672 = vrot.slane %v670, 1
      %v673 = vsel %vm573, %v668, %v672
      %v675 = vshrl.u32 %v503, 16
      %v677 = vshll.u32 %v503, 16
      %v679 = vrot.slane %v677, 1
      %v680 = vor.u32 %v675, %v679
      %v682 = vshll.u32 %v504, 16
      %v684 = vrot.slane %v682, 1
      %v685 = vsel %vm573, %v680, %v684
      %v686 = vshrl.u32 %v504, 16
      %v688 = vor.u32 %v686, %v684
      %v690 = vshll.u32 %v562, 16
      %v692 = vrot.slane %v690, 1
      %v693 = vsel %vm573, %v688, %v692
      %v695 = vshrl.u32 %v505, 16
      %v697 = vshll.u32 %v505, 16
      %v699 = vrot.slane %v697, 1
      %v700 = vor.u32 %v695, %v699
      %v702 = vshll.u32 %v506, 16
      %v704 = vrot.slane %v702, 1
      %v705 = vsel %vm573, %v700, %v704
      %v706 = vshrl.u32 %v506, 16
      %v708 = vor.u32 %v706, %v704
      %v710 = vshll.u32 %v563, 16
      %v712 = vrot.slane %v710, 1
      %v713 = vsel %vm573, %v708, %v712
      %v715 = vshrl.u32 %v507, 16
      %v717 = vshll.u32 %v507, 16
      %v719 = vrot.slane %v717, 1
      %v720 = vor.u32 %v715, %v719
      %v722 = vshll.u32 %v508, 16
      %v724 = vrot.slane %v722, 1
      %v725 = vsel %vm573, %v720, %v724
      %v726 = vshrl.u32 %v508, 16
      %v728 = vor.u32 %v726, %v724
      %v730 = vshll.u32 %v564, 16
      %v732 = vrot.slane %v730, 1
      %v733 = vsel %vm573, %v728, %v732
      %v735 = vshrl.u32 %v509, 16
      %v737 = vshll.u32 %v509, 16
      %v739 = vrot.slane %v737, 1
      %v740 = vor.u32 %v735, %v739
      %v742 = vshll.u32 %v510, 16
      %v744 = vrot.slane %v742, 1
      %v745 = vsel %vm573, %v740, %v744
      %v746 = vshrl.u32 %v510, 16
      %v748 = vor.u32 %v746, %v744
      %v750 = vshll.u32 %v565, 16
      %v752 = vrot.slane %v750, 1
      %v753 = vsel %vm573, %v748, %v752
      %v755 = vshrl.u32 %v511, 16
      %v757 = vshll.u32 %v511, 16
      %v759 = vrot.slane %v757, 1
      %v760 = vor.u32 %v755, %v759
      %v762 = vshll.u32 %v512, 16
      %v764 = vrot.slane %v762, 1
      %v765 = vsel %vm573, %v760, %v764
      %v766 = vshrl.u32 %v512, 16
      %v768 = vor.u32 %v766, %v764
      %v770 = vshll.u32 %v566, 16
      %v772 = vrot.slane %v770, 1
      %v773 = vsel %vm573, %v768, %v772
      %v775 = vshrl.u32 %v513, 16
      %v777 = vshll.u32 %v513, 16
      %v779 = vrot.slane %v777, 1
      %v780 = vor.u32 %v775, %v779
      %v782 = vshll.u32 %v514, 16
      %v784 = vrot.slane %v782, 1
      %v785 = vsel %vm573, %v780, %v784
      %v786 = vshrl.u32 %v514, 16
      %v788 = vor.u32 %v786, %v784
      %v790 = vshll.u32 %v567, 16
      %v792 = vrot.slane %v790, 1
      %v793 = vsel %vm573, %v788, %v792
      %v795 = vshrl.u32 %v515, 16
      %v797 = vshll.u32 %v515, 16
      %v799 = vrot.slane %v797, 1
      %v800 = vor.u32 %v795, %v799
      %v802 = vshll.u32 %v516, 16
      %v804 = vrot.slane %v802, 1
      %v805 = vsel %vm573, %v800, %v804
      %v806 = vshrl.u32 %v516, 16
      %v808 = vor.u32 %v806, %v804
      %v810 = vshll.u32 %v568, 16
      %v812 = vrot.slane %v810, 1
      %v813 = vsel %vm573, %v808, %v812
      %v815 = vshrl.u32 %v517, 16
      %v817 = vshll.u32 %v517, 16
      %v819 = vrot.slane %v817, 1
      %v820 = vor.u32 %v815, %v819
      %v822 = vshll.u32 %v518, 16
      %v824 = vrot.slane %v822, 1
      %v825 = vsel %vm573, %v820, %v824
      %v826 = vshrl.u32 %v518, 16
      %v828 = vor.u32 %v826, %v824
      %v830 = vshll.u32 %v569, 16
      %v832 = vrot.slane %v830, 1
      %v833 = vsel %vm573, %v828, %v832
      %v835 = vshrl.u32 %v519, 16
      %v837 = vshll.u32 %v519, 16
      %v839 = vrot.slane %v837, 1
      %v840 = vor.u32 %v835, %v839
      %v842 = vshll.u32 %v520, 16
      %v844 = vrot.slane %v842, 1
      %v845 = vsel %vm573, %v840, %v844
      %v846 = vshrl.u32 %v520, 16
      %v848 = vor.u32 %v846, %v844
      %v850 = vshll.u32 %v570, 16
      %v852 = vrot.slane %v850, 1
      %v853 = vsel %vm573, %v848, %v852
      %v855 = vshrl.u32 %v521, 16
      %v857 = vshll.u32 %v521, 16
      %v859 = vrot.slane %v857, 1
      %v860 = vor.u32 %v855, %v859
      %v862 = vshll.u32 %v522, 16
      %v864 = vrot.slane %v862, 1
      %v865 = vsel %vm573, %v860, %v864
      %v866 = vshrl.u32 %v522, 16
      %v868 = vor.u32 %v866, %v864
      %v870 = vshll.u32 %v571, 16
      %v872 = vrot.slane %v870, 1
      %v873 = vsel %vm573, %v868, %v872
      %v875 = vshrl.u32 %v523, 16
      %v877 = vshll.u32 %v523, 16
      %v879 = vrot.slane %v877, 1
      %v880 = vor.u32 %v875, %v879
      %v882 = vshll.u32 %v524, 16
      %v884 = vrot.slane %v882, 1
      %v885 = vsel %vm573, %v880, %v884
      %v886 = vshrl.u32 %v524, 16
      %v888 = vor.u32 %v886, %v884
      %v890 = vshll.u32 %v572, 16
      %v892 = vrot.slane %v890, 1
      %v893 = vsel %vm573, %v888, %v892
      %894 = vrot.lane.b32.xlu0 %v585, 6
      %v895 = vpop.permute.xlu0 %894
      %896 = vrot.lane.b32.xlu0 %v593, 6
      %v897 = vpop.permute.xlu0 %896
      %898 = vrot.lane.b32.xlu0 %v605, 6
      %v899 = vpop.permute.xlu0 %898
      %900 = vrot.lane.b32.xlu0 %v613, 6
      %v901 = vpop.permute.xlu0 %900
      %902 = vrot.lane.b32.xlu0 %v625, 6
      %v903 = vpop.permute.xlu0 %902
      %904 = vrot.lane.b32.xlu0 %v633, 6
      %v905 = vpop.permute.xlu0 %904
      %906 = vrot.lane.b32.xlu0 %v645, 6
      %v907 = vpop.permute.xlu0 %906
      %908 = vrot.lane.b32.xlu0 %v653, 6
      %v909 = vpop.permute.xlu0 %908
      %910 = vrot.lane.b32.xlu0 %v665, 6
      %v911 = vpop.permute.xlu0 %910
      %912 = vrot.lane.b32.xlu0 %v673, 6
      %v913 = vpop.permute.xlu0 %912
      %914 = vrot.lane.b32.xlu0 %v685, 6
      %v915 = vpop.permute.xlu0 %914
      %916 = vrot.lane.b32.xlu0 %v693, 6
      %v917 = vpop.permute.xlu0 %916
      %918 = vrot.lane.b32.xlu0 %v705, 6
      %v919 = vpop.permute.xlu0 %918
      %920 = vrot.lane.b32.xlu0 %v713, 6
      %v921 = vpop.permute.xlu0 %920
      %922 = vrot.lane.b32.xlu0 %v725, 6
      %v923 = vpop.permute.xlu0 %922
      %924 = vrot.lane.b32.xlu0 %v733, 6
      %v925 = vpop.permute.xlu0 %924
      %926 = vrot.lane.b32.xlu0 %v745, 6
      %v927 = vpop.permute.xlu0 %926
      %928 = vrot.lane.b32.xlu0 %v753, 6
      %v929 = vpop.permute.xlu0 %928
      %930 = vrot.lane.b32.xlu0 %v765, 6
      %v931 = vpop.permute.xlu0 %930
      %932 = vrot.lane.b32.xlu0 %v773, 6
      %v933 = vpop.permute.xlu0 %932
      %934 = vrot.lane.b32.xlu0 %v785, 6
      %v935 = vpop.permute.xlu0 %934
      %936 = vrot.lane.b32.xlu0 %v793, 6
      %v937 = vpop.permute.xlu0 %936
      %938 = vrot.lane.b32.xlu0 %v805, 6
      %v939 = vpop.permute.xlu0 %938
      %940 = vrot.lane.b32.xlu0 %v813, 6
      %v941 = vpop.permute.xlu0 %940
      %942 = vrot.lane.b32.xlu0 %v825, 6
      %v943 = vpop.permute.xlu0 %942
      %944 = vrot.lane.b32.xlu0 %v833, 6
      %v945 = vpop.permute.xlu0 %944
      %946 = vrot.lane.b32.xlu0 %v845, 6
      %v947 = vpop.permute.xlu0 %946
      %948 = vrot.lane.b32.xlu0 %v853, 6
      %v949 = vpop.permute.xlu0 %948
      %950 = vrot.lane.b32.xlu0 %v865, 6
      %v951 = vpop.permute.xlu0 %950
      %952 = vrot.lane.b32.xlu0 %v873, 6
      %v953 = vpop.permute.xlu0 %952
      %954 = vrot.lane.b32.xlu0 %v885, 6
      %v955 = vpop.permute.xlu0 %954
      %956 = vrot.lane.b32.xlu0 %v893, 6
      %v957 = vpop.permute.xlu0 %956
      %958 = vrot.lane.b32.xlu0 %v493, 3
      %v959 = vpop.permute.xlu0 %958
      %960 = vrot.lane.b32.xlu0 %v494, 3
      %v961 = vpop.permute.xlu0 %960
      %962 = vrot.lane.b32.xlu0 %v495, 3
      %v963 = vpop.permute.xlu0 %962
      %964 = vrot.lane.b32.xlu0 %v496, 3
      %v965 = vpop.permute.xlu0 %964
      %966 = vrot.lane.b32.xlu0 %v497, 3
      %v967 = vpop.permute.xlu0 %966
      %968 = vrot.lane.b32.xlu0 %v498, 3
      %v969 = vpop.permute.xlu0 %968
      %970 = vrot.lane.b32.xlu0 %v499, 3
      %v971 = vpop.permute.xlu0 %970
      %972 = vrot.lane.b32.xlu0 %v500, 3
      %v973 = vpop.permute.xlu0 %972
      %974 = vrot.lane.b32.xlu0 %v501, 3
      %v975 = vpop.permute.xlu0 %974
      %976 = vrot.lane.b32.xlu0 %v502, 3
      %v977 = vpop.permute.xlu0 %976
      %978 = vrot.lane.b32.xlu0 %v503, 3
      %v979 = vpop.permute.xlu0 %978
      %980 = vrot.lane.b32.xlu0 %v504, 3
      %v981 = vpop.permute.xlu0 %980
      %982 = vrot.lane.b32.xlu0 %v505, 3
      %v983 = vpop.permute.xlu0 %982
      %984 = vrot.lane.b32.xlu0 %v506, 3
      %v985 = vpop.permute.xlu0 %984
      %986 = vrot.lane.b32.xlu0 %v507, 3
      %v987 = vpop.permute.xlu0 %986
      %988 = vrot.lane.b32.xlu0 %v508, 3
      %v989 = vpop.permute.xlu0 %988
      %990 = vrot.lane.b32.xlu0 %v509, 3
      %v991 = vpop.permute.xlu0 %990
      %992 = vrot.lane.b32.xlu0 %v510, 3
      %v993 = vpop.permute.xlu0 %992
      %994 = vrot.lane.b32.xlu0 %v511, 3
      %v995 = vpop.permute.xlu0 %994
      %996 = vrot.lane.b32.xlu0 %v512, 3
      %v997 = vpop.permute.xlu0 %996
      %998 = vrot.lane.b32.xlu0 %v513, 3
      %v999 = vpop.permute.xlu0 %998
      %1000 = vrot.lane.b32.xlu0 %v514, 3
      %v1001 = vpop.permute.xlu0 %1000
      %1002 = vrot.lane.b32.xlu0 %v515, 3
      %v1003 = vpop.permute.xlu0 %1002
      %1004 = vrot.lane.b32.xlu0 %v516, 3
      %v1005 = vpop.permute.xlu0 %1004
      %1006 = vrot.lane.b32.xlu0 %v517, 3
      %v1007 = vpop.permute.xlu0 %1006
      %1008 = vrot.lane.b32.xlu0 %v518, 3
      %v1009 = vpop.permute.xlu0 %1008
      %1010 = vrot.lane.b32.xlu0 %v519, 3
      %v1011 = vpop.permute.xlu0 %1010
      %1012 = vrot.lane.b32.xlu0 %v520, 3
      %v1013 = vpop.permute.xlu0 %1012
      %1014 = vrot.lane.b32.xlu0 %v521, 3
      %v1015 = vpop.permute.xlu0 %1014
      %1016 = vrot.lane.b32.xlu0 %v522, 3
      %v1017 = vpop.permute.xlu0 %1016
      %1018 = vrot.lane.b32.xlu0 %v523, 3
      %v1019 = vpop.permute.xlu0 %1018
      %1020 = vrot.lane.b32.xlu0 %v524, 3
      %v1021 = vpop.permute.xlu0 %1020
      %1022 = vrot.lane.b32.xlu0 %v585, 9
      %v1023 = vpop.permute.xlu0 %1022
      %1024 = vrot.lane.b32.xlu0 %v593, 9
      %v1025 = vpop.permute.xlu0 %1024
      %1026 = vrot.lane.b32.xlu0 %v605, 9
      %v1027 = vpop.permute.xlu0 %1026
      %1028 = vrot.lane.b32.xlu0 %v613, 9
      %v1029 = vpop.permute.xlu0 %1028
      %1030 = vrot.lane.b32.xlu0 %v625, 9
      %v1031 = vpop.permute.xlu0 %1030
      %1032 = vrot.lane.b32.xlu0 %v633, 9
      %v1033 = vpop.permute.xlu0 %1032
      %1034 = vrot.lane.b32.xlu0 %v645, 9
      %v1035 = vpop.permute.xlu0 %1034
      %1036 = vrot.lane.b32.xlu0 %v653, 9
      %v1037 = vpop.permute.xlu0 %1036
      %1038 = vrot.lane.b32.xlu0 %v665, 9
      %v1039 = vpop.permute.xlu0 %1038
      %1040 = vrot.lane.b32.xlu0 %v673, 9
      %v1041 = vpop.permute.xlu0 %1040
      %1042 = vrot.lane.b32.xlu0 %v685, 9
      %v1043 = vpop.permute.xlu0 %1042
      %1044 = vrot.lane.b32.xlu0 %v693, 9
      %v1045 = vpop.permute.xlu0 %1044
      %1046 = vrot.lane.b32.xlu0 %v705, 9
      %v1047 = vpop.permute.xlu0 %1046
      %1048 = vrot.lane.b32.xlu0 %v713, 9
      %v1049 = vpop.permute.xlu0 %1048
      %1050 = vrot.lane.b32.xlu0 %v725, 9
      %v1051 = vpop.permute.xlu0 %1050
      %1052 = vrot.lane.b32.xlu0 %v733, 9
      %v1053 = vpop.permute.xlu0 %1052
      %1054 = vrot.lane.b32.xlu0 %v745, 9
      %v1055 = vpop.permute.xlu0 %1054
      %1056 = vrot.lane.b32.xlu0 %v753, 9
      %v1057 = vpop.permute.xlu0 %1056
      %1058 = vrot.lane.b32.xlu0 %v765, 9
      %v1059 = vpop.permute.xlu0 %1058
      %1060 = vrot.lane.b32.xlu0 %v773, 9
      %v1061 = vpop.permute.xlu0 %1060
      %1062 = vrot.lane.b32.xlu0 %v785, 9
      %v1063 = vpop.permute.xlu0 %1062
      %1064 = vrot.lane.b32.xlu0 %v793, 9
      %v1065 = vpop.permute.xlu0 %1064
      %1066 = vrot.lane.b32.xlu0 %v805, 9
      %v1067 = vpop.permute.xlu0 %1066
      %1068 = vrot.lane.b32.xlu0 %v813, 9
      %v1069 = vpop.permute.xlu0 %1068
      %1070 = vrot.lane.b32.xlu0 %v825, 9
      %v1071 = vpop.permute.xlu0 %1070
      %1072 = vrot.lane.b32.xlu0 %v833, 9
      %v1073 = vpop.permute.xlu0 %1072
      %1074 = vrot.lane.b32.xlu0 %v845, 9
      %v1075 = vpop.permute.xlu0 %1074
      %1076 = vrot.lane.b32.xlu0 %v853, 9
      %v1077 = vpop.permute.xlu0 %1076
      %1078 = vrot.lane.b32.xlu0 %v865, 9
      %v1079 = vpop.permute.xlu0 %1078
      %1080 = vrot.lane.b32.xlu0 %v873, 9
      %v1081 = vpop.permute.xlu0 %1080
      %1082 = vrot.lane.b32.xlu0 %v885, 9
      %v1083 = vpop.permute.xlu0 %1082
      %1084 = vrot.lane.b32.xlu0 %v893, 9
      %v1085 = vpop.permute.xlu0 %1084
      %v1150 = vunpack.c.l.b16 %v285
      %v1151 = vunpack.c.l.b16 %v286
      %v1152 = vunpack.c.l.b16 %v287
      %v1153 = vunpack.c.l.b16 %v288
      %v1154 = vunpack.c.l.b16 %v289
      %v1155 = vunpack.c.l.b16 %v290
      %v1156 = vunpack.c.l.b16 %v291
      %v1157 = vunpack.c.l.b16 %v292
      %v1158 = vunpack.c.l.b16 %v293
      %v1159 = vunpack.c.l.b16 %v294
      %v1160 = vunpack.c.l.b16 %v295
      %v1161 = vunpack.c.l.b16 %v296
      %v1162 = vunpack.c.l.b16 %v297
      %v1163 = vunpack.c.l.b16 %v298
      %v1164 = vunpack.c.l.b16 %v299
      %v1165 = vunpack.c.l.b16 %v300
      %v1166 = vunpack.c.l.b16 %v301
      %v1167 = vunpack.c.l.b16 %v302
      %v1168 = vunpack.c.l.b16 %v303
      %v1169 = vunpack.c.l.b16 %v304
      %v1170 = vunpack.c.l.b16 %v305
      %v1171 = vunpack.c.l.b16 %v306
      %v1172 = vunpack.c.l.b16 %v307
      %v1173 = vunpack.c.l.b16 %v308
      %v1174 = vunpack.c.l.b16 %v309
      %v1175 = vunpack.c.l.b16 %v310
      %v1176 = vunpack.c.l.b16 %v311
      %v1177 = vunpack.c.l.b16 %v312
      %v1178 = vunpack.c.l.b16 %v313
      %v1179 = vunpack.c.l.b16 %v314
      %v1180 = vunpack.c.l.b16 %v315
      %v1181 = vunpack.c.l.b16 %v316
      %v1182 = vunpack.c.l.b16 %v317
      %v1183 = vunpack.c.l.b16 %v318
      %v1184 = vunpack.c.l.b16 %v319
      %v1185 = vunpack.c.l.b16 %v320
      %v1186 = vunpack.c.l.b16 %v321
      %v1187 = vunpack.c.l.b16 %v322
      %v1188 = vunpack.c.l.b16 %v323
      %v1189 = vunpack.c.l.b16 %v324
      %v1190 = vunpack.c.l.b16 %v325
      %v1191 = vunpack.c.l.b16 %v326
      %v1192 = vunpack.c.l.b16 %v327
      %v1193 = vunpack.c.l.b16 %v328
      %v1194 = vunpack.c.l.b16 %v329
      %v1195 = vunpack.c.l.b16 %v330
      %v1196 = vunpack.c.l.b16 %v331
      %v1197 = vunpack.c.l.b16 %v332
      %v1198 = vunpack.c.l.b16 %v333
      %v1199 = vunpack.c.l.b16 %v334
      %v1200 = vunpack.c.l.b16 %v335
      %v1201 = vunpack.c.l.b16 %v336
      %v1202 = vunpack.c.l.b16 %v337
      %v1203 = vunpack.c.l.b16 %v338
      %v1204 = vunpack.c.l.b16 %v339
      %v1205 = vunpack.c.l.b16 %v340
      %v1206 = vunpack.c.l.b16 %v341
      %v1207 = vunpack.c.l.b16 %v342
      %v1208 = vunpack.c.l.b16 %v343
      %v1209 = vunpack.c.l.b16 %v344
      %v1210 = vunpack.c.l.b16 %v345
      %v1211 = vunpack.c.l.b16 %v346
      %v1212 = vunpack.c.l.b16 %v347
      %v1213 = vunpack.c.l.b16 %v348
      %v1214 = vpack.c.b16 %v1151, %v1150
      %v1215 = vpack.c.b16 %v1153, %v1152
      %v1216 = vpack.c.b16 %v1155, %v1154
      %v1217 = vpack.c.b16 %v1157, %v1156
      %v1218 = vpack.c.b16 %v1159, %v1158
      %v1219 = vpack.c.b16 %v1161, %v1160
      %v1220 = vpack.c.b16 %v1163, %v1162
      %v1221 = vpack.c.b16 %v1165, %v1164
      %v1222 = vpack.c.b16 %v1167, %v1166
      %v1223 = vpack.c.b16 %v1169, %v1168
      %v1224 = vpack.c.b16 %v1171, %v1170
      %v1225 = vpack.c.b16 %v1173, %v1172
      %v1226 = vpack.c.b16 %v1175, %v1174
      %v1227 = vpack.c.b16 %v1177, %v1176
      %v1228 = vpack.c.b16 %v1179, %v1178
      %v1229 = vpack.c.b16 %v1181, %v1180
      %v1230 = vpack.c.b16 %v1183, %v1182
      %v1231 = vpack.c.b16 %v1185, %v1184
      %v1232 = vpack.c.b16 %v1187, %v1186
      %v1233 = vpack.c.b16 %v1189, %v1188
      %v1234 = vpack.c.b16 %v1191, %v1190
      %v1235 = vpack.c.b16 %v1193, %v1192
      %v1236 = vpack.c.b16 %v1195, %v1194
      %v1237 = vpack.c.b16 %v1197, %v1196
      %v1238 = vpack.c.b16 %v1199, %v1198
      %v1239 = vpack.c.b16 %v1201, %v1200
      %v1240 = vpack.c.b16 %v1203, %v1202
      %v1241 = vpack.c.b16 %v1205, %v1204
      %v1242 = vpack.c.b16 %v1207, %v1206
      %v1243 = vpack.c.b16 %v1209, %v1208
      %v1244 = vpack.c.b16 %v1211, %v1210
      %v1245 = vpack.c.b16 %v1213, %v1212
      %1246 = vrot.lane.b32.xlu0 %v1214, 18
      %v1247 = vpop.permute.xlu0 %1246
      %1248 = vrot.lane.b32.xlu0 %v1215, 18
      %v1249 = vpop.permute.xlu0 %1248
      %1250 = vrot.lane.b32.xlu0 %v1216, 18
      %v1251 = vpop.permute.xlu0 %1250
      %1252 = vrot.lane.b32.xlu0 %v1217, 18
      %v1253 = vpop.permute.xlu0 %1252
      %1254 = vrot.lane.b32.xlu0 %v1218, 18
      %v1255 = vpop.permute.xlu0 %1254
      %1256 = vrot.lane.b32.xlu0 %v1219, 18
      %v1257 = vpop.permute.xlu0 %1256
      %1258 = vrot.lane.b32.xlu0 %v1220, 18
      %v1259 = vpop.permute.xlu0 %1258
      %1260 = vrot.lane.b32.xlu0 %v1221, 18
      %v1261 = vpop.permute.xlu0 %1260
      %1262 = vrot.lane.b32.xlu0 %v1222, 18
      %v1263 = vpop.permute.xlu0 %1262
      %1264 = vrot.lane.b32.xlu0 %v1223, 18
      %v1265 = vpop.permute.xlu0 %1264
      %1266 = vrot.lane.b32.xlu0 %v1224, 18
      %v1267 = vpop.permute.xlu0 %1266
      %1268 = vrot.lane.b32.xlu0 %v1225, 18
      %v1269 = vpop.permute.xlu0 %1268
      %1270 = vrot.lane.b32.xlu0 %v1226, 18
      %v1271 = vpop.permute.xlu0 %1270
      %1272 = vrot.lane.b32.xlu0 %v1227, 18
      %v1273 = vpop.permute.xlu0 %1272
      %1274 = vrot.lane.b32.xlu0 %v1228, 18
      %v1275 = vpop.permute.xlu0 %1274
      %1276 = vrot.lane.b32.xlu0 %v1229, 18
      %v1277 = vpop.permute.xlu0 %1276
      %1278 = vrot.lane.b32.xlu0 %v1230, 18
      %v1279 = vpop.permute.xlu0 %1278
      %1280 = vrot.lane.b32.xlu0 %v1231, 18
      %v1281 = vpop.permute.xlu0 %1280
      %1282 = vrot.lane.b32.xlu0 %v1232, 18
      %v1283 = vpop.permute.xlu0 %1282
      %1284 = vrot.lane.b32.xlu0 %v1233, 18
      %v1285 = vpop.permute.xlu0 %1284
      %1286 = vrot.lane.b32.xlu0 %v1234, 18
      %v1287 = vpop.permute.xlu0 %1286
      %1288 = vrot.lane.b32.xlu0 %v1235, 18
      %v1289 = vpop.permute.xlu0 %1288
      %1290 = vrot.lane.b32.xlu0 %v1236, 18
      %v1291 = vpop.permute.xlu0 %1290
      %1292 = vrot.lane.b32.xlu0 %v1237, 18
      %v1293 = vpop.permute.xlu0 %1292
      %1294 = vrot.lane.b32.xlu0 %v1238, 18
      %v1295 = vpop.permute.xlu0 %1294
      %1296 = vrot.lane.b32.xlu0 %v1239, 18
      %v1297 = vpop.permute.xlu0 %1296
      %1298 = vrot.lane.b32.xlu0 %v1240, 18
      %v1299 = vpop.permute.xlu0 %1298
      %1300 = vrot.lane.b32.xlu0 %v1241, 18
      %v1301 = vpop.permute.xlu0 %1300
      %1302 = vrot.lane.b32.xlu0 %v1242, 18
      %v1303 = vpop.permute.xlu0 %1302
      %1304 = vrot.lane.b32.xlu0 %v1243, 18
      %v1305 = vpop.permute.xlu0 %1304
      %1306 = vrot.lane.b32.xlu0 %v1244, 18
      %v1307 = vpop.permute.xlu0 %1306
      %1308 = vrot.lane.b32.xlu0 %v1245, 18
      %v1309 = vpop.permute.xlu0 %1308
      %v1326 = vunpack.c.l.b16 %v349
      %v1327 = vunpack.c.l.b16 %v350
      %v1328 = vunpack.c.l.b16 %v351
      %v1329 = vunpack.c.l.b16 %v352
      %v1330 = vunpack.c.l.b16 %v353
      %v1331 = vunpack.c.l.b16 %v354
      %v1332 = vunpack.c.l.b16 %v355
      %v1333 = vunpack.c.l.b16 %v356
      %v1334 = vunpack.c.l.b16 %v357
      %v1335 = vunpack.c.l.b16 %v358
      %v1336 = vunpack.c.l.b16 %v359
      %v1337 = vunpack.c.l.b16 %v360
      %v1338 = vunpack.c.l.b16 %v361
      %v1339 = vunpack.c.l.b16 %v362
      %v1340 = vunpack.c.l.b16 %v363
      %v1341 = vunpack.c.l.b16 %v364
      %v1342 = vpack.c.b16 %v1326, %v1326
      %v1343 = vpack.c.b16 %v1327, %v1327
      %v1344 = vpack.c.b16 %v1328, %v1328
      %v1345 = vpack.c.b16 %v1329, %v1329
      %v1346 = vpack.c.b16 %v1330, %v1330
      %v1347 = vpack.c.b16 %v1331, %v1331
      %v1348 = vpack.c.b16 %v1332, %v1332
      %v1349 = vpack.c.b16 %v1333, %v1333
      %v1350 = vpack.c.b16 %v1334, %v1334
      %v1351 = vpack.c.b16 %v1335, %v1335
      %v1352 = vpack.c.b16 %v1336, %v1336
      %v1353 = vpack.c.b16 %v1337, %v1337
      %v1354 = vpack.c.b16 %v1338, %v1338
      %v1355 = vpack.c.b16 %v1339, %v1339
      %v1356 = vpack.c.b16 %v1340, %v1340
      %v1357 = vpack.c.b16 %v1341, %v1341
      %v1359 = vshrl.u32 %v1214, 16
      %v1361 = vshll.u32 %v1214, 16
      %v1363 = vrot.slane %v1361, 1
      %v1364 = vor.u32 %v1359, %v1363
      %v1366 = vshll.u32 %v1215, 16
      %v1368 = vrot.slane %v1366, 1
      %v1369 = vsel %vm573, %v1364, %v1368
      %v1370 = vshrl.u32 %v1215, 16
      %v1372 = vor.u32 %v1370, %v1368
      %v1374 = vshll.u32 %v1342, 16
      %v1376 = vrot.slane %v1374, 1
      %v1377 = vsel %vm573, %v1372, %v1376
      %v1379 = vshrl.u32 %v1216, 16
      %v1381 = vshll.u32 %v1216, 16
      %v1383 = vrot.slane %v1381, 1
      %v1384 = vor.u32 %v1379, %v1383
      %v1386 = vshll.u32 %v1217, 16
      %v1388 = vrot.slane %v1386, 1
      %v1389 = vsel %vm573, %v1384, %v1388
      %v1390 = vshrl.u32 %v1217, 16
      %v1392 = vor.u32 %v1390, %v1388
      %v1394 = vshll.u32 %v1343, 16
      %v1396 = vrot.slane %v1394, 1
      %v1397 = vsel %vm573, %v1392, %v1396
      %v1399 = vshrl.u32 %v1218, 16
      %v1401 = vshll.u32 %v1218, 16
      %v1403 = vrot.slane %v1401, 1
      %v1404 = vor.u32 %v1399, %v1403
      %v1406 = vshll.u32 %v1219, 16
      %v1408 = vrot.slane %v1406, 1
      %v1409 = vsel %vm573, %v1404, %v1408
      %v1410 = vshrl.u32 %v1219, 16
      %v1412 = vor.u32 %v1410, %v1408
      %v1414 = vshll.u32 %v1344, 16
      %v1416 = vrot.slane %v1414, 1
      %v1417 = vsel %vm573, %v1412, %v1416
      %v1419 = vshrl.u32 %v1220, 16
      %v1421 = vshll.u32 %v1220, 16
      %v1423 = vrot.slane %v1421, 1
      %v1424 = vor.u32 %v1419, %v1423
      %v1426 = vshll.u32 %v1221, 16
      %v1428 = vrot.slane %v1426, 1
      %v1429 = vsel %vm573, %v1424, %v1428
      %v1430 = vshrl.u32 %v1221, 16
      %v1432 = vor.u32 %v1430, %v1428
      %v1434 = vshll.u32 %v1345, 16
      %v1436 = vrot.slane %v1434, 1
      %v1437 = vsel %vm573, %v1432, %v1436
      %v1439 = vshrl.u32 %v1222, 16
      %v1441 = vshll.u32 %v1222, 16
      %v1443 = vrot.slane %v1441, 1
      %v1444 = vor.u32 %v1439, %v1443
      %v1446 = vshll.u32 %v1223, 16
      %v1448 = vrot.slane %v1446, 1
      %v1449 = vsel %vm573, %v1444, %v1448
      %v1450 = vshrl.u32 %v1223, 16
      %v1452 = vor.u32 %v1450, %v1448
      %v1454 = vshll.u32 %v1346, 16
      %v1456 = vrot.slane %v1454, 1
      %v1457 = vsel %vm573, %v1452, %v1456
      %v1459 = vshrl.u32 %v1224, 16
      %v1461 = vshll.u32 %v1224, 16
      %v1463 = vrot.slane %v1461, 1
      %v1464 = vor.u32 %v1459, %v1463
      %v1466 = vshll.u32 %v1225, 16
      %v1468 = vrot.slane %v1466, 1
      %v1469 = vsel %vm573, %v1464, %v1468
      %v1470 = vshrl.u32 %v1225, 16
      %v1472 = vor.u32 %v1470, %v1468
      %v1474 = vshll.u32 %v1347, 16
      %v1476 = vrot.slane %v1474, 1
      %v1477 = vsel %vm573, %v1472, %v1476
      %v1479 = vshrl.u32 %v1226, 16
      %v1481 = vshll.u32 %v1226, 16
      %v1483 = vrot.slane %v1481, 1
      %v1484 = vor.u32 %v1479, %v1483
      %v1486 = vshll.u32 %v1227, 16
      %v1488 = vrot.slane %v1486, 1
      %v1489 = vsel %vm573, %v1484, %v1488
      %v1490 = vshrl.u32 %v1227, 16
      %v1492 = vor.u32 %v1490, %v1488
      %v1494 = vshll.u32 %v1348, 16
      %v1496 = vrot.slane %v1494, 1
      %v1497 = vsel %vm573, %v1492, %v1496
      %v1499 = vshrl.u32 %v1228, 16
      %v1501 = vshll.u32 %v1228, 16
      %v1503 = vrot.slane %v1501, 1
      %v1504 = vor.u32 %v1499, %v1503
      %v1506 = vshll.u32 %v1229, 16
      %v1508 = vrot.slane %v1506, 1
      %v1509 = vsel %vm573, %v1504, %v1508
      %v1510 = vshrl.u32 %v1229, 16
      %v1512 = vor.u32 %v1510, %v1508
      %v1514 = vshll.u32 %v1349, 16
      %v1516 = vrot.slane %v1514, 1
      %v1517 = vsel %vm573, %v1512, %v1516
      %v1519 = vshrl.u32 %v1230, 16
      %v1521 = vshll.u32 %v1230, 16
      %v1523 = vrot.slane %v1521, 1
      %v1524 = vor.u32 %v1519, %v1523
      %v1526 = vshll.u32 %v1231, 16
      %v1528 = vrot.slane %v1526, 1
      %v1529 = vsel %vm573, %v1524, %v1528
      %v1530 = vshrl.u32 %v1231, 16
      %v1532 = vor.u32 %v1530, %v1528
      %v1534 = vshll.u32 %v1350, 16
      %v1536 = vrot.slane %v1534, 1
      %v1537 = vsel %vm573, %v1532, %v1536
      %v1539 = vshrl.u32 %v1232, 16
      %v1541 = vshll.u32 %v1232, 16
      %v1543 = vrot.slane %v1541, 1
      %v1544 = vor.u32 %v1539, %v1543
      %v1546 = vshll.u32 %v1233, 16
      %v1548 = vrot.slane %v1546, 1
      %v1549 = vsel %vm573, %v1544, %v1548
      %v1550 = vshrl.u32 %v1233, 16
      %v1552 = vor.u32 %v1550, %v1548
      %v1554 = vshll.u32 %v1351, 16
      %v1556 = vrot.slane %v1554, 1
      %v1557 = vsel %vm573, %v1552, %v1556
      %v1559 = vshrl.u32 %v1234, 16
      %v1561 = vshll.u32 %v1234, 16
      %v1563 = vrot.slane %v1561, 1
      %v1564 = vor.u32 %v1559, %v1563
      %v1566 = vshll.u32 %v1235, 16
      %v1568 = vrot.slane %v1566, 1
      %v1569 = vsel %vm573, %v1564, %v1568
      %v1570 = vshrl.u32 %v1235, 16
      %v1572 = vor.u32 %v1570, %v1568
      %v1574 = vshll.u32 %v1352, 16
      %v1576 = vrot.slane %v1574, 1
      %v1577 = vsel %vm573, %v1572, %v1576
      %v1579 = vshrl.u32 %v1236, 16
      %v1581 = vshll.u32 %v1236, 16
      %v1583 = vrot.slane %v1581, 1
      %v1584 = vor.u32 %v1579, %v1583
      %v1586 = vshll.u32 %v1237, 16
      %v1588 = vrot.slane %v1586, 1
      %v1589 = vsel %vm573, %v1584, %v1588
      %v1590 = vshrl.u32 %v1237, 16
      %v1592 = vor.u32 %v1590, %v1588
      %v1594 = vshll.u32 %v1353, 16
      %v1596 = vrot.slane %v1594, 1
      %v1597 = vsel %vm573, %v1592, %v1596
      %v1599 = vshrl.u32 %v1238, 16
      %v1601 = vshll.u32 %v1238, 16
      %v1603 = vrot.slane %v1601, 1
      %v1604 = vor.u32 %v1599, %v1603
      %v1606 = vshll.u32 %v1239, 16
      %v1608 = vrot.slane %v1606, 1
      %v1609 = vsel %vm573, %v1604, %v1608
      %v1610 = vshrl.u32 %v1239, 16
      %v1612 = vor.u32 %v1610, %v1608
      %v1614 = vshll.u32 %v1354, 16
      %v1616 = vrot.slane %v1614, 1
      %v1617 = vsel %vm573, %v1612, %v1616
      %v1619 = vshrl.u32 %v1240, 16
      %v1621 = vshll.u32 %v1240, 16
      %v1623 = vrot.slane %v1621, 1
      %v1624 = vor.u32 %v1619, %v1623
      %v1626 = vshll.u32 %v1241, 16
      %v1628 = vrot.slane %v1626, 1
      %v1629 = vsel %vm573, %v1624, %v1628
      %v1630 = vshrl.u32 %v1241, 16
      %v1632 = vor.u32 %v1630, %v1628
      %v1634 = vshll.u32 %v1355, 16
      %v1636 = vrot.slane %v1634, 1
      %v1637 = vsel %vm573, %v1632, %v1636
      %v1639 = vshrl.u32 %v1242, 16
      %v1641 = vshll.u32 %v1242, 16
      %v1643 = vrot.slane %v1641, 1
      %v1644 = vor.u32 %v1639, %v1643
      %v1646 = vshll.u32 %v1243, 16
      %v1648 = vrot.slane %v1646, 1
      %v1649 = vsel %vm573, %v1644, %v1648
      %v1650 = vshrl.u32 %v1243, 16
      %v1652 = vor.u32 %v1650, %v1648
      %v1654 = vshll.u32 %v1356, 16
      %v1656 = vrot.slane %v1654, 1
      %v1657 = vsel %vm573, %v1652, %v1656
      %v1659 = vshrl.u32 %v1244, 16
      %v1661 = vshll.u32 %v1244, 16
      %v1663 = vrot.slane %v1661, 1
      %v1664 = vor.u32 %v1659, %v1663
      %v1666 = vshll.u32 %v1245, 16
      %v1668 = vrot.slane %v1666, 1
      %v1669 = vsel %vm573, %v1664, %v1668
      %v1670 = vshrl.u32 %v1245, 16
      %v1672 = vor.u32 %v1670, %v1668
      %v1674 = vshll.u32 %v1357, 16
      %v1676 = vrot.slane %v1674, 1
      %v1677 = vsel %vm573, %v1672, %v1676
      %1678 = vrot.lane.b32.xlu0 %v1369, 24
      %v1679 = vpop.permute.xlu0 %1678
      %1680 = vrot.lane.b32.xlu0 %v1377, 24
      %v1681 = vpop.permute.xlu0 %1680
      %1682 = vrot.lane.b32.xlu0 %v1389, 24
      %v1683 = vpop.permute.xlu0 %1682
      %1684 = vrot.lane.b32.xlu0 %v1397, 24
      %v1685 = vpop.permute.xlu0 %1684
      %1686 = vrot.lane.b32.xlu0 %v1409, 24
      %v1687 = vpop.permute.xlu0 %1686
      %1688 = vrot.lane.b32.xlu0 %v1417, 24
      %v1689 = vpop.permute.xlu0 %1688
      %1690 = vrot.lane.b32.xlu0 %v1429, 24
      %v1691 = vpop.permute.xlu0 %1690
      %1692 = vrot.lane.b32.xlu0 %v1437, 24
      %v1693 = vpop.permute.xlu0 %1692
      %1694 = vrot.lane.b32.xlu0 %v1449, 24
      %v1695 = vpop.permute.xlu0 %1694
      %1696 = vrot.lane.b32.xlu0 %v1457, 24
      %v1697 = vpop.permute.xlu0 %1696
      %1698 = vrot.lane.b32.xlu0 %v1469, 24
      %v1699 = vpop.permute.xlu0 %1698
      %1700 = vrot.lane.b32.xlu0 %v1477, 24
      %v1701 = vpop.permute.xlu0 %1700
      %1702 = vrot.lane.b32.xlu0 %v1489, 24
      %v1703 = vpop.permute.xlu0 %1702
      %1704 = vrot.lane.b32.xlu0 %v1497, 24
      %v1705 = vpop.permute.xlu0 %1704
      %1706 = vrot.lane.b32.xlu0 %v1509, 24
      %v1707 = vpop.permute.xlu0 %1706
      %1708 = vrot.lane.b32.xlu0 %v1517, 24
      %v1709 = vpop.permute.xlu0 %1708
      %1710 = vrot.lane.b32.xlu0 %v1529, 24
      %v1711 = vpop.permute.xlu0 %1710
      %1712 = vrot.lane.b32.xlu0 %v1537, 24
      %v1713 = vpop.permute.xlu0 %1712
      %1714 = vrot.lane.b32.xlu0 %v1549, 24
      %v1715 = vpop.permute.xlu0 %1714
      %1716 = vrot.lane.b32.xlu0 %v1557, 24
      %v1717 = vpop.permute.xlu0 %1716
      %1718 = vrot.lane.b32.xlu0 %v1569, 24
      %v1719 = vpop.permute.xlu0 %1718
      %1720 = vrot.lane.b32.xlu0 %v1577, 24
      %v1721 = vpop.permute.xlu0 %1720
      %1722 = vrot.lane.b32.xlu0 %v1589, 24
      %v1723 = vpop.permute.xlu0 %1722
      %1724 = vrot.lane.b32.xlu0 %v1597, 24
      %v1725 = vpop.permute.xlu0 %1724
      %1726 = vrot.lane.b32.xlu0 %v1609, 24
      %v1727 = vpop.permute.xlu0 %1726
      %1728 = vrot.lane.b32.xlu0 %v1617, 24
      %v1729 = vpop.permute.xlu0 %1728
      %1730 = vrot.lane.b32.xlu0 %v1629, 24
      %v1731 = vpop.permute.xlu0 %1730
      %1732 = vrot.lane.b32.xlu0 %v1637, 24
      %v1733 = vpop.permute.xlu0 %1732
      %1734 = vrot.lane.b32.xlu0 %v1649, 24
      %v1735 = vpop.permute.xlu0 %1734
      %1736 = vrot.lane.b32.xlu0 %v1657, 24
      %v1737 = vpop.permute.xlu0 %1736
      %1738 = vrot.lane.b32.xlu0 %v1669, 24
      %v1739 = vpop.permute.xlu0 %1738
      %1740 = vrot.lane.b32.xlu0 %v1677, 24
      %v1741 = vpop.permute.xlu0 %1740
      %vm1742 = vcmask 48128
      %v1744 = vsel %vm1742, %v493, %v895
      %v1746 = vsel %vm1742, %v494, %v897
      %v1748 = vsel %vm1742, %v495, %v899
      %v1750 = vsel %vm1742, %v496, %v901
      %v1752 = vsel %vm1742, %v497, %v903
      %v1754 = vsel %vm1742, %v498, %v905
      %v1756 = vsel %vm1742, %v499, %v907
      %v1758 = vsel %vm1742, %v500, %v909
      %v1760 = vsel %vm1742, %v501, %v911
      %v1762 = vsel %vm1742, %v502, %v913
      %v1764 = vsel %vm1742, %v503, %v915
      %v1766 = vsel %vm1742, %v504, %v917
      %v1768 = vsel %vm1742, %v505, %v919
      %v1770 = vsel %vm1742, %v506, %v921
      %v1772 = vsel %vm1742, %v507, %v923
      %v1774 = vsel %vm1742, %v508, %v925
      %v1776 = vsel %vm1742, %v509, %v927
      %v1778 = vsel %vm1742, %v510, %v929
      %v1780 = vsel %vm1742, %v511, %v931
      %v1782 = vsel %vm1742, %v512, %v933
      %v1784 = vsel %vm1742, %v513, %v935
      %v1786 = vsel %vm1742, %v514, %v937
      %v1788 = vsel %vm1742, %v515, %v939
      %v1790 = vsel %vm1742, %v516, %v941
      %v1792 = vsel %vm1742, %v517, %v943
      %v1794 = vsel %vm1742, %v518, %v945
      %v1796 = vsel %vm1742, %v519, %v947
      %v1798 = vsel %vm1742, %v520, %v949
      %v1800 = vsel %vm1742, %v521, %v951
      %v1802 = vsel %vm1742, %v522, %v953
      %v1804 = vsel %vm1742, %v523, %v955
      %v1806 = vsel %vm1742, %v524, %v957
      %vm1807 = vcmask 72704
      %v1809 = vsel %vm1807, %v1744, %v959
      %v1811 = vsel %vm1807, %v1746, %v961
      %v1813 = vsel %vm1807, %v1748, %v963
      %v1815 = vsel %vm1807, %v1750, %v965
      %v1817 = vsel %vm1807, %v1752, %v967
      %v1819 = vsel %vm1807, %v1754, %v969
      %v1821 = vsel %vm1807, %v1756, %v971
      %v1823 = vsel %vm1807, %v1758, %v973
      %v1825 = vsel %vm1807, %v1760, %v975
      %v1827 = vsel %vm1807, %v1762, %v977
      %v1829 = vsel %vm1807, %v1764, %v979
      %v1831 = vsel %vm1807, %v1766, %v981
      %v1833 = vsel %vm1807, %v1768, %v983
      %v1835 = vsel %vm1807, %v1770, %v985
      %v1837 = vsel %vm1807, %v1772, %v987
      %v1839 = vsel %vm1807, %v1774, %v989
      %v1841 = vsel %vm1807, %v1776, %v991
      %v1843 = vsel %vm1807, %v1778, %v993
      %v1845 = vsel %vm1807, %v1780, %v995
      %v1847 = vsel %vm1807, %v1782, %v997
      %v1849 = vsel %vm1807, %v1784, %v999
      %v1851 = vsel %vm1807, %v1786, %v1001
      %v1853 = vsel %vm1807, %v1788, %v1003
      %v1855 = vsel %vm1807, %v1790, %v1005
      %v1857 = vsel %vm1807, %v1792, %v1007
      %v1859 = vsel %vm1807, %v1794, %v1009
      %v1861 = vsel %vm1807, %v1796, %v1011
      %v1863 = vsel %vm1807, %v1798, %v1013
      %v1865 = vsel %vm1807, %v1800, %v1015
      %v1867 = vsel %vm1807, %v1802, %v1017
      %v1869 = vsel %vm1807, %v1804, %v1019
      %v1871 = vsel %vm1807, %v1806, %v1021
      %vm1872 = vcmask 97280
      %v1873 = vsel %vm1872, %v1809, %v959
      %v1874 = vsel %vm1872, %v1811, %v961
      %v1875 = vsel %vm1872, %v1813, %v963
      %v1876 = vsel %vm1872, %v1815, %v965
      %v1877 = vsel %vm1872, %v1817, %v967
      %v1878 = vsel %vm1872, %v1819, %v969
      %v1879 = vsel %vm1872, %v1821, %v971
      %v1880 = vsel %vm1872, %v1823, %v973
      %v1881 = vsel %vm1872, %v1825, %v975
      %v1882 = vsel %vm1872, %v1827, %v977
      %v1883 = vsel %vm1872, %v1829, %v979
      %v1884 = vsel %vm1872, %v1831, %v981
      %v1885 = vsel %vm1872, %v1833, %v983
      %v1886 = vsel %vm1872, %v1835, %v985
      %v1887 = vsel %vm1872, %v1837, %v987
      %v1888 = vsel %vm1872, %v1839, %v989
      %v1889 = vsel %vm1872, %v1841, %v991
      %v1890 = vsel %vm1872, %v1843, %v993
      %v1891 = vsel %vm1872, %v1845, %v995
      %v1892 = vsel %vm1872, %v1847, %v997
      %v1893 = vsel %vm1872, %v1849, %v999
      %v1894 = vsel %vm1872, %v1851, %v1001
      %v1895 = vsel %vm1872, %v1853, %v1003
      %v1896 = vsel %vm1872, %v1855, %v1005
      %v1897 = vsel %vm1872, %v1857, %v1007
      %v1898 = vsel %vm1872, %v1859, %v1009
      %v1899 = vsel %vm1872, %v1861, %v1011
      %v1900 = vsel %vm1872, %v1863, %v1013
      %v1901 = vsel %vm1872, %v1865, %v1015
      %v1902 = vsel %vm1872, %v1867, %v1017
      %v1903 = vsel %vm1872, %v1869, %v1019
      %v1904 = vsel %vm1872, %v1871, %v1021
      %vm1905 = vcmask 121856
      %v1907 = vsel %vm1905, %v1873, %v1023
      %v1909 = vsel %vm1905, %v1874, %v1025
      %v1911 = vsel %vm1905, %v1875, %v1027
      %v1913 = vsel %vm1905, %v1876, %v1029
      %v1915 = vsel %vm1905, %v1877, %v1031
      %v1917 = vsel %vm1905, %v1878, %v1033
      %v1919 = vsel %vm1905, %v1879, %v1035
      %v1921 = vsel %vm1905, %v1880, %v1037
      %v1923 = vsel %vm1905, %v1881, %v1039
      %v1925 = vsel %vm1905, %v1882, %v1041
      %v1927 = vsel %vm1905, %v1883, %v1043
      %v1929 = vsel %vm1905, %v1884, %v1045
      %v1931 = vsel %vm1905, %v1885, %v1047
      %v1933 = vsel %vm1905, %v1886, %v1049
      %v1935 = vsel %vm1905, %v1887, %v1051
      %v1937 = vsel %vm1905, %v1888, %v1053
      %v1939 = vsel %vm1905, %v1889, %v1055
      %v1941 = vsel %vm1905, %v1890, %v1057
      %v1943 = vsel %vm1905, %v1891, %v1059
      %v1945 = vsel %vm1905, %v1892, %v1061
      %v1947 = vsel %vm1905, %v1893, %v1063
      %v1949 = vsel %vm1905, %v1894, %v1065
      %v1951 = vsel %vm1905, %v1895, %v1067
      %v1953 = vsel %vm1905, %v1896, %v1069
      %v1955 = vsel %vm1905, %v1897, %v1071
      %v1957 = vsel %vm1905, %v1898, %v1073
      %v1959 = vsel %vm1905, %v1899, %v1075
      %v1961 = vsel %vm1905, %v1900, %v1077
      %v1963 = vsel %vm1905, %v1901, %v1079
      %v1965 = vsel %vm1905, %v1902, %v1081
      %v1967 = vsel %vm1905, %v1903, %v1083
      %v1969 = vsel %vm1905, %v1904, %v1085
      %vm1970 = vcmask 146432
      %v1972 = vsel %vm1970, %v1907, %v1247
      %v1974 = vsel %vm1970, %v1909, %v1249
      %v1976 = vsel %vm1970, %v1911, %v1251
      %v1978 = vsel %vm1970, %v1913, %v1253
      %v1980 = vsel %vm1970, %v1915, %v1255
      %v1982 = vsel %vm1970, %v1917, %v1257
      %v1984 = vsel %vm1970, %v1919, %v1259
      %v1986 = vsel %vm1970, %v1921, %v1261
      %v1988 = vsel %vm1970, %v1923, %v1263
      %v1990 = vsel %vm1970, %v1925, %v1265
      %v1992 = vsel %vm1970, %v1927, %v1267
      %v1994 = vsel %vm1970, %v1929, %v1269
      %v1996 = vsel %vm1970, %v1931, %v1271
      %v1998 = vsel %vm1970, %v1933, %v1273
      %v2000 = vsel %vm1970, %v1935, %v1275
      %v2002 = vsel %vm1970, %v1937, %v1277
      %v2004 = vsel %vm1970, %v1939, %v1279
      %v2006 = vsel %vm1970, %v1941, %v1281
      %v2008 = vsel %vm1970, %v1943, %v1283
      %v2010 = vsel %vm1970, %v1945, %v1285
      %v2012 = vsel %vm1970, %v1947, %v1287
      %v2014 = vsel %vm1970, %v1949, %v1289
      %v2016 = vsel %vm1970, %v1951, %v1291
      %v2018 = vsel %vm1970, %v1953, %v1293
      %v2020 = vsel %vm1970, %v1955, %v1295
      %v2022 = vsel %vm1970, %v1957, %v1297
      %v2024 = vsel %vm1970, %v1959, %v1299
      %v2026 = vsel %vm1970, %v1961, %v1301
      %v2028 = vsel %vm1970, %v1963, %v1303
      %v2030 = vsel %vm1970, %v1965, %v1305
      %v2032 = vsel %vm1970, %v1967, %v1307
      %v2034 = vsel %vm1970, %v1969, %v1309
      %vm2035 = vcmask 171008
      %v2036 = vsel %vm2035, %v1972, %v1247
      %v2037 = vsel %vm2035, %v1974, %v1249
      %v2038 = vsel %vm2035, %v1976, %v1251
      %v2039 = vsel %vm2035, %v1978, %v1253
      %v2040 = vsel %vm2035, %v1980, %v1255
      %v2041 = vsel %vm2035, %v1982, %v1257
      %v2042 = vsel %vm2035, %v1984, %v1259
      %v2043 = vsel %vm2035, %v1986, %v1261
      %v2044 = vsel %vm2035, %v1988, %v1263
      %v2045 = vsel %vm2035, %v1990, %v1265
      %v2046 = vsel %vm2035, %v1992, %v1267
      %v2047 = vsel %vm2035, %v1994, %v1269
      %v2048 = vsel %vm2035, %v1996, %v1271
      %v2049 = vsel %vm2035, %v1998, %v1273
      %v2050 = vsel %vm2035, %v2000, %v1275
      %v2051 = vsel %vm2035, %v2002, %v1277
      %v2052 = vsel %vm2035, %v2004, %v1279
      %v2053 = vsel %vm2035, %v2006, %v1281
      %v2054 = vsel %vm2035, %v2008, %v1283
      %v2055 = vsel %vm2035, %v2010, %v1285
      %v2056 = vsel %vm2035, %v2012, %v1287
      %v2057 = vsel %vm2035, %v2014, %v1289
      %v2058 = vsel %vm2035, %v2016, %v1291
      %v2059 = vsel %vm2035, %v2018, %v1293
      %v2060 = vsel %vm2035, %v2020, %v1295
      %v2061 = vsel %vm2035, %v2022, %v1297
      %v2062 = vsel %vm2035, %v2024, %v1299
      %v2063 = vsel %vm2035, %v2026, %v1301
      %v2064 = vsel %vm2035, %v2028, %v1303
      %v2065 = vsel %vm2035, %v2030, %v1305
      %v2066 = vsel %vm2035, %v2032, %v1307
      %v2067 = vsel %vm2035, %v2034, %v1309
      %vm2068 = vcmask 195584
      %v2070 = vsel %vm2068, %v2036, %v1679
      %v2072 = vsel %vm2068, %v2037, %v1681
      %v2074 = vsel %vm2068, %v2038, %v1683
      %v2076 = vsel %vm2068, %v2039, %v1685
      %v2078 = vsel %vm2068, %v2040, %v1687
      %v2080 = vsel %vm2068, %v2041, %v1689
      %v2082 = vsel %vm2068, %v2042, %v1691
      %v2084 = vsel %vm2068, %v2043, %v1693
      %v2086 = vsel %vm2068, %v2044, %v1695
      %v2088 = vsel %vm2068, %v2045, %v1697
      %v2090 = vsel %vm2068, %v2046, %v1699
      %v2092 = vsel %vm2068, %v2047, %v1701
      %v2094 = vsel %vm2068, %v2048, %v1703
      %v2096 = vsel %vm2068, %v2049, %v1705
      %v2098 = vsel %vm2068, %v2050, %v1707
      %v2100 = vsel %vm2068, %v2051, %v1709
      %v2102 = vsel %vm2068, %v2052, %v1711
      %v2104 = vsel %vm2068, %v2053, %v1713
      %v2106 = vsel %vm2068, %v2054, %v1715
      %v2108 = vsel %vm2068, %v2055, %v1717
      %v2110 = vsel %vm2068, %v2056, %v1719
      %v2112 = vsel %vm2068, %v2057, %v1721
      %v2114 = vsel %vm2068, %v2058, %v1723
      %v2116 = vsel %vm2068, %v2059, %v1725
      %v2118 = vsel %vm2068, %v2060, %v1727
      %v2120 = vsel %vm2068, %v2061, %v1729
      %v2122 = vsel %vm2068, %v2062, %v1731
      %v2124 = vsel %vm2068, %v2063, %v1733
      %v2126 = vsel %vm2068, %v2064, %v1735
      %v2128 = vsel %vm2068, %v2065, %v1737
      %v2130 = vsel %vm2068, %v2066, %v1739
      %v2132 = vsel %vm2068, %v2067, %v1741
      %v2133 = vld [vmem:[%s1] sm:$0xf]
      %v2134 = vld [vmem:[%s1 + $0x4] sm:$0xf]
      %v2135 = vld [vmem:[%s1 + $0x8] sm:$0xf]
      %v2136 = vld [vmem:[%s1 + $0xc] sm:$0x3]
      %v2137 = vld [vmem:[%s2] sm:$0x1]
      %v2139 = vlaneseq
      %v2140 = vshrl.u32 %v2139, 7
      %v2141 = vsub.s32 0, %v2140
      %v2142 = vrot.slane %v2137, %v2141
      %v2148 = vunpack.c.l.b16 %v2133
      %v2149 = vunpack.c.l.b16 %v2134
      %v2150 = vunpack.c.l.b16 %v2135
      %v2151 = vunpack.c.l.b16 %v2136
      %v2152 = vpack.c.b16 %v2149, %v2148
      %v2153 = vpack.c.b16 %v2151, %v2150
      %vm2155 = vcmask 220160
      %v2156 = vsel %vm2155, %v2070, 0
      %v2158 = vsel %vm2155, %v2072, 0
      %v2160 = vsel %vm2155, %v2074, 0
      %v2162 = vsel %vm2155, %v2076, 0
      %v2164 = vsel %vm2155, %v2078, 0
      %v2166 = vsel %vm2155, %v2080, 0
      %v2168 = vsel %vm2155, %v2082, 0
      %v2170 = vsel %vm2155, %v2084, 0
      %v2172 = vsel %vm2155, %v2086, 0
      %v2174 = vsel %vm2155, %v2088, 0
      %v2176 = vsel %vm2155, %v2090, 0
      %v2178 = vsel %vm2155, %v2092, 0
      %v2180 = vsel %vm2155, %v2094, 0
      %v2182 = vsel %vm2155, %v2096, 0
      %v2184 = vsel %vm2155, %v2098, 0
      %v2186 = vsel %vm2155, %v2100, 0
      %v2188 = vsel %vm2155, %v2102, 0
      %v2190 = vsel %vm2155, %v2104, 0
      %v2192 = vsel %vm2155, %v2106, 0
      %v2194 = vsel %vm2155, %v2108, 0
      %v2196 = vsel %vm2155, %v2110, 0
      %v2198 = vsel %vm2155, %v2112, 0
      %v2200 = vsel %vm2155, %v2114, 0
      %v2202 = vsel %vm2155, %v2116, 0
      %v2204 = vsel %vm2155, %v2118, 0
      %v2206 = vsel %vm2155, %v2120, 0
      %v2208 = vsel %vm2155, %v2122, 0
      %v2210 = vsel %vm2155, %v2124, 0
      %v2212 = vsel %vm2155, %v2126, 0
      %v2214 = vsel %vm2155, %v2128, 0
      %v2216 = vsel %vm2155, %v2130, 0
      %v2218 = vsel %vm2155, %v2132, 0
      %vm2220 = vcmask 1044480
      %vm2221 = vcmask 1045504
      %v2222 = vsel %vm2220, 4294967295, 65535
      %v2223 = vsel %vm2221, %v2222, 0
      %v2225 = vand.u32 %v2153, %v2223
      %2227 = vmatprep.subr.bf16.mxu0 0
      %2228 = vmatpush1.bf16.msra.mxu0 %v2152
      %2229 = vmatprep.subr.bf16.mxu0 0
      %2230 = vmatpush1.bf16.msra.mxu0 %v2225
      %2231 = vmatprep.subr.bf16.mxu0 0
      %2232 = vmatpush1.bf16.msra.mxu0 0
      %2233 = vmatprep.subr.bf16.mxu0 0
      %2234 = vmatpush1.bf16.msra.mxu0 0
      %2235 = vmatprep.subr.bf16.mxu0 0
      %2236 = vmatpush1.bf16.msra.mxu0 0
      %2237 = vmatprep.subr.bf16.mxu0 0
      %2238 = vmatpush1.bf16.msra.mxu0 0
      %2239 = vmatprep.subr.bf16.mxu0 0
      %2240 = vmatpush1.bf16.msra.mxu0 0
      %2241 = vmatprep.subr.bf16.mxu0 0
      %2242 = vmatpush1.bf16.msra.mxu0 0
      %2243 = vmatprep.subr.bf16.mxu0 0
      %2244 = vmatpush1.bf16.msra.mxu0 0
      %2245 = vmatprep.subr.bf16.mxu0 0
      %2246 = vmatpush1.bf16.msra.mxu0 0
      %2247 = vmatprep.subr.bf16.mxu0 0
      %2248 = vmatpush1.bf16.msra.mxu0 0
      %2249 = vmatprep.subr.bf16.mxu0 0
      %2250 = vmatpush1.bf16.msra.mxu0 0
      %2251 = vmatprep.subr.bf16.mxu0 0
      %2252 = vmatpush1.bf16.msra.mxu0 0
      %2253 = vmatprep.subr.bf16.mxu0 0
      %2254 = vmatpush1.bf16.msra.mxu0 0
      %2255 = vmatprep.subr.bf16.mxu0 0
      %2256 = vmatpush1.bf16.msra.mxu0 0
      %2257 = vmatprep.subr.bf16.mxu0 0
      %2258 = vmatpush1.bf16.msra.mxu0 0
      %2259 = vmatprep.mubr.bf16.mxu0 0
      %2260 = vmatmul.mubr.bf16.gmra.mrb[0].mxu0 %v2156
      %v2261 = vpop.f32.mrb[0].mxu0
      %v2262 = vadd.f32 %v2142, %v2261
      %v2263 = vpop.f32.mrb[0].mxu0
      %v2264 = vpop.f32.mrb[0].mxu0
      %v2265 = vadd.f32 %v2142, %v2264
      %v2266 = vpop.f32.mrb[0].mxu0
      %2267 = vmatprep.mubr.bf16.mxu0 0
      %2268 = vmatmul.mubr.bf16.gmra.mrb[0].mxu0 %v2158
      %v2269 = vpop.f32.mrb[0].mxu0
      %v2270 = vadd.f32 %v2142, %v2269
      %v2271 = vpop.f32.mrb[0].mxu0
      %v2272 = vpop.f32.mrb[0].mxu0
      %v2273 = vadd.f32 %v2142, %v2272
      %v2274 = vpop.f32.mrb[0].mxu0
      %2275 = vmatprep.mubr.bf16.mxu0 0
      %2276 = vmatmul.mubr.bf16.gmra.mrb[0].mxu0 %v2160
      %v2277 = vpop.f32.mrb[0].mxu0
      %v2278 = vadd.f32 %v2142, %v2277
      %v2279 = vpop.f32.mrb[0].mxu0
      %v2280 = vpop.f32.mrb[0].mxu0
      %v2281 = vadd.f32 %v2142, %v2280
      %v2282 = vpop.f32.mrb[0].mxu0
      %2283 = vmatprep.mubr.bf16.mxu0 0
      %2284 = vmatmul.mubr.bf16.gmra.mrb[0].mxu0 %v2162
      %v2285 = vpop.f32.mrb[0].mxu0
      %v2286 = vadd.f32 %v2142, %v2285
      %v2287 = vpop.f32.mrb[0].mxu0
      %v2288 = vpop.f32.mrb[0].mxu0
      %v2289 = vadd.f32 %v2142, %v2288
      %v2290 = vpop.f32.mrb[0].mxu0
      %2291 = vmatprep.mubr.bf16.mxu0 0
      %2292 = vmatmul.mubr.bf16.gmra.mrb[0].mxu0 %v2164
      %v2293 = vpop.f32.mrb[0].mxu0
      %v2294 = vadd.f32 %v2142, %v2293
      %v2295 = vpop.f32.mrb[0].mxu0
      %v2296 = vpop.f32.mrb[0].mxu0
      %v2297 = vadd.f32 %v2142, %v2296
      %v2298 = vpop.f32.mrb[0].mxu0
      %2299 = vmatprep.mubr.bf16.mxu0 0
      %2300 = vmatmul.mubr.bf16.gmra.mrb[0].mxu0 %v2166
      %v2301 = vpop.f32.mrb[0].mxu0
      %v2302 = vadd.f32 %v2142, %v2301
      %v2303 = vpop.f32.mrb[0].mxu0
      %v2304 = vpop.f32.mrb[0].mxu0
      %v2305 = vadd.f32 %v2142, %v2304
      %v2306 = vpop.f32.mrb[0].mxu0
      %2307 = vmatprep.mubr.bf16.mxu0 0
      %2308 = vmatmul.mubr.bf16.gmra.mrb[0].mxu0 %v2168
      %v2309 = vpop.f32.mrb[0].mxu0
      %v2310 = vadd.f32 %v2142, %v2309
      %v2311 = vpop.f32.mrb[0].mxu0
      %v2312 = vpop.f32.mrb[0].mxu0
      %v2313 = vadd.f32 %v2142, %v2312
      %v2314 = vpop.f32.mrb[0].mxu0
      %2315 = vmatprep.mubr.bf16.mxu0 0
      %2316 = vmatmul.mubr.bf16.gmra.mrb[0].mxu0 %v2170
      %v2317 = vpop.f32.mrb[0].mxu0
      %v2318 = vadd.f32 %v2142, %v2317
      %v2319 = vpop.f32.mrb[0].mxu0
      %v2320 = vpop.f32.mrb[0].mxu0
      %v2321 = vadd.f32 %v2142, %v2320
      %v2322 = vpop.f32.mrb[0].mxu0
      %2323 = vmatprep.mubr.bf16.mxu0 0
      %2324 = vmatmul.mubr.bf16.gmra.mrb[0].mxu0 %v2172
      %v2325 = vpop.f32.mrb[0].mxu0
      %v2326 = vadd.f32 %v2142, %v2325
      %v2327 = vpop.f32.mrb[0].mxu0
      %v2328 = vpop.f32.mrb[0].mxu0
      %v2329 = vadd.f32 %v2142, %v2328
      %v2330 = vpop.f32.mrb[0].mxu0
      %2331 = vmatprep.mubr.bf16.mxu0 0
      %2332 = vmatmul.mubr.bf16.gmra.mrb[0].mxu0 %v2174
      %v2333 = vpop.f32.mrb[0].mxu0
      %v2334 = vadd.f32 %v2142, %v2333
      %v2335 = vpop.f32.mrb[0].mxu0
      %v2336 = vpop.f32.mrb[0].mxu0
      %v2337 = vadd.f32 %v2142, %v2336
      %v2338 = vpop.f32.mrb[0].mxu0
      %2339 = vmatprep.mubr.bf16.mxu0 0
      %2340 = vmatmul.mubr.bf16.gmra.mrb[0].mxu0 %v2176
      %v2341 = vpop.f32.mrb[0].mxu0
      %v2342 = vadd.f32 %v2142, %v2341
      %v2343 = vpop.f32.mrb[0].mxu0
      %v2344 = vpop.f32.mrb[0].mxu0
      %v2345 = vadd.f32 %v2142, %v2344
      %v2346 = vpop.f32.mrb[0].mxu0
      %2347 = vmatprep.mubr.bf16.mxu0 0
      %2348 = vmatmul.mubr.bf16.gmra.mrb[0].mxu0 %v2178
      %v2349 = vpop.f32.mrb[0].mxu0
      %v2350 = vadd.f32 %v2142, %v2349
      %v2351 = vpop.f32.mrb[0].mxu0
      %v2352 = vpop.f32.mrb[0].mxu0
      %v2353 = vadd.f32 %v2142, %v2352
      %v2354 = vpop.f32.mrb[0].mxu0
      %2355 = vmatprep.mubr.bf16.mxu0 0
      %2356 = vmatmul.mubr.bf16.gmra.mrb[0].mxu0 %v2180
      %v2357 = vpop.f32.mrb[0].mxu0
      %v2358 = vadd.f32 %v2142, %v2357
      %v2359 = vpop.f32.mrb[0].mxu0
      %v2360 = vpop.f32.mrb[0].mxu0
      %v2361 = vadd.f32 %v2142, %v2360
      %v2362 = vpop.f32.mrb[0].mxu0
      %2363 = vmatprep.mubr.bf16.mxu0 0
      %2364 = vmatmul.mubr.bf16.gmra.mrb[0].mxu0 %v2182
      %v2365 = vpop.f32.mrb[0].mxu0
      %v2366 = vadd.f32 %v2142, %v2365
      %v2367 = vpop.f32.mrb[0].mxu0
      %v2368 = vpop.f32.mrb[0].mxu0
      %v2369 = vadd.f32 %v2142, %v2368
      %v2370 = vpop.f32.mrb[0].mxu0
      %2371 = vmatprep.mubr.bf16.mxu0 0
      %2372 = vmatmul.mubr.bf16.gmra.mrb[0].mxu0 %v2184
      %v2373 = vpop.f32.mrb[0].mxu0
      %v2374 = vadd.f32 %v2142, %v2373
      %v2375 = vpop.f32.mrb[0].mxu0
      %v2376 = vpop.f32.mrb[0].mxu0
      %v2377 = vadd.f32 %v2142, %v2376
      %v2378 = vpop.f32.mrb[0].mxu0
      %2379 = vmatprep.mubr.bf16.mxu0 0
      %2380 = vmatmul.mubr.bf16.gmra.mrb[0].mxu0 %v2186
      %v2381 = vpop.f32.mrb[0].mxu0
      %v2382 = vadd.f32 %v2142, %v2381
      %v2383 = vpop.f32.mrb[0].mxu0
      %v2384 = vpop.f32.mrb[0].mxu0
      %v2385 = vadd.f32 %v2142, %v2384
      %v2386 = vpop.f32.mrb[0].mxu0
      %2387 = vmatprep.mubr.bf16.mxu0 0
      %2388 = vmatmul.mubr.bf16.gmra.mrb[0].mxu0 %v2188
      %v2389 = vpop.f32.mrb[0].mxu0
      %v2390 = vadd.f32 %v2142, %v2389
      %v2391 = vpop.f32.mrb[0].mxu0
      %v2392 = vpop.f32.mrb[0].mxu0
      %v2393 = vadd.f32 %v2142, %v2392
      %v2394 = vpop.f32.mrb[0].mxu0
      %2395 = vmatprep.mubr.bf16.mxu0 0
      %2396 = vmatmul.mubr.bf16.gmra.mrb[0].mxu0 %v2190
      %v2397 = vpop.f32.mrb[0].mxu0
      %v2398 = vadd.f32 %v2142, %v2397
      %v2399 = vpop.f32.mrb[0].mxu0
      %v2400 = vpop.f32.mrb[0].mxu0
      %v2401 = vadd.f32 %v2142, %v2400
      %v2402 = vpop.f32.mrb[0].mxu0
      %2403 = vmatprep.mubr.bf16.mxu0 0
      %2404 = vmatmul.mubr.bf16.gmra.mrb[0].mxu0 %v2192
      %v2405 = vpop.f32.mrb[0].mxu0
      %v2406 = vadd.f32 %v2142, %v2405
      %v2407 = vpop.f32.mrb[0].mxu0
      %v2408 = vpop.f32.mrb[0].mxu0
      %v2409 = vadd.f32 %v2142, %v2408
      %v2410 = vpop.f32.mrb[0].mxu0
      %2411 = vmatprep.mubr.bf16.mxu0 0
      %2412 = vmatmul.mubr.bf16.gmra.mrb[0].mxu0 %v2194
      %v2413 = vpop.f32.mrb[0].mxu0
      %v2414 = vadd.f32 %v2142, %v2413
      %v2415 = vpop.f32.mrb[0].mxu0
      %v2416 = vpop.f32.mrb[0].mxu0
      %v2417 = vadd.f32 %v2142, %v2416
      %v2418 = vpop.f32.mrb[0].mxu0
      %2419 = vmatprep.mubr.bf16.mxu0 0
      %2420 = vmatmul.mubr.bf16.gmra.mrb[0].mxu0 %v2196
      %v2421 = vpop.f32.mrb[0].mxu0
      %v2422 = vadd.f32 %v2142, %v2421
      %v2423 = vpop.f32.mrb[0].mxu0
      %v2424 = vpop.f32.mrb[0].mxu0
      %v2425 = vadd.f32 %v2142, %v2424
      %v2426 = vpop.f32.mrb[0].mxu0
      %2427 = vmatprep.mubr.bf16.mxu0 0
      %2428 = vmatmul.mubr.bf16.gmra.mrb[0].mxu0 %v2198
      %v2429 = vpop.f32.mrb[0].mxu0
      %v2430 = vadd.f32 %v2142, %v2429
      %v2431 = vpop.f32.mrb[0].mxu0
      %v2432 = vpop.f32.mrb[0].mxu0
      %v2433 = vadd.f32 %v2142, %v2432
      %v2434 = vpop.f32.mrb[0].mxu0
      %2435 = vmatprep.mubr.bf16.mxu0 0
      %2436 = vmatmul.mubr.bf16.gmra.mrb[0].mxu0 %v2200
      %v2437 = vpop.f32.mrb[0].mxu0
      %v2438 = vadd.f32 %v2142, %v2437
      %v2439 = vpop.f32.mrb[0].mxu0
      %v2440 = vpop.f32.mrb[0].mxu0
      %v2441 = vadd.f32 %v2142, %v2440
      %v2442 = vpop.f32.mrb[0].mxu0
      %2443 = vmatprep.mubr.bf16.mxu0 0
      %2444 = vmatmul.mubr.bf16.gmra.mrb[0].mxu0 %v2202
      %v2445 = vpop.f32.mrb[0].mxu0
      %v2446 = vadd.f32 %v2142, %v2445
      %v2447 = vpop.f32.mrb[0].mxu0
      %v2448 = vpop.f32.mrb[0].mxu0
      %v2449 = vadd.f32 %v2142, %v2448
      %v2450 = vpop.f32.mrb[0].mxu0
      %2451 = vmatprep.mubr.bf16.mxu0 0
      %2452 = vmatmul.mubr.bf16.gmra.mrb[0].mxu0 %v2204
      %v2453 = vpop.f32.mrb[0].mxu0
      %v2454 = vadd.f32 %v2142, %v2453
      %v2455 = vpop.f32.mrb[0].mxu0
      %v2456 = vpop.f32.mrb[0].mxu0
      %v2457 = vadd.f32 %v2142, %v2456
      %v2458 = vpop.f32.mrb[0].mxu0
      %2459 = vmatprep.mubr.bf16.mxu0 0
      %2460 = vmatmul.mubr.bf16.gmra.mrb[0].mxu0 %v2206
      %v2461 = vpop.f32.mrb[0].mxu0
      %v2462 = vadd.f32 %v2142, %v2461
      %v2463 = vpop.f32.mrb[0].mxu0
      %v2464 = vpop.f32.mrb[0].mxu0
      %v2465 = vadd.f32 %v2142, %v2464
      %v2466 = vpop.f32.mrb[0].mxu0
      %2467 = vmatprep.mubr.bf16.mxu0 0
      %2468 = vmatmul.mubr.bf16.gmra.mrb[0].mxu0 %v2208
      %v2469 = vpop.f32.mrb[0].mxu0
      %v2470 = vadd.f32 %v2142, %v2469
      %v2471 = vpop.f32.mrb[0].mxu0
      %v2472 = vpop.f32.mrb[0].mxu0
      %v2473 = vadd.f32 %v2142, %v2472
      %v2474 = vpop.f32.mrb[0].mxu0
      %2475 = vmatprep.mubr.bf16.mxu0 0
      %2476 = vmatmul.mubr.bf16.gmra.mrb[0].mxu0 %v2210
      %v2477 = vpop.f32.mrb[0].mxu0
      %v2478 = vadd.f32 %v2142, %v2477
      %v2479 = vpop.f32.mrb[0].mxu0
      %v2480 = vpop.f32.mrb[0].mxu0
      %v2481 = vadd.f32 %v2142, %v2480
      %v2482 = vpop.f32.mrb[0].mxu0
      %2483 = vmatprep.mubr.bf16.mxu0 0
      %2484 = vmatmul.mubr.bf16.gmra.mrb[0].mxu0 %v2212
      %v2485 = vpop.f32.mrb[0].mxu0
      %v2486 = vadd.f32 %v2142, %v2485
      %v2487 = vpop.f32.mrb[0].mxu0
      %v2488 = vpop.f32.mrb[0].mxu0
      %v2489 = vadd.f32 %v2142, %v2488
      %v2490 = vpop.f32.mrb[0].mxu0
      %2491 = vmatprep.mubr.bf16.mxu0 0
      %2492 = vmatmul.mubr.bf16.gmra.mrb[0].mxu0 %v2214
      %v2493 = vpop.f32.mrb[0].mxu0
      %v2494 = vadd.f32 %v2142, %v2493
      %v2495 = vpop.f32.mrb[0].mxu0
      %v2496 = vpop.f32.mrb[0].mxu0
      %v2497 = vadd.f32 %v2142, %v2496
      %v2498 = vpop.f32.mrb[0].mxu0
      %2499 = vmatprep.mubr.bf16.mxu0 0
      %2500 = vmatmul.mubr.bf16.gmra.mrb[0].mxu0 %v2216
      %v2501 = vpop.f32.mrb[0].mxu0
      %v2502 = vadd.f32 %v2142, %v2501
      %v2503 = vpop.f32.mrb[0].mxu0
      %v2504 = vpop.f32.mrb[0].mxu0
      %v2505 = vadd.f32 %v2142, %v2504
      %v2506 = vpop.f32.mrb[0].mxu0
      %2507 = vmatprep.mubr.bf16.mxu0 0
      %2508 = vmatmul.mubr.bf16.gmra.mrb[0].mxu0 %v2218
      %v2509 = vpop.f32.mrb[0].mxu0
      %v2510 = vadd.f32 %v2142, %v2509
      %v2511 = vpop.f32.mrb[0].mxu0
      %v2512 = vpop.f32.mrb[0].mxu0
      %v2513 = vadd.f32 %v2142, %v2512
      %v2514 = vpop.f32.mrb[0].mxu0
      %2515 = vdwg.mxu0
      %v2516 = vmax.f32 %v2262, 0.0
      %v2517 = vmax.f32 %v2265, 0.0
      %v2518 = vmax.f32 %v2270, 0.0
      %v2519 = vmax.f32 %v2273, 0.0
      %v2520 = vmax.f32 %v2278, 0.0
      %v2521 = vmax.f32 %v2281, 0.0
      %v2522 = vmax.f32 %v2286, 0.0
      %v2523 = vmax.f32 %v2289, 0.0
      %v2524 = vmax.f32 %v2294, 0.0
      %v2525 = vmax.f32 %v2297, 0.0
      %v2526 = vmax.f32 %v2302, 0.0
      %v2527 = vmax.f32 %v2305, 0.0
      %v2528 = vmax.f32 %v2310, 0.0
      %v2529 = vmax.f32 %v2313, 0.0
      %v2530 = vmax.f32 %v2318, 0.0
      %v2531 = vmax.f32 %v2321, 0.0
      %v2532 = vmax.f32 %v2326, 0.0
      %v2533 = vmax.f32 %v2329, 0.0
      %v2534 = vmax.f32 %v2334, 0.0
      %v2535 = vmax.f32 %v2337, 0.0
      %v2536 = vmax.f32 %v2342, 0.0
      %v2537 = vmax.f32 %v2345, 0.0
      %v2538 = vmax.f32 %v2350, 0.0
      %v2539 = vmax.f32 %v2353, 0.0
      %v2540 = vmax.f32 %v2358, 0.0
      %v2541 = vmax.f32 %v2361, 0.0
      %v2542 = vmax.f32 %v2366, 0.0
      %v2543 = vmax.f32 %v2369, 0.0
      %v2544 = vmax.f32 %v2374, 0.0
      %v2545 = vmax.f32 %v2377, 0.0
      %v2546 = vmax.f32 %v2382, 0.0
      %v2547 = vmax.f32 %v2385, 0.0
      %v2548 = vmax.f32 %v2390, 0.0
      %v2549 = vmax.f32 %v2393, 0.0
      %v2550 = vmax.f32 %v2398, 0.0
      %v2551 = vmax.f32 %v2401, 0.0
      %v2552 = vmax.f32 %v2406, 0.0
      %v2553 = vmax.f32 %v2409, 0.0
      %v2554 = vmax.f32 %v2414, 0.0
      %v2555 = vmax.f32 %v2417, 0.0
      %v2556 = vmax.f32 %v2422, 0.0
      %v2557 = vmax.f32 %v2425, 0.0
      %v2558 = vmax.f32 %v2430, 0.0
      %v2559 = vmax.f32 %v2433, 0.0
      %v2560 = vmax.f32 %v2438, 0.0
      %v2561 = vmax.f32 %v2441, 0.0
      %v2562 = vmax.f32 %v2446, 0.0
      %v2563 = vmax.f32 %v2449, 0.0
      %v2564 = vmax.f32 %v2454, 0.0
      %v2565 = vmax.f32 %v2457, 0.0
      %v2566 = vmax.f32 %v2462, 0.0
      %v2567 = vmax.f32 %v2465, 0.0
      %v2568 = vmax.f32 %v2470, 0.0
      %v2569 = vmax.f32 %v2473, 0.0
      %v2570 = vmax.f32 %v2478, 0.0
      %v2571 = vmax.f32 %v2481, 0.0
      %v2572 = vmax.f32 %v2486, 0.0
      %v2573 = vmax.f32 %v2489, 0.0
      %v2574 = vmax.f32 %v2494, 0.0
      %v2575 = vmax.f32 %v2497, 0.0
      %v2576 = vmax.f32 %v2502, 0.0
      %v2577 = vmax.f32 %v2505, 0.0
      %v2578 = vmax.f32 %v2510, 0.0
      %v2579 = vmax.f32 %v2513, 0.0
      %v2580 = vpack.c.bf16 %v2517, %v2516
      %v2581 = vpack.c.bf16 %v2519, %v2518
      %v2582 = vpack.c.bf16 %v2521, %v2520
      %v2583 = vpack.c.bf16 %v2523, %v2522
      %v2584 = vpack.c.bf16 %v2525, %v2524
      %v2585 = vpack.c.bf16 %v2527, %v2526
      %v2586 = vpack.c.bf16 %v2529, %v2528
      %v2587 = vpack.c.bf16 %v2531, %v2530
      %v2588 = vpack.c.bf16 %v2533, %v2532
      %v2589 = vpack.c.bf16 %v2535, %v2534
      %v2590 = vpack.c.bf16 %v2537, %v2536
      %v2591 = vpack.c.bf16 %v2539, %v2538
      %v2592 = vpack.c.bf16 %v2541, %v2540
      %v2593 = vpack.c.bf16 %v2543, %v2542
      %v2594 = vpack.c.bf16 %v2545, %v2544
      %v2595 = vpack.c.bf16 %v2547, %v2546
      %v2596 = vpack.c.bf16 %v2549, %v2548
      %v2597 = vpack.c.bf16 %v2551, %v2550
      %v2598 = vpack.c.bf16 %v2553, %v2552
      %v2599 = vpack.c.bf16 %v2555, %v2554
      %v2600 = vpack.c.bf16 %v2557, %v2556
      %v2601 = vpack.c.bf16 %v2559, %v2558
      %v2602 = vpack.c.bf16 %v2561, %v2560
      %v2603 = vpack.c.bf16 %v2563, %v2562
      %v2604 = vpack.c.bf16 %v2565, %v2564
      %v2605 = vpack.c.bf16 %v2567, %v2566
      %v2606 = vpack.c.bf16 %v2569, %v2568
      %v2607 = vpack.c.bf16 %v2571, %v2570
      %v2608 = vpack.c.bf16 %v2573, %v2572
      %v2609 = vpack.c.bf16 %v2575, %v2574
      %v2610 = vpack.c.bf16 %v2577, %v2576
      %v2611 = vpack.c.bf16 %v2579, %v2578
      %v2644 = vunpack.c.l.b16 %v2580
      %v2645 = vunpack.c.h.b16 %v2580
      %v2646 = vunpack.c.l.b16 %v2581
      %v2647 = vunpack.c.h.b16 %v2581
      %v2648 = vunpack.c.l.b16 %v2582
      %v2649 = vunpack.c.h.b16 %v2582
      %v2650 = vunpack.c.l.b16 %v2583
      %v2651 = vunpack.c.h.b16 %v2583
      %v2652 = vunpack.c.l.b16 %v2584
      %v2653 = vunpack.c.h.b16 %v2584
      %v2654 = vunpack.c.l.b16 %v2585
      %v2655 = vunpack.c.h.b16 %v2585
      %v2656 = vunpack.c.l.b16 %v2586
      %v2657 = vunpack.c.h.b16 %v2586
      %v2658 = vunpack.c.l.b16 %v2587
      %v2659 = vunpack.c.h.b16 %v2587
      %v2660 = vunpack.c.l.b16 %v2588
      %v2661 = vunpack.c.h.b16 %v2588
      %v2662 = vunpack.c.l.b16 %v2589
      %v2663 = vunpack.c.h.b16 %v2589
      %v2664 = vunpack.c.l.b16 %v2590
      %v2665 = vunpack.c.h.b16 %v2590
      %v2666 = vunpack.c.l.b16 %v2591
      %v2667 = vunpack.c.h.b16 %v2591
      %v2668 = vunpack.c.l.b16 %v2592
      %v2669 = vunpack.c.h.b16 %v2592
      %v2670 = vunpack.c.l.b16 %v2593
      %v2671 = vunpack.c.h.b16 %v2593
      %v2672 = vunpack.c.l.b16 %v2594
      %v2673 = vunpack.c.h.b16 %v2594
      %v2674 = vunpack.c.l.b16 %v2595
      %v2675 = vunpack.c.h.b16 %v2595
      %v2676 = vunpack.c.l.b16 %v2596
      %v2677 = vunpack.c.h.b16 %v2596
      %v2678 = vunpack.c.l.b16 %v2597
      %v2679 = vunpack.c.h.b16 %v2597
      %v2680 = vunpack.c.l.b16 %v2598
      %v2681 = vunpack.c.h.b16 %v2598
      %v2682 = vunpack.c.l.b16 %v2599
      %v2683 = vunpack.c.h.b16 %v2599
      %v2684 = vunpack.c.l.b16 %v2600
      %v2685 = vunpack.c.h.b16 %v2600
      %v2686 = vunpack.c.l.b16 %v2601
      %v2687 = vunpack.c.h.b16 %v2601
      %v2688 = vunpack.c.l.b16 %v2602
      %v2689 = vunpack.c.h.b16 %v2602
      %v2690 = vunpack.c.l.b16 %v2603
      %v2691 = vunpack.c.h.b16 %v2603
      %v2692 = vunpack.c.l.b16 %v2604
      %v2693 = vunpack.c.h.b16 %v2604
      %v2694 = vunpack.c.l.b16 %v2605
      %v2695 = vunpack.c.h.b16 %v2605
      %v2696 = vunpack.c.l.b16 %v2606
      %v2697 = vunpack.c.h.b16 %v2606
      %v2698 = vunpack.c.l.b16 %v2607
      %v2699 = vunpack.c.h.b16 %v2607
      %v2700 = vunpack.c.l.b16 %v2608
      %v2701 = vunpack.c.h.b16 %v2608
      %v2702 = vunpack.c.l.b16 %v2609
      %v2703 = vunpack.c.h.b16 %v2609
      %v2704 = vunpack.c.l.b16 %v2610
      %v2705 = vunpack.c.h.b16 %v2610
      %v2706 = vunpack.c.l.b16 %v2611
      %v2707 = vunpack.c.h.b16 %v2611
      %v2708 = vpack.c.b16 %v2644, %v2644
      %v2709 = vpack.c.b16 %v2645, %v2645
      %v2710 = vpack.c.b16 %v2646, %v2646
      %v2711 = vpack.c.b16 %v2647, %v2647
      %v2712 = vpack.c.b16 %v2648, %v2648
      %v2713 = vpack.c.b16 %v2649, %v2649
      %v2714 = vpack.c.b16 %v2650, %v2650
      %v2715 = vpack.c.b16 %v2651, %v2651
      %v2716 = vpack.c.b16 %v2652, %v2652
      %v2717 = vpack.c.b16 %v2653, %v2653
      %v2718 = vpack.c.b16 %v2654, %v2654
      %v2719 = vpack.c.b16 %v2655, %v2655
      %v2720 = vpack.c.b16 %v2656, %v2656
      %v2721 = vpack.c.b16 %v2657, %v2657
      %v2722 = vpack.c.b16 %v2658, %v2658
      %v2723 = vpack.c.b16 %v2659, %v2659
      %v2724 = vpack.c.b16 %v2660, %v2660
      %v2725 = vpack.c.b16 %v2661, %v2661
      %v2726 = vpack.c.b16 %v2662, %v2662
      %v2727 = vpack.c.b16 %v2663, %v2663
      %v2728 = vpack.c.b16 %v2664, %v2664
      %v2729 = vpack.c.b16 %v2665, %v2665
      %v2730 = vpack.c.b16 %v2666, %v2666
      %v2731 = vpack.c.b16 %v2667, %v2667
      %v2732 = vpack.c.b16 %v2668, %v2668
      %v2733 = vpack.c.b16 %v2669, %v2669
      %v2734 = vpack.c.b16 %v2670, %v2670
      %v2735 = vpack.c.b16 %v2671, %v2671
      %v2736 = vpack.c.b16 %v2672, %v2672
      %v2737 = vpack.c.b16 %v2673, %v2673
      %v2738 = vpack.c.b16 %v2674, %v2674
      %v2739 = vpack.c.b16 %v2675, %v2675
      %v2740 = vpack.c.b16 %v2676, %v2676
      %v2741 = vpack.c.b16 %v2677, %v2677
      %v2742 = vpack.c.b16 %v2678, %v2678
      %v2743 = vpack.c.b16 %v2679, %v2679
      %v2744 = vpack.c.b16 %v2680, %v2680
      %v2745 = vpack.c.b16 %v2681, %v2681
      %v2746 = vpack.c.b16 %v2682, %v2682
      %v2747 = vpack.c.b16 %v2683, %v2683
      %v2748 = vpack.c.b16 %v2684, %v2684
      %v2749 = vpack.c.b16 %v2685, %v2685
      %v2750 = vpack.c.b16 %v2686, %v2686
      %v2751 = vpack.c.b16 %v2687, %v2687
      %v2752 = vpack.c.b16 %v2688, %v2688
      %v2753 = vpack.c.b16 %v2689, %v2689
      %v2754 = vpack.c.b16 %v2690, %v2690
      %v2755 = vpack.c.b16 %v2691, %v2691
      %v2756 = vpack.c.b16 %v2692, %v2692
      %v2757 = vpack.c.b16 %v2693, %v2693
      %v2758 = vpack.c.b16 %v2694, %v2694
      %v2759 = vpack.c.b16 %v2695, %v2695
      %v2760 = vpack.c.b16 %v2696, %v2696
      %v2761 = vpack.c.b16 %v2697, %v2697
      %v2762 = vpack.c.b16 %v2698, %v2698
      %v2763 = vpack.c.b16 %v2699, %v2699
      %v2764 = vpack.c.b16 %v2700, %v2700
      %v2765 = vpack.c.b16 %v2701, %v2701
      %v2766 = vpack.c.b16 %v2702, %v2702
      %v2767 = vpack.c.b16 %v2703, %v2703
      %v2768 = vpack.c.b16 %v2704, %v2704
      %v2769 = vpack.c.b16 %v2705, %v2705
      %v2770 = vpack.c.b16 %v2706, %v2706
      %v2771 = vpack.c.b16 %v2707, %v2707
      %2836 = vst [vmem:[%s194] sm:$0xf] %v2708
      %2837 = vst [vmem:[%s194 + $0x4] sm:$0xf] %v2709
      %2838 = vst [vmem:[%s194 + $0x8] sm:$0xf] %v2710
      %2839 = vst [vmem:[%s194 + $0xc] sm:$0xf] %v2711
      %2840 = vst [vmem:[%s194 + $0x10] sm:$0xf] %v2712
      %2841 = vst [vmem:[%s194 + $0x14] sm:$0xf] %v2713
      %2842 = vst [vmem:[%s194 + $0x18] sm:$0xf] %v2714
      %2843 = vst [vmem:[%s194 + $0x1c] sm:$0xf] %v2715
      %2844 = vst [vmem:[%s194 + $0x20] sm:$0xf] %v2716
      %2845 = vst [vmem:[%s194 + $0x24] sm:$0xf] %v2717
      %2846 = vst [vmem:[%s194 + $0x28] sm:$0xf] %v2718
      %2847 = vst [vmem:[%s194 + $0x2c] sm:$0xf] %v2719
      %2848 = vst [vmem:[%s194 + $0x30] sm:$0xf] %v2720
      %2849 = vst [vmem:[%s194 + $0x34] sm:$0xf] %v2721
      %2850 = vst [vmem:[%s194 + $0x38] sm:$0xf] %v2722
      %2851 = vst [vmem:[%s194 + $0x3c] sm:$0xf] %v2723
      %2852 = vst [vmem:[%s194 + $0x40] sm:$0xf] %v2724
      %2853 = vst [vmem:[%s194 + $0x44] sm:$0xf] %v2725
      %2854 = vst [vmem:[%s194 + $0x48] sm:$0xf] %v2726
      %2855 = vst [vmem:[%s194 + $0x4c] sm:$0xf] %v2727
      %2856 = vst [vmem:[%s194 + $0x50] sm:$0xf] %v2728
      %2857 = vst [vmem:[%s194 + $0x54] sm:$0xf] %v2729
      %2858 = vst [vmem:[%s194 + $0x58] sm:$0xf] %v2730
      %2859 = vst [vmem:[%s194 + $0x5c] sm:$0xf] %v2731
      %2860 = vst [vmem:[%s194 + $0x60] sm:$0xf] %v2732
      %2861 = vst [vmem:[%s194 + $0x64] sm:$0xf] %v2733
      %2862 = vst [vmem:[%s194 + $0x68] sm:$0xf] %v2734
      %2863 = vst [vmem:[%s194 + $0x6c] sm:$0xf] %v2735
      %2864 = vst [vmem:[%s194 + $0x70] sm:$0xf] %v2736
      %2865 = vst [vmem:[%s194 + $0x74] sm:$0xf] %v2737
      %2866 = vst [vmem:[%s194 + $0x78] sm:$0xf] %v2738
      %2867 = vst [vmem:[%s194 + $0x7c] sm:$0xf] %v2739
      %2868 = vst [vmem:[%s194 + $0x80] sm:$0xf] %v2740
      %2869 = vst [vmem:[%s194 + $0x84] sm:$0xf] %v2741
      %2870 = vst [vmem:[%s194 + $0x88] sm:$0xf] %v2742
      %2871 = vst [vmem:[%s194 + $0x8c] sm:$0xf] %v2743
      %2872 = vst [vmem:[%s194 + $0x90] sm:$0xf] %v2744
      %2873 = vst [vmem:[%s194 + $0x94] sm:$0xf] %v2745
      %2874 = vst [vmem:[%s194 + $0x98] sm:$0xf] %v2746
      %2875 = vst [vmem:[%s194 + $0x9c] sm:$0xf] %v2747
      %2876 = vst [vmem:[%s194 + $0xa0] sm:$0xf] %v2748
      %2877 = vst [vmem:[%s194 + $0xa4] sm:$0xf] %v2749
      %2878 = vst [vmem:[%s194 + $0xa8] sm:$0xf] %v2750
      %2879 = vst [vmem:[%s194 + $0xac] sm:$0xf] %v2751
      %2880 = vst [vmem:[%s194 + $0xb0] sm:$0xf] %v2752
      %2881 = vst [vmem:[%s194 + $0xb4] sm:$0xf] %v2753
      %2882 = vst [vmem:[%s194 + $0xb8] sm:$0xf] %v2754
      %2883 = vst [vmem:[%s194 + $0xbc] sm:$0xf] %v2755
      %2884 = vst [vmem:[%s194 + $0xc0] sm:$0xf] %v2756
      %2885 = vst [vmem:[%s194 + $0xc4] sm:$0xf] %v2757
      %2886 = vst [vmem:[%s194 + $0xc8] sm:$0xf] %v2758
      %2887 = vst [vmem:[%s194 + $0xcc] sm:$0xf] %v2759
      %2888 = vst [vmem:[%s194 + $0xd0] sm:$0xf] %v2760
      %2889 = vst [vmem:[%s194 + $0xd4] sm:$0xf] %v2761
      %2890 = vst [vmem:[%s194 + $0xd8] sm:$0xf] %v2762
      %2891 = vst [vmem:[%s194 + $0xdc] sm:$0xf] %v2763
      %2892 = vst [vmem:[%s194 + $0xe0] sm:$0xf] %v2764
      %2893 = vst [vmem:[%s194 + $0xe4] sm:$0xf] %v2765
      %2894 = vst [vmem:[%s194 + $0xe8] sm:$0xf] %v2766
      %2895 = vst [vmem:[%s194 + $0xec] sm:$0xf] %v2767
      %2896 = vst [vmem:[%s194 + $0xf0] sm:$0xf] %v2768
      %2897 = vst [vmem:[%s194 + $0xf4] sm:$0xf] %v2769
      %2898 = vst [vmem:[%s194 + $0xf8] sm:$0xf] %v2770
      %2899 = vst [vmem:[%s194 + $0xfc] sm:$0xf] %v2771
      %s2900 = smul.u32 16, %s19
      %p2901 = scmp.lt.s32.totalorder %s18, 1
      %s2902 = scalar_select %p2901, %s18, 1
      %p2903 = scmp.lt.s32.totalorder %s2900, 31
      %s2904 = scalar_select %p2903, %s2900, 31
      %s2905 = smul.addr %s2904, 4
      %s2906 = smul.addr %s2902, 128
      %s2907 = sadd.s32 %s2905, %s2906
      %s2908 = smul.addr %s2907, 4
      %s2909 = scalar_lea.vmem %s3, %s2908
      // Predicated region
      $region33: #{forward.4} parent=31 // pred_check
        %p2910 = pneg %p114
      $region34: #{forward.4} parent=31 // pred_check_branch
        %2912 = sbr.rel (%p2910) target = $region36
      $region35: #{forward.4} parent=31 // pred_region
        %s2913 = smul.u32 16, %s19
      $region36: #{forward.4} parent=31 // pred_fallthru
        _
    $region32: #{forward.4} parent=5 // pred_fallthru
      _
    %p2914 = scmp.le.s32.totalorder 2, %s9
    // Predicated region
    $region37: #{forward.4} parent=5 // pred_check
      %p2915 = pneg %p2914
    $region38: #{forward.4} parent=5 // pred_check_branch
      %2917 = sbr.rel (%p2915) target = $region40
    $region39: #{forward.4} parent=5 // pred_region
      %s2918 = ssub.s32 %s9, 2
      // Predicated region
      $region41: #{forward.4} parent=39 // pred_check
        %p2919 = pneg %p120
      $region42: #{forward.4} parent=39 // pred_check_branch
        %2921 = sbr.rel (%p2919) target = $region44
      $region43: #{forward.4} parent=39 // pred_region
        %s2922 = smul.u32 16, %s21
        %p2923 = scmp.lt.s32.totalorder %s20, 1
        %s2924 = scalar_select %p2923, %s20, 1
        %p2925 = scmp.lt.s32.totalorder %s2922, 31
        %s2926 = scalar_select %p2925, %s2922, 31
        %s2927 = smul.addr %s2926, 4
        %s2928 = smul.addr %s2924, 128
        %s2929 = sadd.s32 %s2927, %s2928
        %s2930 = smul.addr %s2929, 4
        %s2931 = scalar_lea.vmem %s3, %s2930
      $region44: #{forward.4} parent=39 // pred_fallthru
        _
    $region40: #{forward.4} parent=5 // pred_fallthru
      _
  $region6: #{forward.4} parent=0 // loop_footer
    %s13 = sadd.s32 1, %s9
  $region7: #{forward.4} parent=0 // loop_footer_branch
    %8 = sbr.rel target = $region3
  $region8: #{forward.4} parent=0 // loop_exit
    _

// kernel: forward.5
$region0: #{forward.5}
  #allocation0 [shape = 'u32[]', space=smem, size = 0x4, offset = 0x4, fixed_abs, tag = 'smem constant byte address 0x4 - core index']
  #allocation1 [shape = 'u32[144,128]{1,0:T(1,128)}', space=vmem, size = 0x12000, scoped, tag = 'internal scratch']
  %s0 = inlined_call_operand.vmem [shape: bf16[2,17,17,512], index: 0, kind: input, shape index: {}]
  %s1 = inlined_call_operand.vmem [shape: bf16[1152,128], index: 1, kind: input, shape index: {}]
  %s2 = inlined_call_operand.vmem [shape: f32[1,128], index: 2, kind: input, shape index: {}]
  %s3 = inlined_call_operand.vmem [shape: bf16[2,16,16,128], index: 3, kind: output, shape index: {}]
  %s4 = sld [smem:[#allocation0]]
  $region45: #{forward.5} parent=0
    _
  %s6 = ssub.s32 1, %s4
  %s7 = scalar_select 0, %s6, %s4
  loop: start=0, step=1, limit=4
  $region2: #{forward.5} parent=0 // loop_pre_header
    _
  $region3: #{forward.5} parent=0 // loop_header
    %s9 = sphi 0, %s13
    %p10 = scmp.ge.s32.totalorder %s9, 4
    %s16 = sphi 0, %s28
    %s17 = sphi 0, %s24
    %s18 = sphi 0, %s16
    %s19 = sphi 0, %s17
    %s20 = sphi 0, %s18
    %s21 = sphi 0, %s19
    %s31 = sphi 0, %s33
    %s34 = sphi 0, %s31
    %s35 = sphi 0, %s34
    %s51 = sphi 0, %s35
    %s55 = sphi 0, %s55
    %s57 = sphi 0, %s55
    %s58 = sphi 0, %s57
    %s72 = sphi 0, %s58
    %s76 = sphi 0, %s76
    %s78 = sphi 0, %s76
    %s79 = sphi 0, %s78
    %s93 = sphi 0, %s79
    %s101 = sphi 0, %s103
    %s104 = sphi 0, %s101
    %s105 = sphi 0, %s104
    %s121 = sphi 0, %s105
  $region4: #{forward.5} parent=0 // loop_header_branch
    %12 = sbr.rel (%p10) target = $region8
  $region5: #{forward.5} parent=0 // loop_body
    %s14 = ssub.s32 %s9, 1
    %s15 = ssub.s32 %s9, 2
    %s22 = sadd.s32 1, %s17
    %p23 = scmp.ge.s32.totalorder %s22, 1
    %s24 = scalar_select %p23, 0, %s22
    %s25 = sadd.s32 1, %s16
    %s26 = scalar_select %p23, %s25, %s16
    %p27 = scmp.ge.s32.totalorder %s26, 2
    %s28 = scalar_select %p27, 0, %s26
    %s29 = ssub.s32 %s16, %s28
    %p30 = scmp.eq.s32.totalorder %s29, 0
    %s32 = sadd.s32 %s31, 1
    %s33 = scalar_select %p30, %s31, %s32
    %p36 = pneg %p30
    %p37 = scmp.eq.s32.totalorder %s9, 1
    %p38 = por %p36, %p37
    %p39 = scmp.ne.s32.totalorder %s31, %s34
    %p40 = scmp.eq.s32.totalorder %s9, 0
    %p41 = por %p39, %p40
    %p42 = scmp.ne.s32.totalorder %s31, %s34
    %p43 = scmp.eq.s32.totalorder %s14, 1
    %p44 = por %p42, %p43
    %p45 = scmp.ne.s32.totalorder %s34, %s35
    %p46 = scmp.eq.s32.totalorder %s14, 0
    %p47 = por %p45, %p46
    %p48 = scmp.ne.s32.totalorder %s34, %s35
    %p49 = scmp.eq.s32.totalorder %s15, 1
    %p50 = por %p48, %p49
    %p52 = scmp.ne.s32.totalorder %s35, %s51
    %p53 = scmp.eq.s32.totalorder %s15, 0
    %p54 = por %p52, %p53
    %s56 = sadd.s32 %s55, 1
    %p59 = scmp.eq.s32.totalorder %s9, 1
    %p60 = scmp.ne.s32.totalorder %s55, %s57
    %p61 = scmp.eq.s32.totalorder %s9, 0
    %p62 = por %p60, %p61
    %p63 = scmp.ne.s32.totalorder %s55, %s57
    %p64 = scmp.eq.s32.totalorder %s14, 1
    %p65 = por %p63, %p64
    %p66 = scmp.ne.s32.totalorder %s57, %s58
    %p67 = scmp.eq.s32.totalorder %s14, 0
    %p68 = por %p66, %p67
    %p69 = scmp.ne.s32.totalorder %s57, %s58
    %p70 = scmp.eq.s32.totalorder %s15, 1
    %p71 = por %p69, %p70
    %p73 = scmp.ne.s32.totalorder %s58, %s72
    %p74 = scmp.eq.s32.totalorder %s15, 0
    %p75 = por %p73, %p74
    %s77 = sadd.s32 %s76, 1
    %p80 = scmp.eq.s32.totalorder %s9, 1
    %p81 = scmp.ne.s32.totalorder %s76, %s78
    %p82 = scmp.eq.s32.totalorder %s9, 0
    %p83 = por %p81, %p82
    %p84 = scmp.ne.s32.totalorder %s76, %s78
    %p85 = scmp.eq.s32.totalorder %s14, 1
    %p86 = por %p84, %p85
    %p87 = scmp.ne.s32.totalorder %s78, %s79
    %p88 = scmp.eq.s32.totalorder %s14, 0
    %p89 = por %p87, %p88
    %p90 = scmp.ne.s32.totalorder %s78, %s79
    %p91 = scmp.eq.s32.totalorder %s15, 1
    %p92 = por %p90, %p91
    %p94 = scmp.ne.s32.totalorder %s79, %s93
    %p95 = scmp.eq.s32.totalorder %s15, 0
    %p96 = por %p94, %p95
    %s97 = ssub.s32 %s16, %s28
    %s98 = ssub.s32 %s17, %s24
    %s99 = sor.u32 %s97, %s98
    %p100 = scmp.eq.s32.totalorder %s99, 0
    %s102 = sadd.s32 %s101, 1
    %s103 = scalar_select %p100, %s101, %s102
    %p106 = pneg %p100
    %p107 = scmp.eq.s32.totalorder %s9, 1
    %p108 = por %p106, %p107
    %p109 = scmp.ne.s32.totalorder %s101, %s104
    %p110 = scmp.eq.s32.totalorder %s9, 0
    %p111 = por %p109, %p110
    %p112 = scmp.ne.s32.totalorder %s101, %s104
    %p113 = scmp.eq.s32.totalorder %s14, 1
    %p114 = por %p112, %p113
    %p115 = scmp.ne.s32.totalorder %s104, %s105
    %p116 = scmp.eq.s32.totalorder %s14, 0
    %p117 = por %p115, %p116
    %p118 = scmp.ne.s32.totalorder %s104, %s105
    %p119 = scmp.eq.s32.totalorder %s15, 1
    %p120 = por %p118, %p119
    %p122 = scmp.ne.s32.totalorder %s105, %s121
    %p123 = scmp.eq.s32.totalorder %s15, 0
    %p124 = por %p122, %p123
    %p125 = scmp.le.s32.totalorder 1, %s9
    %p126 = scmp.lt.s32.totalorder %s9, 3
    %p127 = pnand %p125, %p126
    %p128 = pneg %p127
    // Predicated region
    $region9: #{forward.5} parent=5 // pred_check
      _
    $region10: #{forward.5} parent=5 // pred_check_branch
      %130 = sbr.rel (%p127) target = $region12
    $region11: #{forward.5} parent=5 // pred_region
      %s131 = ssub.s32 %s9, 1
      // Predicated region
      $region13: #{forward.5} parent=11 // pred_check
        %p132 = pneg %p68
      $region14: #{forward.5} parent=11 // pred_check_branch
        %134 = sbr.rel (%p132) target = $region16
      $region15: #{forward.5} parent=11 // pred_region
        _
      $region16: #{forward.5} parent=11 // pred_fallthru
        _
      // Predicated region
      $region17: #{forward.5} parent=11 // pred_check
        %p135 = pneg %p89
      $region18: #{forward.5} parent=11 // pred_check_branch
        %137 = sbr.rel (%p135) target = $region20
      $region19: #{forward.5} parent=11 // pred_region
        _
      $region20: #{forward.5} parent=11 // pred_fallthru
        _
    $region12: #{forward.5} parent=5 // pred_fallthru
      _
    %p138 = scmp.lt.s32.totalorder %s9, 2
    // Predicated region
    $region21: #{forward.5} parent=5 // pred_check
      %p139 = pneg %p138
    $region22: #{forward.5} parent=5 // pred_check_branch
      %141 = sbr.rel (%p139) target = $region24
    $region23: #{forward.5} parent=5 // pred_region
      // Predicated region
      $region25: #{forward.5} parent=23 // pred_check
        %p142 = pneg %p41
      $region26: #{forward.5} parent=23 // pred_check_branch
        %144 = sbr.rel (%p142) target = $region28
      $region27: #{forward.5} parent=23 // pred_region
        %p145 = scmp.lt.s32.totalorder %s16, 1
        %s146 = scalar_select %p145, %s16, 1
        %s147 = smul.addr %s146, 204
        %s148 = smul.addr %s147, 4
        %s149 = scalar_lea.vmem %s0, %s148
      $region28: #{forward.5} parent=23 // pred_fallthru
        _
    $region24: #{forward.5} parent=5 // pred_fallthru
      _
    %p150 = scmp.le.s32.totalorder 1, %s9
    %p151 = scmp.lt.s32.totalorder %s9, 3
    %p152 = pnand %p150, %p151
    %p153 = pneg %p152
    // Predicated region
    $region29: #{forward.5} parent=5 // pred_check
      _
    $region30: #{forward.5} parent=5 // pred_check_branch
      %155 = sbr.rel (%p152) target = $region32
    $region31: #{forward.5} parent=5 // pred_region
      %s156 = ssub.s32 %s9, 1
      %p157 = scmp.lt.s32.totalorder %s18, 1
      %s158 = scalar_select %p157, %s18, 1
      %s159 = smul.addr %s158, 204
      %s160 = smul.addr %s159, 4
      %s161 = scalar_lea.vmem %s0, %s160
      %p162 = pneg %p47
      %p163 = pneg %p44
      %p164 = pneg %p68
      %p165 = pneg %p65
      %p166 = pneg %p89
      %p167 = pneg %p86
      %p168 = pneg %p117
      %p169 = pneg %p114
      %s170 = smul.u32 16, %s19
      %p171 = scmp.lt.s32.totalorder %s18, 1
      %s172 = scalar_select %p171, %s18, 1
      %p173 = scmp.lt.s32.totalorder %s170, 15
      %s174 = scalar_select %p173, %s170, 15
      %s175 = smul.addr %s174, 2
      %s176 = smul.addr %s172, 32
      %s177 = sadd.s32 %s175, %s176
      %s178 = smul.addr %s177, 4
      %s179 = scalar_lea.vmem %s3, %s178
      %p180 = scmp.lt.s32.totalorder %s18, 1
      %s181 = scalar_select %p180, %s18, 1
      %s182 = smul.addr %s181, 204
      %s183 = smul.addr %s182, 4
      %s184 = scalar_lea.vmem %s0, %s183
      %s185 = smul.u32 16, %s19
      %p186 = scmp.lt.s32.totalorder %s18, 1
      %s187 = scalar_select %p186, %s18, 1
      %p188 = scmp.lt.s32.totalorder %s185, 15
      %s189 = scalar_select %p188, %s185, 15
      %s190 = smul.addr %s189, 2
      %s191 = smul.addr %s187, 32
      %s192 = sadd.s32 %s190, %s191
      %s193 = smul.addr %s192, 4
      %s194 = scalar_lea.vmem %s3, %s193
      %s195 = smul.u32 16, %s19
      %s197 = smul.u32 %s19, 16
      %s198 = smul.u32 %s197, 12
      %s199 = smul.addr %s198, 4
      %s200 = scalar_lea.vmem %s184, %s199
      %v201 = vld [vmem:[%s200] sm:$0xf]
      %v202 = vld [vmem:[%s200 + $0x10] sm:$0xf]
      %v203 = vld [vmem:[%s200 + $0x30] sm:$0xf]
      %v204 = vld [vmem:[%s200 + $0x40] sm:$0xf]
      %v205 = vld [vmem:[%s200 + $0x60] sm:$0xf]
      %v206 = vld [vmem:[%s200 + $0x70] sm:$0xf]
      %v207 = vld [vmem:[%s200 + $0x90] sm:$0xf]
      %v208 = vld [vmem:[%s200 + $0xa0] sm:$0xf]
      %v209 = vld [vmem:[%s200 + $0xc0] sm:$0xf]
      %v210 = vld [vmem:[%s200 + $0xd0] sm:$0xf]
      %v211 = vld [vmem:[%s200 + $0xf0] sm:$0xf]
      %v212 = vld [vmem:[%s200 + $0x100] sm:$0xf]
      %v213 = vld [vmem:[%s200 + $0x120] sm:$0xf]
      %v214 = vld [vmem:[%s200 + $0x130] sm:$0xf]
      %v215 = vld [vmem:[%s200 + $0x150] sm:$0xf]
      %v216 = vld [vmem:[%s200 + $0x160] sm:$0xf]
      %v217 = vld [vmem:[%s200 + $0x180] sm:$0xf]
      %v218 = vld [vmem:[%s200 + $0x190] sm:$0xf]
      %v219 = vld [vmem:[%s200 + $0x1b0] sm:$0xf]
      %v220 = vld [vmem:[%s200 + $0x1c0] sm:$0xf]
      %v221 = vld [vmem:[%s200 + $0x1e0] sm:$0xf]
      %v222 = vld [vmem:[%s200 + $0x1f0] sm:$0xf]
      %v223 = vld [vmem:[%s200 + $0x210] sm:$0xf]
      %v224 = vld [vmem:[%s200 + $0x220] sm:$0xf]
      %v225 = vld [vmem:[%s200 + $0x240] sm:$0xf]
      %v226 = vld [vmem:[%s200 + $0x250] sm:$0xf]
      %v227 = vld [vmem:[%s200 + $0x270] sm:$0xf]
      %v228 = vld [vmem:[%s200 + $0x280] sm:$0xf]
      %v229 = vld [vmem:[%s200 + $0x2a0] sm:$0xf]
      %v230 = vld [vmem:[%s200 + $0x2b0] sm:$0xf]
      %v231 = vld [vmem:[%s200 + $0x2d0] sm:$0xf]
      %v232 = vld [vmem:[%s200 + $0x2e0] sm:$0xf]
      %v233 = vld [vmem:[%s200 + $0x4] sm:$0xf]
      %v234 = vld [vmem:[%s200 + $0x14] sm:$0xf]
      %v235 = vld [vmem:[%s200 + $0x34] sm:$0xf]
      %v236 = vld [vmem:[%s200 + $0x44] sm:$0xf]
      %v237 = vld [vmem:[%s200 + $0x64] sm:$0xf]
      %v238 = vld [vmem:[%s200 + $0x74] sm:$0xf]
      %v239 = vld [vmem:[%s200 + $0x94] sm:$0xf]
      %v240 = vld [vmem:[%s200 + $0xa4] sm:$0xf]
      %v241 = vld [vmem:[%s200 + $0xc4] sm:$0xf]
      %v242 = vld [vmem:[%s200 + $0xd4] sm:$0xf]
      %v243 = vld [vmem:[%s200 + $0xf4] sm:$0xf]
      %v244 = vld [vmem:[%s200 + $0x104] sm:$0xf]
      %v245 = vld [vmem:[%s200 + $0x124] sm:$0xf]
      %v246 = vld [vmem:[%s200 + $0x134] sm:$0xf]
      %v247 = vld [vmem:[%s200 + $0x154] sm:$0xf]
      %v248 = vld [vmem:[%s200 + $0x164] sm:$0xf]
      %v249 = vld [vmem:[%s200 + $0x184] sm:$0xf]
      %v250 = vld [vmem:[%s200 + $0x194] sm:$0xf]
      %v251 = vld [vmem:[%s200 + $0x1b4] sm:$0xf]
      %v252 = vld [vmem:[%s200 + $0x1c4] sm:$0xf]
      %v253 = vld [vmem:[%s200 + $0x1e4] sm:$0xf]
      %v254 = vld [vmem:[%s200 + $0x1f4] sm:$0xf]
      %v255 = vld [vmem:[%s200 + $0x214] sm:$0xf]
      %v256 = vld [vmem:[%s200 + $0x224] sm:$0xf]
      %v257 = vld [vmem:[%s200 + $0x244] sm:$0xf]
      %v258 = vld [vmem:[%s200 + $0x254] sm:$0xf]
      %v259 = vld [vmem:[%s200 + $0x274] sm:$0xf]
      %v260 = vld [vmem:[%s200 + $0x284] sm:$0xf]
      %v261 = vld [vmem:[%s200 + $0x2a4] sm:$0xf]
      %v262 = vld [vmem:[%s200 + $0x2b4] sm:$0xf]
      %v263 = vld [vmem:[%s200 + $0x2d4] sm:$0xf]
      %v264 = vld [vmem:[%s200 + $0x2e4] sm:$0xf]
      %v265 = vld [vmem:[%s200 + $0x20] sm:$0x1]
      %v266 = vld [vmem:[%s200 + $0x50] sm:$0x1]
      %v267 = vld [vmem:[%s200 + $0x80] sm:$0x1]
      %v268 = vld [vmem:[%s200 + $0xb0] sm:$0x1]
      %v269 = vld [vmem:[%s200 + $0xe0] sm:$0x1]
      %v270 = vld [vmem:[%s200 + $0x110] sm:$0x1]
      %v271 = vld [vmem:[%s200 + $0x140] sm:$0x1]
      %v272 = vld [vmem:[%s200 + $0x170] sm:$0x1]
      %v273 = vld [vmem:[%s200 + $0x1a0] sm:$0x1]
      %v274 = vld [vmem:[%s200 + $0x1d0] sm:$0x1]
      %v275 = vld [vmem:[%s200 + $0x200] sm:$0x1]
      %v276 = vld [vmem:[%s200 + $0x230] sm:$0x1]
      %v277 = vld [vmem:[%s200 + $0x260] sm:$0x1]
      %v278 = vld [vmem:[%s200 + $0x290] sm:$0x1]
      %v279 = vld [vmem:[%s200 + $0x2c0] sm:$0x1]
      %v280 = vld [vmem:[%s200 + $0x2f0] sm:$0x1]
      %v281 = vld [vmem:[%s200 + $0x8] sm:$0xf]
      %v282 = vld [vmem:[%s200 + $0x18] sm:$0xf]
      %v283 = vld [vmem:[%s200 + $0x38] sm:$0xf]
      %v284 = vld [vmem:[%s200 + $0x48] sm:$0xf]
      %v285 = vld [vmem:[%s200 + $0x68] sm:$0xf]
      %v286 = vld [vmem:[%s200 + $0x78] sm:$0xf]
      %v287 = vld [vmem:[%s200 + $0x98] sm:$0xf]
      %v288 = vld [vmem:[%s200 + $0xa8] sm:$0xf]
      %v289 = vld [vmem:[%s200 + $0xc8] sm:$0xf]
      %v290 = vld [vmem:[%s200 + $0xd8] sm:$0xf]
      %v291 = vld [vmem:[%s200 + $0xf8] sm:$0xf]
      %v292 = vld [vmem:[%s200 + $0x108] sm:$0xf]
      %v293 = vld [vmem:[%s200 + $0x128] sm:$0xf]
      %v294 = vld [vmem:[%s200 + $0x138] sm:$0xf]
      %v295 = vld [vmem:[%s200 + $0x158] sm:$0xf]
      %v296 = vld [vmem:[%s200 + $0x168] sm:$0xf]
      %v297 = vld [vmem:[%s200 + $0x188] sm:$0xf]
      %v298 = vld [vmem:[%s200 + $0x198] sm:$0xf]
      %v299 = vld [vmem:[%s200 + $0x1b8] sm:$0xf]
      %v300 = vld [vmem:[%s200 + $0x1c8] sm:$0xf]
      %v301 = vld [vmem:[%s200 + $0x1e8] sm:$0xf]
      %v302 = vld [vmem:[%s200 + $0x1f8] sm:$0xf]
      %v303 = vld [vmem:[%s200 + $0x218] sm:$0xf]
      %v304 = vld [vmem:[%s200 + $0x228] sm:$0xf]
      %v305 = vld [vmem:[%s200 + $0x248] sm:$0xf]
      %v306 = vld [vmem:[%s200 + $0x258] sm:$0xf]
      %v307 = vld [vmem:[%s200 + $0x278] sm:$0xf]
      %v308 = vld [vmem:[%s200 + $0x288] sm:$0xf]
      %v309 = vld [vmem:[%s200 + $0x2a8] sm:$0xf]
      %v310 = vld [vmem:[%s200 + $0x2b8] sm:$0xf]
      %v311 = vld [vmem:[%s200 + $0x2d8] sm:$0xf]
      %v312 = vld [vmem:[%s200 + $0x2e8] sm:$0xf]
      %v313 = vld [vmem:[%s200 + $0xc] sm:$0xf]
      %v314 = vld [vmem:[%s200 + $0x1c] sm:$0xf]
      %v315 = vld [vmem:[%s200 + $0x3c] sm:$0xf]
      %v316 = vld [vmem:[%s200 + $0x4c] sm:$0xf]
      %v317 = vld [vmem:[%s200 + $0x6c] sm:$0xf]
      %v318 = vld [vmem:[%s200 + $0x7c] sm:$0xf]
      %v319 = vld [vmem:[%s200 + $0x9c] sm:$0xf]
      %v320 = vld [vmem:[%s200 + $0xac] sm:$0xf]
      %v321 = vld [vmem:[%s200 + $0xcc] sm:$0xf]
      %v322 = vld [vmem:[%s200 + $0xdc] sm:$0xf]
      %v323 = vld [vmem:[%s200 + $0xfc] sm:$0xf]
      %v324 = vld [vmem:[%s200 + $0x10c] sm:$0xf]
      %v325 = vld [vmem:[%s200 + $0x12c] sm:$0xf]
      %v326 = vld [vmem:[%s200 + $0x13c] sm:$0xf]
      %v327 = vld [vmem:[%s200 + $0x15c] sm:$0xf]
      %v328 = vld [vmem:[%s200 + $0x16c] sm:$0xf]
      %v329 = vld [vmem:[%s200 + $0x18c] sm:$0xf]
      %v330 = vld [vmem:[%s200 + $0x19c] sm:$0xf]
      %v331 = vld [vmem:[%s200 + $0x1bc] sm:$0xf]
      %v332 = vld [vmem:[%s200 + $0x1cc] sm:$0xf]
      %v333 = vld [vmem:[%s200 + $0x1ec] sm:$0xf]
      %v334 = vld [vmem:[%s200 + $0x1fc] sm:$0xf]
      %v335 = vld [vmem:[%s200 + $0x21c] sm:$0xf]
      %v336 = vld [vmem:[%s200 + $0x22c] sm:$0xf]
      %v337 = vld [vmem:[%s200 + $0x24c] sm:$0xf]
      %v338 = vld [vmem:[%s200 + $0x25c] sm:$0xf]
      %v339 = vld [vmem:[%s200 + $0x27c] sm:$0xf]
      %v340 = vld [vmem:[%s200 + $0x28c] sm:$0xf]
      %v341 = vld [vmem:[%s200 + $0x2ac] sm:$0xf]
      %v342 = vld [vmem:[%s200 + $0x2bc] sm:$0xf]
      %v343 = vld [vmem:[%s200 + $0x2dc] sm:$0xf]
      %v344 = vld [vmem:[%s200 + $0x2ec] sm:$0xf]
      %v345 = vld [vmem:[%s200 + $0x28] sm:$0x1]
      %v346 = vld [vmem:[%s200 + $0x58] sm:$0x1]
      %v347 = vld [vmem:[%s200 + $0x88] sm:$0x1]
      %v348 = vld [vmem:[%s200 + $0xb8] sm:$0x1]
      %v349 = vld [vmem:[%s200 + $0xe8] sm:$0x1]
      %v350 = vld [vmem:[%s200 + $0x118] sm:$0x1]
      %v351 = vld [vmem:[%s200 + $0x148] sm:$0x1]
      %v352 = vld [vmem:[%s200 + $0x178] sm:$0x1]
      %v353 = vld [vmem:[%s200 + $0x1a8] sm:$0x1]
      %v354 = vld [vmem:[%s200 + $0x1d8] sm:$0x1]
      %v355 = vld [vmem:[%s200 + $0x208] sm:$0x1]
      %v356 = vld [vmem:[%s200 + $0x238] sm:$0x1]
      %v357 = vld [vmem:[%s200 + $0x268] sm:$0x1]
      %v358 = vld [vmem:[%s200 + $0x298] sm:$0x1]
      %v359 = vld [vmem:[%s200 + $0x2c8] sm:$0x1]
      %v360 = vld [vmem:[%s200 + $0x2f8] sm:$0x1]
      %s361 = sadd.s32 %s197, 1
      %s362 = smul.u32 %s361, 12
      %s363 = smul.addr %s362, 4
      %s364 = scalar_lea.vmem %s184, %s363
      %v365 = vld [vmem:[%s364] sm:$0xf]
      %v366 = vld [vmem:[%s364 + $0x10] sm:$0xf]
      %v367 = vld [vmem:[%s364 + $0x30] sm:$0xf]
      %v368 = vld [vmem:[%s364 + $0x40] sm:$0xf]
      %v369 = vld [vmem:[%s364 + $0x60] sm:$0xf]
      %v370 = vld [vmem:[%s364 + $0x70] sm:$0xf]
      %v371 = vld [vmem:[%s364 + $0x90] sm:$0xf]
      %v372 = vld [vmem:[%s364 + $0xa0] sm:$0xf]
      %v373 = vld [vmem:[%s364 + $0xc0] sm:$0xf]
      %v374 = vld [vmem:[%s364 + $0xd0] sm:$0xf]
      %v375 = vld [vmem:[%s364 + $0xf0] sm:$0xf]
      %v376 = vld [vmem:[%s364 + $0x100] sm:$0xf]
      %v377 = vld [vmem:[%s364 + $0x120] sm:$0xf]
      %v378 = vld [vmem:[%s364 + $0x130] sm:$0xf]
      %v379 = vld [vmem:[%s364 + $0x150] sm:$0xf]
      %v380 = vld [vmem:[%s364 + $0x160] sm:$0xf]
      %v381 = vld [vmem:[%s364 + $0x180] sm:$0xf]
      %v382 = vld [vmem:[%s364 + $0x190] sm:$0xf]
      %v383 = vld [vmem:[%s364 + $0x1b0] sm:$0xf]
      %v384 = vld [vmem:[%s364 + $0x1c0] sm:$0xf]
      %v385 = vld [vmem:[%s364 + $0x1e0] sm:$0xf]
      %v386 = vld [vmem:[%s364 + $0x1f0] sm:$0xf]
      %v387 = vld [vmem:[%s364 + $0x210] sm:$0xf]
      %v388 = vld [vmem:[%s364 + $0x220] sm:$0xf]
      %v389 = vld [vmem:[%s364 + $0x240] sm:$0xf]
      %v390 = vld [vmem:[%s364 + $0x250] sm:$0xf]
      %v391 = vld [vmem:[%s364 + $0x270] sm:$0xf]
      %v392 = vld [vmem:[%s364 + $0x280] sm:$0xf]
      %v393 = vld [vmem:[%s364 + $0x2a0] sm:$0xf]
      %v394 = vld [vmem:[%s364 + $0x2b0] sm:$0xf]
      %v395 = vld [vmem:[%s364 + $0x2d0] sm:$0xf]
      %v396 = vld [vmem:[%s364 + $0x2e0] sm:$0xf]
      %v397 = vld [vmem:[%s364 + $0x4] sm:$0xf]
      %v398 = vld [vmem:[%s364 + $0x14] sm:$0xf]
      %v399 = vld [vmem:[%s364 + $0x34] sm:$0xf]
      %v400 = vld [vmem:[%s364 + $0x44] sm:$0xf]
      %v401 = vld [vmem:[%s364 + $0x64] sm:$0xf]
      %v402 = vld [vmem:[%s364 + $0x74] sm:$0xf]
      %v403 = vld [vmem:[%s364 + $0x94] sm:$0xf]
      %v404 = vld [vmem:[%s364 + $0xa4] sm:$0xf]
      %v405 = vld [vmem:[%s364 + $0xc4] sm:$0xf]
      %v406 = vld [vmem:[%s364 + $0xd4] sm:$0xf]
      %v407 = vld [vmem:[%s364 + $0xf4] sm:$0xf]
      %v408 = vld [vmem:[%s364 + $0x104] sm:$0xf]
      %v409 = vld [vmem:[%s364 + $0x124] sm:$0xf]
      %v410 = vld [vmem:[%s364 + $0x134] sm:$0xf]
      %v411 = vld [vmem:[%s364 + $0x154] sm:$0xf]
      %v412 = vld [vmem:[%s364 + $0x164] sm:$0xf]
      %v413 = vld [vmem:[%s364 + $0x184] sm:$0xf]
      %v414 = vld [vmem:[%s364 + $0x194] sm:$0xf]
      %v415 = vld [vmem:[%s364 + $0x1b4] sm:$0xf]
      %v416 = vld [vmem:[%s364 + $0x1c4] sm:$0xf]
      %v417 = vld [vmem:[%s364 + $0x1e4] sm:$0xf]
      %v418 = vld [vmem:[%s364 + $0x1f4] sm:$0xf]
      %v419 = vld [vmem:[%s364 + $0x214] sm:$0xf]
      %v420 = vld [vmem:[%s364 + $0x224] sm:$0xf]
      %v421 = vld [vmem:[%s364 + $0x244] sm:$0xf]
      %v422 = vld [vmem:[%s364 + $0x254] sm:$0xf]
      %v423 = vld [vmem:[%s364 + $0x274] sm:$0xf]
      %v424 = vld [vmem:[%s364 + $0x284] sm:$0xf]
      %v425 = vld [vmem:[%s364 + $0x2a4] sm:$0xf]
      %v426 = vld [vmem:[%s364 + $0x2b4] sm:$0xf]
      %v427 = vld [vmem:[%s364 + $0x2d4] sm:$0xf]
      %v428 = vld [vmem:[%s364 + $0x2e4] sm:$0xf]
      %v429 = vld [vmem:[%s364 + $0x20] sm:$0x1]
      %v430 = vld [vmem:[%s364 + $0x50] sm:$0x1]
      %v431 = vld [vmem:[%s364 + $0x80] sm:$0x1]
      %v432 = vld [vmem:[%s364 + $0xb0] sm:$0x1]
      %v433 = vld [vmem:[%s364 + $0xe0] sm:$0x1]
      %v434 = vld [vmem:[%s364 + $0x110] sm:$0x1]
      %v435 = vld [vmem:[%s364 + $0x140] sm:$0x1]
      %v436 = vld [vmem:[%s364 + $0x170] sm:$0x1]
      %v437 = vld [vmem:[%s364 + $0x1a0] sm:$0x1]
      %v438 = vld [vmem:[%s364 + $0x1d0] sm:$0x1]
      %v439 = vld [vmem:[%s364 + $0x200] sm:$0x1]
      %v440 = vld [vmem:[%s364 + $0x230] sm:$0x1]
      %v441 = vld [vmem:[%s364 + $0x260] sm:$0x1]
      %v442 = vld [vmem:[%s364 + $0x290] sm:$0x1]
      %v443 = vld [vmem:[%s364 + $0x2c0] sm:$0x1]
      %v444 = vld [vmem:[%s364 + $0x2f0] sm:$0x1]
      %v477 = vunpack.c.l.b16 %v201
      %v478 = vunpack.c.l.b16 %v202
      %v479 = vunpack.c.l.b16 %v203
      %v480 = vunpack.c.l.b16 %v204
      %v481 = vunpack.c.l.b16 %v205
      %v482 = vunpack.c.l.b16 %v206
      %v483 = vunpack.c.l.b16 %v207
      %v484 = vunpack.c.l.b16 %v208
      %v485 = vunpack.c.l.b16 %v209
      %v486 = vunpack.c.l.b16 %v210
      %v487 = vunpack.c.l.b16 %v211
      %v488 = vunpack.c.l.b16 %v212
      %v489 = vunpack.c.l.b16 %v213
      %v490 = vunpack.c.l.b16 %v214
      %v491 = vunpack.c.l.b16 %v215
      %v492 = vunpack.c.l.b16 %v216
      %v493 = vunpack.c.l.b16 %v217
      %v494 = vunpack.c.l.b16 %v218
      %v495 = vunpack.c.l.b16 %v219
      %v496 = vunpack.c.l.b16 %v220
      %v497 = vunpack.c.l.b16 %v221
      %v498 = vunpack.c.l.b16 %v222
      %v499 = vunpack.c.l.b16 %v223
      %v500 = vunpack.c.l.b16 %v224
      %v501 = vunpack.c.l.b16 %v225
      %v502 = vunpack.c.l.b16 %v226
      %v503 = vunpack.c.l.b16 %v227
      %v504 = vunpack.c.l.b16 %v228
      %v505 = vunpack.c.l.b16 %v229
      %v506 = vunpack.c.l.b16 %v230
      %v507 = vunpack.c.l.b16 %v231
      %v508 = vunpack.c.l.b16 %v232
      %v509 = vpack.c.b16 %v478, %v477
      %v510 = vpack.c.b16 %v480, %v479
      %v511 = vpack.c.b16 %v482, %v481
      %v512 = vpack.c.b16 %v484, %v483
      %v513 = vpack.c.b16 %v486, %v485
      %v514 = vpack.c.b16 %v488, %v487
      %v515 = vpack.c.b16 %v490, %v489
      %v516 = vpack.c.b16 %v492, %v491
      %v517 = vpack.c.b16 %v494, %v493
      %v518 = vpack.c.b16 %v496, %v495
      %v519 = vpack.c.b16 %v498, %v497
      %v520 = vpack.c.b16 %v500, %v499
      %v521 = vpack.c.b16 %v502, %v501
      %v522 = vpack.c.b16 %v504, %v503
      %v523 = vpack.c.b16 %v506, %v505
      %v524 = vpack.c.b16 %v508, %v507
      %v573 = vunpack.c.l.b16 %v233
      %v574 = vunpack.c.l.b16 %v234
      %v575 = vunpack.c.l.b16 %v235
      %v576 = vunpack.c.l.b16 %v236
      %v577 = vunpack.c.l.b16 %v237
      %v578 = vunpack.c.l.b16 %v238
      %v579 = vunpack.c.l.b16 %v239
      %v580 = vunpack.c.l.b16 %v240
      %v581 = vunpack.c.l.b16 %v241
      %v582 = vunpack.c.l.b16 %v242
      %v583 = vunpack.c.l.b16 %v243
      %v584 = vunpack.c.l.b16 %v244
      %v585 = vunpack.c.l.b16 %v245
      %v586 = vunpack.c.l.b16 %v246
      %v587 = vunpack.c.l.b16 %v247
      %v588 = vunpack.c.l.b16 %v248
      %v589 = vunpack.c.l.b16 %v249
      %v590 = vunpack.c.l.b16 %v250
      %v591 = vunpack.c.l.b16 %v251
      %v592 = vunpack.c.l.b16 %v252
      %v593 = vunpack.c.l.b16 %v253
      %v594 = vunpack.c.l.b16 %v254
      %v595 = vunpack.c.l.b16 %v255
      %v596 = vunpack.c.l.b16 %v256
      %v597 = vunpack.c.l.b16 %v257
      %v598 = vunpack.c.l.b16 %v258
      %v599 = vunpack.c.l.b16 %v259
      %v600 = vunpack.c.l.b16 %v260
      %v601 = vunpack.c.l.b16 %v261
      %v602 = vunpack.c.l.b16 %v262
      %v603 = vunpack.c.l.b16 %v263
      %v604 = vunpack.c.l.b16 %v264
      %v605 = vpack.c.b16 %v574, %v573
      %v606 = vpack.c.b16 %v576, %v575
      %v607 = vpack.c.b16 %v578, %v577
      %v608 = vpack.c.b16 %v580, %v579
      %v609 = vpack.c.b16 %v582, %v581
      %v610 = vpack.c.b16 %v584, %v583
      %v611 = vpack.c.b16 %v586, %v585
      %v612 = vpack.c.b16 %v588, %v587
      %v613 = vpack.c.b16 %v590, %v589
      %v614 = vpack.c.b16 %v592, %v591
      %v615 = vpack.c.b16 %v594, %v593
      %v616 = vpack.c.b16 %v596, %v595
      %v617 = vpack.c.b16 %v598, %v597
      %v618 = vpack.c.b16 %v600, %v599
      %v619 = vpack.c.b16 %v602, %v601
      %v620 = vpack.c.b16 %v604, %v603
      %v653 = vunpack.c.l.b16 %v265
      %v654 = vunpack.c.l.b16 %v266
      %v655 = vunpack.c.l.b16 %v267
      %v656 = vunpack.c.l.b16 %v268
      %v657 = vunpack.c.l.b16 %v269
      %v658 = vunpack.c.l.b16 %v270
      %v659 = vunpack.c.l.b16 %v271
      %v660 = vunpack.c.l.b16 %v272
      %v661 = vunpack.c.l.b16 %v273
      %v662 = vunpack.c.l.b16 %v274
      %v663 = vunpack.c.l.b16 %v275
      %v664 = vunpack.c.l.b16 %v276
      %v665 = vunpack.c.l.b16 %v277
      %v666 = vunpack.c.l.b16 %v278
      %v667 = vunpack.c.l.b16 %v279
      %v668 = vunpack.c.l.b16 %v280
      %v669 = vpack.c.b16 %v653, %v653
      %v670 = vpack.c.b16 %v654, %v654
      %v671 = vpack.c.b16 %v655, %v655
      %v672 = vpack.c.b16 %v656, %v656
      %v673 = vpack.c.b16 %v657, %v657
      %v674 = vpack.c.b16 %v658, %v658
      %v675 = vpack.c.b16 %v659, %v659
      %v676 = vpack.c.b16 %v660, %v660
      %v677 = vpack.c.b16 %v661, %v661
      %v678 = vpack.c.b16 %v662, %v662
      %v679 = vpack.c.b16 %v663, %v663
      %v680 = vpack.c.b16 %v664, %v664
      %v681 = vpack.c.b16 %v665, %v665
      %v682 = vpack.c.b16 %v666, %v666
      %v683 = vpack.c.b16 %v667, %v667
      %v684 = vpack.c.b16 %v668, %v668
      %vm685 = vsmask.f32 7424
      %v687 = vshrl.u32 %v509, 16
      %v689 = vshll.u32 %v509, 16
      %v691 = vrot.slane %v689, 1
      %v692 = vor.u32 %v687, %v691
      %v694 = vshll.u32 %v669, 16
      %v696 = vrot.slane %v694, 1
      %v697 = vsel %vm685, %v692, %v696
      %v699 = vshrl.u32 %v510, 16
      %v701 = vshll.u32 %v510, 16
      %v703 = vrot.slane %v701, 1
      %v704 = vor.u32 %v699, %v703
      %v706 = vshll.u32 %v670, 16
      %v708 = vrot.slane %v706, 1
      %v709 = vsel %vm685, %v704, %v708
      %v711 = vshrl.u32 %v511, 16
      %v713 = vshll.u32 %v511, 16
      %v715 = vrot.slane %v713, 1
      %v716 = vor.u32 %v711, %v715
      %v718 = vshll.u32 %v671, 16
      %v720 = vrot.slane %v718, 1
      %v721 = vsel %vm685, %v716, %v720
      %v723 = vshrl.u32 %v512, 16
      %v725 = vshll.u32 %v512, 16
      %v727 = vrot.slane %v725, 1
      %v728 = vor.u32 %v723, %v727
      %v730 = vshll.u32 %v672, 16
      %v732 = vrot.slane %v730, 1
      %v733 = vsel %vm685, %v728, %v732
      %v735 = vshrl.u32 %v513, 16
      %v737 = vshll.u32 %v513, 16
      %v739 = vrot.slane %v737, 1
      %v740 = vor.u32 %v735, %v739
      %v742 = vshll.u32 %v673, 16
      %v744 = vrot.slane %v742, 1
      %v745 = vsel %vm685, %v740, %v744
      %v747 = vshrl.u32 %v514, 16
      %v749 = vshll.u32 %v514, 16
      %v751 = vrot.slane %v749, 1
      %v752 = vor.u32 %v747, %v751
      %v754 = vshll.u32 %v674, 16
      %v756 = vrot.slane %v754, 1
      %v757 = vsel %vm685, %v752, %v756
      %v759 = vshrl.u32 %v515, 16
      %v761 = vshll.u32 %v515, 16
      %v763 = vrot.slane %v761, 1
      %v764 = vor.u32 %v759, %v763
      %v766 = vshll.u32 %v675, 16
      %v768 = vrot.slane %v766, 1
      %v769 = vsel %vm685, %v764, %v768
      %v771 = vshrl.u32 %v516, 16
      %v773 = vshll.u32 %v516, 16
      %v775 = vrot.slane %v773, 1
      %v776 = vor.u32 %v771, %v775
      %v778 = vshll.u32 %v676, 16
      %v780 = vrot.slane %v778, 1
      %v781 = vsel %vm685, %v776, %v780
      %v783 = vshrl.u32 %v517, 16
      %v785 = vshll.u32 %v517, 16
      %v787 = vrot.slane %v785, 1
      %v788 = vor.u32 %v783, %v787
      %v790 = vshll.u32 %v677, 16
      %v792 = vrot.slane %v790, 1
      %v793 = vsel %vm685, %v788, %v792
      %v795 = vshrl.u32 %v518, 16
      %v797 = vshll.u32 %v518, 16
      %v799 = vrot.slane %v797, 1
      %v800 = vor.u32 %v795, %v799
      %v802 = vshll.u32 %v678, 16
      %v804 = vrot.slane %v802, 1
      %v805 = vsel %vm685, %v800, %v804
      %v807 = vshrl.u32 %v519, 16
      %v809 = vshll.u32 %v519, 16
      %v811 = vrot.slane %v809, 1
      %v812 = vor.u32 %v807, %v811
      %v814 = vshll.u32 %v679, 16
      %v816 = vrot.slane %v814, 1
      %v817 = vsel %vm685, %v812, %v816
      %v819 = vshrl.u32 %v520, 16
      %v821 = vshll.u32 %v520, 16
      %v823 = vrot.slane %v821, 1
      %v824 = vor.u32 %v819, %v823
      %v826 = vshll.u32 %v680, 16
      %v828 = vrot.slane %v826, 1
      %v829 = vsel %vm685, %v824, %v828
      %v831 = vshrl.u32 %v521, 16
      %v833 = vshll.u32 %v521, 16
      %v835 = vrot.slane %v833, 1
      %v836 = vor.u32 %v831, %v835
      %v838 = vshll.u32 %v681, 16
      %v840 = vrot.slane %v838, 1
      %v841 = vsel %vm685, %v836, %v840
      %v843 = vshrl.u32 %v522, 16
      %v845 = vshll.u32 %v522, 16
      %v847 = vrot.slane %v845, 1
      %v848 = vor.u32 %v843, %v847
      %v850 = vshll.u32 %v682, 16
      %v852 = vrot.slane %v850, 1
      %v853 = vsel %vm685, %v848, %v852
      %v855 = vshrl.u32 %v523, 16
      %v857 = vshll.u32 %v523, 16
      %v859 = vrot.slane %v857, 1
      %v860 = vor.u32 %v855, %v859
      %v862 = vshll.u32 %v683, 16
      %v864 = vrot.slane %v862, 1
      %v865 = vsel %vm685, %v860, %v864
      %v867 = vshrl.u32 %v524, 16
      %v869 = vshll.u32 %v524, 16
      %v871 = vrot.slane %v869, 1
      %v872 = vor.u32 %v867, %v871
      %v874 = vshll.u32 %v684, 16
      %v876 = vrot.slane %v874, 1
      %v877 = vsel %vm685, %v872, %v876
      %v926 = vunpack.c.l.b16 %v281
      %v927 = vunpack.c.l.b16 %v282
      %v928 = vunpack.c.l.b16 %v283
      %v929 = vunpack.c.l.b16 %v284
      %v930 = vunpack.c.l.b16 %v285
      %v931 = vunpack.c.l.b16 %v286
      %v932 = vunpack.c.l.b16 %v287
      %v933 = vunpack.c.l.b16 %v288
      %v934 = vunpack.c.l.b16 %v289
      %v935 = vunpack.c.l.b16 %v290
      %v936 = vunpack.c.l.b16 %v291
      %v937 = vunpack.c.l.b16 %v292
      %v938 = vunpack.c.l.b16 %v293
      %v939 = vunpack.c.l.b16 %v294
      %v940 = vunpack.c.l.b16 %v295
      %v941 = vunpack.c.l.b16 %v296
      %v942 = vunpack.c.l.b16 %v297
      %v943 = vunpack.c.l.b16 %v298
      %v944 = vunpack.c.l.b16 %v299
      %v945 = vunpack.c.l.b16 %v300
      %v946 = vunpack.c.l.b16 %v301
      %v947 = vunpack.c.l.b16 %v302
      %v948 = vunpack.c.l.b16 %v303
      %v949 = vunpack.c.l.b16 %v304
      %v950 = vunpack.c.l.b16 %v305
      %v951 = vunpack.c.l.b16 %v306
      %v952 = vunpack.c.l.b16 %v307
      %v953 = vunpack.c.l.b16 %v308
      %v954 = vunpack.c.l.b16 %v309
      %v955 = vunpack.c.l.b16 %v310
      %v956 = vunpack.c.l.b16 %v311
      %v957 = vunpack.c.l.b16 %v312
      %v958 = vpack.c.b16 %v927, %v926
      %v959 = vpack.c.b16 %v929, %v928
      %v960 = vpack.c.b16 %v931, %v930
      %v961 = vpack.c.b16 %v933, %v932
      %v962 = vpack.c.b16 %v935, %v934
      %v963 = vpack.c.b16 %v937, %v936
      %v964 = vpack.c.b16 %v939, %v938
      %v965 = vpack.c.b16 %v941, %v940
      %v966 = vpack.c.b16 %v943, %v942
      %v967 = vpack.c.b16 %v945, %v944
      %v968 = vpack.c.b16 %v947, %v946
      %v969 = vpack.c.b16 %v949, %v948
      %v970 = vpack.c.b16 %v951, %v950
      %v971 = vpack.c.b16 %v953, %v952
      %v972 = vpack.c.b16 %v955, %v954
      %v973 = vpack.c.b16 %v957, %v956
      %v1022 = vunpack.c.l.b16 %v313
      %v1023 = vunpack.c.l.b16 %v314
      %v1024 = vunpack.c.l.b16 %v315
      %v1025 = vunpack.c.l.b16 %v316
      %v1026 = vunpack.c.l.b16 %v317
      %v1027 = vunpack.c.l.b16 %v318
      %v1028 = vunpack.c.l.b16 %v319
      %v1029 = vunpack.c.l.b16 %v320
      %v1030 = vunpack.c.l.b16 %v321
      %v1031 = vunpack.c.l.b16 %v322
      %v1032 = vunpack.c.l.b16 %v323
      %v1033 = vunpack.c.l.b16 %v324
      %v1034 = vunpack.c.l.b16 %v325
      %v1035 = vunpack.c.l.b16 %v326
      %v1036 = vunpack.c.l.b16 %v327
      %v1037 = vunpack.c.l.b16 %v328
      %v1038 = vunpack.c.l.b16 %v329
      %v1039 = vunpack.c.l.b16 %v330
      %v1040 = vunpack.c.l.b16 %v331
      %v1041 = vunpack.c.l.b16 %v332
      %v1042 = vunpack.c.l.b16 %v333
      %v1043 = vunpack.c.l.b16 %v334
      %v1044 = vunpack.c.l.b16 %v335
      %v1045 = vunpack.c.l.b16 %v336
      %v1046 = vunpack.c.l.b16 %v337
      %v1047 = vunpack.c.l.b16 %v338
      %v1048 = vunpack.c.l.b16 %v339
      %v1049 = vunpack.c.l.b16 %v340
      %v1050 = vunpack.c.l.b16 %v341
      %v1051 = vunpack.c.l.b16 %v342
      %v1052 = vunpack.c.l.b16 %v343
      %v1053 = vunpack.c.l.b16 %v344
      %v1054 = vpack.c.b16 %v1023, %v1022
      %v1055 = vpack.c.b16 %v1025, %v1024
      %v1056 = vpack.c.b16 %v1027, %v1026
      %v1057 = vpack.c.b16 %v1029, %v1028
      %v1058 = vpack.c.b16 %v1031, %v1030
      %v1059 = vpack.c.b16 %v1033, %v1032
      %v1060 = vpack.c.b16 %v1035, %v1034
      %v1061 = vpack.c.b16 %v1037, %v1036
      %v1062 = vpack.c.b16 %v1039, %v1038
      %v1063 = vpack.c.b16 %v1041, %v1040
      %v1064 = vpack.c.b16 %v1043, %v1042
      %v1065 = vpack.c.b16 %v1045, %v1044
      %v1066 = vpack.c.b16 %v1047, %v1046
      %v1067 = vpack.c.b16 %v1049, %v1048
      %v1068 = vpack.c.b16 %v1051, %v1050
      %v1069 = vpack.c.b16 %v1053, %v1052
      %v1102 = vunpack.c.l.b16 %v345
      %v1103 = vunpack.c.l.b16 %v346
      %v1104 = vunpack.c.l.b16 %v347
      %v1105 = vunpack.c.l.b16 %v348
      %v1106 = vunpack.c.l.b16 %v349
      %v1107 = vunpack.c.l.b16 %v350
      %v1108 = vunpack.c.l.b16 %v351
      %v1109 = vunpack.c.l.b16 %v352
      %v1110 = vunpack.c.l.b16 %v353
      %v1111 = vunpack.c.l.b16 %v354
      %v1112 = vunpack.c.l.b16 %v355
      %v1113 = vunpack.c.l.b16 %v356
      %v1114 = vunpack.c.l.b16 %v357
      %v1115 = vunpack.c.l.b16 %v358
      %v1116 = vunpack.c.l.b16 %v359
      %v1117 = vunpack.c.l.b16 %v360
      %v1118 = vpack.c.b16 %v1102, %v1102
      %v1119 = vpack.c.b16 %v1103, %v1103
      %v1120 = vpack.c.b16 %v1104, %v1104
      %v1121 = vpack.c.b16 %v1105, %v1105
      %v1122 = vpack.c.b16 %v1106, %v1106
      %v1123 = vpack.c.b16 %v1107, %v1107
      %v1124 = vpack.c.b16 %v1108, %v1108
      %v1125 = vpack.c.b16 %v1109, %v1109
      %v1126 = vpack.c.b16 %v1110, %v1110
      %v1127 = vpack.c.b16 %v1111, %v1111
      %v1128 = vpack.c.b16 %v1112, %v1112
      %v1129 = vpack.c.b16 %v1113, %v1113
      %v1130 = vpack.c.b16 %v1114, %v1114
      %v1131 = vpack.c.b16 %v1115, %v1115
      %v1132 = vpack.c.b16 %v1116, %v1116
      %v1133 = vpack.c.b16 %v1117, %v1117
      %v1135 = vshrl.u32 %v958, 16
      %v1137 = vshll.u32 %v958, 16
      %v1139 = vrot.slane %v1137, 1
      %v1140 = vor.u32 %v1135, %v1139
      %v1142 = vshll.u32 %v1118, 16
      %v1144 = vrot.slane %v1142, 1
      %v1145 = vsel %vm685, %v1140, %v1144
      %v1147 = vshrl.u32 %v959, 16
      %v1149 = vshll.u32 %v959, 16
      %v1151 = vrot.slane %v1149, 1
      %v1152 = vor.u32 %v1147, %v1151
      %v1154 = vshll.u32 %v1119, 16
      %v1156 = vrot.slane %v1154, 1
      %v1157 = vsel %vm685, %v1152, %v1156
      %v1159 = vshrl.u32 %v960, 16
      %v1161 = vshll.u32 %v960, 16
      %v1163 = vrot.slane %v1161, 1
      %v1164 = vor.u32 %v1159, %v1163
      %v1166 = vshll.u32 %v1120, 16
      %v1168 = vrot.slane %v1166, 1
      %v1169 = vsel %vm685, %v1164, %v1168
      %v1171 = vshrl.u32 %v961, 16
      %v1173 = vshll.u32 %v961, 16
      %v1175 = vrot.slane %v1173, 1
      %v1176 = vor.u32 %v1171, %v1175
      %v1178 = vshll.u32 %v1121, 16
      %v1180 = vrot.slane %v1178, 1
      %v1181 = vsel %vm685, %v1176, %v1180
      %v1183 = vshrl.u32 %v962, 16
      %v1185 = vshll.u32 %v962, 16
      %v1187 = vrot.slane %v1185, 1
      %v1188 = vor.u32 %v1183, %v1187
      %v1190 = vshll.u32 %v1122, 16
      %v1192 = vrot.slane %v1190, 1
      %v1193 = vsel %vm685, %v1188, %v1192
      %v1195 = vshrl.u32 %v963, 16
      %v1197 = vshll.u32 %v963, 16
      %v1199 = vrot.slane %v1197, 1
      %v1200 = vor.u32 %v1195, %v1199
      %v1202 = vshll.u32 %v1123, 16
      %v1204 = vrot.slane %v1202, 1
      %v1205 = vsel %vm685, %v1200, %v1204
      %v1207 = vshrl.u32 %v964, 16
      %v1209 = vshll.u32 %v964, 16
      %v1211 = vrot.slane %v1209, 1
      %v1212 = vor.u32 %v1207, %v1211
      %v1214 = vshll.u32 %v1124, 16
      %v1216 = vrot.slane %v1214, 1
      %v1217 = vsel %vm685, %v1212, %v1216
      %v1219 = vshrl.u32 %v965, 16
      %v1221 = vshll.u32 %v965, 16
      %v1223 = vrot.slane %v1221, 1
      %v1224 = vor.u32 %v1219, %v1223
      %v1226 = vshll.u32 %v1125, 16
      %v1228 = vrot.slane %v1226, 1
      %v1229 = vsel %vm685, %v1224, %v1228
      %v1231 = vshrl.u32 %v966, 16
      %v1233 = vshll.u32 %v966, 16
      %v1235 = vrot.slane %v1233, 1
      %v1236 = vor.u32 %v1231, %v1235
      %v1238 = vshll.u32 %v1126, 16
      %v1240 = vrot.slane %v1238, 1
      %v1241 = vsel %vm685, %v1236, %v1240
      %v1243 = vshrl.u32 %v967, 16
      %v1245 = vshll.u32 %v967, 16
      %v1247 = vrot.slane %v1245, 1
      %v1248 = vor.u32 %v1243, %v1247
      %v1250 = vshll.u32 %v1127, 16
      %v1252 = vrot.slane %v1250, 1
      %v1253 = vsel %vm685, %v1248, %v1252
      %v1255 = vshrl.u32 %v968, 16
      %v1257 = vshll.u32 %v968, 16
      %v1259 = vrot.slane %v1257, 1
      %v1260 = vor.u32 %v1255, %v1259
      %v1262 = vshll.u32 %v1128, 16
      %v1264 = vrot.slane %v1262, 1
      %v1265 = vsel %vm685, %v1260, %v1264
      %v1267 = vshrl.u32 %v969, 16
      %v1269 = vshll.u32 %v969, 16
      %v1271 = vrot.slane %v1269, 1
      %v1272 = vor.u32 %v1267, %v1271
      %v1274 = vshll.u32 %v1129, 16
      %v1276 = vrot.slane %v1274, 1
      %v1277 = vsel %vm685, %v1272, %v1276
      %v1279 = vshrl.u32 %v970, 16
      %v1281 = vshll.u32 %v970, 16
      %v1283 = vrot.slane %v1281, 1
      %v1284 = vor.u32 %v1279, %v1283
      %v1286 = vshll.u32 %v1130, 16
      %v1288 = vrot.slane %v1286, 1
      %v1289 = vsel %vm685, %v1284, %v1288
      %v1291 = vshrl.u32 %v971, 16
      %v1293 = vshll.u32 %v971, 16
      %v1295 = vrot.slane %v1293, 1
      %v1296 = vor.u32 %v1291, %v1295
      %v1298 = vshll.u32 %v1131, 16
      %v1300 = vrot.slane %v1298, 1
      %v1301 = vsel %vm685, %v1296, %v1300
      %v1303 = vshrl.u32 %v972, 16
      %v1305 = vshll.u32 %v972, 16
      %v1307 = vrot.slane %v1305, 1
      %v1308 = vor.u32 %v1303, %v1307
      %v1310 = vshll.u32 %v1132, 16
      %v1312 = vrot.slane %v1310, 1
      %v1313 = vsel %vm685, %v1308, %v1312
      %v1315 = vshrl.u32 %v973, 16
      %v1317 = vshll.u32 %v973, 16
      %v1319 = vrot.slane %v1317, 1
      %v1320 = vor.u32 %v1315, %v1319
      %v1322 = vshll.u32 %v1133, 16
      %v1324 = vrot.slane %v1322, 1
      %v1325 = vsel %vm685, %v1320, %v1324
      %v1374 = vunpack.c.l.b16 %v365
      %v1375 = vunpack.c.l.b16 %v366
      %v1376 = vunpack.c.l.b16 %v367
      %v1377 = vunpack.c.l.b16 %v368
      %v1378 = vunpack.c.l.b16 %v369
      %v1379 = vunpack.c.l.b16 %v370
      %v1380 = vunpack.c.l.b16 %v371
      %v1381 = vunpack.c.l.b16 %v372
      %v1382 = vunpack.c.l.b16 %v373
      %v1383 = vunpack.c.l.b16 %v374
      %v1384 = vunpack.c.l.b16 %v375
      %v1385 = vunpack.c.l.b16 %v376
      %v1386 = vunpack.c.l.b16 %v377
      %v1387 = vunpack.c.l.b16 %v378
      %v1388 = vunpack.c.l.b16 %v379
      %v1389 = vunpack.c.l.b16 %v380
      %v1390 = vunpack.c.l.b16 %v381
      %v1391 = vunpack.c.l.b16 %v382
      %v1392 = vunpack.c.l.b16 %v383
      %v1393 = vunpack.c.l.b16 %v384
      %v1394 = vunpack.c.l.b16 %v385
      %v1395 = vunpack.c.l.b16 %v386
      %v1396 = vunpack.c.l.b16 %v387
      %v1397 = vunpack.c.l.b16 %v388
      %v1398 = vunpack.c.l.b16 %v389
      %v1399 = vunpack.c.l.b16 %v390
      %v1400 = vunpack.c.l.b16 %v391
      %v1401 = vunpack.c.l.b16 %v392
      %v1402 = vunpack.c.l.b16 %v393
      %v1403 = vunpack.c.l.b16 %v394
      %v1404 = vunpack.c.l.b16 %v395
      %v1405 = vunpack.c.l.b16 %v396
      %v1406 = vpack.c.b16 %v1375, %v1374
      %v1407 = vpack.c.b16 %v1377, %v1376
      %v1408 = vpack.c.b16 %v1379, %v1378
      %v1409 = vpack.c.b16 %v1381, %v1380
      %v1410 = vpack.c.b16 %v1383, %v1382
      %v1411 = vpack.c.b16 %v1385, %v1384
      %v1412 = vpack.c.b16 %v1387, %v1386
      %v1413 = vpack.c.b16 %v1389, %v1388
      %v1414 = vpack.c.b16 %v1391, %v1390
      %v1415 = vpack.c.b16 %v1393, %v1392
      %v1416 = vpack.c.b16 %v1395, %v1394
      %v1417 = vpack.c.b16 %v1397, %v1396
      %v1418 = vpack.c.b16 %v1399, %v1398
      %v1419 = vpack.c.b16 %v1401, %v1400
      %v1420 = vpack.c.b16 %v1403, %v1402
      %v1421 = vpack.c.b16 %v1405, %v1404
      %v1470 = vunpack.c.l.b16 %v397
      %v1471 = vunpack.c.l.b16 %v398
      %v1472 = vunpack.c.l.b16 %v399
      %v1473 = vunpack.c.l.b16 %v400
      %v1474 = vunpack.c.l.b16 %v401
      %v1475 = vunpack.c.l.b16 %v402
      %v1476 = vunpack.c.l.b16 %v403
      %v1477 = vunpack.c.l.b16 %v404
      %v1478 = vunpack.c.l.b16 %v405
      %v1479 = vunpack.c.l.b16 %v406
      %v1480 = vunpack.c.l.b16 %v407
      %v1481 = vunpack.c.l.b16 %v408
      %v1482 = vunpack.c.l.b16 %v409
      %v1483 = vunpack.c.l.b16 %v410
      %v1484 = vunpack.c.l.b16 %v411
      %v1485 = vunpack.c.l.b16 %v412
      %v1486 = vunpack.c.l.b16 %v413
      %v1487 = vunpack.c.l.b16 %v414
      %v1488 = vunpack.c.l.b16 %v415
      %v1489 = vunpack.c.l.b16 %v416
      %v1490 = vunpack.c.l.b16 %v417
      %v1491 = vunpack.c.l.b16 %v418
      %v1492 = vunpack.c.l.b16 %v419
      %v1493 = vunpack.c.l.b16 %v420
      %v1494 = vunpack.c.l.b16 %v421
      %v1495 = vunpack.c.l.b16 %v422
      %v1496 = vunpack.c.l.b16 %v423
      %v1497 = vunpack.c.l.b16 %v424
      %v1498 = vunpack.c.l.b16 %v425
      %v1499 = vunpack.c.l.b16 %v426
      %v1500 = vunpack.c.l.b16 %v427
      %v1501 = vunpack.c.l.b16 %v428
      %v1502 = vpack.c.b16 %v1471, %v1470
      %v1503 = vpack.c.b16 %v1473, %v1472
      %v1504 = vpack.c.b16 %v1475, %v1474
      %v1505 = vpack.c.b16 %v1477, %v1476
      %v1506 = vpack.c.b16 %v1479, %v1478
      %v1507 = vpack.c.b16 %v1481, %v1480
      %v1508 = vpack.c.b16 %v1483, %v1482
      %v1509 = vpack.c.b16 %v1485, %v1484
      %v1510 = vpack.c.b16 %v1487, %v1486
      %v1511 = vpack.c.b16 %v1489, %v1488
      %v1512 = vpack.c.b16 %v1491, %v1490
      %v1513 = vpack.c.b16 %v1493, %v1492
      %v1514 = vpack.c.b16 %v1495, %v1494
      %v1515 = vpack.c.b16 %v1497, %v1496
      %v1516 = vpack.c.b16 %v1499, %v1498
      %v1517 = vpack.c.b16 %v1501, %v1500
      %v1550 = vunpack.c.l.b16 %v429
      %v1551 = vunpack.c.l.b16 %v430
      %v1552 = vunpack.c.l.b16 %v431
      %v1553 = vunpack.c.l.b16 %v432
      %v1554 = vunpack.c.l.b16 %v433
      %v1555 = vunpack.c.l.b16 %v434
      %v1556 = vunpack.c.l.b16 %v435
      %v1557 = vunpack.c.l.b16 %v436
      %v1558 = vunpack.c.l.b16 %v437
      %v1559 = vunpack.c.l.b16 %v438
      %v1560 = vunpack.c.l.b16 %v439
      %v1561 = vunpack.c.l.b16 %v440
      %v1562 = vunpack.c.l.b16 %v441
      %v1563 = vunpack.c.l.b16 %v442
      %v1564 = vunpack.c.l.b16 %v443
      %v1565 = vunpack.c.l.b16 %v444
      %v1566 = vpack.c.b16 %v1550, %v1550
      %v1567 = vpack.c.b16 %v1551, %v1551
      %v1568 = vpack.c.b16 %v1552, %v1552
      %v1569 = vpack.c.b16 %v1553, %v1553
      %v1570 = vpack.c.b16 %v1554, %v1554
      %v1571 = vpack.c.b16 %v1555, %v1555
      %v1572 = vpack.c.b16 %v1556, %v1556
      %v1573 = vpack.c.b16 %v1557, %v1557
      %v1574 = vpack.c.b16 %v1558, %v1558
      %v1575 = vpack.c.b16 %v1559, %v1559
      %v1576 = vpack.c.b16 %v1560, %v1560
      %v1577 = vpack.c.b16 %v1561, %v1561
      %v1578 = vpack.c.b16 %v1562, %v1562
      %v1579 = vpack.c.b16 %v1563, %v1563
      %v1580 = vpack.c.b16 %v1564, %v1564
      %v1581 = vpack.c.b16 %v1565, %v1565
      %v1583 = vshrl.u32 %v1406, 16
      %v1585 = vshll.u32 %v1406, 16
      %v1587 = vrot.slane %v1585, 1
      %v1588 = vor.u32 %v1583, %v1587
      %v1590 = vshll.u32 %v1566, 16
      %v1592 = vrot.slane %v1590, 1
      %v1593 = vsel %vm685, %v1588, %v1592
      %v1595 = vshrl.u32 %v1407, 16
      %v1597 = vshll.u32 %v1407, 16
      %v1599 = vrot.slane %v1597, 1
      %v1600 = vor.u32 %v1595, %v1599
      %v1602 = vshll.u32 %v1567, 16
      %v1604 = vrot.slane %v1602, 1
      %v1605 = vsel %vm685, %v1600, %v1604
      %v1607 = vshrl.u32 %v1408, 16
      %v1609 = vshll.u32 %v1408, 16
      %v1611 = vrot.slane %v1609, 1
      %v1612 = vor.u32 %v1607, %v1611
      %v1614 = vshll.u32 %v1568, 16
      %v1616 = vrot.slane %v1614, 1
      %v1617 = vsel %vm685, %v1612, %v1616
      %v1619 = vshrl.u32 %v1409, 16
      %v1621 = vshll.u32 %v1409, 16
      %v1623 = vrot.slane %v1621, 1
      %v1624 = vor.u32 %v1619, %v1623
      %v1626 = vshll.u32 %v1569, 16
      %v1628 = vrot.slane %v1626, 1
      %v1629 = vsel %vm685, %v1624, %v1628
      %v1631 = vshrl.u32 %v1410, 16
      %v1633 = vshll.u32 %v1410, 16
      %v1635 = vrot.slane %v1633, 1
      %v1636 = vor.u32 %v1631, %v1635
      %v1638 = vshll.u32 %v1570, 16
      %v1640 = vrot.slane %v1638, 1
      %v1641 = vsel %vm685, %v1636, %v1640
      %v1643 = vshrl.u32 %v1411, 16
      %v1645 = vshll.u32 %v1411, 16
      %v1647 = vrot.slane %v1645, 1
      %v1648 = vor.u32 %v1643, %v1647
      %v1650 = vshll.u32 %v1571, 16
      %v1652 = vrot.slane %v1650, 1
      %v1653 = vsel %vm685, %v1648, %v1652
      %v1655 = vshrl.u32 %v1412, 16
      %v1657 = vshll.u32 %v1412, 16
      %v1659 = vrot.slane %v1657, 1
      %v1660 = vor.u32 %v1655, %v1659
      %v1662 = vshll.u32 %v1572, 16
      %v1664 = vrot.slane %v1662, 1
      %v1665 = vsel %vm685, %v1660, %v1664
      %v1667 = vshrl.u32 %v1413, 16
      %v1669 = vshll.u32 %v1413, 16
      %v1671 = vrot.slane %v1669, 1
      %v1672 = vor.u32 %v1667, %v1671
      %v1674 = vshll.u32 %v1573, 16
      %v1676 = vrot.slane %v1674, 1
      %v1677 = vsel %vm685, %v1672, %v1676
      %v1679 = vshrl.u32 %v1414, 16
      %v1681 = vshll.u32 %v1414, 16
      %v1683 = vrot.slane %v1681, 1
      %v1684 = vor.u32 %v1679, %v1683
      %v1686 = vshll.u32 %v1574, 16
      %v1688 = vrot.slane %v1686, 1
      %v1689 = vsel %vm685, %v1684, %v1688
      %v1691 = vshrl.u32 %v1415, 16
      %v1693 = vshll.u32 %v1415, 16
      %v1695 = vrot.slane %v1693, 1
      %v1696 = vor.u32 %v1691, %v1695
      %v1698 = vshll.u32 %v1575, 16
      %v1700 = vrot.slane %v1698, 1
      %v1701 = vsel %vm685, %v1696, %v1700
      %v1703 = vshrl.u32 %v1416, 16
      %v1705 = vshll.u32 %v1416, 16
      %v1707 = vrot.slane %v1705, 1
      %v1708 = vor.u32 %v1703, %v1707
      %v1710 = vshll.u32 %v1576, 16
      %v1712 = vrot.slane %v1710, 1
      %v1713 = vsel %vm685, %v1708, %v1712
      %v1715 = vshrl.u32 %v1417, 16
      %v1717 = vshll.u32 %v1417, 16
      %v1719 = vrot.slane %v1717, 1
      %v1720 = vor.u32 %v1715, %v1719
      %v1722 = vshll.u32 %v1577, 16
      %v1724 = vrot.slane %v1722, 1
      %v1725 = vsel %vm685, %v1720, %v1724
      %v1727 = vshrl.u32 %v1418, 16
      %v1729 = vshll.u32 %v1418, 16
      %v1731 = vrot.slane %v1729, 1
      %v1732 = vor.u32 %v1727, %v1731
      %v1734 = vshll.u32 %v1578, 16
      %v1736 = vrot.slane %v1734, 1
      %v1737 = vsel %vm685, %v1732, %v1736
      %v1739 = vshrl.u32 %v1419, 16
      %v1741 = vshll.u32 %v1419, 16
      %v1743 = vrot.slane %v1741, 1
      %v1744 = vor.u32 %v1739, %v1743
      %v1746 = vshll.u32 %v1579, 16
      %v1748 = vrot.slane %v1746, 1
      %v1749 = vsel %vm685, %v1744, %v1748
      %v1751 = vshrl.u32 %v1420, 16
      %v1753 = vshll.u32 %v1420, 16
      %v1755 = vrot.slane %v1753, 1
      %v1756 = vor.u32 %v1751, %v1755
      %v1758 = vshll.u32 %v1580, 16
      %v1760 = vrot.slane %v1758, 1
      %v1761 = vsel %vm685, %v1756, %v1760
      %v1763 = vshrl.u32 %v1421, 16
      %v1765 = vshll.u32 %v1421, 16
      %v1767 = vrot.slane %v1765, 1
      %v1768 = vor.u32 %v1763, %v1767
      %v1770 = vshll.u32 %v1581, 16
      %v1772 = vrot.slane %v1770, 1
      %v1773 = vsel %vm685, %v1768, %v1772
      %v1790 = vld [vmem:[%s1] sm:$0xf]
      %v1791 = vld [vmem:[%s1 + $0x4] sm:$0xf]
      %v1792 = vld [vmem:[%s1 + $0x8] sm:$0xf]
      %v1793 = vld [vmem:[%s1 + $0xc] sm:$0xf]
      %v1794 = vld [vmem:[%s1 + $0x10] sm:$0xf]
      %v1795 = vld [vmem:[%s1 + $0x14] sm:$0xf]
      %v1796 = vld [vmem:[%s1 + $0x18] sm:$0xf]
      %v1797 = vld [vmem:[%s1 + $0x1c] sm:$0xf]
      %v1798 = vld [vmem:[%s1 + $0x20] sm:$0xf]
      %v1799 = vld [vmem:[%s1 + $0x24] sm:$0xf]
      %v1800 = vld [vmem:[%s1 + $0x28] sm:$0xf]
      %v1801 = vld [vmem:[%s1 + $0x2c] sm:$0xf]
      %v1802 = vld [vmem:[%s1 + $0x30] sm:$0xf]
      %v1803 = vld [vmem:[%s1 + $0x34] sm:$0xf]
      %v1804 = vld [vmem:[%s1 + $0x38] sm:$0xf]
      %v1805 = vld [vmem:[%s1 + $0x3c] sm:$0xf]
      %v1806 = vld [vmem:[%s1 + $0x40] sm:$0xf]
      %v1807 = vld [vmem:[%s1 + $0x44] sm:$0xf]
      %v1808 = vld [vmem:[%s1 + $0x48] sm:$0xf]
      %v1809 = vld [vmem:[%s1 + $0x4c] sm:$0xf]
      %v1810 = vld [vmem:[%s1 + $0x50] sm:$0xf]
      %v1811 = vld [vmem:[%s1 + $0x54] sm:$0xf]
      %v1812 = vld [vmem:[%s1 + $0x58] sm:$0xf]
      %v1813 = vld [vmem:[%s1 + $0x5c] sm:$0xf]
      %v1814 = vld [vmem:[%s1 + $0x60] sm:$0xf]
      %v1815 = vld [vmem:[%s1 + $0x64] sm:$0xf]
      %v1816 = vld [vmem:[%s1 + $0x68] sm:$0xf]
      %v1817 = vld [vmem:[%s1 + $0x6c] sm:$0xf]
      %v1818 = vld [vmem:[%s1 + $0x70] sm:$0xf]
      %v1819 = vld [vmem:[%s1 + $0x74] sm:$0xf]
      %v1820 = vld [vmem:[%s1 + $0x78] sm:$0xf]
      %v1821 = vld [vmem:[%s1 + $0x7c] sm:$0xf]
      %v1822 = vld [vmem:[%s1 + $0x80] sm:$0xf]
      %v1823 = vld [vmem:[%s1 + $0x84] sm:$0xf]
      %v1824 = vld [vmem:[%s1 + $0x88] sm:$0xf]
      %v1825 = vld [vmem:[%s1 + $0x8c] sm:$0xf]
      %v1826 = vld [vmem:[%s1 + $0x90] sm:$0xf]
      %v1827 = vld [vmem:[%s1 + $0x94] sm:$0xf]
      %v1828 = vld [vmem:[%s1 + $0x98] sm:$0xf]
      %v1829 = vld [vmem:[%s1 + $0x9c] sm:$0xf]
      %v1830 = vld [vmem:[%s1 + $0xa0] sm:$0xf]
      %v1831 = vld [vmem:[%s1 + $0xa4] sm:$0xf]
      %v1832 = vld [vmem:[%s1 + $0xa8] sm:$0xf]
      %v1833 = vld [vmem:[%s1 + $0xac] sm:$0xf]
      %v1834 = vld [vmem:[%s1 + $0xb0] sm:$0xf]
      %v1835 = vld [vmem:[%s1 + $0xb4] sm:$0xf]
      %v1836 = vld [vmem:[%s1 + $0xb8] sm:$0xf]
      %v1837 = vld [vmem:[%s1 + $0xbc] sm:$0xf]
      %v1838 = vld [vmem:[%s1 + $0xc0] sm:$0xf]
      %v1839 = vld [vmem:[%s1 + $0xc4] sm:$0xf]
      %v1840 = vld [vmem:[%s1 + $0xc8] sm:$0xf]
      %v1841 = vld [vmem:[%s1 + $0xcc] sm:$0xf]
      %v1842 = vld [vmem:[%s1 + $0xd0] sm:$0xf]
      %v1843 = vld [vmem:[%s1 + $0xd4] sm:$0xf]
      %v1844 = vld [vmem:[%s1 + $0xd8] sm:$0xf]
      %v1845 = vld [vmem:[%s1 + $0xdc] sm:$0xf]
      %v1846 = vld [vmem:[%s1 + $0xe0] sm:$0xf]
      %v1847 = vld [vmem:[%s1 + $0xe4] sm:$0xf]
      %v1848 = vld [vmem:[%s1 + $0xe8] sm:$0xf]
      %v1849 = vld [vmem:[%s1 + $0xec] sm:$0xf]
      %v1850 = vld [vmem:[%s1 + $0xf0] sm:$0xf]
      %v1851 = vld [vmem:[%s1 + $0xf4] sm:$0xf]
      %v1852 = vld [vmem:[%s1 + $0xf8] sm:$0xf]
      %v1853 = vld [vmem:[%s1 + $0xfc] sm:$0xf]
      %v1854 = vld [vmem:[%s1 + $0x100] sm:$0xf]
      %v1855 = vld [vmem:[%s1 + $0x104] sm:$0xf]
      %v1856 = vld [vmem:[%s1 + $0x108] sm:$0xf]
      %v1857 = vld [vmem:[%s1 + $0x10c] sm:$0xf]
      %v1858 = vld [vmem:[%s1 + $0x110] sm:$0xf]
      %v1859 = vld [vmem:[%s1 + $0x114] sm:$0xf]
      %v1860 = vld [vmem:[%s1 + $0x118] sm:$0xf]
      %v1861 = vld [vmem:[%s1 + $0x11c] sm:$0xf]
      %v1862 = vld [vmem:[%s1 + $0x120] sm:$0xf]
      %v1863 = vld [vmem:[%s1 + $0x124] sm:$0xf]
      %v1864 = vld [vmem:[%s1 + $0x128] sm:$0xf]
      %v1865 = vld [vmem:[%s1 + $0x12c] sm:$0xf]
      %v1866 = vld [vmem:[%s1 + $0x130] sm:$0xf]
      %v1867 = vld [vmem:[%s1 + $0x134] sm:$0xf]
      %v1868 = vld [vmem:[%s1 + $0x138] sm:$0xf]
      %v1869 = vld [vmem:[%s1 + $0x13c] sm:$0xf]
      %v1870 = vld [vmem:[%s1 + $0x140] sm:$0xf]
      %v1871 = vld [vmem:[%s1 + $0x144] sm:$0xf]
      %v1872 = vld [vmem:[%s1 + $0x148] sm:$0xf]
      %v1873 = vld [vmem:[%s1 + $0x14c] sm:$0xf]
      %v1874 = vld [vmem:[%s1 + $0x150] sm:$0xf]
      %v1875 = vld [vmem:[%s1 + $0x154] sm:$0xf]
      %v1876 = vld [vmem:[%s1 + $0x158] sm:$0xf]
      %v1877 = vld [vmem:[%s1 + $0x15c] sm:$0xf]
      %v1878 = vld [vmem:[%s1 + $0x160] sm:$0xf]
      %v1879 = vld [vmem:[%s1 + $0x164] sm:$0xf]
      %v1880 = vld [vmem:[%s1 + $0x168] sm:$0xf]
      %v1881 = vld [vmem:[%s1 + $0x16c] sm:$0xf]
      %v1882 = vld [vmem:[%s1 + $0x170] sm:$0xf]
      %v1883 = vld [vmem:[%s1 + $0x174] sm:$0xf]
      %v1884 = vld [vmem:[%s1 + $0x178] sm:$0xf]
      %v1885 = vld [vmem:[%s1 + $0x17c] sm:$0xf]
      %v1886 = vld [vmem:[%s1 + $0x180] sm:$0xf]
      %v1887 = vld [vmem:[%s1 + $0x184] sm:$0xf]
      %v1888 = vld [vmem:[%s1 + $0x188] sm:$0xf]
      %v1889 = vld [vmem:[%s1 + $0x18c] sm:$0xf]
      %v1890 = vld [vmem:[%s1 + $0x190] sm:$0xf]
      %v1891 = vld [vmem:[%s1 + $0x194] sm:$0xf]
      %v1892 = vld [vmem:[%s1 + $0x198] sm:$0xf]
      %v1893 = vld [vmem:[%s1 + $0x19c] sm:$0xf]
      %v1894 = vld [vmem:[%s1 + $0x1a0] sm:$0xf]
      %v1895 = vld [vmem:[%s1 + $0x1a4] sm:$0xf]
      %v1896 = vld [vmem:[%s1 + $0x1a8] sm:$0xf]
      %v1897 = vld [vmem:[%s1 + $0x1ac] sm:$0xf]
      %v1898 = vld [vmem:[%s1 + $0x1b0] sm:$0xf]
      %v1899 = vld [vmem:[%s1 + $0x1b4] sm:$0xf]
      %v1900 = vld [vmem:[%s1 + $0x1b8] sm:$0xf]
      %v1901 = vld [vmem:[%s1 + $0x1bc] sm:$0xf]
      %v1902 = vld [vmem:[%s1 + $0x1c0] sm:$0xf]
      %v1903 = vld [vmem:[%s1 + $0x1c4] sm:$0xf]
      %v1904 = vld [vmem:[%s1 + $0x1c8] sm:$0xf]
      %v1905 = vld [vmem:[%s1 + $0x1cc] sm:$0xf]
      %v1906 = vld [vmem:[%s1 + $0x1d0] sm:$0xf]
      %v1907 = vld [vmem:[%s1 + $0x1d4] sm:$0xf]
      %v1908 = vld [vmem:[%s1 + $0x1d8] sm:$0xf]
      %v1909 = vld [vmem:[%s1 + $0x1dc] sm:$0xf]
      %v1910 = vld [vmem:[%s1 + $0x1e0] sm:$0xf]
      %v1911 = vld [vmem:[%s1 + $0x1e4] sm:$0xf]
      %v1912 = vld [vmem:[%s1 + $0x1e8] sm:$0xf]
      %v1913 = vld [vmem:[%s1 + $0x1ec] sm:$0xf]
      %v1914 = vld [vmem:[%s1 + $0x1f0] sm:$0xf]
      %v1915 = vld [vmem:[%s1 + $0x1f4] sm:$0xf]
      %v1916 = vld [vmem:[%s1 + $0x1f8] sm:$0xf]
      %v1917 = vld [vmem:[%s1 + $0x1fc] sm:$0xf]
      %v1918 = vld [vmem:[%s1 + $0x200] sm:$0xf]
      %v1919 = vld [vmem:[%s1 + $0x204] sm:$0xf]
      %v1920 = vld [vmem:[%s1 + $0x208] sm:$0xf]
      %v1921 = vld [vmem:[%s1 + $0x20c] sm:$0xf]
      %v1922 = vld [vmem:[%s1 + $0x210] sm:$0xf]
      %v1923 = vld [vmem:[%s1 + $0x214] sm:$0xf]
      %v1924 = vld [vmem:[%s1 + $0x218] sm:$0xf]
      %v1925 = vld [vmem:[%s1 + $0x21c] sm:$0xf]
      %v1926 = vld [vmem:[%s1 + $0x220] sm:$0xf]
      %v1927 = vld [vmem:[%s1 + $0x224] sm:$0xf]
      %v1928 = vld [vmem:[%s1 + $0x228] sm:$0xf]
      %v1929 = vld [vmem:[%s1 + $0x22c] sm:$0xf]
      %v1930 = vld [vmem:[%s1 + $0x230] sm:$0xf]
      %v1931 = vld [vmem:[%s1 + $0x234] sm:$0xf]
      %v1932 = vld [vmem:[%s1 + $0x238] sm:$0xf]
      %v1933 = vld [vmem:[%s1 + $0x23c] sm:$0xf]
      %v1934 = vld [vmem:[%s2] sm:$0x1]
      %v1936 = vlaneseq
      %v1937 = vshrl.u32 %v1936, 7
      %v1938 = vsub.s32 0, %v1937
      %v1939 = vrot.slane %v1934, %v1938
      %v2085 = vunpack.c.l.b16 %v1790
      %v2086 = vunpack.c.l.b16 %v1791
      %v2087 = vunpack.c.l.b16 %v1792
      %v2088 = vunpack.c.l.b16 %v1793
      %v2089 = vunpack.c.l.b16 %v1794
      %v2090 = vunpack.c.l.b16 %v1795
      %v2091 = vunpack.c.l.b16 %v1796
      %v2092 = vunpack.c.l.b16 %v1797
      %v2093 = vunpack.c.l.b16 %v1798
      %v2094 = vunpack.c.l.b16 %v1799
      %v2095 = vunpack.c.l.b16 %v1800
      %v2096 = vunpack.c.l.b16 %v1801
      %v2097 = vunpack.c.l.b16 %v1802
      %v2098 = vunpack.c.l.b16 %v1803
      %v2099 = vunpack.c.l.b16 %v1804
      %v2100 = vunpack.c.l.b16 %v1805
      %v2101 = vunpack.c.l.b16 %v1806
      %v2102 = vunpack.c.l.b16 %v1807
      %v2103 = vunpack.c.l.b16 %v1808
      %v2104 = vunpack.c.l.b16 %v1809
      %v2105 = vunpack.c.l.b16 %v1810
      %v2106 = vunpack.c.l.b16 %v1811
      %v2107 = vunpack.c.l.b16 %v1812
      %v2108 = vunpack.c.l.b16 %v1813
      %v2109 = vunpack.c.l.b16 %v1814
      %v2110 = vunpack.c.l.b16 %v1815
      %v2111 = vunpack.c.l.b16 %v1816
      %v2112 = vunpack.c.l.b16 %v1817
      %v2113 = vunpack.c.l.b16 %v1818
      %v2114 = vunpack.c.l.b16 %v1819
      %v2115 = vunpack.c.l.b16 %v1820
      %v2116 = vunpack.c.l.b16 %v1821
      %v2117 = vunpack.c.l.b16 %v1822
      %v2118 = vunpack.c.l.b16 %v1823
      %v2119 = vunpack.c.l.b16 %v1824
      %v2120 = vunpack.c.l.b16 %v1825
      %v2121 = vunpack.c.l.b16 %v1826
      %v2122 = vunpack.c.l.b16 %v1827
      %v2123 = vunpack.c.l.b16 %v1828
      %v2124 = vunpack.c.l.b16 %v1829
      %v2125 = vunpack.c.l.b16 %v1830
      %v2126 = vunpack.c.l.b16 %v1831
      %v2127 = vunpack.c.l.b16 %v1832
      %v2128 = vunpack.c.l.b16 %v1833
      %v2129 = vunpack.c.l.b16 %v1834
      %v2130 = vunpack.c.l.b16 %v1835
      %v2131 = vunpack.c.l.b16 %v1836
      %v2132 = vunpack.c.l.b16 %v1837
      %v2133 = vunpack.c.l.b16 %v1838
      %v2134 = vunpack.c.l.b16 %v1839
      %v2135 = vunpack.c.l.b16 %v1840
      %v2136 = vunpack.c.l.b16 %v1841
      %v2137 = vunpack.c.l.b16 %v1842
      %v2138 = vunpack.c.l.b16 %v1843
      %v2139 = vunpack.c.l.b16 %v1844
      %v2140 = vunpack.c.l.b16 %v1845
      %v2141 = vunpack.c.l.b16 %v1846
      %v2142 = vunpack.c.l.b16 %v1847
      %v2143 = vunpack.c.l.b16 %v1848
      %v2144 = vunpack.c.l.b16 %v1849
      %v2145 = vunpack.c.l.b16 %v1850
      %v2146 = vunpack.c.l.b16 %v1851
      %v2147 = vunpack.c.l.b16 %v1852
      %v2148 = vunpack.c.l.b16 %v1853
      %v2149 = vunpack.c.l.b16 %v1854
      %v2150 = vunpack.c.l.b16 %v1855
      %v2151 = vunpack.c.l.b16 %v1856
      %v2152 = vunpack.c.l.b16 %v1857
      %v2153 = vunpack.c.l.b16 %v1858
      %v2154 = vunpack.c.l.b16 %v1859
      %v2155 = vunpack.c.l.b16 %v1860
      %v2156 = vunpack.c.l.b16 %v1861
      %v2157 = vunpack.c.l.b16 %v1862
      %v2158 = vunpack.c.l.b16 %v1863
      %v2159 = vunpack.c.l.b16 %v1864
      %v2160 = vunpack.c.l.b16 %v1865
      %v2161 = vunpack.c.l.b16 %v1866
      %v2162 = vunpack.c.l.b16 %v1867
      %v2163 = vunpack.c.l.b16 %v1868
      %v2164 = vunpack.c.l.b16 %v1869
      %v2165 = vunpack.c.l.b16 %v1870
      %v2166 = vunpack.c.l.b16 %v1871
      %v2167 = vunpack.c.l.b16 %v1872
      %v2168 = vunpack.c.l.b16 %v1873
      %v2169 = vunpack.c.l.b16 %v1874
      %v2170 = vunpack.c.l.b16 %v1875
      %v2171 = vunpack.c.l.b16 %v1876
      %v2172 = vunpack.c.l.b16 %v1877
      %v2173 = vunpack.c.l.b16 %v1878
      %v2174 = vunpack.c.l.b16 %v1879
      %v2175 = vunpack.c.l.b16 %v1880
      %v2176 = vunpack.c.l.b16 %v1881
      %v2177 = vunpack.c.l.b16 %v1882
      %v2178 = vunpack.c.l.b16 %v1883
      %v2179 = vunpack.c.l.b16 %v1884
      %v2180 = vunpack.c.l.b16 %v1885
      %v2181 = vunpack.c.l.b16 %v1886
      %v2182 = vunpack.c.l.b16 %v1887
      %v2183 = vunpack.c.l.b16 %v1888
      %v2184 = vunpack.c.l.b16 %v1889
      %v2185 = vunpack.c.l.b16 %v1890
      %v2186 = vunpack.c.l.b16 %v1891
      %v2187 = vunpack.c.l.b16 %v1892
      %v2188 = vunpack.c.l.b16 %v1893
      %v2189 = vunpack.c.l.b16 %v1894
      %v2190 = vunpack.c.l.b16 %v1895
      %v2191 = vunpack.c.l.b16 %v1896
      %v2192 = vunpack.c.l.b16 %v1897
      %v2193 = vunpack.c.l.b16 %v1898
      %v2194 = vunpack.c.l.b16 %v1899
      %v2195 = vunpack.c.l.b16 %v1900
      %v2196 = vunpack.c.l.b16 %v1901
      %v2197 = vunpack.c.l.b16 %v1902
      %v2198 = vunpack.c.l.b16 %v1903
      %v2199 = vunpack.c.l.b16 %v1904
      %v2200 = vunpack.c.l.b16 %v1905
      %v2201 = vunpack.c.l.b16 %v1906
      %v2202 = vunpack.c.l.b16 %v1907
      %v2203 = vunpack.c.l.b16 %v1908
      %v2204 = vunpack.c.l.b16 %v1909
      %v2205 = vunpack.c.l.b16 %v1910
      %v2206 = vunpack.c.l.b16 %v1911
      %v2207 = vunpack.c.l.b16 %v1912
      %v2208 = vunpack.c.l.b16 %v1913
      %v2209 = vunpack.c.l.b16 %v1914
      %v2210 = vunpack.c.l.b16 %v1915
      %v2211 = vunpack.c.l.b16 %v1916
      %v2212 = vunpack.c.l.b16 %v1917
      %v2213 = vunpack.c.l.b16 %v1918
      %v2214 = vunpack.c.l.b16 %v1919
      %v2215 = vunpack.c.l.b16 %v1920
      %v2216 = vunpack.c.l.b16 %v1921
      %v2217 = vunpack.c.l.b16 %v1922
      %v2218 = vunpack.c.l.b16 %v1923
      %v2219 = vunpack.c.l.b16 %v1924
      %v2220 = vunpack.c.l.b16 %v1925
      %v2221 = vunpack.c.l.b16 %v1926
      %v2222 = vunpack.c.l.b16 %v1927
      %v2223 = vunpack.c.l.b16 %v1928
      %v2224 = vunpack.c.l.b16 %v1929
      %v2225 = vunpack.c.l.b16 %v1930
      %v2226 = vunpack.c.l.b16 %v1931
      %v2227 = vunpack.c.l.b16 %v1932
      %v2228 = vunpack.c.l.b16 %v1933
      %v2229 = vpack.c.b16 %v2086, %v2085
      %v2230 = vpack.c.b16 %v2088, %v2087
      %v2231 = vpack.c.b16 %v2090, %v2089
      %v2232 = vpack.c.b16 %v2092, %v2091
      %v2233 = vpack.c.b16 %v2094, %v2093
      %v2234 = vpack.c.b16 %v2096, %v2095
      %v2235 = vpack.c.b16 %v2098, %v2097
      %v2236 = vpack.c.b16 %v2100, %v2099
      %v2237 = vpack.c.b16 %v2102, %v2101
      %v2238 = vpack.c.b16 %v2104, %v2103
      %v2239 = vpack.c.b16 %v2106, %v2105
      %v2240 = vpack.c.b16 %v2108, %v2107
      %v2241 = vpack.c.b16 %v2110, %v2109
      %v2242 = vpack.c.b16 %v2112, %v2111
      %v2243 = vpack.c.b16 %v2114, %v2113
      %v2244 = vpack.c.b16 %v2116, %v2115
      %v2245 = vpack.c.b16 %v2118, %v2117
      %v2246 = vpack.c.b16 %v2120, %v2119
      %v2247 = vpack.c.b16 %v2122, %v2121
      %v2248 = vpack.c.b16 %v2124, %v2123
      %v2249 = vpack.c.b16 %v2126, %v2125
      %v2250 = vpack.c.b16 %v2128, %v2127
      %v2251 = vpack.c.b16 %v2130, %v2129
      %v2252 = vpack.c.b16 %v2132, %v2131
      %v2253 = vpack.c.b16 %v2134, %v2133
      %v2254 = vpack.c.b16 %v2136, %v2135
      %v2255 = vpack.c.b16 %v2138, %v2137
      %v2256 = vpack.c.b16 %v2140, %v2139
      %v2257 = vpack.c.b16 %v2142, %v2141
      %v2258 = vpack.c.b16 %v2144, %v2143
      %v2259 = vpack.c.b16 %v2146, %v2145
      %v2260 = vpack.c.b16 %v2148, %v2147
      %v2261 = vpack.c.b16 %v2150, %v2149
      %v2262 = vpack.c.b16 %v2152, %v2151
      %v2263 = vpack.c.b16 %v2154, %v2153
      %v2264 = vpack.c.b16 %v2156, %v2155
      %v2265 = vpack.c.b16 %v2158, %v2157
      %v2266 = vpack.c.b16 %v2160, %v2159
      %v2267 = vpack.c.b16 %v2162, %v2161
      %v2268 = vpack.c.b16 %v2164, %v2163
      %v2269 = vpack.c.b16 %v2166, %v2165
      %v2270 = vpack.c.b16 %v2168, %v2167
      %v2271 = vpack.c.b16 %v2170, %v2169
      %v2272 = vpack.c.b16 %v2172, %v2171
      %v2273 = vpack.c.b16 %v2174, %v2173
      %v2274 = vpack.c.b16 %v2176, %v2175
      %v2275 = vpack.c.b16 %v2178, %v2177
      %v2276 = vpack.c.b16 %v2180, %v2179
      %v2277 = vpack.c.b16 %v2182, %v2181
      %v2278 = vpack.c.b16 %v2184, %v2183
      %v2279 = vpack.c.b16 %v2186, %v2185
      %v2280 = vpack.c.b16 %v2188, %v2187
      %v2281 = vpack.c.b16 %v2190, %v2189
      %v2282 = vpack.c.b16 %v2192, %v2191
      %v2283 = vpack.c.b16 %v2194, %v2193
      %v2284 = vpack.c.b16 %v2196, %v2195
      %v2285 = vpack.c.b16 %v2198, %v2197
      %v2286 = vpack.c.b16 %v2200, %v2199
      %v2287 = vpack.c.b16 %v2202, %v2201
      %v2288 = vpack.c.b16 %v2204, %v2203
      %v2289 = vpack.c.b16 %v2206, %v2205
      %v2290 = vpack.c.b16 %v2208, %v2207
      %v2291 = vpack.c.b16 %v2210, %v2209
      %v2292 = vpack.c.b16 %v2212, %v2211
      %v2293 = vpack.c.b16 %v2214, %v2213
      %v2294 = vpack.c.b16 %v2216, %v2215
      %v2295 = vpack.c.b16 %v2218, %v2217
      %v2296 = vpack.c.b16 %v2220, %v2219
      %v2297 = vpack.c.b16 %v2222, %v2221
      %v2298 = vpack.c.b16 %v2224, %v2223
      %v2299 = vpack.c.b16 %v2226, %v2225
      %v2300 = vpack.c.b16 %v2228, %v2227
      %2373 = vmatprep.subr.bf16.mxu0 0
      %2374 = vmatpush1.bf16.msra.mxu0 %v2229
      %2375 = vmatprep.subr.bf16.mxu0 0
      %2376 = vmatpush1.bf16.msra.mxu0 %v2230
      %2377 = vmatprep.subr.bf16.mxu0 0
      %2378 = vmatpush1.bf16.msra.mxu0 %v2231
      %2379 = vmatprep.subr.bf16.mxu0 0
      %2380 = vmatpush1.bf16.msra.mxu0 %v2232
      %2381 = vmatprep.subr.bf16.mxu0 0
      %2382 = vmatpush1.bf16.msra.mxu0 %v2233
      %2383 = vmatprep.subr.bf16.mxu0 0
      %2384 = vmatpush1.bf16.msra.mxu0 %v2234
      %2385 = vmatprep.subr.bf16.mxu0 0
      %2386 = vmatpush1.bf16.msra.mxu0 %v2235
      %2387 = vmatprep.subr.bf16.mxu0 0
      %2388 = vmatpush1.bf16.msra.mxu0 %v2236
      %2389 = vmatprep.subr.bf16.mxu0 0
      %2390 = vmatpush1.bf16.msra.mxu0 %v2237
      %2391 = vmatprep.subr.bf16.mxu0 0
      %2392 = vmatpush1.bf16.msra.mxu0 %v2238
      %2393 = vmatprep.subr.bf16.mxu0 0
      %2394 = vmatpush1.bf16.msra.mxu0 %v2239
      %2395 = vmatprep.subr.bf16.mxu0 0
      %2396 = vmatpush1.bf16.msra.mxu0 %v2240
      %2397 = vmatprep.subr.bf16.mxu0 0
      %2398 = vmatpush1.bf16.msra.mxu0 %v2241
      %2399 = vmatprep.subr.bf16.mxu0 0
      %2400 = vmatpush1.bf16.msra.mxu0 %v2242
      %2401 = vmatprep.subr.bf16.mxu0 0
      %2402 = vmatpush1.bf16.msra.mxu0 %v2243
      %2403 = vmatprep.subr.bf16.mxu0 0
      %2404 = vmatpush1.bf16.msra.mxu0 %v2244
      %2405 = vmatprep.mubr.bf16.mxu0 %v605
      %2406 = vmatmul.mubr.bf16.gmra.mrb[0].mxu0 %v509
      %v2407 = vpop.f32.mrb[0].mxu0
      %v2408 = vadd.f32 %v1939, %v2407
      %v2409 = vpop.f32.mrb[0].mxu0
      %v2410 = vpop.f32.mrb[0].mxu0
      %v2411 = vadd.f32 %v1939, %v2410
      %v2412 = vpop.f32.mrb[0].mxu0
      %2413 = vmatprep.mubr.bf16.mxu0 %v606
      %2414 = vmatmul.mubr.bf16.gmra.mrb[0].mxu0 %v510
      %v2415 = vpop.f32.mrb[0].mxu0
      %v2416 = vadd.f32 %v1939, %v2415
      %v2417 = vpop.f32.mrb[0].mxu0
      %v2418 = vpop.f32.mrb[0].mxu0
      %v2419 = vadd.f32 %v1939, %v2418
      %v2420 = vpop.f32.mrb[0].mxu0
      %2421 = vmatprep.mubr.bf16.mxu0 %v607
      %2422 = vmatmul.mubr.bf16.gmra.mrb[0].mxu0 %v511
      %v2423 = vpop.f32.mrb[0].mxu0
      %v2424 = vadd.f32 %v1939, %v2423
      %v2425 = vpop.f32.mrb[0].mxu0
      %v2426 = vpop.f32.mrb[0].mxu0
      %v2427 = vadd.f32 %v1939, %v2426
      %v2428 = vpop.f32.mrb[0].mxu0
      %2429 = vmatprep.mubr.bf16.mxu0 %v608
      %2430 = vmatmul.mubr.bf16.gmra.mrb[0].mxu0 %v512
      %v2431 = vpop.f32.mrb[0].mxu0
      %v2432 = vadd.f32 %v1939, %v2431
      %v2433 = vpop.f32.mrb[0].mxu0
      %v2434 = vpop.f32.mrb[0].mxu0
      %v2435 = vadd.f32 %v1939, %v2434
      %v2436 = vpop.f32.mrb[0].mxu0
      %2437 = vmatprep.mubr.bf16.mxu0 %v609
      %2438 = vmatmul.mubr.bf16.gmra.mrb[0].mxu0 %v513
      %v2439 = vpop.f32.mrb[0].mxu0
      %v2440 = vadd.f32 %v1939, %v2439
      %v2441 = vpop.f32.mrb[0].mxu0
      %v2442 = vpop.f32.mrb[0].mxu0
      %v2443 = vadd.f32 %v1939, %v2442
      %v2444 = vpop.f32.mrb[0].mxu0
      %2445 = vmatprep.mubr.bf16.mxu0 %v610
      %2446 = vmatmul.mubr.bf16.gmra.mrb[0].mxu0 %v514
      %v2447 = vpop.f32.mrb[0].mxu0
      %v2448 = vadd.f32 %v1939, %v2447
      %v2449 = vpop.f32.mrb[0].mxu0
      %v2450 = vpop.f32.mrb[0].mxu0
      %v2451 = vadd.f32 %v1939, %v2450
      %v2452 = vpop.f32.mrb[0].mxu0
      %2453 = vmatprep.mubr.bf16.mxu0 %v611
      %2454 = vmatmul.mubr.bf16.gmra.mrb[0].mxu0 %v515
      %v2455 = vpop.f32.mrb[0].mxu0
      %v2456 = vadd.f32 %v1939, %v2455
      %v2457 = vpop.f32.mrb[0].mxu0
      %v2458 = vpop.f32.mrb[0].mxu0
      %v2459 = vadd.f32 %v1939, %v2458
      %v2460 = vpop.f32.mrb[0].mxu0
      %2461 = vmatprep.mubr.bf16.mxu0 %v612
      %2462 = vmatmul.mubr.bf16.gmra.mrb[0].mxu0 %v516
      %v2463 = vpop.f32.mrb[0].mxu0
      %v2464 = vadd.f32 %v1939, %v2463
      %v2465 = vpop.f32.mrb[0].mxu0
      %v2466 = vpop.f32.mrb[0].mxu0
      %v2467 = vadd.f32 %v1939, %v2466
      %v2468 = vpop.f32.mrb[0].mxu0
      %2469 = vmatprep.mubr.bf16.mxu0 %v613
      %2470 = vmatmul.mubr.bf16.gmra.mrb[0].mxu0 %v517
      %v2471 = vpop.f32.mrb[0].mxu0
      %v2472 = vadd.f32 %v1939, %v2471
      %v2473 = vpop.f32.mrb[0].mxu0
      %v2474 = vpop.f32.mrb[0].mxu0
      %v2475 = vadd.f32 %v1939, %v2474
      %v2476 = vpop.f32.mrb[0].mxu0
      %2477 = vmatprep.mubr.bf16.mxu0 %v614
      %2478 = vmatmul.mubr.bf16.gmra.mrb[0].mxu0 %v518
      %v2479 = vpop.f32.mrb[0].mxu0
      %v2480 = vadd.f32 %v1939, %v2479
      %v2481 = vpop.f32.mrb[0].mxu0
      %v2482 = vpop.f32.mrb[0].mxu0
      %v2483 = vadd.f32 %v1939, %v2482
      %v2484 = vpop.f32.mrb[0].mxu0
      %2485 = vmatprep.mubr.bf16.mxu0 %v615
      %2486 = vmatmul.mubr.bf16.gmra.mrb[0].mxu0 %v519
      %v2487 = vpop.f32.mrb[0].mxu0
      %v2488 = vadd.f32 %v1939, %v2487
      %v2489 = vpop.f32.mrb[0].mxu0
      %v2490 = vpop.f32.mrb[0].mxu0
      %v2491 = vadd.f32 %v1939, %v2490
      %v2492 = vpop.f32.mrb[0].mxu0
      %2493 = vmatprep.mubr.bf16.mxu0 %v616
      %2494 = vmatmul.mubr.bf16.gmra.mrb[0].mxu0 %v520
      %v2495 = vpop.f32.mrb[0].mxu0
      %v2496 = vadd.f32 %v1939, %v2495
      %v2497 = vpop.f32.mrb[0].mxu0
      %v2498 = vpop.f32.mrb[0].mxu0
      %v2499 = vadd.f32 %v1939, %v2498
      %v2500 = vpop.f32.mrb[0].mxu0
      %2501 = vmatprep.mubr.bf16.mxu0 %v617
      %2502 = vmatmul.mubr.bf16.gmra.mrb[0].mxu0 %v521
      %v2503 = vpop.f32.mrb[0].mxu0
      %v2504 = vadd.f32 %v1939, %v2503
      %v2505 = vpop.f32.mrb[0].mxu0
      %v2506 = vpop.f32.mrb[0].mxu0
      %v2507 = vadd.f32 %v1939, %v2506
      %v2508 = vpop.f32.mrb[0].mxu0
      %2509 = vmatprep.mubr.bf16.mxu0 %v618
      %2510 = vmatmul.mubr.bf16.gmra.mrb[0].mxu0 %v522
      %v2511 = vpop.f32.mrb[0].mxu0
      %v2512 = vadd.f32 %v1939, %v2511
      %v2513 = vpop.f32.mrb[0].mxu0
      %v2514 = vpop.f32.mrb[0].mxu0
      %v2515 = vadd.f32 %v1939, %v2514
      %v2516 = vpop.f32.mrb[0].mxu0
      %2517 = vmatprep.mubr.bf16.mxu0 %v619
      %2518 = vmatmul.mubr.bf16.gmra.mrb[0].mxu0 %v523
      %v2519 = vpop.f32.mrb[0].mxu0
      %v2520 = vadd.f32 %v1939, %v2519
      %v2521 = vpop.f32.mrb[0].mxu0
      %v2522 = vpop.f32.mrb[0].mxu0
      %v2523 = vadd.f32 %v1939, %v2522
      %v2524 = vpop.f32.mrb[0].mxu0
      %2525 = vmatprep.mubr.bf16.mxu0 %v620
      %2526 = vmatmul.mubr.bf16.gmra.mrb[0].mxu0 %v524
      %v2527 = vpop.f32.mrb[0].mxu0
      %v2528 = vadd.f32 %v1939, %v2527
      %v2529 = vpop.f32.mrb[0].mxu0
      %v2530 = vpop.f32.mrb[0].mxu0
      %v2531 = vadd.f32 %v1939, %v2530
      %v2532 = vpop.f32.mrb[0].mxu0
      %2533 = vdwg.mxu0
      %2534 = vmatprep.subr.bf16.mxu0 0
      %2535 = vmatpush1.bf16.msra.mxu0 %v2245
      %2536 = vmatprep.subr.bf16.mxu0 0
      %2537 = vmatpush1.bf16.msra.mxu0 %v2246
      %2538 = vmatprep.subr.bf16.mxu0 0
      %2539 = vmatpush1.bf16.msra.mxu0 %v2247
      %2540 = vmatprep.subr.bf16.mxu0 0
      %2541 = vmatpush1.bf16.msra.mxu0 %v2248
      %2542 = vmatprep.subr.bf16.mxu0 0
      %2543 = vmatpush1.bf16.msra.mxu0 %v2249
      %2544 = vmatprep.subr.bf16.mxu0 0
      %2545 = vmatpush1.bf16.msra.mxu0 %v2250
      %2546 = vmatprep.subr.bf16.mxu0 0
      %2547 = vmatpush1.bf16.msra.mxu0 %v2251
      %2548 = vmatprep.subr.bf16.mxu0 0
      %2549 = vmatpush1.bf16.msra.mxu0 %v2252
      %2550 = vmatprep.subr.bf16.mxu0 0
      %2551 = vmatpush1.bf16.msra.mxu0 %v2253
      %2552 = vmatprep.subr.bf16.mxu0 0
      %2553 = vmatpush1.bf16.msra.mxu0 %v2254
      %2554 = vmatprep.subr.bf16.mxu0 0
      %2555 = vmatpush1.bf16.msra.mxu0 %v2255
      %2556 = vmatprep.subr.bf16.mxu0 0
      %2557 = vmatpush1.bf16.msra.mxu0 %v2256
      %2558 = vmatprep.subr.bf16.mxu0 0
      %2559 = vmatpush1.bf16.msra.mxu0 %v2257
      %2560 = vmatprep.subr.bf16.mxu0 0
      %2561 = vmatpush1.bf16.msra.mxu0 %v2258
      %2562 = vmatprep.subr.bf16.mxu0 0
      %2563 = vmatpush1.bf16.msra.mxu0 %v2259
      %2564 = vmatprep.subr.bf16.mxu0 0
      %2565 = vmatpush1.bf16.msra.mxu0 %v2260
      %2566 = vmatprep.mubr.bf16.mxu0 %v958
      %2567 = vmatmul.mubr.bf16.gmra.mrb[0].mxu0 %v697
      %v2568 = vpop.f32.mrb[0].mxu0
      %v2569 = vadd.f32 %v2408, %v2568
      %v2570 = vpop.f32.mrb[0].mxu0
      %v2571 = vpop.f32.mrb[0].mxu0
      %v2572 = vadd.f32 %v2411, %v2571
      %v2573 = vpop.f32.mrb[0].mxu0
      %2574 = vmatprep.mubr.bf16.mxu0 %v959
      %2575 = vmatmul.mubr.bf16.gmra.mrb[0].mxu0 %v709
      %v2576 = vpop.f32.mrb[0].mxu0
      %v2577 = vadd.f32 %v2416, %v2576
      %v2578 = vpop.f32.mrb[0].mxu0
      %v2579 = vpop.f32.mrb[0].mxu0
      %v2580 = vadd.f32 %v2419, %v2579
      %v2581 = vpop.f32.mrb[0].mxu0
      %2582 = vmatprep.mubr.bf16.mxu0 %v960
      %2583 = vmatmul.mubr.bf16.gmra.mrb[0].mxu0 %v721
      %v2584 = vpop.f32.mrb[0].mxu0
      %v2585 = vadd.f32 %v2424, %v2584
      %v2586 = vpop.f32.mrb[0].mxu0
      %v2587 = vpop.f32.mrb[0].mxu0
      %v2588 = vadd.f32 %v2427, %v2587
      %v2589 = vpop.f32.mrb[0].mxu0
      %2590 = vmatprep.mubr.bf16.mxu0 %v961
      %2591 = vmatmul.mubr.bf16.gmra.mrb[0].mxu0 %v733
      %v2592 = vpop.f32.mrb[0].mxu0
      %v2593 = vadd.f32 %v2432, %v2592
      %v2594 = vpop.f32.mrb[0].mxu0
      %v2595 = vpop.f32.mrb[0].mxu0
      %v2596 = vadd.f32 %v2435, %v2595
      %v2597 = vpop.f32.mrb[0].mxu0
      %2598 = vmatprep.mubr.bf16.mxu0 %v962
      %2599 = vmatmul.mubr.bf16.gmra.mrb[0].mxu0 %v745
      %v2600 = vpop.f32.mrb[0].mxu0
      %v2601 = vadd.f32 %v2440, %v2600
      %v2602 = vpop.f32.mrb[0].mxu0
      %v2603 = vpop.f32.mrb[0].mxu0
      %v2604 = vadd.f32 %v2443, %v2603
      %v2605 = vpop.f32.mrb[0].mxu0
      %2606 = vmatprep.mubr.bf16.mxu0 %v963
      %2607 = vmatmul.mubr.bf16.gmra.mrb[0].mxu0 %v757
      %v2608 = vpop.f32.mrb[0].mxu0
      %v2609 = vadd.f32 %v2448, %v2608
      %v2610 = vpop.f32.mrb[0].mxu0
      %v2611 = vpop.f32.mrb[0].mxu0
      %v2612 = vadd.f32 %v2451, %v2611
      %v2613 = vpop.f32.mrb[0].mxu0
      %2614 = vmatprep.mubr.bf16.mxu0 %v964
      %2615 = vmatmul.mubr.bf16.gmra.mrb[0].mxu0 %v769
      %v2616 = vpop.f32.mrb[0].mxu0
      %v2617 = vadd.f32 %v2456, %v2616
      %v2618 = vpop.f32.mrb[0].mxu0
      %v2619 = vpop.f32.mrb[0].mxu0
      %v2620 = vadd.f32 %v2459, %v2619
      %v2621 = vpop.f32.mrb[0].mxu0
      %2622 = vmatprep.mubr.bf16.mxu0 %v965
      %2623 = vmatmul.mubr.bf16.gmra.mrb[0].mxu0 %v781
      %v2624 = vpop.f32.mrb[0].mxu0
      %v2625 = vadd.f32 %v2464, %v2624
      %v2626 = vpop.f32.mrb[0].mxu0
      %v2627 = vpop.f32.mrb[0].mxu0
      %v2628 = vadd.f32 %v2467, %v2627
      %v2629 = vpop.f32.mrb[0].mxu0
      %2630 = vmatprep.mubr.bf16.mxu0 %v966
      %2631 = vmatmul.mubr.bf16.gmra.mrb[0].mxu0 %v793
      %v2632 = vpop.f32.mrb[0].mxu0
      %v2633 = vadd.f32 %v2472, %v2632
      %v2634 = vpop.f32.mrb[0].mxu0
      %v2635 = vpop.f32.mrb[0].mxu0
      %v2636 = vadd.f32 %v2475, %v2635
      %v2637 = vpop.f32.mrb[0].mxu0
      %2638 = vmatprep.mubr.bf16.mxu0 %v967
      %2639 = vmatmul.mubr.bf16.gmra.mrb[0].mxu0 %v805
      %v2640 = vpop.f32.mrb[0].mxu0
      %v2641 = vadd.f32 %v2480, %v2640
      %v2642 = vpop.f32.mrb[0].mxu0
      %v2643 = vpop.f32.mrb[0].mxu0
      %v2644 = vadd.f32 %v2483, %v2643
      %v2645 = vpop.f32.mrb[0].mxu0
      %2646 = vmatprep.mubr.bf16.mxu0 %v968
      %2647 = vmatmul.mubr.bf16.gmra.mrb[0].mxu0 %v817
      %v2648 = vpop.f32.mrb[0].mxu0
      %v2649 = vadd.f32 %v2488, %v2648
      %v2650 = vpop.f32.mrb[0].mxu0
      %v2651 = vpop.f32.mrb[0].mxu0
      %v2652 = vadd.f32 %v2491, %v2651
      %v2653 = vpop.f32.mrb[0].mxu0
      %2654 = vmatprep.mubr.bf16.mxu0 %v969
      %2655 = vmatmul.mubr.bf16.gmra.mrb[0].mxu0 %v829
      %v2656 = vpop.f32.mrb[0].mxu0
      %v2657 = vadd.f32 %v2496, %v2656
      %v2658 = vpop.f32.mrb[0].mxu0
      %v2659 = vpop.f32.mrb[0].mxu0
      %v2660 = vadd.f32 %v2499, %v2659
      %v2661 = vpop.f32.mrb[0].mxu0
      %2662 = vmatprep.mubr.bf16.mxu0 %v970
      %2663 = vmatmul.mubr.bf16.gmra.mrb[0].mxu0 %v841
      %v2664 = vpop.f32.mrb[0].mxu0
      %v2665 = vadd.f32 %v2504, %v2664
      %v2666 = vpop.f32.mrb[0].mxu0
      %v2667 = vpop.f32.mrb[0].mxu0
      %v2668 = vadd.f32 %v2507, %v2667
      %v2669 = vpop.f32.mrb[0].mxu0
      %2670 = vmatprep.mubr.bf16.mxu0 %v971
      %2671 = vmatmul.mubr.bf16.gmra.mrb[0].mxu0 %v853
      %v2672 = vpop.f32.mrb[0].mxu0
      %v2673 = vadd.f32 %v2512, %v2672
      %v2674 = vpop.f32.mrb[0].mxu0
      %v2675 = vpop.f32.mrb[0].mxu0
      %v2676 = vadd.f32 %v2515, %v2675
      %v2677 = vpop.f32.mrb[0].mxu0
      %2678 = vmatprep.mubr.bf16.mxu0 %v972
      %2679 = vmatmul.mubr.bf16.gmra.mrb[0].mxu0 %v865
      %v2680 = vpop.f32.mrb[0].mxu0
      %v2681 = vadd.f32 %v2520, %v2680
      %v2682 = vpop.f32.mrb[0].mxu0
      %v2683 = vpop.f32.mrb[0].mxu0
      %v2684 = vadd.f32 %v2523, %v2683
      %v2685 = vpop.f32.mrb[0].mxu0
      %2686 = vmatprep.mubr.bf16.mxu0 %v973
      %2687 = vmatmul.mubr.bf16.gmra.mrb[0].mxu0 %v877
      %v2688 = vpop.f32.mrb[0].mxu0
      %v2689 = vadd.f32 %v2528, %v2688
      %v2690 = vpop.f32.mrb[0].mxu0
      %v2691 = vpop.f32.mrb[0].mxu0
      %v2692 = vadd.f32 %v2531, %v2691
      %v2693 = vpop.f32.mrb[0].mxu0
      %2694 = vdwg.mxu0
      %2695 = vmatprep.subr.bf16.mxu0 0
      %2696 = vmatpush1.bf16.msra.mxu0 %v2261
      %2697 = vmatprep.subr.bf16.mxu0 0
      %2698 = vmatpush1.bf16.msra.mxu0 %v2262
      %2699 = vmatprep.subr.bf16.mxu0 0
      %2700 = vmatpush1.bf16.msra.mxu0 %v2263
      %2701 = vmatprep.subr.bf16.mxu0 0
      %2702 = vmatpush1.bf16.msra.mxu0 %v2264
      %2703 = vmatprep.subr.bf16.mxu0 0
      %2704 = vmatpush1.bf16.msra.mxu0 %v2265
      %2705 = vmatprep.subr.bf16.mxu0 0
      %2706 = vmatpush1.bf16.msra.mxu0 %v2266
      %2707 = vmatprep.subr.bf16.mxu0 0
      %2708 = vmatpush1.bf16.msra.mxu0 %v2267
      %2709 = vmatprep.subr.bf16.mxu0 0
      %2710 = vmatpush1.bf16.msra.mxu0 %v2268
      %2711 = vmatprep.subr.bf16.mxu0 0
      %2712 = vmatpush1.bf16.msra.mxu0 %v2269
      %2713 = vmatprep.subr.bf16.mxu0 0
      %2714 = vmatpush1.bf16.msra.mxu0 %v2270
      %2715 = vmatprep.subr.bf16.mxu0 0
      %2716 = vmatpush1.bf16.msra.mxu0 %v2271
      %2717 = vmatprep.subr.bf16.mxu0 0
      %2718 = vmatpush1.bf16.msra.mxu0 %v2272
      %2719 = vmatprep.subr.bf16.mxu0 0
      %2720 = vmatpush1.bf16.msra.mxu0 %v2273
      %2721 = vmatprep.subr.bf16.mxu0 0
      %2722 = vmatpush1.bf16.msra.mxu0 %v2274
      %2723 = vmatprep.subr.bf16.mxu0 0
      %2724 = vmatpush1.bf16.msra.mxu0 %v2275
      %2725 = vmatprep.subr.bf16.mxu0 0
      %2726 = vmatpush1.bf16.msra.mxu0 %v2276
      %2727 = vmatprep.mubr.bf16.mxu0 %v1145
      %2728 = vmatmul.mubr.bf16.gmra.mrb[0].mxu0 %v1054
      %v2729 = vpop.f32.mrb[0].mxu0
      %v2730 = vadd.f32 %v2569, %v2729
      %v2731 = vpop.f32.mrb[0].mxu0
      %v2732 = vpop.f32.mrb[0].mxu0
      %v2733 = vadd.f32 %v2572, %v2732
      %v2734 = vpop.f32.mrb[0].mxu0
      %2735 = vmatprep.mubr.bf16.mxu0 %v1157
      %2736 = vmatmul.mubr.bf16.gmra.mrb[0].mxu0 %v1055
      %v2737 = vpop.f32.mrb[0].mxu0
      %v2738 = vadd.f32 %v2577, %v2737
      %v2739 = vpop.f32.mrb[0].mxu0
      %v2740 = vpop.f32.mrb[0].mxu0
      %v2741 = vadd.f32 %v2580, %v2740
      %v2742 = vpop.f32.mrb[0].mxu0
      %2743 = vmatprep.mubr.bf16.mxu0 %v1169
      %2744 = vmatmul.mubr.bf16.gmra.mrb[0].mxu0 %v1056
      %v2745 = vpop.f32.mrb[0].mxu0
      %v2746 = vadd.f32 %v2585, %v2745
      %v2747 = vpop.f32.mrb[0].mxu0
      %v2748 = vpop.f32.mrb[0].mxu0
      %v2749 = vadd.f32 %v2588, %v2748
      %v2750 = vpop.f32.mrb[0].mxu0
      %2751 = vmatprep.mubr.bf16.mxu0 %v1181
      %2752 = vmatmul.mubr.bf16.gmra.mrb[0].mxu0 %v1057
      %v2753 = vpop.f32.mrb[0].mxu0
      %v2754 = vadd.f32 %v2593, %v2753
      %v2755 = vpop.f32.mrb[0].mxu0
      %v2756 = vpop.f32.mrb[0].mxu0
      %v2757 = vadd.f32 %v2596, %v2756
      %v2758 = vpop.f32.mrb[0].mxu0
      %2759 = vmatprep.mubr.bf16.mxu0 %v1193
      %2760 = vmatmul.mubr.bf16.gmra.mrb[0].mxu0 %v1058
      %v2761 = vpop.f32.mrb[0].mxu0
      %v2762 = vadd.f32 %v2601, %v2761
      %v2763 = vpop.f32.mrb[0].mxu0
      %v2764 = vpop.f32.mrb[0].mxu0
      %v2765 = vadd.f32 %v2604, %v2764
      %v2766 = vpop.f32.mrb[0].mxu0
      %2767 = vmatprep.mubr.bf16.mxu0 %v1205
      %2768 = vmatmul.mubr.bf16.gmra.mrb[0].mxu0 %v1059
      %v2769 = vpop.f32.mrb[0].mxu0
      %v2770 = vadd.f32 %v2609, %v2769
      %v2771 = vpop.f32.mrb[0].mxu0
      %v2772 = vpop.f32.mrb[0].mxu0
      %v2773 = vadd.f32 %v2612, %v2772
      %v2774 = vpop.f32.mrb[0].mxu0
      %2775 = vmatprep.mubr.bf16.mxu0 %v1217
      %2776 = vmatmul.mubr.bf16.gmra.mrb[0].mxu0 %v1060
      %v2777 = vpop.f32.mrb[0].mxu0
      %v2778 = vadd.f32 %v2617, %v2777
      %v2779 = vpop.f32.mrb[0].mxu0
      %v2780 = vpop.f32.mrb[0].mxu0
      %v2781 = vadd.f32 %v2620, %v2780
      %v2782 = vpop.f32.mrb[0].mxu0
      %2783 = vmatprep.mubr.bf16.mxu0 %v1229
      %2784 = vmatmul.mubr.bf16.gmra.mrb[0].mxu0 %v1061
      %v2785 = vpop.f32.mrb[0].mxu0
      %v2786 = vadd.f32 %v2625, %v2785
      %v2787 = vpop.f32.mrb[0].mxu0
      %v2788 = vpop.f32.mrb[0].mxu0
      %v2789 = vadd.f32 %v2628, %v2788
      %v2790 = vpop.f32.mrb[0].mxu0
      %2791 = vmatprep.mubr.bf16.mxu0 %v1241
      %2792 = vmatmul.mubr.bf16.gmra.mrb[0].mxu0 %v1062
      %v2793 = vpop.f32.mrb[0].mxu0
      %v2794 = vadd.f32 %v2633, %v2793
      %v2795 = vpop.f32.mrb[0].mxu0
      %v2796 = vpop.f32.mrb[0].mxu0
      %v2797 = vadd.f32 %v2636, %v2796
      %v2798 = vpop.f32.mrb[0].mxu0
      %2799 = vmatprep.mubr.bf16.mxu0 %v1253
      %2800 = vmatmul.mubr.bf16.gmra.mrb[0].mxu0 %v1063
      %v2801 = vpop.f32.mrb[0].mxu0
      %v2802 = vadd.f32 %v2641, %v2801
      %v2803 = vpop.f32.mrb[0].mxu0
      %v2804 = vpop.f32.mrb[0].mxu0
      %v2805 = vadd.f32 %v2644, %v2804
      %v2806 = vpop.f32.mrb[0].mxu0
      %2807 = vmatprep.mubr.bf16.mxu0 %v1265
      %2808 = vmatmul.mubr.bf16.gmra.mrb[0].mxu0 %v1064
      %v2809 = vpop.f32.mrb[0].mxu0
      %v2810 = vadd.f32 %v2649, %v2809
      %v2811 = vpop.f32.mrb[0].mxu0
      %v2812 = vpop.f32.mrb[0].mxu0
      %v2813 = vadd.f32 %v2652, %v2812
      %v2814 = vpop.f32.mrb[0].mxu0
      %2815 = vmatprep.mubr.bf16.mxu0 %v1277
      %2816 = vmatmul.mubr.bf16.gmra.mrb[0].mxu0 %v1065
      %v2817 = vpop.f32.mrb[0].mxu0
      %v2818 = vadd.f32 %v2657, %v2817
      %v2819 = vpop.f32.mrb[0].mxu0
      %v2820 = vpop.f32.mrb[0].mxu0
      %v2821 = vadd.f32 %v2660, %v2820
      %v2822 = vpop.f32.mrb[0].mxu0
      %2823 = vmatprep.mubr.bf16.mxu0 %v1289
      %2824 = vmatmul.mubr.bf16.gmra.mrb[0].mxu0 %v1066
      %v2825 = vpop.f32.mrb[0].mxu0
      %v2826 = vadd.f32 %v2665, %v2825
      %v2827 = vpop.f32.mrb[0].mxu0
      %v2828 = vpop.f32.mrb[0].mxu0
      %v2829 = vadd.f32 %v2668, %v2828
      %v2830 = vpop.f32.mrb[0].mxu0
      %2831 = vmatprep.mubr.bf16.mxu0 %v1301
      %2832 = vmatmul.mubr.bf16.gmra.mrb[0].mxu0 %v1067
      %v2833 = vpop.f32.mrb[0].mxu0
      %v2834 = vadd.f32 %v2673, %v2833
      %v2835 = vpop.f32.mrb[0].mxu0
      %v2836 = vpop.f32.mrb[0].mxu0
      %v2837 = vadd.f32 %v2676, %v2836
      %v2838 = vpop.f32.mrb[0].mxu0
      %2839 = vmatprep.mubr.bf16.mxu0 %v1313
      %2840 = vmatmul.mubr.bf16.gmra.mrb[0].mxu0 %v1068
      %v2841 = vpop.f32.mrb[0].mxu0
      %v2842 = vadd.f32 %v2681, %v2841
      %v2843 = vpop.f32.mrb[0].mxu0
      %v2844 = vpop.f32.mrb[0].mxu0
      %v2845 = vadd.f32 %v2684, %v2844
      %v2846 = vpop.f32.mrb[0].mxu0
      %2847 = vmatprep.mubr.bf16.mxu0 %v1325
      %2848 = vmatmul.mubr.bf16.gmra.mrb[0].mxu0 %v1069
      %v2849 = vpop.f32.mrb[0].mxu0
      %v2850 = vadd.f32 %v2689, %v2849
      %v2851 = vpop.f32.mrb[0].mxu0
      %v2852 = vpop.f32.mrb[0].mxu0
      %v2853 = vadd.f32 %v2692, %v2852
      %v2854 = vpop.f32.mrb[0].mxu0
      %2855 = vdwg.mxu0
      %2856 = vmatprep.subr.bf16.mxu0 0
      %2857 = vmatpush1.bf16.msra.mxu0 %v2277
      %2858 = vmatprep.subr.bf16.mxu0 0
      %2859 = vmatpush1.bf16.msra.mxu0 %v2278
      %2860 = vmatprep.subr.bf16.mxu0 0
      %2861 = vmatpush1.bf16.msra.mxu0 %v2279
      %2862 = vmatprep.subr.bf16.mxu0 0
      %2863 = vmatpush1.bf16.msra.mxu0 %v2280
      %2864 = vmatprep.subr.bf16.mxu0 0
      %2865 = vmatpush1.bf16.msra.mxu0 %v2281
      %2866 = vmatprep.subr.bf16.mxu0 0
      %2867 = vmatpush1.bf16.msra.mxu0 %v2282
      %2868 = vmatprep.subr.bf16.mxu0 0
      %2869 = vmatpush1.bf16.msra.mxu0 %v2283
      %2870 = vmatprep.subr.bf16.mxu0 0
      %2871 = vmatpush1.bf16.msra.mxu0 %v2284
      %2872 = vmatprep.subr.bf16.mxu0 0
      %2873 = vmatpush1.bf16.msra.mxu0 %v2285
      %2874 = vmatprep.subr.bf16.mxu0 0
      %2875 = vmatpush1.bf16.msra.mxu0 %v2286
      %2876 = vmatprep.subr.bf16.mxu0 0
      %2877 = vmatpush1.bf16.msra.mxu0 %v2287
      %2878 = vmatprep.subr.bf16.mxu0 0
      %2879 = vmatpush1.bf16.msra.mxu0 %v2288
      %2880 = vmatprep.subr.bf16.mxu0 0
      %2881 = vmatpush1.bf16.msra.mxu0 %v2289
      %2882 = vmatprep.subr.bf16.mxu0 0
      %2883 = vmatpush1.bf16.msra.mxu0 %v2290
      %2884 = vmatprep.subr.bf16.mxu0 0
      %2885 = vmatpush1.bf16.msra.mxu0 %v2291
      %2886 = vmatprep.subr.bf16.mxu0 0
      %2887 = vmatpush1.bf16.msra.mxu0 %v2292
      %2888 = vmatprep.mubr.bf16.mxu0 %v1502
      %2889 = vmatmul.mubr.bf16.gmra.mrb[0].mxu0 %v1406
      %v2890 = vpop.f32.mrb[0].mxu0
      %v2891 = vadd.f32 %v2730, %v2890
      %v2892 = vpop.f32.mrb[0].mxu0
      %v2893 = vpop.f32.mrb[0].mxu0
      %v2894 = vadd.f32 %v2733, %v2893
      %v2895 = vpop.f32.mrb[0].mxu0
      %2896 = vmatprep.mubr.bf16.mxu0 %v1503
      %2897 = vmatmul.mubr.bf16.gmra.mrb[0].mxu0 %v1407
      %v2898 = vpop.f32.mrb[0].mxu0
      %v2899 = vadd.f32 %v2738, %v2898
      %v2900 = vpop.f32.mrb[0].mxu0
      %v2901 = vpop.f32.mrb[0].mxu0
      %v2902 = vadd.f32 %v2741, %v2901
      %v2903 = vpop.f32.mrb[0].mxu0
      %2904 = vmatprep.mubr.bf16.mxu0 %v1504
      %2905 = vmatmul.mubr.bf16.gmra.mrb[0].mxu0 %v1408
      %v2906 = vpop.f32.mrb[0].mxu0
      %v2907 = vadd.f32 %v2746, %v2906
      %v2908 = vpop.f32.mrb[0].mxu0
      %v2909 = vpop.f32.mrb[0].mxu0
      %v2910 = vadd.f32 %v2749, %v2909
      %v2911 = vpop.f32.mrb[0].mxu0
      %2912 = vmatprep.mubr.bf16.mxu0 %v1505
      %2913 = vmatmul.mubr.bf16.gmra.mrb[0].mxu0 %v1409
      %v2914 = vpop.f32.mrb[0].mxu0
      %v2915 = vadd.f32 %v2754, %v2914
      %v2916 = vpop.f32.mrb[0].mxu0
      %v2917 = vpop.f32.mrb[0].mxu0
      %v2918 = vadd.f32 %v2757, %v2917
      %v2919 = vpop.f32.mrb[0].mxu0
      %2920 = vmatprep.mubr.bf16.mxu0 %v1506
      %2921 = vmatmul.mubr.bf16.gmra.mrb[0].mxu0 %v1410
      %v2922 = vpop.f32.mrb[0].mxu0
      %v2923 = vadd.f32 %v2762, %v2922
      %v2924 = vpop.f32.mrb[0].mxu0
      %v2925 = vpop.f32.mrb[0].mxu0
      %v2926 = vadd.f32 %v2765, %v2925
      %v2927 = vpop.f32.mrb[0].mxu0
      %2928 = vmatprep.mubr.bf16.mxu0 %v1507
      %2929 = vmatmul.mubr.bf16.gmra.mrb[0].mxu0 %v1411
      %v2930 = vpop.f32.mrb[0].mxu0
      %v2931 = vadd.f32 %v2770, %v2930
      %v2932 = vpop.f32.mrb[0].mxu0
      %v2933 = vpop.f32.mrb[0].mxu0
      %v2934 = vadd.f32 %v2773, %v2933
      %v2935 = vpop.f32.mrb[0].mxu0
      %2936 = vmatprep.mubr.bf16.mxu0 %v1508
      %2937 = vmatmul.mubr.bf16.gmra.mrb[0].mxu0 %v1412
      %v2938 = vpop.f32.mrb[0].mxu0
      %v2939 = vadd.f32 %v2778, %v2938
      %v2940 = vpop.f32.mrb[0].mxu0
      %v2941 = vpop.f32.mrb[0].mxu0
      %v2942 = vadd.f32 %v2781, %v2941
      %v2943 = vpop.f32.mrb[0].mxu0
      %2944 = vmatprep.mubr.bf16.mxu0 %v1509
      %2945 = vmatmul.mubr.bf16.gmra.mrb[0].mxu0 %v1413
      %v2946 = vpop.f32.mrb[0].mxu0
      %v2947 = vadd.f32 %v2786, %v2946
      %v2948 = vpop.f32.mrb[0].mxu0
      %v2949 = vpop.f32.mrb[0].mxu0
      %v2950 = vadd.f32 %v2789, %v2949
      %v2951 = vpop.f32.mrb[0].mxu0
      %2952 = vmatprep.mubr.bf16.mxu0 %v1510
      %2953 = vmatmul.mubr.bf16.gmra.mrb[0].mxu0 %v1414
      %v2954 = vpop.f32.mrb[0].mxu0
      %v2955 = vadd.f32 %v2794, %v2954
      %v2956 = vpop.f32.mrb[0].mxu0
      %v2957 = vpop.f32.mrb[0].mxu0
      %v2958 = vadd.f32 %v2797, %v2957
      %v2959 = vpop.f32.mrb[0].mxu0
      %2960 = vmatprep.mubr.bf16.mxu0 %v1511
      %2961 = vmatmul.mubr.bf16.gmra.mrb[0].mxu0 %v1415
      %v2962 = vpop.f32.mrb[0].mxu0
      %v2963 = vadd.f32 %v2802, %v2962
      %v2964 = vpop.f32.mrb[0].mxu0
      %v2965 = vpop.f32.mrb[0].mxu0
      %v2966 = vadd.f32 %v2805, %v2965
      %v2967 = vpop.f32.mrb[0].mxu0
      %2968 = vmatprep.mubr.bf16.mxu0 %v1512
      %2969 = vmatmul.mubr.bf16.gmra.mrb[0].mxu0 %v1416
      %v2970 = vpop.f32.mrb[0].mxu0
      %v2971 = vadd.f32 %v2810, %v2970
      %v2972 = vpop.f32.mrb[0].mxu0
      %v2973 = vpop.f32.mrb[0].mxu0
      %v2974 = vadd.f32 %v2813, %v2973
      %v2975 = vpop.f32.mrb[0].mxu0
      %2976 = vmatprep.mubr.bf16.mxu0 %v1513
      %2977 = vmatmul.mubr.bf16.gmra.mrb[0].mxu0 %v1417
      %v2978 = vpop.f32.mrb[0].mxu0
      %v2979 = vadd.f32 %v2818, %v2978
      %v2980 = vpop.f32.mrb[0].mxu0
      %v2981 = vpop.f32.mrb[0].mxu0
      %v2982 = vadd.f32 %v2821, %v2981
      %v2983 = vpop.f32.mrb[0].mxu0
      %2984 = vmatprep.mubr.bf16.mxu0 %v1514
      %2985 = vmatmul.mubr.bf16.gmra.mrb[0].mxu0 %v1418
      %v2986 = vpop.f32.mrb[0].mxu0
      %v2987 = vadd.f32 %v2826, %v2986
      %v2988 = vpop.f32.mrb[0].mxu0
      %v2989 = vpop.f32.mrb[0].mxu0
      %v2990 = vadd.f32 %v2829, %v2989
      %v2991 = vpop.f32.mrb[0].mxu0
      %2992 = vmatprep.mubr.bf16.mxu0 %v1515
      %2993 = vmatmul.mubr.bf16.gmra.mrb[0].mxu0 %v1419
      %v2994 = vpop.f32.mrb[0].mxu0
      %v2995 = vadd.f32 %v2834, %v2994
      %v2996 = vpop.f32.mrb[0].mxu0
      %v2997 = vpop.f32.mrb[0].mxu0
      %v2998 = vadd.f32 %v2837, %v2997
      %v2999 = vpop.f32.mrb[0].mxu0
      %3000 = vmatprep.mubr.bf16.mxu0 %v1516
      %3001 = vmatmul.mubr.bf16.gmra.mrb[0].mxu0 %v1420
      %v3002 = vpop.f32.mrb[0].mxu0
      %v3003 = vadd.f32 %v2842, %v3002
      %v3004 = vpop.f32.mrb[0].mxu0
      %v3005 = vpop.f32.mrb[0].mxu0
      %v3006 = vadd.f32 %v2845, %v3005
      %v3007 = vpop.f32.mrb[0].mxu0
      %3008 = vmatprep.mubr.bf16.mxu0 %v1517
      %3009 = vmatmul.mubr.bf16.gmra.mrb[0].mxu0 %v1421
      %v3010 = vpop.f32.mrb[0].mxu0
      %v3011 = vadd.f32 %v2850, %v3010
      %v3012 = vpop.f32.mrb[0].mxu0
      %v3013 = vpop.f32.mrb[0].mxu0
      %v3014 = vadd.f32 %v2853, %v3013
      %v3015 = vpop.f32.mrb[0].mxu0
      %3016 = vdwg.mxu0
      %3017 = vmatprep.subr.bf16.mxu0 0
      %3018 = vmatpush1.bf16.msra.mxu0 %v2293
      %3019 = vmatprep.subr.bf16.mxu0 0
      %3020 = vmatpush1.bf16.msra.mxu0 %v2294
      %3021 = vmatprep.subr.bf16.mxu0 0
      %3022 = vmatpush1.bf16.msra.mxu0 %v2295
      %3023 = vmatprep.subr.bf16.mxu0 0
      %3024 = vmatpush1.bf16.msra.mxu0 %v2296
      %3025 = vmatprep.subr.bf16.mxu0 0
      %3026 = vmatpush1.bf16.msra.mxu0 %v2297
      %3027 = vmatprep.subr.bf16.mxu0 0
      %3028 = vmatpush1.bf16.msra.mxu0 %v2298
      %3029 = vmatprep.subr.bf16.mxu0 0
      %3030 = vmatpush1.bf16.msra.mxu0 %v2299
      %3031 = vmatprep.subr.bf16.mxu0 0
      %3032 = vmatpush1.bf16.msra.mxu0 %v2300
      %3033 = vmatprep.subr.bf16.mxu0 0
      %3034 = vmatpush1.bf16.msra.mxu0 0
      %3035 = vmatprep.subr.bf16.mxu0 0
      %3036 = vmatpush1.bf16.msra.mxu0 0
      %3037 = vmatprep.subr.bf16.mxu0 0
      %3038 = vmatpush1.bf16.msra.mxu0 0
      %3039 = vmatprep.subr.bf16.mxu0 0
      %3040 = vmatpush1.bf16.msra.mxu0 0
      %3041 = vmatprep.subr.bf16.mxu0 0
      %3042 = vmatpush1.bf16.msra.mxu0 0
      %3043 = vmatprep.subr.bf16.mxu0 0
      %3044 = vmatpush1.bf16.msra.mxu0 0
      %3045 = vmatprep.subr.bf16.mxu0 0
      %3046 = vmatpush1.bf16.msra.mxu0 0
      %3047 = vmatprep.subr.bf16.mxu0 0
      %3048 = vmatpush1.bf16.msra.mxu0 0
      %3049 = vmatprep.mubr.bf16.mxu0 0
      %3050 = vmatmul.mubr.bf16.gmra.mrb[0].mxu0 %v1593
      %v3051 = vpop.f32.mrb[0].mxu0
      %v3052 = vadd.f32 %v2891, %v3051
      %v3053 = vpop.f32.mrb[0].mxu0
      %v3054 = vpop.f32.mrb[0].mxu0
      %v3055 = vadd.f32 %v2894, %v3054
      %v3056 = vpop.f32.mrb[0].mxu0
      %3057 = vmatprep.mubr.bf16.mxu0 0
      %3058 = vmatmul.mubr.bf16.gmra.mrb[0].mxu0 %v1605
      %v3059 = vpop.f32.mrb[0].mxu0
      %v3060 = vadd.f32 %v2899, %v3059
      %v3061 = vpop.f32.mrb[0].mxu0
      %v3062 = vpop.f32.mrb[0].mxu0
      %v3063 = vadd.f32 %v2902, %v3062
      %v3064 = vpop.f32.mrb[0].mxu0
      %3065 = vmatprep.mubr.bf16.mxu0 0
      %3066 = vmatmul.mubr.bf16.gmra.mrb[0].mxu0 %v1617
      %v3067 = vpop.f32.mrb[0].mxu0
      %v3068 = vadd.f32 %v2907, %v3067
      %v3069 = vpop.f32.mrb[0].mxu0
      %v3070 = vpop.f32.mrb[0].mxu0
      %v3071 = vadd.f32 %v2910, %v3070
      %v3072 = vpop.f32.mrb[0].mxu0
      %3073 = vmatprep.mubr.bf16.mxu0 0
      %3074 = vmatmul.mubr.bf16.gmra.mrb[0].mxu0 %v1629
      %v3075 = vpop.f32.mrb[0].mxu0
      %v3076 = vadd.f32 %v2915, %v3075
      %v3077 = vpop.f32.mrb[0].mxu0
      %v3078 = vpop.f32.mrb[0].mxu0
      %v3079 = vadd.f32 %v2918, %v3078
      %v3080 = vpop.f32.mrb[0].mxu0
      %3081 = vmatprep.mubr.bf16.mxu0 0
      %3082 = vmatmul.mubr.bf16.gmra.mrb[0].mxu0 %v1641
      %v3083 = vpop.f32.mrb[0].mxu0
      %v3084 = vadd.f32 %v2923, %v3083
      %v3085 = vpop.f32.mrb[0].mxu0
      %v3086 = vpop.f32.mrb[0].mxu0
      %v3087 = vadd.f32 %v2926, %v3086
      %v3088 = vpop.f32.mrb[0].mxu0
      %3089 = vmatprep.mubr.bf16.mxu0 0
      %3090 = vmatmul.mubr.bf16.gmra.mrb[0].mxu0 %v1653
      %v3091 = vpop.f32.mrb[0].mxu0
      %v3092 = vadd.f32 %v2931, %v3091
      %v3093 = vpop.f32.mrb[0].mxu0
      %v3094 = vpop.f32.mrb[0].mxu0
      %v3095 = vadd.f32 %v2934, %v3094
      %v3096 = vpop.f32.mrb[0].mxu0
      %3097 = vmatprep.mubr.bf16.mxu0 0
      %3098 = vmatmul.mubr.bf16.gmra.mrb[0].mxu0 %v1665
      %v3099 = vpop.f32.mrb[0].mxu0
      %v3100 = vadd.f32 %v2939, %v3099
      %v3101 = vpop.f32.mrb[0].mxu0
      %v3102 = vpop.f32.mrb[0].mxu0
      %v3103 = vadd.f32 %v2942, %v3102
      %v3104 = vpop.f32.mrb[0].mxu0
      %3105 = vmatprep.mubr.bf16.mxu0 0
      %3106 = vmatmul.mubr.bf16.gmra.mrb[0].mxu0 %v1677
      %v3107 = vpop.f32.mrb[0].mxu0
      %v3108 = vadd.f32 %v2947, %v3107
      %v3109 = vpop.f32.mrb[0].mxu0
      %v3110 = vpop.f32.mrb[0].mxu0
      %v3111 = vadd.f32 %v2950, %v3110
      %v3112 = vpop.f32.mrb[0].mxu0
      %3113 = vmatprep.mubr.bf16.mxu0 0
      %3114 = vmatmul.mubr.bf16.gmra.mrb[0].mxu0 %v1689
      %v3115 = vpop.f32.mrb[0].mxu0
      %v3116 = vadd.f32 %v2955, %v3115
      %v3117 = vpop.f32.mrb[0].mxu0
      %v3118 = vpop.f32.mrb[0].mxu0
      %v3119 = vadd.f32 %v2958, %v3118
      %v3120 = vpop.f32.mrb[0].mxu0
      %3121 = vmatprep.mubr.bf16.mxu0 0
      %3122 = vmatmul.mubr.bf16.gmra.mrb[0].mxu0 %v1701
      %v3123 = vpop.f32.mrb[0].mxu0
      %v3124 = vadd.f32 %v2963, %v3123
      %v3125 = vpop.f32.mrb[0].mxu0
      %v3126 = vpop.f32.mrb[0].mxu0
      %v3127 = vadd.f32 %v2966, %v3126
      %v3128 = vpop.f32.mrb[0].mxu0
      %3129 = vmatprep.mubr.bf16.mxu0 0
      %3130 = vmatmul.mubr.bf16.gmra.mrb[0].mxu0 %v1713
      %v3131 = vpop.f32.mrb[0].mxu0
      %v3132 = vadd.f32 %v2971, %v3131
      %v3133 = vpop.f32.mrb[0].mxu0
      %v3134 = vpop.f32.mrb[0].mxu0
      %v3135 = vadd.f32 %v2974, %v3134
      %v3136 = vpop.f32.mrb[0].mxu0
      %3137 = vmatprep.mubr.bf16.mxu0 0
      %3138 = vmatmul.mubr.bf16.gmra.mrb[0].mxu0 %v1725
      %v3139 = vpop.f32.mrb[0].mxu0
      %v3140 = vadd.f32 %v2979, %v3139
      %v3141 = vpop.f32.mrb[0].mxu0
      %v3142 = vpop.f32.mrb[0].mxu0
      %v3143 = vadd.f32 %v2982, %v3142
      %v3144 = vpop.f32.mrb[0].mxu0
      %3145 = vmatprep.mubr.bf16.mxu0 0
      %3146 = vmatmul.mubr.bf16.gmra.mrb[0].mxu0 %v1737
      %v3147 = vpop.f32.mrb[0].mxu0
      %v3148 = vadd.f32 %v2987, %v3147
      %v3149 = vpop.f32.mrb[0].mxu0
      %v3150 = vpop.f32.mrb[0].mxu0
      %v3151 = vadd.f32 %v2990, %v3150
      %v3152 = vpop.f32.mrb[0].mxu0
      %3153 = vmatprep.mubr.bf16.mxu0 0
      %3154 = vmatmul.mubr.bf16.gmra.mrb[0].mxu0 %v1749
      %v3155 = vpop.f32.mrb[0].mxu0
      %v3156 = vadd.f32 %v2995, %v3155
      %v3157 = vpop.f32.mrb[0].mxu0
      %v3158 = vpop.f32.mrb[0].mxu0
      %v3159 = vadd.f32 %v2998, %v3158
      %v3160 = vpop.f32.mrb[0].mxu0
      %3161 = vmatprep.mubr.bf16.mxu0 0
      %3162 = vmatmul.mubr.bf16.gmra.mrb[0].mxu0 %v1761
      %v3163 = vpop.f32.mrb[0].mxu0
      %v3164 = vadd.f32 %v3003, %v3163
      %v3165 = vpop.f32.mrb[0].mxu0
      %v3166 = vpop.f32.mrb[0].mxu0
      %v3167 = vadd.f32 %v3006, %v3166
      %v3168 = vpop.f32.mrb[0].mxu0
      %3169 = vmatprep.mubr.bf16.mxu0 0
      %3170 = vmatmul.mubr.bf16.gmra.mrb[0].mxu0 %v1773
      %v3171 = vpop.f32.mrb[0].mxu0
      %v3172 = vadd.f32 %v3011, %v3171
      %v3173 = vpop.f32.mrb[0].mxu0
      %v3174 = vpop.f32.mrb[0].mxu0
      %v3175 = vadd.f32 %v3014, %v3174
      %v3176 = vpop.f32.mrb[0].mxu0
      %3177 = vdwg.mxu0
      %v3178 = vmax.f32 %v3052, 0.0
      %v3179 = vmax.f32 %v3055, 0.0
      %v3180 = vmax.f32 %v3060, 0.0
      %v3181 = vmax.f32 %v3063, 0.0
      %v3182 = vmax.f32 %v3068, 0.0
      %v3183 = vmax.f32 %v3071, 0.0
      %v3184 = vmax.f32 %v3076, 0.0
      %v3185 = vmax.f32 %v3079, 0.0
      %v3186 = vmax.f32 %v3084, 0.0
      %v3187 = vmax.f32 %v3087, 0.0
      %v3188 = vmax.f32 %v3092, 0.0
      %v3189 = vmax.f32 %v3095, 0.0
      %v3190 = vmax.f32 %v3100, 0.0
      %v3191 = vmax.f32 %v3103, 0.0
      %v3192 = vmax.f32 %v3108, 0.0
      %v3193 = vmax.f32 %v3111, 0.0
      %v3194 = vmax.f32 %v3116, 0.0
      %v3195 = vmax.f32 %v3119, 0.0
      %v3196 = vmax.f32 %v3124, 0.0
      %v3197 = vmax.f32 %v3127, 0.0
      %v3198 = vmax.f32 %v3132, 0.0
      %v3199 = vmax.f32 %v3135, 0.0
      %v3200 = vmax.f32 %v3140, 0.0
      %v3201 = vmax.f32 %v3143, 0.0
      %v3202 = vmax.f32 %v3148, 0.0
      %v3203 = vmax.f32 %v3151, 0.0
      %v3204 = vmax.f32 %v3156, 0.0
      %v3205 = vmax.f32 %v3159, 0.0
      %v3206 = vmax.f32 %v3164, 0.0
      %v3207 = vmax.f32 %v3167, 0.0
      %v3208 = vmax.f32 %v3172, 0.0
      %v3209 = vmax.f32 %v3175, 0.0
      %v3210 = vpack.c.bf16 %v3179, %v3178
      %v3211 = vpack.c.bf16 %v3181, %v3180
      %v3212 = vpack.c.bf16 %v3183, %v3182
      %v3213 = vpack.c.bf16 %v3185, %v3184
      %v3214 = vpack.c.bf16 %v3187, %v3186
      %v3215 = vpack.c.bf16 %v3189, %v3188
      %v3216 = vpack.c.bf16 %v3191, %v3190
      %v3217 = vpack.c.bf16 %v3193, %v3192
      %v3218 = vpack.c.bf16 %v3195, %v3194
      %v3219 = vpack.c.bf16 %v3197, %v3196
      %v3220 = vpack.c.bf16 %v3199, %v3198
      %v3221 = vpack.c.bf16 %v3201, %v3200
      %v3222 = vpack.c.bf16 %v3203, %v3202
      %v3223 = vpack.c.bf16 %v3205, %v3204
      %v3224 = vpack.c.bf16 %v3207, %v3206
      %v3225 = vpack.c.bf16 %v3209, %v3208
      %v3242 = vunpack.c.l.b16 %v3210
      %v3243 = vunpack.c.h.b16 %v3210
      %v3244 = vunpack.c.l.b16 %v3211
      %v3245 = vunpack.c.h.b16 %v3211
      %v3246 = vunpack.c.l.b16 %v3212
      %v3247 = vunpack.c.h.b16 %v3212
      %v3248 = vunpack.c.l.b16 %v3213
      %v3249 = vunpack.c.h.b16 %v3213
      %v3250 = vunpack.c.l.b16 %v3214
      %v3251 = vunpack.c.h.b16 %v3214
      %v3252 = vunpack.c.l.b16 %v3215
      %v3253 = vunpack.c.h.b16 %v3215
      %v3254 = vunpack.c.l.b16 %v3216
      %v3255 = vunpack.c.h.b16 %v3216
      %v3256 = vunpack.c.l.b16 %v3217
      %v3257 = vunpack.c.h.b16 %v3217
      %v3258 = vunpack.c.l.b16 %v3218
      %v3259 = vunpack.c.h.b16 %v3218
      %v3260 = vunpack.c.l.b16 %v3219
      %v3261 = vunpack.c.h.b16 %v3219
      %v3262 = vunpack.c.l.b16 %v3220
      %v3263 = vunpack.c.h.b16 %v3220
      %v3264 = vunpack.c.l.b16 %v3221
      %v3265 = vunpack.c.h.b16 %v3221
      %v3266 = vunpack.c.l.b16 %v3222
      %v3267 = vunpack.c.h.b16 %v3222
      %v3268 = vunpack.c.l.b16 %v3223
      %v3269 = vunpack.c.h.b16 %v3223
      %v3270 = vunpack.c.l.b16 %v3224
      %v3271 = vunpack.c.h.b16 %v3224
      %v3272 = vunpack.c.l.b16 %v3225
      %v3273 = vunpack.c.h.b16 %v3225
      %v3274 = vpack.c.b16 %v3242, %v3242
      %v3275 = vpack.c.b16 %v3243, %v3243
      %v3276 = vpack.c.b16 %v3244, %v3244
      %v3277 = vpack.c.b16 %v3245, %v3245
      %v3278 = vpack.c.b16 %v3246, %v3246
      %v3279 = vpack.c.b16 %v3247, %v3247
      %v3280 = vpack.c.b16 %v3248, %v3248
      %v3281 = vpack.c.b16 %v3249, %v3249
      %v3282 = vpack.c.b16 %v3250, %v3250
      %v3283 = vpack.c.b16 %v3251, %v3251
      %v3284 = vpack.c.b16 %v3252, %v3252
      %v3285 = vpack.c.b16 %v3253, %v3253
      %v3286 = vpack.c.b16 %v3254, %v3254
      %v3287 = vpack.c.b16 %v3255, %v3255
      %v3288 = vpack.c.b16 %v3256, %v3256
      %v3289 = vpack.c.b16 %v3257, %v3257
      %v3290 = vpack.c.b16 %v3258, %v3258
      %v3291 = vpack.c.b16 %v3259, %v3259
      %v3292 = vpack.c.b16 %v3260, %v3260
      %v3293 = vpack.c.b16 %v3261, %v3261
      %v3294 = vpack.c.b16 %v3262, %v3262
      %v3295 = vpack.c.b16 %v3263, %v3263
      %v3296 = vpack.c.b16 %v3264, %v3264
      %v3297 = vpack.c.b16 %v3265, %v3265
      %v3298 = vpack.c.b16 %v3266, %v3266
      %v3299 = vpack.c.b16 %v3267, %v3267
      %v3300 = vpack.c.b16 %v3268, %v3268
      %v3301 = vpack.c.b16 %v3269, %v3269
      %v3302 = vpack.c.b16 %v3270, %v3270
      %v3303 = vpack.c.b16 %v3271, %v3271
      %v3304 = vpack.c.b16 %v3272, %v3272
      %v3305 = vpack.c.b16 %v3273, %v3273
      %3338 = vst [vmem:[%s194] sm:$0xf] %v3274
      %3339 = vst [vmem:[%s194 + $0x4] sm:$0xf] %v3275
      %3340 = vst [vmem:[%s194 + $0x8] sm:$0xf] %v3276
      %3341 = vst [vmem:[%s194 + $0xc] sm:$0xf] %v3277
      %3342 = vst [vmem:[%s194 + $0x10] sm:$0xf] %v3278
      %3343 = vst [vmem:[%s194 + $0x14] sm:$0xf] %v3279
      %3344 = vst [vmem:[%s194 + $0x18] sm:$0xf] %v3280
      %3345 = vst [vmem:[%s194 + $0x1c] sm:$0xf] %v3281
      %3346 = vst [vmem:[%s194 + $0x20] sm:$0xf] %v3282
      %3347 = vst [vmem:[%s194 + $0x24] sm:$0xf] %v3283
      %3348 = vst [vmem:[%s194 + $0x28] sm:$0xf] %v3284
      %3349 = vst [vmem:[%s194 + $0x2c] sm:$0xf] %v3285
      %3350 = vst [vmem:[%s194 + $0x30] sm:$0xf] %v3286
      %3351 = vst [vmem:[%s194 + $0x34] sm:$0xf] %v3287
      %3352 = vst [vmem:[%s194 + $0x38] sm:$0xf] %v3288
      %3353 = vst [vmem:[%s194 + $0x3c] sm:$0xf] %v3289
      %3354 = vst [vmem:[%s194 + $0x40] sm:$0xf] %v3290
      %3355 = vst [vmem:[%s194 + $0x44] sm:$0xf] %v3291
      %3356 = vst [vmem:[%s194 + $0x48] sm:$0xf] %v3292
      %3357 = vst [vmem:[%s194 + $0x4c] sm:$0xf] %v3293
      %3358 = vst [vmem:[%s194 + $0x50] sm:$0xf] %v3294
      %3359 = vst [vmem:[%s194 + $0x54] sm:$0xf] %v3295
      %3360 = vst [vmem:[%s194 + $0x58] sm:$0xf] %v3296
      %3361 = vst [vmem:[%s194 + $0x5c] sm:$0xf] %v3297
      %3362 = vst [vmem:[%s194 + $0x60] sm:$0xf] %v3298
      %3363 = vst [vmem:[%s194 + $0x64] sm:$0xf] %v3299
      %3364 = vst [vmem:[%s194 + $0x68] sm:$0xf] %v3300
      %3365 = vst [vmem:[%s194 + $0x6c] sm:$0xf] %v3301
      %3366 = vst [vmem:[%s194 + $0x70] sm:$0xf] %v3302
      %3367 = vst [vmem:[%s194 + $0x74] sm:$0xf] %v3303
      %3368 = vst [vmem:[%s194 + $0x78] sm:$0xf] %v3304
      %3369 = vst [vmem:[%s194 + $0x7c] sm:$0xf] %v3305
      %s3370 = smul.u32 16, %s19
      %p3371 = scmp.lt.s32.totalorder %s18, 1
      %s3372 = scalar_select %p3371, %s18, 1
      %p3373 = scmp.lt.s32.totalorder %s3370, 15
      %s3374 = scalar_select %p3373, %s3370, 15
      %s3375 = smul.addr %s3374, 2
      %s3376 = smul.addr %s3372, 32
      %s3377 = sadd.s32 %s3375, %s3376
      %s3378 = smul.addr %s3377, 4
      %s3379 = scalar_lea.vmem %s3, %s3378
      // Predicated region
      $region33: #{forward.5} parent=31 // pred_check
        %p3380 = pneg %p114
      $region34: #{forward.5} parent=31 // pred_check_branch
        %3382 = sbr.rel (%p3380) target = $region36
      $region35: #{forward.5} parent=31 // pred_region
        %s3383 = smul.u32 16, %s19
      $region36: #{forward.5} parent=31 // pred_fallthru
        _
    $region32: #{forward.5} parent=5 // pred_fallthru
      _
    %p3384 = scmp.le.s32.totalorder 2, %s9
    // Predicated region
    $region37: #{forward.5} parent=5 // pred_check
      %p3385 = pneg %p3384
    $region38: #{forward.5} parent=5 // pred_check_branch
      %3387 = sbr.rel (%p3385) target = $region40
    $region39: #{forward.5} parent=5 // pred_region
      %s3388 = ssub.s32 %s9, 2
      // Predicated region
      $region41: #{forward.5} parent=39 // pred_check
        %p3389 = pneg %p120
      $region42: #{forward.5} parent=39 // pred_check_branch
        %3391 = sbr.rel (%p3389) target = $region44
      $region43: #{forward.5} parent=39 // pred_region
        %s3392 = smul.u32 16, %s21
        %p3393 = scmp.lt.s32.totalorder %s20, 1
        %s3394 = scalar_select %p3393, %s20, 1
        %p3395 = scmp.lt.s32.totalorder %s3392, 15
        %s3396 = scalar_select %p3395, %s3392, 15
        %s3397 = smul.addr %s3396, 2
        %s3398 = smul.addr %s3394, 32
        %s3399 = sadd.s32 %s3397, %s3398
        %s3400 = smul.addr %s3399, 4
        %s3401 = scalar_lea.vmem %s3, %s3400
      $region44: #{forward.5} parent=39 // pred_fallthru
        _
    $region40: #{forward.5} parent=5 // pred_fallthru
      _
  $region6: #{forward.5} parent=0 // loop_footer
    %s13 = sadd.s32 1, %s9
  $region7: #{forward.5} parent=0 // loop_footer_branch
    %8 = sbr.rel target = $region3
  $region8: #{forward.5} parent=0 // loop_exit
    _

// kernel: forward.6
$region0: #{forward.6}
  #allocation0 [shape = 'u32[]', space=smem, size = 0x4, offset = 0x4, fixed_abs, tag = 'smem constant byte address 0x4 - core index']
  #allocation1 [shape = 'u32[144,128]{1,0:T(1,128)}', space=vmem, size = 0x12000, scoped, tag = 'internal scratch']
  %s0 = inlined_call_operand.vmem [shape: bf16[2,9,9,512], index: 0, kind: input, shape index: {}]
  %s1 = inlined_call_operand.vmem [shape: bf16[1152,128], index: 1, kind: input, shape index: {}]
  %s2 = inlined_call_operand.vmem [shape: f32[1,128], index: 2, kind: input, shape index: {}]
  %s3 = inlined_call_operand.vmem [shape: bf16[2,8,8,128], index: 3, kind: output, shape index: {}]
  %s4 = sld [smem:[#allocation0]]
  $region45: #{forward.6} parent=0
    _
  %s6 = ssub.s32 1, %s4
  %s7 = scalar_select 0, %s6, %s4
  loop: start=0, step=1, limit=4
  $region2: #{forward.6} parent=0 // loop_pre_header
    _
  $region3: #{forward.6} parent=0 // loop_header
    %s9 = sphi 0, %s13
    %p10 = scmp.ge.s32.totalorder %s9, 4
    %s16 = sphi 0, %s28
    %s17 = sphi 0, %s24
    %s18 = sphi 0, %s16
    %s19 = sphi 0, %s17
    %s20 = sphi 0, %s18
    %s21 = sphi 0, %s19
    %s31 = sphi 0, %s33
    %s34 = sphi 0, %s31
    %s35 = sphi 0, %s34
    %s51 = sphi 0, %s35
    %s55 = sphi 0, %s55
    %s57 = sphi 0, %s55
    %s58 = sphi 0, %s57
    %s72 = sphi 0, %s58
    %s76 = sphi 0, %s76
    %s78 = sphi 0, %s76
    %s79 = sphi 0, %s78
    %s93 = sphi 0, %s79
    %s101 = sphi 0, %s103
    %s104 = sphi 0, %s101
    %s105 = sphi 0, %s104
    %s121 = sphi 0, %s105
  $region4: #{forward.6} parent=0 // loop_header_branch
    %12 = sbr.rel (%p10) target = $region8
  $region5: #{forward.6} parent=0 // loop_body
    %s14 = ssub.s32 %s9, 1
    %s15 = ssub.s32 %s9, 2
    %s22 = sadd.s32 1, %s17
    %p23 = scmp.ge.s32.totalorder %s22, 1
    %s24 = scalar_select %p23, 0, %s22
    %s25 = sadd.s32 1, %s16
    %s26 = scalar_select %p23, %s25, %s16
    %p27 = scmp.ge.s32.totalorder %s26, 2
    %s28 = scalar_select %p27, 0, %s26
    %s29 = ssub.s32 %s16, %s28
    %p30 = scmp.eq.s32.totalorder %s29, 0
    %s32 = sadd.s32 %s31, 1
    %s33 = scalar_select %p30, %s31, %s32
    %p36 = pneg %p30
    %p37 = scmp.eq.s32.totalorder %s9, 1
    %p38 = por %p36, %p37
    %p39 = scmp.ne.s32.totalorder %s31, %s34
    %p40 = scmp.eq.s32.totalorder %s9, 0
    %p41 = por %p39, %p40
    %p42 = scmp.ne.s32.totalorder %s31, %s34
    %p43 = scmp.eq.s32.totalorder %s14, 1
    %p44 = por %p42, %p43
    %p45 = scmp.ne.s32.totalorder %s34, %s35
    %p46 = scmp.eq.s32.totalorder %s14, 0
    %p47 = por %p45, %p46
    %p48 = scmp.ne.s32.totalorder %s34, %s35
    %p49 = scmp.eq.s32.totalorder %s15, 1
    %p50 = por %p48, %p49
    %p52 = scmp.ne.s32.totalorder %s35, %s51
    %p53 = scmp.eq.s32.totalorder %s15, 0
    %p54 = por %p52, %p53
    %s56 = sadd.s32 %s55, 1
    %p59 = scmp.eq.s32.totalorder %s9, 1
    %p60 = scmp.ne.s32.totalorder %s55, %s57
    %p61 = scmp.eq.s32.totalorder %s9, 0
    %p62 = por %p60, %p61
    %p63 = scmp.ne.s32.totalorder %s55, %s57
    %p64 = scmp.eq.s32.totalorder %s14, 1
    %p65 = por %p63, %p64
    %p66 = scmp.ne.s32.totalorder %s57, %s58
    %p67 = scmp.eq.s32.totalorder %s14, 0
    %p68 = por %p66, %p67
    %p69 = scmp.ne.s32.totalorder %s57, %s58
    %p70 = scmp.eq.s32.totalorder %s15, 1
    %p71 = por %p69, %p70
    %p73 = scmp.ne.s32.totalorder %s58, %s72
    %p74 = scmp.eq.s32.totalorder %s15, 0
    %p75 = por %p73, %p74
    %s77 = sadd.s32 %s76, 1
    %p80 = scmp.eq.s32.totalorder %s9, 1
    %p81 = scmp.ne.s32.totalorder %s76, %s78
    %p82 = scmp.eq.s32.totalorder %s9, 0
    %p83 = por %p81, %p82
    %p84 = scmp.ne.s32.totalorder %s76, %s78
    %p85 = scmp.eq.s32.totalorder %s14, 1
    %p86 = por %p84, %p85
    %p87 = scmp.ne.s32.totalorder %s78, %s79
    %p88 = scmp.eq.s32.totalorder %s14, 0
    %p89 = por %p87, %p88
    %p90 = scmp.ne.s32.totalorder %s78, %s79
    %p91 = scmp.eq.s32.totalorder %s15, 1
    %p92 = por %p90, %p91
    %p94 = scmp.ne.s32.totalorder %s79, %s93
    %p95 = scmp.eq.s32.totalorder %s15, 0
    %p96 = por %p94, %p95
    %s97 = ssub.s32 %s16, %s28
    %s98 = ssub.s32 %s17, %s24
    %s99 = sor.u32 %s97, %s98
    %p100 = scmp.eq.s32.totalorder %s99, 0
    %s102 = sadd.s32 %s101, 1
    %s103 = scalar_select %p100, %s101, %s102
    %p106 = pneg %p100
    %p107 = scmp.eq.s32.totalorder %s9, 1
    %p108 = por %p106, %p107
    %p109 = scmp.ne.s32.totalorder %s101, %s104
    %p110 = scmp.eq.s32.totalorder %s9, 0
    %p111 = por %p109, %p110
    %p112 = scmp.ne.s32.totalorder %s101, %s104
    %p113 = scmp.eq.s32.totalorder %s14, 1
    %p114 = por %p112, %p113
    %p115 = scmp.ne.s32.totalorder %s104, %s105
    %p116 = scmp.eq.s32.totalorder %s14, 0
    %p117 = por %p115, %p116
    %p118 = scmp.ne.s32.totalorder %s104, %s105
    %p119 = scmp.eq.s32.totalorder %s15, 1
    %p120 = por %p118, %p119
    %p122 = scmp.ne.s32.totalorder %s105, %s121
    %p123 = scmp.eq.s32.totalorder %s15, 0
    %p124 = por %p122, %p123
    %p125 = scmp.le.s32.totalorder 1, %s9
    %p126 = scmp.lt.s32.totalorder %s9, 3
    %p127 = pnand %p125, %p126
    %p128 = pneg %p127
    // Predicated region
    $region9: #{forward.6} parent=5 // pred_check
      _
    $region10: #{forward.6} parent=5 // pred_check_branch
      %130 = sbr.rel (%p127) target = $region12
    $region11: #{forward.6} parent=5 // pred_region
      %s131 = ssub.s32 %s9, 1
      // Predicated region
      $region13: #{forward.6} parent=11 // pred_check
        %p132 = pneg %p68
      $region14: #{forward.6} parent=11 // pred_check_branch
        %134 = sbr.rel (%p132) target = $region16
      $region15: #{forward.6} parent=11 // pred_region
        _
      $region16: #{forward.6} parent=11 // pred_fallthru
        _
      // Predicated region
      $region17: #{forward.6} parent=11 // pred_check
        %p135 = pneg %p89
      $region18: #{forward.6} parent=11 // pred_check_branch
        %137 = sbr.rel (%p135) target = $region20
      $region19: #{forward.6} parent=11 // pred_region
        _
      $region20: #{forward.6} parent=11 // pred_fallthru
        _
    $region12: #{forward.6} parent=5 // pred_fallthru
      _
    %p138 = scmp.lt.s32.totalorder %s9, 2
    // Predicated region
    $region21: #{forward.6} parent=5 // pred_check
      %p139 = pneg %p138
    $region22: #{forward.6} parent=5 // pred_check_branch
      %141 = sbr.rel (%p139) target = $region24
    $region23: #{forward.6} parent=5 // pred_region
      // Predicated region
      $region25: #{forward.6} parent=23 // pred_check
        %p142 = pneg %p41
      $region26: #{forward.6} parent=23 // pred_check_branch
        %144 = sbr.rel (%p142) target = $region28
      $region27: #{forward.6} parent=23 // pred_region
        %p145 = scmp.lt.s32.totalorder %s16, 1
        %s146 = scalar_select %p145, %s16, 1
        %s147 = smul.addr %s146, 72
        %s148 = smul.addr %s147, 4
        %s149 = scalar_lea.vmem %s0, %s148
      $region28: #{forward.6} parent=23 // pred_fallthru
        _
    $region24: #{forward.6} parent=5 // pred_fallthru
      _
    %p150 = scmp.le.s32.totalorder 1, %s9
    %p151 = scmp.lt.s32.totalorder %s9, 3
    %p152 = pnand %p150, %p151
    %p153 = pneg %p152
    // Predicated region
    $region29: #{forward.6} parent=5 // pred_check
      _
    $region30: #{forward.6} parent=5 // pred_check_branch
      %155 = sbr.rel (%p152) target = $region32
    $region31: #{forward.6} parent=5 // pred_region
      %s156 = ssub.s32 %s9, 1
      %p157 = scmp.lt.s32.totalorder %s18, 1
      %s158 = scalar_select %p157, %s18, 1
      %s159 = smul.addr %s158, 72
      %s160 = smul.addr %s159, 4
      %s161 = scalar_lea.vmem %s0, %s160
      %p162 = pneg %p47
      %p163 = pneg %p44
      %p164 = pneg %p68
      %p165 = pneg %p65
      %p166 = pneg %p89
      %p167 = pneg %p86
      %p168 = pneg %p117
      %p169 = pneg %p114
      %s170 = smul.u32 8, %s19
      %p171 = scmp.lt.s32.totalorder %s18, 1
      %s172 = scalar_select %p171, %s18, 1
      %p173 = scmp.lt.s32.totalorder %s170, 7
      %s174 = scalar_select %p173, %s170, 7
      %s175 = smul.addr %s172, 8
      %s176 = sadd.s32 %s174, %s175
      %s177 = smul.addr %s176, 4
      %s178 = scalar_lea.vmem %s3, %s177
      %p179 = scmp.lt.s32.totalorder %s18, 1
      %s180 = scalar_select %p179, %s18, 1
      %s181 = smul.addr %s180, 72
      %s182 = smul.addr %s181, 4
      %s183 = scalar_lea.vmem %s0, %s182
      %s184 = smul.u32 8, %s19
      %p185 = scmp.lt.s32.totalorder %s18, 1
      %s186 = scalar_select %p185, %s18, 1
      %p187 = scmp.lt.s32.totalorder %s184, 7
      %s188 = scalar_select %p187, %s184, 7
      %s189 = smul.addr %s186, 8
      %s190 = sadd.s32 %s188, %s189
      %s191 = smul.addr %s190, 4
      %s192 = scalar_lea.vmem %s3, %s191
      %s193 = smul.u32 8, %s19
      %s195 = smul.u32 %s19, 8
      %s196 = smul.u32 %s195, 8
      %s197 = smul.addr %s196, 4
      %s198 = scalar_lea.vmem %s183, %s197
      %v199 = vld [vmem:[%s198] sm:$0xf]
      %v200 = vld [vmem:[%s198 + $0x20] sm:$0xf]
      %v201 = vld [vmem:[%s198 + $0x40] sm:$0xf]
      %v202 = vld [vmem:[%s198 + $0x60] sm:$0xf]
      %v203 = vld [vmem:[%s198 + $0x80] sm:$0xf]
      %v204 = vld [vmem:[%s198 + $0xa0] sm:$0xf]
      %v205 = vld [vmem:[%s198 + $0xc0] sm:$0xf]
      %v206 = vld [vmem:[%s198 + $0xe0] sm:$0xf]
      %v207 = vld [vmem:[%s198 + $0x4] sm:$0xf]
      %v208 = vld [vmem:[%s198 + $0x24] sm:$0xf]
      %v209 = vld [vmem:[%s198 + $0x44] sm:$0xf]
      %v210 = vld [vmem:[%s198 + $0x64] sm:$0xf]
      %v211 = vld [vmem:[%s198 + $0x84] sm:$0xf]
      %v212 = vld [vmem:[%s198 + $0xa4] sm:$0xf]
      %v213 = vld [vmem:[%s198 + $0xc4] sm:$0xf]
      %v214 = vld [vmem:[%s198 + $0xe4] sm:$0xf]
      %v215 = vld [vmem:[%s198 + $0x10] sm:$0x1]
      %v216 = vld [vmem:[%s198 + $0x30] sm:$0x1]
      %v217 = vld [vmem:[%s198 + $0x50] sm:$0x1]
      %v218 = vld [vmem:[%s198 + $0x70] sm:$0x1]
      %v219 = vld [vmem:[%s198 + $0x90] sm:$0x1]
      %v220 = vld [vmem:[%s198 + $0xb0] sm:$0x1]
      %v221 = vld [vmem:[%s198 + $0xd0] sm:$0x1]
      %v222 = vld [vmem:[%s198 + $0xf0] sm:$0x1]
      %v223 = vld [vmem:[%s198 + $0x8] sm:$0xf]
      %v224 = vld [vmem:[%s198 + $0x28] sm:$0xf]
      %v225 = vld [vmem:[%s198 + $0x48] sm:$0xf]
      %v226 = vld [vmem:[%s198 + $0x68] sm:$0xf]
      %v227 = vld [vmem:[%s198 + $0x88] sm:$0xf]
      %v228 = vld [vmem:[%s198 + $0xa8] sm:$0xf]
      %v229 = vld [vmem:[%s198 + $0xc8] sm:$0xf]
      %v230 = vld [vmem:[%s198 + $0xe8] sm:$0xf]
      %v231 = vld [vmem:[%s198 + $0xc] sm:$0xf]
      %v232 = vld [vmem:[%s198 + $0x2c] sm:$0xf]
      %v233 = vld [vmem:[%s198 + $0x4c] sm:$0xf]
      %v234 = vld [vmem:[%s198 + $0x6c] sm:$0xf]
      %v235 = vld [vmem:[%s198 + $0x8c] sm:$0xf]
      %v236 = vld [vmem:[%s198 + $0xac] sm:$0xf]
      %v237 = vld [vmem:[%s198 + $0xcc] sm:$0xf]
      %v238 = vld [vmem:[%s198 + $0xec] sm:$0xf]
      %v239 = vld [vmem:[%s198 + $0x18] sm:$0x1]
      %v240 = vld [vmem:[%s198 + $0x38] sm:$0x1]
      %v241 = vld [vmem:[%s198 + $0x58] sm:$0x1]
      %v242 = vld [vmem:[%s198 + $0x78] sm:$0x1]
      %v243 = vld [vmem:[%s198 + $0x98] sm:$0x1]
      %v244 = vld [vmem:[%s198 + $0xb8] sm:$0x1]
      %v245 = vld [vmem:[%s198 + $0xd8] sm:$0x1]
      %v246 = vld [vmem:[%s198 + $0xf8] sm:$0x1]
      %s247 = sadd.s32 %s195, 1
      %s248 = smul.u32 %s247, 8
      %s249 = smul.addr %s248, 4
      %s250 = scalar_lea.vmem %s183, %s249
      %v251 = vld [vmem:[%s250] sm:$0xf]
      %v252 = vld [vmem:[%s250 + $0x20] sm:$0xf]
      %v253 = vld [vmem:[%s250 + $0x40] sm:$0xf]
      %v254 = vld [vmem:[%s250 + $0x60] sm:$0xf]
      %v255 = vld [vmem:[%s250 + $0x80] sm:$0xf]
      %v256 = vld [vmem:[%s250 + $0xa0] sm:$0xf]
      %v257 = vld [vmem:[%s250 + $0xc0] sm:$0xf]
      %v258 = vld [vmem:[%s250 + $0xe0] sm:$0xf]
      %v259 = vld [vmem:[%s250 + $0x4] sm:$0xf]
      %v260 = vld [vmem:[%s250 + $0x24] sm:$0xf]
      %v261 = vld [vmem:[%s250 + $0x44] sm:$0xf]
      %v262 = vld [vmem:[%s250 + $0x64] sm:$0xf]
      %v263 = vld [vmem:[%s250 + $0x84] sm:$0xf]
      %v264 = vld [vmem:[%s250 + $0xa4] sm:$0xf]
      %v265 = vld [vmem:[%s250 + $0xc4] sm:$0xf]
      %v266 = vld [vmem:[%s250 + $0xe4] sm:$0xf]
      %v267 = vld [vmem:[%s250 + $0x10] sm:$0x1]
      %v268 = vld [vmem:[%s250 + $0x30] sm:$0x1]
      %v269 = vld [vmem:[%s250 + $0x50] sm:$0x1]
      %v270 = vld [vmem:[%s250 + $0x70] sm:$0x1]
      %v271 = vld [vmem:[%s250 + $0x90] sm:$0x1]
      %v272 = vld [vmem:[%s250 + $0xb0] sm:$0x1]
      %v273 = vld [vmem:[%s250 + $0xd0] sm:$0x1]
      %v274 = vld [vmem:[%s250 + $0xf0] sm:$0x1]
      %v291 = vunpack.c.l.b16 %v199
      %v292 = vunpack.c.l.b16 %v215
      %v293 = vunpack.c.l.b16 %v200
      %v294 = vunpack.c.l.b16 %v216
      %v295 = vunpack.c.l.b16 %v201
      %v296 = vunpack.c.l.b16 %v217
      %v297 = vunpack.c.l.b16 %v202
      %v298 = vunpack.c.l.b16 %v218
      %v299 = vunpack.c.l.b16 %v203
      %v300 = vunpack.c.l.b16 %v219
      %v301 = vunpack.c.l.b16 %v204
      %v302 = vunpack.c.l.b16 %v220
      %v303 = vunpack.c.l.b16 %v205
      %v304 = vunpack.c.l.b16 %v221
      %v305 = vunpack.c.l.b16 %v206
      %v306 = vunpack.c.l.b16 %v222
      %v307 = vpack.c.b16 %v292, %v291
      %v308 = vpack.c.b16 %v294, %v293
      %v309 = vpack.c.b16 %v296, %v295
      %v310 = vpack.c.b16 %v298, %v297
      %v311 = vpack.c.b16 %v300, %v299
      %v312 = vpack.c.b16 %v302, %v301
      %v313 = vpack.c.b16 %v304, %v303
      %v314 = vpack.c.b16 %v306, %v305
      %v316 = vshrl.u32 %v307, 16
      %v318 = vshll.u32 %v307, 16
      %v320 = vrot.slane %v318, 1
      %v321 = vor.u32 %v316, %v320
      %v323 = vshrl.u32 %v308, 16
      %v325 = vshll.u32 %v308, 16
      %v327 = vrot.slane %v325, 1
      %v328 = vor.u32 %v323, %v327
      %v330 = vshrl.u32 %v309, 16
      %v332 = vshll.u32 %v309, 16
      %v334 = vrot.slane %v332, 1
      %v335 = vor.u32 %v330, %v334
      %v337 = vshrl.u32 %v310, 16
      %v339 = vshll.u32 %v310, 16
      %v341 = vrot.slane %v339, 1
      %v342 = vor.u32 %v337, %v341
      %v344 = vshrl.u32 %v311, 16
      %v346 = vshll.u32 %v311, 16
      %v348 = vrot.slane %v346, 1
      %v349 = vor.u32 %v344, %v348
      %v351 = vshrl.u32 %v312, 16
      %v353 = vshll.u32 %v312, 16
      %v355 = vrot.slane %v353, 1
      %v356 = vor.u32 %v351, %v355
      %v358 = vshrl.u32 %v313, 16
      %v360 = vshll.u32 %v313, 16
      %v362 = vrot.slane %v360, 1
      %v363 = vor.u32 %v358, %v362
      %v365 = vshrl.u32 %v314, 16
      %v367 = vshll.u32 %v314, 16
      %v369 = vrot.slane %v367, 1
      %v370 = vor.u32 %v365, %v369
      %v387 = vunpack.c.l.b16 %v223
      %v388 = vunpack.c.l.b16 %v239
      %v389 = vunpack.c.l.b16 %v224
      %v390 = vunpack.c.l.b16 %v240
      %v391 = vunpack.c.l.b16 %v225
      %v392 = vunpack.c.l.b16 %v241
      %v393 = vunpack.c.l.b16 %v226
      %v394 = vunpack.c.l.b16 %v242
      %v395 = vunpack.c.l.b16 %v227
      %v396 = vunpack.c.l.b16 %v243
      %v397 = vunpack.c.l.b16 %v228
      %v398 = vunpack.c.l.b16 %v244
      %v399 = vunpack.c.l.b16 %v229
      %v400 = vunpack.c.l.b16 %v245
      %v401 = vunpack.c.l.b16 %v230
      %v402 = vunpack.c.l.b16 %v246
      %v403 = vpack.c.b16 %v388, %v387
      %v404 = vpack.c.b16 %v390, %v389
      %v405 = vpack.c.b16 %v392, %v391
      %v406 = vpack.c.b16 %v394, %v393
      %v407 = vpack.c.b16 %v396, %v395
      %v408 = vpack.c.b16 %v398, %v397
      %v409 = vpack.c.b16 %v400, %v399
      %v410 = vpack.c.b16 %v402, %v401
      %v412 = vshrl.u32 %v403, 16
      %v414 = vshll.u32 %v403, 16
      %v416 = vrot.slane %v414, 1
      %v417 = vor.u32 %v412, %v416
      %v419 = vshrl.u32 %v404, 16
      %v421 = vshll.u32 %v404, 16
      %v423 = vrot.slane %v421, 1
      %v424 = vor.u32 %v419, %v423
      %v426 = vshrl.u32 %v405, 16
      %v428 = vshll.u32 %v405, 16
      %v430 = vrot.slane %v428, 1
      %v431 = vor.u32 %v426, %v430
      %v433 = vshrl.u32 %v406, 16
      %v435 = vshll.u32 %v406, 16
      %v437 = vrot.slane %v435, 1
      %v438 = vor.u32 %v433, %v437
      %v440 = vshrl.u32 %v407, 16
      %v442 = vshll.u32 %v407, 16
      %v444 = vrot.slane %v442, 1
      %v445 = vor.u32 %v440, %v444
      %v447 = vshrl.u32 %v408, 16
      %v449 = vshll.u32 %v408, 16
      %v451 = vrot.slane %v449, 1
      %v452 = vor.u32 %v447, %v451
      %v454 = vshrl.u32 %v409, 16
      %v456 = vshll.u32 %v409, 16
      %v458 = vrot.slane %v456, 1
      %v459 = vor.u32 %v454, %v458
      %v461 = vshrl.u32 %v410, 16
      %v463 = vshll.u32 %v410, 16
      %v465 = vrot.slane %v463, 1
      %v466 = vor.u32 %v461, %v465
      %v483 = vunpack.c.l.b16 %v251
      %v484 = vunpack.c.l.b16 %v267
      %v485 = vunpack.c.l.b16 %v252
      %v486 = vunpack.c.l.b16 %v268
      %v487 = vunpack.c.l.b16 %v253
      %v488 = vunpack.c.l.b16 %v269
      %v489 = vunpack.c.l.b16 %v254
      %v490 = vunpack.c.l.b16 %v270
      %v491 = vunpack.c.l.b16 %v255
      %v492 = vunpack.c.l.b16 %v271
      %v493 = vunpack.c.l.b16 %v256
      %v494 = vunpack.c.l.b16 %v272
      %v495 = vunpack.c.l.b16 %v257
      %v496 = vunpack.c.l.b16 %v273
      %v497 = vunpack.c.l.b16 %v258
      %v498 = vunpack.c.l.b16 %v274
      %v499 = vpack.c.b16 %v484, %v483
      %v500 = vpack.c.b16 %v486, %v485
      %v501 = vpack.c.b16 %v488, %v487
      %v502 = vpack.c.b16 %v490, %v489
      %v503 = vpack.c.b16 %v492, %v491
      %v504 = vpack.c.b16 %v494, %v493
      %v505 = vpack.c.b16 %v496, %v495
      %v506 = vpack.c.b16 %v498, %v497
      %v508 = vshrl.u32 %v499, 16
      %v510 = vshll.u32 %v499, 16
      %v512 = vrot.slane %v510, 1
      %v513 = vor.u32 %v508, %v512
      %v515 = vshrl.u32 %v500, 16
      %v517 = vshll.u32 %v500, 16
      %v519 = vrot.slane %v517, 1
      %v520 = vor.u32 %v515, %v519
      %v522 = vshrl.u32 %v501, 16
      %v524 = vshll.u32 %v501, 16
      %v526 = vrot.slane %v524, 1
      %v527 = vor.u32 %v522, %v526
      %v529 = vshrl.u32 %v502, 16
      %v531 = vshll.u32 %v502, 16
      %v533 = vrot.slane %v531, 1
      %v534 = vor.u32 %v529, %v533
      %v536 = vshrl.u32 %v503, 16
      %v538 = vshll.u32 %v503, 16
      %v540 = vrot.slane %v538, 1
      %v541 = vor.u32 %v536, %v540
      %v543 = vshrl.u32 %v504, 16
      %v545 = vshll.u32 %v504, 16
      %v547 = vrot.slane %v545, 1
      %v548 = vor.u32 %v543, %v547
      %v550 = vshrl.u32 %v505, 16
      %v552 = vshll.u32 %v505, 16
      %v554 = vrot.slane %v552, 1
      %v555 = vor.u32 %v550, %v554
      %v557 = vshrl.u32 %v506, 16
      %v559 = vshll.u32 %v506, 16
      %v561 = vrot.slane %v559, 1
      %v562 = vor.u32 %v557, %v561
      %v587 = vunpack.c.l.b16 %v207
      %v588 = vunpack.c.l.b16 %v321
      %v589 = vunpack.c.l.b16 %v231
      %v590 = vunpack.c.l.b16 %v417
      %v591 = vunpack.c.l.b16 %v259
      %v592 = vunpack.c.l.b16 %v513
      %v593 = vunpack.c.l.b16 %v208
      %v594 = vunpack.c.l.b16 %v328
      %v595 = vunpack.c.l.b16 %v232
      %v596 = vunpack.c.l.b16 %v424
      %v597 = vunpack.c.l.b16 %v260
      %v598 = vunpack.c.l.b16 %v520
      %v599 = vunpack.c.l.b16 %v209
      %v600 = vunpack.c.l.b16 %v335
      %v601 = vunpack.c.l.b16 %v233
      %v602 = vunpack.c.l.b16 %v431
      %v603 = vunpack.c.l.b16 %v261
      %v604 = vunpack.c.l.b16 %v527
      %v605 = vunpack.c.l.b16 %v210
      %v606 = vunpack.c.l.b16 %v342
      %v607 = vunpack.c.l.b16 %v234
      %v608 = vunpack.c.l.b16 %v438
      %v609 = vunpack.c.l.b16 %v262
      %v610 = vunpack.c.l.b16 %v534
      %v611 = vunpack.c.l.b16 %v211
      %v612 = vunpack.c.l.b16 %v349
      %v613 = vunpack.c.l.b16 %v235
      %v614 = vunpack.c.l.b16 %v445
      %v615 = vunpack.c.l.b16 %v263
      %v616 = vunpack.c.l.b16 %v541
      %v617 = vunpack.c.l.b16 %v212
      %v618 = vunpack.c.l.b16 %v356
      %v619 = vunpack.c.l.b16 %v236
      %v620 = vunpack.c.l.b16 %v452
      %v621 = vunpack.c.l.b16 %v264
      %v622 = vunpack.c.l.b16 %v548
      %v623 = vunpack.c.l.b16 %v213
      %v624 = vunpack.c.l.b16 %v363
      %v625 = vunpack.c.l.b16 %v237
      %v626 = vunpack.c.l.b16 %v459
      %v627 = vunpack.c.l.b16 %v265
      %v628 = vunpack.c.l.b16 %v555
      %v629 = vunpack.c.l.b16 %v214
      %v630 = vunpack.c.l.b16 %v370
      %v631 = vunpack.c.l.b16 %v238
      %v632 = vunpack.c.l.b16 %v466
      %v633 = vunpack.c.l.b16 %v266
      %v634 = vunpack.c.l.b16 %v562
      %v635 = vld [vmem:[%s1] sm:$0xf]
      %v636 = vld [vmem:[%s1 + $0x4] sm:$0xf]
      %v637 = vld [vmem:[%s1 + $0x8] sm:$0xf]
      %v638 = vld [vmem:[%s1 + $0xc] sm:$0xf]
      %v639 = vld [vmem:[%s1 + $0x10] sm:$0xf]
      %v640 = vld [vmem:[%s1 + $0x14] sm:$0xf]
      %v641 = vld [vmem:[%s1 + $0x18] sm:$0xf]
      %v642 = vld [vmem:[%s1 + $0x1c] sm:$0xf]
      %v643 = vld [vmem:[%s1 + $0x20] sm:$0xf]
      %v644 = vld [vmem:[%s1 + $0x24] sm:$0xf]
      %v645 = vld [vmem:[%s1 + $0x28] sm:$0xf]
      %v646 = vld [vmem:[%s1 + $0x2c] sm:$0xf]
      %v647 = vld [vmem:[%s1 + $0x30] sm:$0xf]
      %v648 = vld [vmem:[%s1 + $0x34] sm:$0xf]
      %v649 = vld [vmem:[%s1 + $0x38] sm:$0xf]
      %v650 = vld [vmem:[%s1 + $0x3c] sm:$0xf]
      %v651 = vld [vmem:[%s1 + $0x40] sm:$0xf]
      %v652 = vld [vmem:[%s1 + $0x44] sm:$0xf]
      %v653 = vld [vmem:[%s1 + $0x48] sm:$0xf]
      %v654 = vld [vmem:[%s1 + $0x4c] sm:$0xf]
      %v655 = vld [vmem:[%s1 + $0x50] sm:$0xf]
      %v656 = vld [vmem:[%s1 + $0x54] sm:$0xf]
      %v657 = vld [vmem:[%s1 + $0x58] sm:$0xf]
      %v658 = vld [vmem:[%s1 + $0x5c] sm:$0xf]
      %v659 = vld [vmem:[%s1 + $0x60] sm:$0xf]
      %v660 = vld [vmem:[%s1 + $0x64] sm:$0xf]
      %v661 = vld [vmem:[%s1 + $0x68] sm:$0xf]
      %v662 = vld [vmem:[%s1 + $0x6c] sm:$0xf]
      %v663 = vld [vmem:[%s1 + $0x70] sm:$0xf]
      %v664 = vld [vmem:[%s1 + $0x74] sm:$0xf]
      %v665 = vld [vmem:[%s1 + $0x78] sm:$0xf]
      %v666 = vld [vmem:[%s1 + $0x7c] sm:$0xf]
      %v667 = vld [vmem:[%s1 + $0x80] sm:$0xf]
      %v668 = vld [vmem:[%s1 + $0x84] sm:$0xf]
      %v669 = vld [vmem:[%s1 + $0x88] sm:$0xf]
      %v670 = vld [vmem:[%s1 + $0x8c] sm:$0xf]
      %v671 = vld [vmem:[%s1 + $0x90] sm:$0xf]
      %v672 = vld [vmem:[%s1 + $0x94] sm:$0xf]
      %v673 = vld [vmem:[%s1 + $0x98] sm:$0xf]
      %v674 = vld [vmem:[%s1 + $0x9c] sm:$0xf]
      %v675 = vld [vmem:[%s1 + $0xa0] sm:$0xf]
      %v676 = vld [vmem:[%s1 + $0xa4] sm:$0xf]
      %v677 = vld [vmem:[%s1 + $0xa8] sm:$0xf]
      %v678 = vld [vmem:[%s1 + $0xac] sm:$0xf]
      %v679 = vld [vmem:[%s1 + $0xb0] sm:$0xf]
      %v680 = vld [vmem:[%s1 + $0xb4] sm:$0xf]
      %v681 = vld [vmem:[%s1 + $0xb8] sm:$0xf]
      %v682 = vld [vmem:[%s1 + $0xbc] sm:$0xf]
      %v683 = vld [vmem:[%s1 + $0xc0] sm:$0xf]
      %v684 = vld [vmem:[%s1 + $0xc4] sm:$0xf]
      %v685 = vld [vmem:[%s1 + $0xc8] sm:$0xf]
      %v686 = vld [vmem:[%s1 + $0xcc] sm:$0xf]
      %v687 = vld [vmem:[%s1 + $0xd0] sm:$0xf]
      %v688 = vld [vmem:[%s1 + $0xd4] sm:$0xf]
      %v689 = vld [vmem:[%s1 + $0xd8] sm:$0xf]
      %v690 = vld [vmem:[%s1 + $0xdc] sm:$0xf]
      %v691 = vld [vmem:[%s1 + $0xe0] sm:$0xf]
      %v692 = vld [vmem:[%s1 + $0xe4] sm:$0xf]
      %v693 = vld [vmem:[%s1 + $0xe8] sm:$0xf]
      %v694 = vld [vmem:[%s1 + $0xec] sm:$0xf]
      %v695 = vld [vmem:[%s1 + $0xf0] sm:$0xf]
      %v696 = vld [vmem:[%s1 + $0xf4] sm:$0xf]
      %v697 = vld [vmem:[%s1 + $0xf8] sm:$0xf]
      %v698 = vld [vmem:[%s1 + $0xfc] sm:$0xf]
      %v699 = vld [vmem:[%s1 + $0x100] sm:$0xf]
      %v700 = vld [vmem:[%s1 + $0x104] sm:$0xf]
      %v701 = vld [vmem:[%s1 + $0x108] sm:$0xf]
      %v702 = vld [vmem:[%s1 + $0x10c] sm:$0xf]
      %v703 = vld [vmem:[%s1 + $0x110] sm:$0xf]
      %v704 = vld [vmem:[%s1 + $0x114] sm:$0xf]
      %v705 = vld [vmem:[%s1 + $0x118] sm:$0xf]
      %v706 = vld [vmem:[%s1 + $0x11c] sm:$0xf]
      %v707 = vld [vmem:[%s1 + $0x120] sm:$0xf]
      %v708 = vld [vmem:[%s1 + $0x124] sm:$0xf]
      %v709 = vld [vmem:[%s1 + $0x128] sm:$0xf]
      %v710 = vld [vmem:[%s1 + $0x12c] sm:$0xf]
      %v711 = vld [vmem:[%s1 + $0x130] sm:$0xf]
      %v712 = vld [vmem:[%s1 + $0x134] sm:$0xf]
      %v713 = vld [vmem:[%s1 + $0x138] sm:$0xf]
      %v714 = vld [vmem:[%s1 + $0x13c] sm:$0xf]
      %v715 = vld [vmem:[%s1 + $0x140] sm:$0xf]
      %v716 = vld [vmem:[%s1 + $0x144] sm:$0xf]
      %v717 = vld [vmem:[%s1 + $0x148] sm:$0xf]
      %v718 = vld [vmem:[%s1 + $0x14c] sm:$0xf]
      %v719 = vld [vmem:[%s1 + $0x150] sm:$0xf]
      %v720 = vld [vmem:[%s1 + $0x154] sm:$0xf]
      %v721 = vld [vmem:[%s1 + $0x158] sm:$0xf]
      %v722 = vld [vmem:[%s1 + $0x15c] sm:$0xf]
      %v723 = vld [vmem:[%s1 + $0x160] sm:$0xf]
      %v724 = vld [vmem:[%s1 + $0x164] sm:$0xf]
      %v725 = vld [vmem:[%s1 + $0x168] sm:$0xf]
      %v726 = vld [vmem:[%s1 + $0x16c] sm:$0xf]
      %v727 = vld [vmem:[%s1 + $0x170] sm:$0xf]
      %v728 = vld [vmem:[%s1 + $0x174] sm:$0xf]
      %v729 = vld [vmem:[%s1 + $0x178] sm:$0xf]
      %v730 = vld [vmem:[%s1 + $0x17c] sm:$0xf]
      %v731 = vld [vmem:[%s1 + $0x180] sm:$0xf]
      %v732 = vld [vmem:[%s1 + $0x184] sm:$0xf]
      %v733 = vld [vmem:[%s1 + $0x188] sm:$0xf]
      %v734 = vld [vmem:[%s1 + $0x18c] sm:$0xf]
      %v735 = vld [vmem:[%s1 + $0x190] sm:$0xf]
      %v736 = vld [vmem:[%s1 + $0x194] sm:$0xf]
      %v737 = vld [vmem:[%s1 + $0x198] sm:$0xf]
      %v738 = vld [vmem:[%s1 + $0x19c] sm:$0xf]
      %v739 = vld [vmem:[%s1 + $0x1a0] sm:$0xf]
      %v740 = vld [vmem:[%s1 + $0x1a4] sm:$0xf]
      %v741 = vld [vmem:[%s1 + $0x1a8] sm:$0xf]
      %v742 = vld [vmem:[%s1 + $0x1ac] sm:$0xf]
      %v743 = vld [vmem:[%s1 + $0x1b0] sm:$0xf]
      %v744 = vld [vmem:[%s1 + $0x1b4] sm:$0xf]
      %v745 = vld [vmem:[%s1 + $0x1b8] sm:$0xf]
      %v746 = vld [vmem:[%s1 + $0x1bc] sm:$0xf]
      %v747 = vld [vmem:[%s1 + $0x1c0] sm:$0xf]
      %v748 = vld [vmem:[%s1 + $0x1c4] sm:$0xf]
      %v749 = vld [vmem:[%s1 + $0x1c8] sm:$0xf]
      %v750 = vld [vmem:[%s1 + $0x1cc] sm:$0xf]
      %v751 = vld [vmem:[%s1 + $0x1d0] sm:$0xf]
      %v752 = vld [vmem:[%s1 + $0x1d4] sm:$0xf]
      %v753 = vld [vmem:[%s1 + $0x1d8] sm:$0xf]
      %v754 = vld [vmem:[%s1 + $0x1dc] sm:$0xf]
      %v755 = vld [vmem:[%s1 + $0x1e0] sm:$0xf]
      %v756 = vld [vmem:[%s1 + $0x1e4] sm:$0xf]
      %v757 = vld [vmem:[%s1 + $0x1e8] sm:$0xf]
      %v758 = vld [vmem:[%s1 + $0x1ec] sm:$0xf]
      %v759 = vld [vmem:[%s1 + $0x1f0] sm:$0xf]
      %v760 = vld [vmem:[%s1 + $0x1f4] sm:$0xf]
      %v761 = vld [vmem:[%s1 + $0x1f8] sm:$0xf]
      %v762 = vld [vmem:[%s1 + $0x1fc] sm:$0xf]
      %v763 = vld [vmem:[%s1 + $0x200] sm:$0xf]
      %v764 = vld [vmem:[%s1 + $0x204] sm:$0xf]
      %v765 = vld [vmem:[%s1 + $0x208] sm:$0xf]
      %v766 = vld [vmem:[%s1 + $0x20c] sm:$0xf]
      %v767 = vld [vmem:[%s1 + $0x210] sm:$0xf]
      %v768 = vld [vmem:[%s1 + $0x214] sm:$0xf]
      %v769 = vld [vmem:[%s1 + $0x218] sm:$0xf]
      %v770 = vld [vmem:[%s1 + $0x21c] sm:$0xf]
      %v771 = vld [vmem:[%s1 + $0x220] sm:$0xf]
      %v772 = vld [vmem:[%s1 + $0x224] sm:$0xf]
      %v773 = vld [vmem:[%s1 + $0x228] sm:$0xf]
      %v774 = vld [vmem:[%s1 + $0x22c] sm:$0xf]
      %v775 = vld [vmem:[%s1 + $0x230] sm:$0xf]
      %v776 = vld [vmem:[%s1 + $0x234] sm:$0xf]
      %v777 = vld [vmem:[%s1 + $0x238] sm:$0xf]
      %v778 = vld [vmem:[%s1 + $0x23c] sm:$0xf]
      %v779 = vld [vmem:[%s2] sm:$0x1]
      %v781 = vlaneseq
      %v782 = vshrl.u32 %v781, 7
      %v783 = vsub.s32 0, %v782
      %v784 = vrot.slane %v779, %v783
      %v786 = vpack.c.b16 %v293, %v291
      %v787 = vpack.c.b16 %v593, %v587
      %v788 = vpack.c.b16 %v594, %v588
      %v789 = vpack.c.b16 %v389, %v387
      %v790 = vpack.c.b16 %v595, %v589
      %v791 = vpack.c.b16 %v596, %v590
      %v792 = vpack.c.b16 %v485, %v483
      %v793 = vpack.c.b16 %v597, %v591
      %v794 = vpack.c.b16 %v598, %v592
      %v795 = vpack.c.b16 %v297, %v295
      %v796 = vpack.c.b16 %v605, %v599
      %v797 = vpack.c.b16 %v606, %v600
      %v798 = vpack.c.b16 %v393, %v391
      %v799 = vpack.c.b16 %v607, %v601
      %v800 = vpack.c.b16 %v608, %v602
      %v801 = vpack.c.b16 %v489, %v487
      %v802 = vpack.c.b16 %v609, %v603
      %v803 = vpack.c.b16 %v610, %v604
      %v804 = vpack.c.b16 %v301, %v299
      %v805 = vpack.c.b16 %v617, %v611
      %v806 = vpack.c.b16 %v618, %v612
      %v807 = vpack.c.b16 %v397, %v395
      %v808 = vpack.c.b16 %v619, %v613
      %v809 = vpack.c.b16 %v620, %v614
      %v810 = vpack.c.b16 %v493, %v491
      %v811 = vpack.c.b16 %v621, %v615
      %v812 = vpack.c.b16 %v622, %v616
      %v813 = vpack.c.b16 %v305, %v303
      %v814 = vpack.c.b16 %v629, %v623
      %v815 = vpack.c.b16 %v630, %v624
      %v816 = vpack.c.b16 %v401, %v399
      %v817 = vpack.c.b16 %v631, %v625
      %v818 = vpack.c.b16 %v632, %v626
      %v819 = vpack.c.b16 %v497, %v495
      %v820 = vpack.c.b16 %v633, %v627
      %v821 = vpack.c.b16 %v634, %v628
      %v1002 = vunpack.c.l.b16 %v635
      %v1003 = vunpack.c.l.b16 %v636
      %v1004 = vunpack.c.l.b16 %v637
      %v1005 = vunpack.c.l.b16 %v638
      %v1006 = vunpack.c.l.b16 %v639
      %v1007 = vunpack.c.l.b16 %v640
      %v1008 = vunpack.c.l.b16 %v641
      %v1009 = vunpack.c.l.b16 %v642
      %v1010 = vunpack.c.l.b16 %v643
      %v1011 = vunpack.c.l.b16 %v644
      %v1012 = vunpack.c.l.b16 %v645
      %v1013 = vunpack.c.l.b16 %v646
      %v1014 = vunpack.c.l.b16 %v647
      %v1015 = vunpack.c.l.b16 %v648
      %v1016 = vunpack.c.l.b16 %v649
      %v1017 = vunpack.c.l.b16 %v650
      %v1018 = vunpack.c.l.b16 %v651
      %v1019 = vunpack.c.l.b16 %v652
      %v1020 = vunpack.c.l.b16 %v653
      %v1021 = vunpack.c.l.b16 %v654
      %v1022 = vunpack.c.l.b16 %v655
      %v1023 = vunpack.c.l.b16 %v656
      %v1024 = vunpack.c.l.b16 %v657
      %v1025 = vunpack.c.l.b16 %v658
      %v1026 = vunpack.c.l.b16 %v659
      %v1027 = vunpack.c.l.b16 %v660
      %v1028 = vunpack.c.l.b16 %v661
      %v1029 = vunpack.c.l.b16 %v662
      %v1030 = vunpack.c.l.b16 %v663
      %v1031 = vunpack.c.l.b16 %v664
      %v1032 = vunpack.c.l.b16 %v665
      %v1033 = vunpack.c.l.b16 %v666
      %v1034 = vunpack.c.l.b16 %v667
      %v1035 = vunpack.c.l.b16 %v668
      %v1036 = vunpack.c.l.b16 %v669
      %v1037 = vunpack.c.l.b16 %v670
      %v1038 = vunpack.c.l.b16 %v671
      %v1039 = vunpack.c.l.b16 %v672
      %v1040 = vunpack.c.l.b16 %v673
      %v1041 = vunpack.c.l.b16 %v674
      %v1042 = vunpack.c.l.b16 %v675
      %v1043 = vunpack.c.l.b16 %v676
      %v1044 = vunpack.c.l.b16 %v677
      %v1045 = vunpack.c.l.b16 %v678
      %v1046 = vunpack.c.l.b16 %v679
      %v1047 = vunpack.c.l.b16 %v680
      %v1048 = vunpack.c.l.b16 %v681
      %v1049 = vunpack.c.l.b16 %v682
      %v1050 = vunpack.c.l.b16 %v683
      %v1051 = vunpack.c.l.b16 %v684
      %v1052 = vunpack.c.l.b16 %v685
      %v1053 = vunpack.c.l.b16 %v686
      %v1054 = vunpack.c.l.b16 %v687
      %v1055 = vunpack.c.l.b16 %v688
      %v1056 = vunpack.c.l.b16 %v689
      %v1057 = vunpack.c.l.b16 %v690
      %v1058 = vunpack.c.l.b16 %v691
      %v1059 = vunpack.c.l.b16 %v692
      %v1060 = vunpack.c.l.b16 %v693
      %v1061 = vunpack.c.l.b16 %v694
      %v1062 = vunpack.c.l.b16 %v695
      %v1063 = vunpack.c.l.b16 %v696
      %v1064 = vunpack.c.l.b16 %v697
      %v1065 = vunpack.c.l.b16 %v698
      %v1066 = vunpack.c.l.b16 %v699
      %v1067 = vunpack.c.l.b16 %v700
      %v1068 = vunpack.c.l.b16 %v701
      %v1069 = vunpack.c.l.b16 %v702
      %v1070 = vunpack.c.l.b16 %v703
      %v1071 = vunpack.c.l.b16 %v704
      %v1072 = vunpack.c.l.b16 %v705
      %v1073 = vunpack.c.l.b16 %v706
      %v1074 = vunpack.c.l.b16 %v707
      %v1075 = vunpack.c.l.b16 %v708
      %v1076 = vunpack.c.l.b16 %v709
      %v1077 = vunpack.c.l.b16 %v710
      %v1078 = vunpack.c.l.b16 %v711
      %v1079 = vunpack.c.l.b16 %v712
      %v1080 = vunpack.c.l.b16 %v713
      %v1081 = vunpack.c.l.b16 %v714
      %v1082 = vunpack.c.l.b16 %v715
      %v1083 = vunpack.c.l.b16 %v716
      %v1084 = vunpack.c.l.b16 %v717
      %v1085 = vunpack.c.l.b16 %v718
      %v1086 = vunpack.c.l.b16 %v719
      %v1087 = vunpack.c.l.b16 %v720
      %v1088 = vunpack.c.l.b16 %v721
      %v1089 = vunpack.c.l.b16 %v722
      %v1090 = vunpack.c.l.b16 %v723
      %v1091 = vunpack.c.l.b16 %v724
      %v1092 = vunpack.c.l.b16 %v725
      %v1093 = vunpack.c.l.b16 %v726
      %v1094 = vunpack.c.l.b16 %v727
      %v1095 = vunpack.c.l.b16 %v728
      %v1096 = vunpack.c.l.b16 %v729
      %v1097 = vunpack.c.l.b16 %v730
      %v1098 = vunpack.c.l.b16 %v731
      %v1099 = vunpack.c.l.b16 %v732
      %v1100 = vunpack.c.l.b16 %v733
      %v1101 = vunpack.c.l.b16 %v734
      %v1102 = vunpack.c.l.b16 %v735
      %v1103 = vunpack.c.l.b16 %v736
      %v1104 = vunpack.c.l.b16 %v737
      %v1105 = vunpack.c.l.b16 %v738
      %v1106 = vunpack.c.l.b16 %v739
      %v1107 = vunpack.c.l.b16 %v740
      %v1108 = vunpack.c.l.b16 %v741
      %v1109 = vunpack.c.l.b16 %v742
      %v1110 = vunpack.c.l.b16 %v743
      %v1111 = vunpack.c.l.b16 %v744
      %v1112 = vunpack.c.l.b16 %v745
      %v1113 = vunpack.c.l.b16 %v746
      %v1114 = vunpack.c.l.b16 %v747
      %v1115 = vunpack.c.l.b16 %v748
      %v1116 = vunpack.c.l.b16 %v749
      %v1117 = vunpack.c.l.b16 %v750
      %v1118 = vunpack.c.l.b16 %v751
      %v1119 = vunpack.c.l.b16 %v752
      %v1120 = vunpack.c.l.b16 %v753
      %v1121 = vunpack.c.l.b16 %v754
      %v1122 = vunpack.c.l.b16 %v755
      %v1123 = vunpack.c.l.b16 %v756
      %v1124 = vunpack.c.l.b16 %v757
      %v1125 = vunpack.c.l.b16 %v758
      %v1126 = vunpack.c.l.b16 %v759
      %v1127 = vunpack.c.l.b16 %v760
      %v1128 = vunpack.c.l.b16 %v761
      %v1129 = vunpack.c.l.b16 %v762
      %v1130 = vunpack.c.l.b16 %v763
      %v1131 = vunpack.c.l.b16 %v764
      %v1132 = vunpack.c.l.b16 %v765
      %v1133 = vunpack.c.l.b16 %v766
      %v1134 = vunpack.c.l.b16 %v767
      %v1135 = vunpack.c.l.b16 %v768
      %v1136 = vunpack.c.l.b16 %v769
      %v1137 = vunpack.c.l.b16 %v770
      %v1138 = vunpack.c.l.b16 %v771
      %v1139 = vunpack.c.l.b16 %v772
      %v1140 = vunpack.c.l.b16 %v773
      %v1141 = vunpack.c.l.b16 %v774
      %v1142 = vunpack.c.l.b16 %v775
      %v1143 = vunpack.c.l.b16 %v776
      %v1144 = vunpack.c.l.b16 %v777
      %v1145 = vunpack.c.l.b16 %v778
      %v1146 = vpack.c.b16 %v1003, %v1002
      %v1147 = vpack.c.b16 %v1005, %v1004
      %v1148 = vpack.c.b16 %v1007, %v1006
      %v1149 = vpack.c.b16 %v1009, %v1008
      %v1150 = vpack.c.b16 %v1011, %v1010
      %v1151 = vpack.c.b16 %v1013, %v1012
      %v1152 = vpack.c.b16 %v1015, %v1014
      %v1153 = vpack.c.b16 %v1017, %v1016
      %v1154 = vpack.c.b16 %v1019, %v1018
      %v1155 = vpack.c.b16 %v1021, %v1020
      %v1156 = vpack.c.b16 %v1023, %v1022
      %v1157 = vpack.c.b16 %v1025, %v1024
      %v1158 = vpack.c.b16 %v1027, %v1026
      %v1159 = vpack.c.b16 %v1029, %v1028
      %v1160 = vpack.c.b16 %v1031, %v1030
      %v1161 = vpack.c.b16 %v1033, %v1032
      %v1162 = vpack.c.b16 %v1035, %v1034
      %v1163 = vpack.c.b16 %v1037, %v1036
      %v1164 = vpack.c.b16 %v1039, %v1038
      %v1165 = vpack.c.b16 %v1041, %v1040
      %v1166 = vpack.c.b16 %v1043, %v1042
      %v1167 = vpack.c.b16 %v1045, %v1044
      %v1168 = vpack.c.b16 %v1047, %v1046
      %v1169 = vpack.c.b16 %v1049, %v1048
      %v1170 = vpack.c.b16 %v1051, %v1050
      %v1171 = vpack.c.b16 %v1053, %v1052
      %v1172 = vpack.c.b16 %v1055, %v1054
      %v1173 = vpack.c.b16 %v1057, %v1056
      %v1174 = vpack.c.b16 %v1059, %v1058
      %v1175 = vpack.c.b16 %v1061, %v1060
      %v1176 = vpack.c.b16 %v1063, %v1062
      %v1177 = vpack.c.b16 %v1065, %v1064
      %v1178 = vpack.c.b16 %v1067, %v1066
      %v1179 = vpack.c.b16 %v1069, %v1068
      %v1180 = vpack.c.b16 %v1071, %v1070
      %v1181 = vpack.c.b16 %v1073, %v1072
      %v1182 = vpack.c.b16 %v1075, %v1074
      %v1183 = vpack.c.b16 %v1077, %v1076
      %v1184 = vpack.c.b16 %v1079, %v1078
      %v1185 = vpack.c.b16 %v1081, %v1080
      %v1186 = vpack.c.b16 %v1083, %v1082
      %v1187 = vpack.c.b16 %v1085, %v1084
      %v1188 = vpack.c.b16 %v1087, %v1086
      %v1189 = vpack.c.b16 %v1089, %v1088
      %v1190 = vpack.c.b16 %v1091, %v1090
      %v1191 = vpack.c.b16 %v1093, %v1092
      %v1192 = vpack.c.b16 %v1095, %v1094
      %v1193 = vpack.c.b16 %v1097, %v1096
      %v1194 = vpack.c.b16 %v1099, %v1098
      %v1195 = vpack.c.b16 %v1101, %v1100
      %v1196 = vpack.c.b16 %v1103, %v1102
      %v1197 = vpack.c.b16 %v1105, %v1104
      %v1198 = vpack.c.b16 %v1107, %v1106
      %v1199 = vpack.c.b16 %v1109, %v1108
      %v1200 = vpack.c.b16 %v1111, %v1110
      %v1201 = vpack.c.b16 %v1113, %v1112
      %v1202 = vpack.c.b16 %v1115, %v1114
      %v1203 = vpack.c.b16 %v1117, %v1116
      %v1204 = vpack.c.b16 %v1119, %v1118
      %v1205 = vpack.c.b16 %v1121, %v1120
      %v1206 = vpack.c.b16 %v1123, %v1122
      %v1207 = vpack.c.b16 %v1125, %v1124
      %v1208 = vpack.c.b16 %v1127, %v1126
      %v1209 = vpack.c.b16 %v1129, %v1128
      %v1210 = vpack.c.b16 %v1131, %v1130
      %v1211 = vpack.c.b16 %v1133, %v1132
      %v1212 = vpack.c.b16 %v1135, %v1134
      %v1213 = vpack.c.b16 %v1137, %v1136
      %v1214 = vpack.c.b16 %v1139, %v1138
      %v1215 = vpack.c.b16 %v1141, %v1140
      %v1216 = vpack.c.b16 %v1143, %v1142
      %v1217 = vpack.c.b16 %v1145, %v1144
      %1290 = vmatprep.subr.bf16.mxu0 0
      %1291 = vmatpush1.bf16.msra.mxu0 %v1146
      %1292 = vmatprep.subr.bf16.mxu0 0
      %1293 = vmatpush1.bf16.msra.mxu0 %v1147
      %1294 = vmatprep.subr.bf16.mxu0 0
      %1295 = vmatpush1.bf16.msra.mxu0 %v1148
      %1296 = vmatprep.subr.bf16.mxu0 0
      %1297 = vmatpush1.bf16.msra.mxu0 %v1149
      %1298 = vmatprep.subr.bf16.mxu0 0
      %1299 = vmatpush1.bf16.msra.mxu0 %v1150
      %1300 = vmatprep.subr.bf16.mxu0 0
      %1301 = vmatpush1.bf16.msra.mxu0 %v1151
      %1302 = vmatprep.subr.bf16.mxu0 0
      %1303 = vmatpush1.bf16.msra.mxu0 %v1152
      %1304 = vmatprep.subr.bf16.mxu0 0
      %1305 = vmatpush1.bf16.msra.mxu0 %v1153
      %1306 = vmatprep.subr.bf16.mxu0 0
      %1307 = vmatpush1.bf16.msra.mxu0 %v1154
      %1308 = vmatprep.subr.bf16.mxu0 0
      %1309 = vmatpush1.bf16.msra.mxu0 %v1155
      %1310 = vmatprep.subr.bf16.mxu0 0
      %1311 = vmatpush1.bf16.msra.mxu0 %v1156
      %1312 = vmatprep.subr.bf16.mxu0 0
      %1313 = vmatpush1.bf16.msra.mxu0 %v1157
      %1314 = vmatprep.subr.bf16.mxu0 0
      %1315 = vmatpush1.bf16.msra.mxu0 %v1158
      %1316 = vmatprep.subr.bf16.mxu0 0
      %1317 = vmatpush1.bf16.msra.mxu0 %v1159
      %1318 = vmatprep.subr.bf16.mxu0 0
      %1319 = vmatpush1.bf16.msra.mxu0 %v1160
      %1320 = vmatprep.subr.bf16.mxu0 0
      %1321 = vmatpush1.bf16.msra.mxu0 %v1161
      %1322 = vmatprep.mubr.bf16.mxu0 %v787
      %1323 = vmatmul.mubr.bf16.gmra.mrb[0].mxu0 %v786
      %v1324 = vpop.f32.mrb[0].mxu0
      %v1325 = vadd.f32 %v784, %v1324
      %v1326 = vpop.f32.mrb[0].mxu0
      %v1327 = vpop.f32.mrb[0].mxu0
      %v1328 = vadd.f32 %v784, %v1327
      %v1329 = vpop.f32.mrb[0].mxu0
      %1330 = vmatprep.mubr.bf16.mxu0 %v796
      %1331 = vmatmul.mubr.bf16.gmra.mrb[0].mxu0 %v795
      %v1332 = vpop.f32.mrb[0].mxu0
      %v1333 = vadd.f32 %v784, %v1332
      %v1334 = vpop.f32.mrb[0].mxu0
      %v1335 = vpop.f32.mrb[0].mxu0
      %v1336 = vadd.f32 %v784, %v1335
      %v1337 = vpop.f32.mrb[0].mxu0
      %1338 = vmatprep.mubr.bf16.mxu0 %v805
      %1339 = vmatmul.mubr.bf16.gmra.mrb[0].mxu0 %v804
      %v1340 = vpop.f32.mrb[0].mxu0
      %v1341 = vadd.f32 %v784, %v1340
      %v1342 = vpop.f32.mrb[0].mxu0
      %v1343 = vpop.f32.mrb[0].mxu0
      %v1344 = vadd.f32 %v784, %v1343
      %v1345 = vpop.f32.mrb[0].mxu0
      %1346 = vmatprep.mubr.bf16.mxu0 %v814
      %1347 = vmatmul.mubr.bf16.gmra.mrb[0].mxu0 %v813
      %v1348 = vpop.f32.mrb[0].mxu0
      %v1349 = vadd.f32 %v784, %v1348
      %v1350 = vpop.f32.mrb[0].mxu0
      %v1351 = vpop.f32.mrb[0].mxu0
      %v1352 = vadd.f32 %v784, %v1351
      %v1353 = vpop.f32.mrb[0].mxu0
      %1354 = vdwg.mxu0
      %1355 = vmatprep.subr.bf16.mxu0 0
      %1356 = vmatpush1.bf16.msra.mxu0 %v1162
      %1357 = vmatprep.subr.bf16.mxu0 0
      %1358 = vmatpush1.bf16.msra.mxu0 %v1163
      %1359 = vmatprep.subr.bf16.mxu0 0
      %1360 = vmatpush1.bf16.msra.mxu0 %v1164
      %1361 = vmatprep.subr.bf16.mxu0 0
      %1362 = vmatpush1.bf16.msra.mxu0 %v1165
      %1363 = vmatprep.subr.bf16.mxu0 0
      %1364 = vmatpush1.bf16.msra.mxu0 %v1166
      %1365 = vmatprep.subr.bf16.mxu0 0
      %1366 = vmatpush1.bf16.msra.mxu0 %v1167
      %1367 = vmatprep.subr.bf16.mxu0 0
      %1368 = vmatpush1.bf16.msra.mxu0 %v1168
      %1369 = vmatprep.subr.bf16.mxu0 0
      %1370 = vmatpush1.bf16.msra.mxu0 %v1169
      %1371 = vmatprep.subr.bf16.mxu0 0
      %1372 = vmatpush1.bf16.msra.mxu0 %v1170
      %1373 = vmatprep.subr.bf16.mxu0 0
      %1374 = vmatpush1.bf16.msra.mxu0 %v1171
      %1375 = vmatprep.subr.bf16.mxu0 0
      %1376 = vmatpush1.bf16.msra.mxu0 %v1172
      %1377 = vmatprep.subr.bf16.mxu0 0
      %1378 = vmatpush1.bf16.msra.mxu0 %v1173
      %1379 = vmatprep.subr.bf16.mxu0 0
      %1380 = vmatpush1.bf16.msra.mxu0 %v1174
      %1381 = vmatprep.subr.bf16.mxu0 0
      %1382 = vmatpush1.bf16.msra.mxu0 %v1175
      %1383 = vmatprep.subr.bf16.mxu0 0
      %1384 = vmatpush1.bf16.msra.mxu0 %v1176
      %1385 = vmatprep.subr.bf16.mxu0 0
      %1386 = vmatpush1.bf16.msra.mxu0 %v1177
      %1387 = vmatprep.mubr.bf16.mxu0 %v789
      %1388 = vmatmul.mubr.bf16.gmra.mrb[0].mxu0 %v788
      %v1389 = vpop.f32.mrb[0].mxu0
      %v1390 = vadd.f32 %v1325, %v1389
      %v1391 = vpop.f32.mrb[0].mxu0
      %v1392 = vpop.f32.mrb[0].mxu0
      %v1393 = vadd.f32 %v1328, %v1392
      %v1394 = vpop.f32.mrb[0].mxu0
      %1395 = vmatprep.mubr.bf16.mxu0 %v798
      %1396 = vmatmul.mubr.bf16.gmra.mrb[0].mxu0 %v797
      %v1397 = vpop.f32.mrb[0].mxu0
      %v1398 = vadd.f32 %v1333, %v1397
      %v1399 = vpop.f32.mrb[0].mxu0
      %v1400 = vpop.f32.mrb[0].mxu0
      %v1401 = vadd.f32 %v1336, %v1400
      %v1402 = vpop.f32.mrb[0].mxu0
      %1403 = vmatprep.mubr.bf16.mxu0 %v807
      %1404 = vmatmul.mubr.bf16.gmra.mrb[0].mxu0 %v806
      %v1405 = vpop.f32.mrb[0].mxu0
      %v1406 = vadd.f32 %v1341, %v1405
      %v1407 = vpop.f32.mrb[0].mxu0
      %v1408 = vpop.f32.mrb[0].mxu0
      %v1409 = vadd.f32 %v1344, %v1408
      %v1410 = vpop.f32.mrb[0].mxu0
      %1411 = vmatprep.mubr.bf16.mxu0 %v816
      %1412 = vmatmul.mubr.bf16.gmra.mrb[0].mxu0 %v815
      %v1413 = vpop.f32.mrb[0].mxu0
      %v1414 = vadd.f32 %v1349, %v1413
      %v1415 = vpop.f32.mrb[0].mxu0
      %v1416 = vpop.f32.mrb[0].mxu0
      %v1417 = vadd.f32 %v1352, %v1416
      %v1418 = vpop.f32.mrb[0].mxu0
      %1419 = vdwg.mxu0
      %1420 = vmatprep.subr.bf16.mxu0 0
      %1421 = vmatpush1.bf16.msra.mxu0 %v1178
      %1422 = vmatprep.subr.bf16.mxu0 0
      %1423 = vmatpush1.bf16.msra.mxu0 %v1179
      %1424 = vmatprep.subr.bf16.mxu0 0
      %1425 = vmatpush1.bf16.msra.mxu0 %v1180
      %1426 = vmatprep.subr.bf16.mxu0 0
      %1427 = vmatpush1.bf16.msra.mxu0 %v1181
      %1428 = vmatprep.subr.bf16.mxu0 0
      %1429 = vmatpush1.bf16.msra.mxu0 %v1182
      %1430 = vmatprep.subr.bf16.mxu0 0
      %1431 = vmatpush1.bf16.msra.mxu0 %v1183
      %1432 = vmatprep.subr.bf16.mxu0 0
      %1433 = vmatpush1.bf16.msra.mxu0 %v1184
      %1434 = vmatprep.subr.bf16.mxu0 0
      %1435 = vmatpush1.bf16.msra.mxu0 %v1185
      %1436 = vmatprep.subr.bf16.mxu0 0
      %1437 = vmatpush1.bf16.msra.mxu0 %v1186
      %1438 = vmatprep.subr.bf16.mxu0 0
      %1439 = vmatpush1.bf16.msra.mxu0 %v1187
      %1440 = vmatprep.subr.bf16.mxu0 0
      %1441 = vmatpush1.bf16.msra.mxu0 %v1188
      %1442 = vmatprep.subr.bf16.mxu0 0
      %1443 = vmatpush1.bf16.msra.mxu0 %v1189
      %1444 = vmatprep.subr.bf16.mxu0 0
      %1445 = vmatpush1.bf16.msra.mxu0 %v1190
      %1446 = vmatprep.subr.bf16.mxu0 0
      %1447 = vmatpush1.bf16.msra.mxu0 %v1191
      %1448 = vmatprep.subr.bf16.mxu0 0
      %1449 = vmatpush1.bf16.msra.mxu0 %v1192
      %1450 = vmatprep.subr.bf16.mxu0 0
      %1451 = vmatpush1.bf16.msra.mxu0 %v1193
      %1452 = vmatprep.mubr.bf16.mxu0 %v791
      %1453 = vmatmul.mubr.bf16.gmra.mrb[0].mxu0 %v790
      %v1454 = vpop.f32.mrb[0].mxu0
      %v1455 = vadd.f32 %v1390, %v1454
      %v1456 = vpop.f32.mrb[0].mxu0
      %v1457 = vpop.f32.mrb[0].mxu0
      %v1458 = vadd.f32 %v1393, %v1457
      %v1459 = vpop.f32.mrb[0].mxu0
      %1460 = vmatprep.mubr.bf16.mxu0 %v800
      %1461 = vmatmul.mubr.bf16.gmra.mrb[0].mxu0 %v799
      %v1462 = vpop.f32.mrb[0].mxu0
      %v1463 = vadd.f32 %v1398, %v1462
      %v1464 = vpop.f32.mrb[0].mxu0
      %v1465 = vpop.f32.mrb[0].mxu0
      %v1466 = vadd.f32 %v1401, %v1465
      %v1467 = vpop.f32.mrb[0].mxu0
      %1468 = vmatprep.mubr.bf16.mxu0 %v809
      %1469 = vmatmul.mubr.bf16.gmra.mrb[0].mxu0 %v808
      %v1470 = vpop.f32.mrb[0].mxu0
      %v1471 = vadd.f32 %v1406, %v1470
      %v1472 = vpop.f32.mrb[0].mxu0
      %v1473 = vpop.f32.mrb[0].mxu0
      %v1474 = vadd.f32 %v1409, %v1473
      %v1475 = vpop.f32.mrb[0].mxu0
      %1476 = vmatprep.mubr.bf16.mxu0 %v818
      %1477 = vmatmul.mubr.bf16.gmra.mrb[0].mxu0 %v817
      %v1478 = vpop.f32.mrb[0].mxu0
      %v1479 = vadd.f32 %v1414, %v1478
      %v1480 = vpop.f32.mrb[0].mxu0
      %v1481 = vpop.f32.mrb[0].mxu0
      %v1482 = vadd.f32 %v1417, %v1481
      %v1483 = vpop.f32.mrb[0].mxu0
      %1484 = vdwg.mxu0
      %1485 = vmatprep.subr.bf16.mxu0 0
      %1486 = vmatpush1.bf16.msra.mxu0 %v1194
      %1487 = vmatprep.subr.bf16.mxu0 0
      %1488 = vmatpush1.bf16.msra.mxu0 %v1195
      %1489 = vmatprep.subr.bf16.mxu0 0
      %1490 = vmatpush1.bf16.msra.mxu0 %v1196
      %1491 = vmatprep.subr.bf16.mxu0 0
      %1492 = vmatpush1.bf16.msra.mxu0 %v1197
      %1493 = vmatprep.subr.bf16.mxu0 0
      %1494 = vmatpush1.bf16.msra.mxu0 %v1198
      %1495 = vmatprep.subr.bf16.mxu0 0
      %1496 = vmatpush1.bf16.msra.mxu0 %v1199
      %1497 = vmatprep.subr.bf16.mxu0 0
      %1498 = vmatpush1.bf16.msra.mxu0 %v1200
      %1499 = vmatprep.subr.bf16.mxu0 0
      %1500 = vmatpush1.bf16.msra.mxu0 %v1201
      %1501 = vmatprep.subr.bf16.mxu0 0
      %1502 = vmatpush1.bf16.msra.mxu0 %v1202
      %1503 = vmatprep.subr.bf16.mxu0 0
      %1504 = vmatpush1.bf16.msra.mxu0 %v1203
      %1505 = vmatprep.subr.bf16.mxu0 0
      %1506 = vmatpush1.bf16.msra.mxu0 %v1204
      %1507 = vmatprep.subr.bf16.mxu0 0
      %1508 = vmatpush1.bf16.msra.mxu0 %v1205
      %1509 = vmatprep.subr.bf16.mxu0 0
      %1510 = vmatpush1.bf16.msra.mxu0 %v1206
      %1511 = vmatprep.subr.bf16.mxu0 0
      %1512 = vmatpush1.bf16.msra.mxu0 %v1207
      %1513 = vmatprep.subr.bf16.mxu0 0
      %1514 = vmatpush1.bf16.msra.mxu0 %v1208
      %1515 = vmatprep.subr.bf16.mxu0 0
      %1516 = vmatpush1.bf16.msra.mxu0 %v1209
      %1517 = vmatprep.mubr.bf16.mxu0 %v793
      %1518 = vmatmul.mubr.bf16.gmra.mrb[0].mxu0 %v792
      %v1519 = vpop.f32.mrb[0].mxu0
      %v1520 = vadd.f32 %v1455, %v1519
      %v1521 = vpop.f32.mrb[0].mxu0
      %v1522 = vpop.f32.mrb[0].mxu0
      %v1523 = vadd.f32 %v1458, %v1522
      %v1524 = vpop.f32.mrb[0].mxu0
      %1525 = vmatprep.mubr.bf16.mxu0 %v802
      %1526 = vmatmul.mubr.bf16.gmra.mrb[0].mxu0 %v801
      %v1527 = vpop.f32.mrb[0].mxu0
      %v1528 = vadd.f32 %v1463, %v1527
      %v1529 = vpop.f32.mrb[0].mxu0
      %v1530 = vpop.f32.mrb[0].mxu0
      %v1531 = vadd.f32 %v1466, %v1530
      %v1532 = vpop.f32.mrb[0].mxu0
      %1533 = vmatprep.mubr.bf16.mxu0 %v811
      %1534 = vmatmul.mubr.bf16.gmra.mrb[0].mxu0 %v810
      %v1535 = vpop.f32.mrb[0].mxu0
      %v1536 = vadd.f32 %v1471, %v1535
      %v1537 = vpop.f32.mrb[0].mxu0
      %v1538 = vpop.f32.mrb[0].mxu0
      %v1539 = vadd.f32 %v1474, %v1538
      %v1540 = vpop.f32.mrb[0].mxu0
      %1541 = vmatprep.mubr.bf16.mxu0 %v820
      %1542 = vmatmul.mubr.bf16.gmra.mrb[0].mxu0 %v819
      %v1543 = vpop.f32.mrb[0].mxu0
      %v1544 = vadd.f32 %v1479, %v1543
      %v1545 = vpop.f32.mrb[0].mxu0
      %v1546 = vpop.f32.mrb[0].mxu0
      %v1547 = vadd.f32 %v1482, %v1546
      %v1548 = vpop.f32.mrb[0].mxu0
      %1549 = vdwg.mxu0
      %1550 = vmatprep.subr.bf16.mxu0 0
      %1551 = vmatpush1.bf16.msra.mxu0 %v1210
      %1552 = vmatprep.subr.bf16.mxu0 0
      %1553 = vmatpush1.bf16.msra.mxu0 %v1211
      %1554 = vmatprep.subr.bf16.mxu0 0
      %1555 = vmatpush1.bf16.msra.mxu0 %v1212
      %1556 = vmatprep.subr.bf16.mxu0 0
      %1557 = vmatpush1.bf16.msra.mxu0 %v1213
      %1558 = vmatprep.subr.bf16.mxu0 0
      %1559 = vmatpush1.bf16.msra.mxu0 %v1214
      %1560 = vmatprep.subr.bf16.mxu0 0
      %1561 = vmatpush1.bf16.msra.mxu0 %v1215
      %1562 = vmatprep.subr.bf16.mxu0 0
      %1563 = vmatpush1.bf16.msra.mxu0 %v1216
      %1564 = vmatprep.subr.bf16.mxu0 0
      %1565 = vmatpush1.bf16.msra.mxu0 %v1217
      %1566 = vmatprep.subr.bf16.mxu0 0
      %1567 = vmatpush1.bf16.msra.mxu0 0
      %1568 = vmatprep.subr.bf16.mxu0 0
      %1569 = vmatpush1.bf16.msra.mxu0 0
      %1570 = vmatprep.subr.bf16.mxu0 0
      %1571 = vmatpush1.bf16.msra.mxu0 0
      %1572 = vmatprep.subr.bf16.mxu0 0
      %1573 = vmatpush1.bf16.msra.mxu0 0
      %1574 = vmatprep.subr.bf16.mxu0 0
      %1575 = vmatpush1.bf16.msra.mxu0 0
      %1576 = vmatprep.subr.bf16.mxu0 0
      %1577 = vmatpush1.bf16.msra.mxu0 0
      %1578 = vmatprep.subr.bf16.mxu0 0
      %1579 = vmatpush1.bf16.msra.mxu0 0
      %1580 = vmatprep.subr.bf16.mxu0 0
      %1581 = vmatpush1.bf16.msra.mxu0 0
      %1582 = vmatprep.mubr.bf16.mxu0 0
      %1583 = vmatmul.mubr.bf16.gmra.mrb[0].mxu0 %v794
      %v1584 = vpop.f32.mrb[0].mxu0
      %v1585 = vadd.f32 %v1520, %v1584
      %v1586 = vpop.f32.mrb[0].mxu0
      %v1587 = vpop.f32.mrb[0].mxu0
      %v1588 = vadd.f32 %v1523, %v1587
      %v1589 = vpop.f32.mrb[0].mxu0
      %1590 = vmatprep.mubr.bf16.mxu0 0
      %1591 = vmatmul.mubr.bf16.gmra.mrb[0].mxu0 %v803
      %v1592 = vpop.f32.mrb[0].mxu0
      %v1593 = vadd.f32 %v1528, %v1592
      %v1594 = vpop.f32.mrb[0].mxu0
      %v1595 = vpop.f32.mrb[0].mxu0
      %v1596 = vadd.f32 %v1531, %v1595
      %v1597 = vpop.f32.mrb[0].mxu0
      %1598 = vmatprep.mubr.bf16.mxu0 0
      %1599 = vmatmul.mubr.bf16.gmra.mrb[0].mxu0 %v812
      %v1600 = vpop.f32.mrb[0].mxu0
      %v1601 = vadd.f32 %v1536, %v1600
      %v1602 = vpop.f32.mrb[0].mxu0
      %v1603 = vpop.f32.mrb[0].mxu0
      %v1604 = vadd.f32 %v1539, %v1603
      %v1605 = vpop.f32.mrb[0].mxu0
      %1606 = vmatprep.mubr.bf16.mxu0 0
      %1607 = vmatmul.mubr.bf16.gmra.mrb[0].mxu0 %v821
      %v1608 = vpop.f32.mrb[0].mxu0
      %v1609 = vadd.f32 %v1544, %v1608
      %v1610 = vpop.f32.mrb[0].mxu0
      %v1611 = vpop.f32.mrb[0].mxu0
      %v1612 = vadd.f32 %v1547, %v1611
      %v1613 = vpop.f32.mrb[0].mxu0
      %1614 = vdwg.mxu0
      %v1615 = vmax.f32 %v1585, 0.0
      %v1616 = vmax.f32 %v1588, 0.0
      %v1617 = vmax.f32 %v1593, 0.0
      %v1618 = vmax.f32 %v1596, 0.0
      %v1619 = vmax.f32 %v1601, 0.0
      %v1620 = vmax.f32 %v1604, 0.0
      %v1621 = vmax.f32 %v1609, 0.0
      %v1622 = vmax.f32 %v1612, 0.0
      %v1623 = vpack.c.bf16 %v1615, %v1615
      %v1624 = vpack.c.bf16 %v1616, %v1616
      %v1625 = vpack.c.bf16 %v1617, %v1617
      %v1626 = vpack.c.bf16 %v1618, %v1618
      %v1627 = vpack.c.bf16 %v1619, %v1619
      %v1628 = vpack.c.bf16 %v1620, %v1620
      %v1629 = vpack.c.bf16 %v1621, %v1621
      %v1630 = vpack.c.bf16 %v1622, %v1622
      %1631 = vst [vmem:[%s192] sm:$0xf] %v1623
      %1632 = vst [vmem:[%s192 + $0x4] sm:$0xf] %v1624
      %1633 = vst [vmem:[%s192 + $0x8] sm:$0xf] %v1625
      %1634 = vst [vmem:[%s192 + $0xc] sm:$0xf] %v1626
      %1635 = vst [vmem:[%s192 + $0x10] sm:$0xf] %v1627
      %1636 = vst [vmem:[%s192 + $0x14] sm:$0xf] %v1628
      %1637 = vst [vmem:[%s192 + $0x18] sm:$0xf] %v1629
      %1638 = vst [vmem:[%s192 + $0x1c] sm:$0xf] %v1630
      %s1639 = smul.u32 8, %s19
      %p1640 = scmp.lt.s32.totalorder %s18, 1
      %s1641 = scalar_select %p1640, %s18, 1
      %p1642 = scmp.lt.s32.totalorder %s1639, 7
      %s1643 = scalar_select %p1642, %s1639, 7
      %s1644 = smul.addr %s1641, 8
      %s1645 = sadd.s32 %s1643, %s1644
      %s1646 = smul.addr %s1645, 4
      %s1647 = scalar_lea.vmem %s3, %s1646
      // Predicated region
      $region33: #{forward.6} parent=31 // pred_check
        %p1648 = pneg %p114
      $region34: #{forward.6} parent=31 // pred_check_branch
        %1650 = sbr.rel (%p1648) target = $region36
      $region35: #{forward.6} parent=31 // pred_region
        %s1651 = smul.u32 8, %s19
      $region36: #{forward.6} parent=31 // pred_fallthru
        _
    $region32: #{forward.6} parent=5 // pred_fallthru
      _
    %p1652 = scmp.le.s32.totalorder 2, %s9
    // Predicated region
    $region37: #{forward.6} parent=5 // pred_check
      %p1653 = pneg %p1652
    $region38: #{forward.6} parent=5 // pred_check_branch
      %1655 = sbr.rel (%p1653) target = $region40
    $region39: #{forward.6} parent=5 // pred_region
      %s1656 = ssub.s32 %s9, 2
      // Predicated region
      $region41: #{forward.6} parent=39 // pred_check
        %p1657 = pneg %p120
      $region42: #{forward.6} parent=39 // pred_check_branch
        %1659 = sbr.rel (%p1657) target = $region44
      $region43: #{forward.6} parent=39 // pred_region
        %s1660 = smul.u32 8, %s21
        %p1661 = scmp.lt.s32.totalorder %s20, 1
        %s1662 = scalar_select %p1661, %s20, 1
        %p1663 = scmp.lt.s32.totalorder %s1660, 7
        %s1664 = scalar_select %p1663, %s1660, 7
        %s1665 = smul.addr %s1662, 8
        %s1666 = sadd.s32 %s1664, %s1665
        %s1667 = smul.addr %s1666, 4
        %s1668 = scalar_lea.vmem %s3, %s1667
      $region44: #{forward.6} parent=39 // pred_fallthru
        _
    $region40: #{forward.6} parent=5 // pred_fallthru
      _
  $region6: #{forward.6} parent=0 // loop_footer
    %s13 = sadd.s32 1, %s9
  $region7: #{forward.6} parent=0 // loop_footer_branch
    %8 = sbr.rel target = $region3
  $region8: #{forward.6} parent=0 // loop_exit
    _

// kernel: forward.7
$region0: #{forward.7}
  #allocation0 [shape = 'u32[]', space=smem, size = 0x4, offset = 0x4, fixed_abs, tag = 'smem constant byte address 0x4 - core index']
  #allocation1 [shape = 'u32[144,128]{1,0:T(1,128)}', space=vmem, size = 0x12000, scoped, tag = 'internal scratch']
  %s0 = inlined_call_operand.vmem [shape: bf16[2,5,5,512], index: 0, kind: input, shape index: {}]
  %s1 = inlined_call_operand.vmem [shape: bf16[1152,128], index: 1, kind: input, shape index: {}]
  %s2 = inlined_call_operand.vmem [shape: f32[1,128], index: 2, kind: input, shape index: {}]
  %s3 = inlined_call_operand.vmem [shape: bf16[2,4,4,128], index: 3, kind: output, shape index: {}]
  %s4 = sld [smem:[#allocation0]]
  $region45: #{forward.7} parent=0
    _
  %s6 = ssub.s32 1, %s4
  %s7 = scalar_select 0, %s6, %s4
  loop: start=0, step=1, limit=4
  $region2: #{forward.7} parent=0 // loop_pre_header
    _
  $region3: #{forward.7} parent=0 // loop_header
    %s9 = sphi 0, %s13
    %p10 = scmp.ge.s32.totalorder %s9, 4
    %s16 = sphi 0, %s28
    %s17 = sphi 0, %s24
    %s18 = sphi 0, %s16
    %s19 = sphi 0, %s17
    %s20 = sphi 0, %s18
    %s21 = sphi 0, %s19
    %s31 = sphi 0, %s33
    %s34 = sphi 0, %s31
    %s35 = sphi 0, %s34
    %s51 = sphi 0, %s35
    %s55 = sphi 0, %s55
    %s57 = sphi 0, %s55
    %s58 = sphi 0, %s57
    %s72 = sphi 0, %s58
    %s76 = sphi 0, %s76
    %s78 = sphi 0, %s76
    %s79 = sphi 0, %s78
    %s93 = sphi 0, %s79
    %s101 = sphi 0, %s103
    %s104 = sphi 0, %s101
    %s105 = sphi 0, %s104
    %s121 = sphi 0, %s105
  $region4: #{forward.7} parent=0 // loop_header_branch
    %12 = sbr.rel (%p10) target = $region8
  $region5: #{forward.7} parent=0 // loop_body
    %s14 = ssub.s32 %s9, 1
    %s15 = ssub.s32 %s9, 2
    %s22 = sadd.s32 1, %s17
    %p23 = scmp.ge.s32.totalorder %s22, 1
    %s24 = scalar_select %p23, 0, %s22
    %s25 = sadd.s32 1, %s16
    %s26 = scalar_select %p23, %s25, %s16
    %p27 = scmp.ge.s32.totalorder %s26, 2
    %s28 = scalar_select %p27, 0, %s26
    %s29 = ssub.s32 %s16, %s28
    %p30 = scmp.eq.s32.totalorder %s29, 0
    %s32 = sadd.s32 %s31, 1
    %s33 = scalar_select %p30, %s31, %s32
    %p36 = pneg %p30
    %p37 = scmp.eq.s32.totalorder %s9, 1
    %p38 = por %p36, %p37
    %p39 = scmp.ne.s32.totalorder %s31, %s34
    %p40 = scmp.eq.s32.totalorder %s9, 0
    %p41 = por %p39, %p40
    %p42 = scmp.ne.s32.totalorder %s31, %s34
    %p43 = scmp.eq.s32.totalorder %s14, 1
    %p44 = por %p42, %p43
    %p45 = scmp.ne.s32.totalorder %s34, %s35
    %p46 = scmp.eq.s32.totalorder %s14, 0
    %p47 = por %p45, %p46
    %p48 = scmp.ne.s32.totalorder %s34, %s35
    %p49 = scmp.eq.s32.totalorder %s15, 1
    %p50 = por %p48, %p49
    %p52 = scmp.ne.s32.totalorder %s35, %s51
    %p53 = scmp.eq.s32.totalorder %s15, 0
    %p54 = por %p52, %p53
    %s56 = sadd.s32 %s55, 1
    %p59 = scmp.eq.s32.totalorder %s9, 1
    %p60 = scmp.ne.s32.totalorder %s55, %s57
    %p61 = scmp.eq.s32.totalorder %s9, 0
    %p62 = por %p60, %p61
    %p63 = scmp.ne.s32.totalorder %s55, %s57
    %p64 = scmp.eq.s32.totalorder %s14, 1
    %p65 = por %p63, %p64
    %p66 = scmp.ne.s32.totalorder %s57, %s58
    %p67 = scmp.eq.s32.totalorder %s14, 0
    %p68 = por %p66, %p67
    %p69 = scmp.ne.s32.totalorder %s57, %s58
    %p70 = scmp.eq.s32.totalorder %s15, 1
    %p71 = por %p69, %p70
    %p73 = scmp.ne.s32.totalorder %s58, %s72
    %p74 = scmp.eq.s32.totalorder %s15, 0
    %p75 = por %p73, %p74
    %s77 = sadd.s32 %s76, 1
    %p80 = scmp.eq.s32.totalorder %s9, 1
    %p81 = scmp.ne.s32.totalorder %s76, %s78
    %p82 = scmp.eq.s32.totalorder %s9, 0
    %p83 = por %p81, %p82
    %p84 = scmp.ne.s32.totalorder %s76, %s78
    %p85 = scmp.eq.s32.totalorder %s14, 1
    %p86 = por %p84, %p85
    %p87 = scmp.ne.s32.totalorder %s78, %s79
    %p88 = scmp.eq.s32.totalorder %s14, 0
    %p89 = por %p87, %p88
    %p90 = scmp.ne.s32.totalorder %s78, %s79
    %p91 = scmp.eq.s32.totalorder %s15, 1
    %p92 = por %p90, %p91
    %p94 = scmp.ne.s32.totalorder %s79, %s93
    %p95 = scmp.eq.s32.totalorder %s15, 0
    %p96 = por %p94, %p95
    %s97 = ssub.s32 %s16, %s28
    %s98 = ssub.s32 %s17, %s24
    %s99 = sor.u32 %s97, %s98
    %p100 = scmp.eq.s32.totalorder %s99, 0
    %s102 = sadd.s32 %s101, 1
    %s103 = scalar_select %p100, %s101, %s102
    %p106 = pneg %p100
    %p107 = scmp.eq.s32.totalorder %s9, 1
    %p108 = por %p106, %p107
    %p109 = scmp.ne.s32.totalorder %s101, %s104
    %p110 = scmp.eq.s32.totalorder %s9, 0
    %p111 = por %p109, %p110
    %p112 = scmp.ne.s32.totalorder %s101, %s104
    %p113 = scmp.eq.s32.totalorder %s14, 1
    %p114 = por %p112, %p113
    %p115 = scmp.ne.s32.totalorder %s104, %s105
    %p116 = scmp.eq.s32.totalorder %s14, 0
    %p117 = por %p115, %p116
    %p118 = scmp.ne.s32.totalorder %s104, %s105
    %p119 = scmp.eq.s32.totalorder %s15, 1
    %p120 = por %p118, %p119
    %p122 = scmp.ne.s32.totalorder %s105, %s121
    %p123 = scmp.eq.s32.totalorder %s15, 0
    %p124 = por %p122, %p123
    %p125 = scmp.le.s32.totalorder 1, %s9
    %p126 = scmp.lt.s32.totalorder %s9, 3
    %p127 = pnand %p125, %p126
    %p128 = pneg %p127
    // Predicated region
    $region9: #{forward.7} parent=5 // pred_check
      _
    $region10: #{forward.7} parent=5 // pred_check_branch
      %130 = sbr.rel (%p127) target = $region12
    $region11: #{forward.7} parent=5 // pred_region
      %s131 = ssub.s32 %s9, 1
      // Predicated region
      $region13: #{forward.7} parent=11 // pred_check
        %p132 = pneg %p68
      $region14: #{forward.7} parent=11 // pred_check_branch
        %134 = sbr.rel (%p132) target = $region16
      $region15: #{forward.7} parent=11 // pred_region
        _
      $region16: #{forward.7} parent=11 // pred_fallthru
        _
      // Predicated region
      $region17: #{forward.7} parent=11 // pred_check
        %p135 = pneg %p89
      $region18: #{forward.7} parent=11 // pred_check_branch
        %137 = sbr.rel (%p135) target = $region20
      $region19: #{forward.7} parent=11 // pred_region
        _
      $region20: #{forward.7} parent=11 // pred_fallthru
        _
    $region12: #{forward.7} parent=5 // pred_fallthru
      _
    %p138 = scmp.lt.s32.totalorder %s9, 2
    // Predicated region
    $region21: #{forward.7} parent=5 // pred_check
      %p139 = pneg %p138
    $region22: #{forward.7} parent=5 // pred_check_branch
      %141 = sbr.rel (%p139) target = $region24
    $region23: #{forward.7} parent=5 // pred_region
      // Predicated region
      $region25: #{forward.7} parent=23 // pred_check
        %p142 = pneg %p41
      $region26: #{forward.7} parent=23 // pred_check_branch
        %144 = sbr.rel (%p142) target = $region28
      $region27: #{forward.7} parent=23 // pred_region
        %p145 = scmp.lt.s32.totalorder %s16, 1
        %s146 = scalar_select %p145, %s16, 1
        %s147 = smul.addr %s146, 20
        %s148 = smul.addr %s147, 4
        %s149 = scalar_lea.vmem %s0, %s148
      $region28: #{forward.7} parent=23 // pred_fallthru
        _
    $region24: #{forward.7} parent=5 // pred_fallthru
      _
    %p150 = scmp.le.s32.totalorder 1, %s9
    %p151 = scmp.lt.s32.totalorder %s9, 3
    %p152 = pnand %p150, %p151
    %p153 = pneg %p152
    // Predicated region
    $region29: #{forward.7} parent=5 // pred_check
      _
    $region30: #{forward.7} parent=5 // pred_check_branch
      %155 = sbr.rel (%p152) target = $region32
    $region31: #{forward.7} parent=5 // pred_region
      %s156 = ssub.s32 %s9, 1
      %p157 = scmp.lt.s32.totalorder %s18, 1
      %s158 = scalar_select %p157, %s18, 1
      %s159 = smul.addr %s158, 20
      %s160 = smul.addr %s159, 4
      %s161 = scalar_lea.vmem %s0, %s160
      %p162 = pneg %p47
      %p163 = pneg %p44
      %p164 = pneg %p68
      %p165 = pneg %p65
      %p166 = pneg %p89
      %p167 = pneg %p86
      %p168 = pneg %p117
      %p169 = pneg %p114
      %s170 = smul.u32 4, %s19
      %p171 = scmp.lt.s32.totalorder %s18, 1
      %s172 = scalar_select %p171, %s18, 1
      %p173 = scmp.lt.s32.totalorder %s170, 3
      %s174 = scalar_select %p173, %s170, 3
      %s175 = smul.addr %s172, 4
      %s176 = sadd.s32 %s174, %s175
      %s177 = smul.addr %s176, 2
      %s178 = scalar_lea.vmem %s3, %s177
      %p179 = scmp.lt.s32.totalorder %s18, 1
      %s180 = scalar_select %p179, %s18, 1
      %s181 = smul.addr %s180, 20
      %s182 = smul.addr %s181, 4
      %s183 = scalar_lea.vmem %s0, %s182
      %s184 = smul.u32 4, %s19
      %p185 = scmp.lt.s32.totalorder %s18, 1
      %s186 = scalar_select %p185, %s18, 1
      %p187 = scmp.lt.s32.totalorder %s184, 3
      %s188 = scalar_select %p187, %s184, 3
      %s189 = smul.addr %s186, 4
      %s190 = sadd.s32 %s188, %s189
      %s191 = smul.addr %s190, 2
      %s192 = scalar_lea.vmem %s3, %s191
      %s193 = smul.u32 4, %s19
      %s195 = smul.u32 %s19, 4
      %s196 = smul.u32 %s195, 4
      %s197 = smul.addr %s196, 4
      %s198 = scalar_lea.vmem %s183, %s197
      %v199 = vld [vmem:[%s198] sm:$0x3]
      %v200 = vld [vmem:[%s198 + $0x10] sm:$0x3]
      %v201 = vld [vmem:[%s198 + $0x20] sm:$0x3]
      %v202 = vld [vmem:[%s198 + $0x30] sm:$0x3]
      %v203 = vld [vmem:[%s198 + $0x4] sm:$0x3]
      %v204 = vld [vmem:[%s198 + $0x14] sm:$0x3]
      %v205 = vld [vmem:[%s198 + $0x24] sm:$0x3]
      %v206 = vld [vmem:[%s198 + $0x34] sm:$0x3]
      %v207 = vld [vmem:[%s198] sm:$0x7]
      %v208 = vld [vmem:[%s198 + $0x10] sm:$0x7]
      %v209 = vld [vmem:[%s198 + $0x20] sm:$0x7]
      %v210 = vld [vmem:[%s198 + $0x30] sm:$0x7]
      %v211 = vld [vmem:[%s198 + $0x8] sm:$0x3]
      %v212 = vld [vmem:[%s198 + $0x18] sm:$0x3]
      %v213 = vld [vmem:[%s198 + $0x28] sm:$0x3]
      %v214 = vld [vmem:[%s198 + $0x38] sm:$0x3]
      %v215 = vld [vmem:[%s198 + $0xc] sm:$0x3]
      %v216 = vld [vmem:[%s198 + $0x1c] sm:$0x3]
      %v217 = vld [vmem:[%s198 + $0x2c] sm:$0x3]
      %v218 = vld [vmem:[%s198 + $0x3c] sm:$0x3]
      %v219 = vld [vmem:[%s198 + $0x8] sm:$0x7]
      %v220 = vld [vmem:[%s198 + $0x18] sm:$0x7]
      %v221 = vld [vmem:[%s198 + $0x28] sm:$0x7]
      %v222 = vld [vmem:[%s198 + $0x38] sm:$0x7]
      %s223 = sadd.s32 %s195, 1
      %s224 = smul.u32 %s223, 4
      %s225 = smul.addr %s224, 4
      %s226 = scalar_lea.vmem %s183, %s225
      %v227 = vld [vmem:[%s226] sm:$0x3]
      %v228 = vld [vmem:[%s226 + $0x10] sm:$0x3]
      %v229 = vld [vmem:[%s226 + $0x20] sm:$0x3]
      %v230 = vld [vmem:[%s226 + $0x30] sm:$0x3]
      %v231 = vld [vmem:[%s226 + $0x4] sm:$0x3]
      %v232 = vld [vmem:[%s226 + $0x14] sm:$0x3]
      %v233 = vld [vmem:[%s226 + $0x24] sm:$0x3]
      %v234 = vld [vmem:[%s226 + $0x34] sm:$0x3]
      %v235 = vld [vmem:[%s226] sm:$0x7]
      %v236 = vld [vmem:[%s226 + $0x10] sm:$0x7]
      %v237 = vld [vmem:[%s226 + $0x20] sm:$0x7]
      %v238 = vld [vmem:[%s226 + $0x30] sm:$0x7]
      %v243 = vunpack.c.l.b16 %v207
      %v244 = vunpack.c.l.b16 %v208
      %v245 = vunpack.c.l.b16 %v209
      %v246 = vunpack.c.l.b16 %v210
      %v247 = vpack.c.b16 %v243, %v243
      %v248 = vpack.c.b16 %v244, %v244
      %v249 = vpack.c.b16 %v245, %v245
      %v250 = vpack.c.b16 %v246, %v246
      %v252 = vshrl.u32 %v247, 16
      %v254 = vshll.u32 %v247, 16
      %v256 = vrot.slane %v254, 1
      %v257 = vor.u32 %v252, %v256
      %v259 = vshrl.u32 %v248, 16
      %v261 = vshll.u32 %v248, 16
      %v263 = vrot.slane %v261, 1
      %v264 = vor.u32 %v259, %v263
      %v266 = vshrl.u32 %v249, 16
      %v268 = vshll.u32 %v249, 16
      %v270 = vrot.slane %v268, 1
      %v271 = vor.u32 %v266, %v270
      %v273 = vshrl.u32 %v250, 16
      %v275 = vshll.u32 %v250, 16
      %v277 = vrot.slane %v275, 1
      %v278 = vor.u32 %v273, %v277
      %v283 = vunpack.c.l.b16 %v219
      %v284 = vunpack.c.l.b16 %v220
      %v285 = vunpack.c.l.b16 %v221
      %v286 = vunpack.c.l.b16 %v222
      %v287 = vpack.c.b16 %v283, %v283
      %v288 = vpack.c.b16 %v284, %v284
      %v289 = vpack.c.b16 %v285, %v285
      %v290 = vpack.c.b16 %v286, %v286
      %v292 = vshrl.u32 %v287, 16
      %v294 = vshll.u32 %v287, 16
      %v296 = vrot.slane %v294, 1
      %v297 = vor.u32 %v292, %v296
      %v299 = vshrl.u32 %v288, 16
      %v301 = vshll.u32 %v288, 16
      %v303 = vrot.slane %v301, 1
      %v304 = vor.u32 %v299, %v303
      %v306 = vshrl.u32 %v289, 16
      %v308 = vshll.u32 %v289, 16
      %v310 = vrot.slane %v308, 1
      %v311 = vor.u32 %v306, %v310
      %v313 = vshrl.u32 %v290, 16
      %v315 = vshll.u32 %v290, 16
      %v317 = vrot.slane %v315, 1
      %v318 = vor.u32 %v313, %v317
      %v323 = vunpack.c.l.b16 %v235
      %v324 = vunpack.c.l.b16 %v236
      %v325 = vunpack.c.l.b16 %v237
      %v326 = vunpack.c.l.b16 %v238
      %v327 = vpack.c.b16 %v323, %v323
      %v328 = vpack.c.b16 %v324, %v324
      %v329 = vpack.c.b16 %v325, %v325
      %v330 = vpack.c.b16 %v326, %v326
      %v332 = vshrl.u32 %v327, 16
      %v334 = vshll.u32 %v327, 16
      %v336 = vrot.slane %v334, 1
      %v337 = vor.u32 %v332, %v336
      %v339 = vshrl.u32 %v328, 16
      %v341 = vshll.u32 %v328, 16
      %v343 = vrot.slane %v341, 1
      %v344 = vor.u32 %v339, %v343
      %v346 = vshrl.u32 %v329, 16
      %v348 = vshll.u32 %v329, 16
      %v350 = vrot.slane %v348, 1
      %v351 = vor.u32 %v346, %v350
      %v353 = vshrl.u32 %v330, 16
      %v355 = vshll.u32 %v330, 16
      %v357 = vrot.slane %v355, 1
      %v358 = vor.u32 %v353, %v357
      %v383 = vcombine.low %v199, %v203
      %v384 = vcombine.low %v257, %v211
      %v386 = vunpack.c.l.s4 1983009808
      %v387 = vunpack.c.0.s8 %v386
      %v388 = vlaneseq
      %v389 = vshrl.u32 %v388, 7
      %v390 = vsub.s32 %v387, %v389
      %v391 = vrot.slane %v383, %v390
      %v393 = vunpack.c.l.s4 1983009808
      %v394 = vunpack.c.0.s8 %v393
      %v395 = vlaneseq
      %v396 = vshrl.u32 %v395, 7
      %v397 = vsub.s32 %v394, %v396
      %v398 = vrot.slane %v384, %v397
      %v399 = vcombine.low %v391, %v398
      %v400 = vcombine.low %v215, %v297
      %v401 = vcombine.low %v227, %v231
      %v403 = vunpack.c.l.s4 1983009808
      %v404 = vunpack.c.0.s8 %v403
      %v405 = vlaneseq
      %v406 = vshrl.u32 %v405, 7
      %v407 = vsub.s32 %v404, %v406
      %v408 = vrot.slane %v400, %v407
      %v410 = vunpack.c.l.s4 1983009808
      %v411 = vunpack.c.0.s8 %v410
      %v412 = vlaneseq
      %v413 = vshrl.u32 %v412, 7
      %v414 = vsub.s32 %v411, %v413
      %v415 = vrot.slane %v401, %v414
      %v416 = vcombine.low %v408, %v415
      %v418 = vunpack.c.l.s4 1983009808
      %v419 = vunpack.c.0.s8 %v418
      %v420 = vlaneseq
      %v421 = vshrl.u32 %v420, 7
      %v422 = vsub.s32 %v419, %v421
      %v423 = vrot.slane %v337, %v422
      %v424 = vcombine.low %v200, %v204
      %v425 = vcombine.low %v264, %v212
      %v427 = vunpack.c.l.s4 1983009808
      %v428 = vunpack.c.0.s8 %v427
      %v429 = vlaneseq
      %v430 = vshrl.u32 %v429, 7
      %v431 = vsub.s32 %v428, %v430
      %v432 = vrot.slane %v424, %v431
      %v434 = vunpack.c.l.s4 1983009808
      %v435 = vunpack.c.0.s8 %v434
      %v436 = vlaneseq
      %v437 = vshrl.u32 %v436, 7
      %v438 = vsub.s32 %v435, %v437
      %v439 = vrot.slane %v425, %v438
      %v440 = vcombine.low %v432, %v439
      %v441 = vcombine.low %v216, %v304
      %v442 = vcombine.low %v228, %v232
      %v444 = vunpack.c.l.s4 1983009808
      %v445 = vunpack.c.0.s8 %v444
      %v446 = vlaneseq
      %v447 = vshrl.u32 %v446, 7
      %v448 = vsub.s32 %v445, %v447
      %v449 = vrot.slane %v441, %v448
      %v451 = vunpack.c.l.s4 1983009808
      %v452 = vunpack.c.0.s8 %v451
      %v453 = vlaneseq
      %v454 = vshrl.u32 %v453, 7
      %v455 = vsub.s32 %v452, %v454
      %v456 = vrot.slane %v442, %v455
      %v457 = vcombine.low %v449, %v456
      %v459 = vunpack.c.l.s4 1983009808
      %v460 = vunpack.c.0.s8 %v459
      %v461 = vlaneseq
      %v462 = vshrl.u32 %v461, 7
      %v463 = vsub.s32 %v460, %v462
      %v464 = vrot.slane %v344, %v463
      %v465 = vcombine.low %v201, %v205
      %v466 = vcombine.low %v271, %v213
      %v468 = vunpack.c.l.s4 1983009808
      %v469 = vunpack.c.0.s8 %v468
      %v470 = vlaneseq
      %v471 = vshrl.u32 %v470, 7
      %v472 = vsub.s32 %v469, %v471
      %v473 = vrot.slane %v465, %v472
      %v475 = vunpack.c.l.s4 1983009808
      %v476 = vunpack.c.0.s8 %v475
      %v477 = vlaneseq
      %v478 = vshrl.u32 %v477, 7
      %v479 = vsub.s32 %v476, %v478
      %v480 = vrot.slane %v466, %v479
      %v481 = vcombine.low %v473, %v480
      %v482 = vcombine.low %v217, %v311
      %v483 = vcombine.low %v229, %v233
      %v485 = vunpack.c.l.s4 1983009808
      %v486 = vunpack.c.0.s8 %v485
      %v487 = vlaneseq
      %v488 = vshrl.u32 %v487, 7
      %v489 = vsub.s32 %v486, %v488
      %v490 = vrot.slane %v482, %v489
      %v492 = vunpack.c.l.s4 1983009808
      %v493 = vunpack.c.0.s8 %v492
      %v494 = vlaneseq
      %v495 = vshrl.u32 %v494, 7
      %v496 = vsub.s32 %v493, %v495
      %v497 = vrot.slane %v483, %v496
      %v498 = vcombine.low %v490, %v497
      %v500 = vunpack.c.l.s4 1983009808
      %v501 = vunpack.c.0.s8 %v500
      %v502 = vlaneseq
      %v503 = vshrl.u32 %v502, 7
      %v504 = vsub.s32 %v501, %v503
      %v505 = vrot.slane %v351, %v504
      %v506 = vcombine.low %v202, %v206
      %v507 = vcombine.low %v278, %v214
      %v509 = vunpack.c.l.s4 1983009808
      %v510 = vunpack.c.0.s8 %v509
      %v511 = vlaneseq
      %v512 = vshrl.u32 %v511, 7
      %v513 = vsub.s32 %v510, %v512
      %v514 = vrot.slane %v506, %v513
      %v516 = vunpack.c.l.s4 1983009808
      %v517 = vunpack.c.0.s8 %v516
      %v518 = vlaneseq
      %v519 = vshrl.u32 %v518, 7
      %v520 = vsub.s32 %v517, %v519
      %v521 = vrot.slane %v507, %v520
      %v522 = vcombine.low %v514, %v521
      %v523 = vcombine.low %v218, %v318
      %v524 = vcombine.low %v230, %v234
      %v526 = vunpack.c.l.s4 1983009808
      %v527 = vunpack.c.0.s8 %v526
      %v528 = vlaneseq
      %v529 = vshrl.u32 %v528, 7
      %v530 = vsub.s32 %v527, %v529
      %v531 = vrot.slane %v523, %v530
      %v533 = vunpack.c.l.s4 1983009808
      %v534 = vunpack.c.0.s8 %v533
      %v535 = vlaneseq
      %v536 = vshrl.u32 %v535, 7
      %v537 = vsub.s32 %v534, %v536
      %v538 = vrot.slane %v524, %v537
      %v539 = vcombine.low %v531, %v538
      %v541 = vunpack.c.l.s4 1983009808
      %v542 = vunpack.c.0.s8 %v541
      %v543 = vlaneseq
      %v544 = vshrl.u32 %v543, 7
      %v545 = vsub.s32 %v542, %v544
      %v546 = vrot.slane %v358, %v545
      %v547 = vld [vmem:[%s1] sm:$0xf]
      %v548 = vld [vmem:[%s1 + $0x4] sm:$0xf]
      %v549 = vld [vmem:[%s1 + $0x8] sm:$0xf]
      %v550 = vld [vmem:[%s1 + $0xc] sm:$0xf]
      %v551 = vld [vmem:[%s1 + $0x10] sm:$0xf]
      %v552 = vld [vmem:[%s1 + $0x14] sm:$0xf]
      %v553 = vld [vmem:[%s1 + $0x18] sm:$0xf]
      %v554 = vld [vmem:[%s1 + $0x1c] sm:$0xf]
      %v555 = vld [vmem:[%s1 + $0x20] sm:$0xf]
      %v556 = vld [vmem:[%s1 + $0x24] sm:$0xf]
      %v557 = vld [vmem:[%s1 + $0x28] sm:$0xf]
      %v558 = vld [vmem:[%s1 + $0x2c] sm:$0xf]
      %v559 = vld [vmem:[%s1 + $0x30] sm:$0xf]
      %v560 = vld [vmem:[%s1 + $0x34] sm:$0xf]
      %v561 = vld [vmem:[%s1 + $0x38] sm:$0xf]
      %v562 = vld [vmem:[%s1 + $0x3c] sm:$0xf]
      %v563 = vld [vmem:[%s1 + $0x40] sm:$0xf]
      %v564 = vld [vmem:[%s1 + $0x44] sm:$0xf]
      %v565 = vld [vmem:[%s1 + $0x48] sm:$0xf]
      %v566 = vld [vmem:[%s1 + $0x4c] sm:$0xf]
      %v567 = vld [vmem:[%s1 + $0x50] sm:$0xf]
      %v568 = vld [vmem:[%s1 + $0x54] sm:$0xf]
      %v569 = vld [vmem:[%s1 + $0x58] sm:$0xf]
      %v570 = vld [vmem:[%s1 + $0x5c] sm:$0xf]
      %v571 = vld [vmem:[%s1 + $0x60] sm:$0xf]
      %v572 = vld [vmem:[%s1 + $0x64] sm:$0xf]
      %v573 = vld [vmem:[%s1 + $0x68] sm:$0xf]
      %v574 = vld [vmem:[%s1 + $0x6c] sm:$0xf]
      %v575 = vld [vmem:[%s1 + $0x70] sm:$0xf]
      %v576 = vld [vmem:[%s1 + $0x74] sm:$0xf]
      %v577 = vld [vmem:[%s1 + $0x78] sm:$0xf]
      %v578 = vld [vmem:[%s1 + $0x7c] sm:$0xf]
      %v579 = vld [vmem:[%s1 + $0x80] sm:$0xf]
      %v580 = vld [vmem:[%s1 + $0x84] sm:$0xf]
      %v581 = vld [vmem:[%s1 + $0x88] sm:$0xf]
      %v582 = vld [vmem:[%s1 + $0x8c] sm:$0xf]
      %v583 = vld [vmem:[%s1 + $0x90] sm:$0xf]
      %v584 = vld [vmem:[%s1 + $0x94] sm:$0xf]
      %v585 = vld [vmem:[%s1 + $0x98] sm:$0xf]
      %v586 = vld [vmem:[%s1 + $0x9c] sm:$0xf]
      %v587 = vld [vmem:[%s1 + $0xa0] sm:$0xf]
      %v588 = vld [vmem:[%s1 + $0xa4] sm:$0xf]
      %v589 = vld [vmem:[%s1 + $0xa8] sm:$0xf]
      %v590 = vld [vmem:[%s1 + $0xac] sm:$0xf]
      %v591 = vld [vmem:[%s1 + $0xb0] sm:$0xf]
      %v592 = vld [vmem:[%s1 + $0xb4] sm:$0xf]
      %v593 = vld [vmem:[%s1 + $0xb8] sm:$0xf]
      %v594 = vld [vmem:[%s1 + $0xbc] sm:$0xf]
      %v595 = vld [vmem:[%s1 + $0xc0] sm:$0xf]
      %v596 = vld [vmem:[%s1 + $0xc4] sm:$0xf]
      %v597 = vld [vmem:[%s1 + $0xc8] sm:$0xf]
      %v598 = vld [vmem:[%s1 + $0xcc] sm:$0xf]
      %v599 = vld [vmem:[%s1 + $0xd0] sm:$0xf]
      %v600 = vld [vmem:[%s1 + $0xd4] sm:$0xf]
      %v601 = vld [vmem:[%s1 + $0xd8] sm:$0xf]
      %v602 = vld [vmem:[%s1 + $0xdc] sm:$0xf]
      %v603 = vld [vmem:[%s1 + $0xe0] sm:$0xf]
      %v604 = vld [vmem:[%s1 + $0xe4] sm:$0xf]
      %v605 = vld [vmem:[%s1 + $0xe8] sm:$0xf]
      %v606 = vld [vmem:[%s1 + $0xec] sm:$0xf]
      %v607 = vld [vmem:[%s1 + $0xf0] sm:$0xf]
      %v608 = vld [vmem:[%s1 + $0xf4] sm:$0xf]
      %v609 = vld [vmem:[%s1 + $0xf8] sm:$0xf]
      %v610 = vld [vmem:[%s1 + $0xfc] sm:$0xf]
      %v611 = vld [vmem:[%s1 + $0x100] sm:$0xf]
      %v612 = vld [vmem:[%s1 + $0x104] sm:$0xf]
      %v613 = vld [vmem:[%s1 + $0x108] sm:$0xf]
      %v614 = vld [vmem:[%s1 + $0x10c] sm:$0xf]
      %v615 = vld [vmem:[%s1 + $0x110] sm:$0xf]
      %v616 = vld [vmem:[%s1 + $0x114] sm:$0xf]
      %v617 = vld [vmem:[%s1 + $0x118] sm:$0xf]
      %v618 = vld [vmem:[%s1 + $0x11c] sm:$0xf]
      %v619 = vld [vmem:[%s1 + $0x120] sm:$0xf]
      %v620 = vld [vmem:[%s1 + $0x124] sm:$0xf]
      %v621 = vld [vmem:[%s1 + $0x128] sm:$0xf]
      %v622 = vld [vmem:[%s1 + $0x12c] sm:$0xf]
      %v623 = vld [vmem:[%s1 + $0x130] sm:$0xf]
      %v624 = vld [vmem:[%s1 + $0x134] sm:$0xf]
      %v625 = vld [vmem:[%s1 + $0x138] sm:$0xf]
      %v626 = vld [vmem:[%s1 + $0x13c] sm:$0xf]
      %v627 = vld [vmem:[%s1 + $0x140] sm:$0xf]
      %v628 = vld [vmem:[%s1 + $0x144] sm:$0xf]
      %v629 = vld [vmem:[%s1 + $0x148] sm:$0xf]
      %v630 = vld [vmem:[%s1 + $0x14c] sm:$0xf]
      %v631 = vld [vmem:[%s1 + $0x150] sm:$0xf]
      %v632 = vld [vmem:[%s1 + $0x154] sm:$0xf]
      %v633 = vld [vmem:[%s1 + $0x158] sm:$0xf]
      %v634 = vld [vmem:[%s1 + $0x15c] sm:$0xf]
      %v635 = vld [vmem:[%s1 + $0x160] sm:$0xf]
      %v636 = vld [vmem:[%s1 + $0x164] sm:$0xf]
      %v637 = vld [vmem:[%s1 + $0x168] sm:$0xf]
      %v638 = vld [vmem:[%s1 + $0x16c] sm:$0xf]
      %v639 = vld [vmem:[%s1 + $0x170] sm:$0xf]
      %v640 = vld [vmem:[%s1 + $0x174] sm:$0xf]
      %v641 = vld [vmem:[%s1 + $0x178] sm:$0xf]
      %v642 = vld [vmem:[%s1 + $0x17c] sm:$0xf]
      %v643 = vld [vmem:[%s1 + $0x180] sm:$0xf]
      %v644 = vld [vmem:[%s1 + $0x184] sm:$0xf]
      %v645 = vld [vmem:[%s1 + $0x188] sm:$0xf]
      %v646 = vld [vmem:[%s1 + $0x18c] sm:$0xf]
      %v647 = vld [vmem:[%s1 + $0x190] sm:$0xf]
      %v648 = vld [vmem:[%s1 + $0x194] sm:$0xf]
      %v649 = vld [vmem:[%s1 + $0x198] sm:$0xf]
      %v650 = vld [vmem:[%s1 + $0x19c] sm:$0xf]
      %v651 = vld [vmem:[%s1 + $0x1a0] sm:$0xf]
      %v652 = vld [vmem:[%s1 + $0x1a4] sm:$0xf]
      %v653 = vld [vmem:[%s1 + $0x1a8] sm:$0xf]
      %v654 = vld [vmem:[%s1 + $0x1ac] sm:$0xf]
      %v655 = vld [vmem:[%s1 + $0x1b0] sm:$0xf]
      %v656 = vld [vmem:[%s1 + $0x1b4] sm:$0xf]
      %v657 = vld [vmem:[%s1 + $0x1b8] sm:$0xf]
      %v658 = vld [vmem:[%s1 + $0x1bc] sm:$0xf]
      %v659 = vld [vmem:[%s1 + $0x1c0] sm:$0xf]
      %v660 = vld [vmem:[%s1 + $0x1c4] sm:$0xf]
      %v661 = vld [vmem:[%s1 + $0x1c8] sm:$0xf]
      %v662 = vld [vmem:[%s1 + $0x1cc] sm:$0xf]
      %v663 = vld [vmem:[%s1 + $0x1d0] sm:$0xf]
      %v664 = vld [vmem:[%s1 + $0x1d4] sm:$0xf]
      %v665 = vld [vmem:[%s1 + $0x1d8] sm:$0xf]
      %v666 = vld [vmem:[%s1 + $0x1dc] sm:$0xf]
      %v667 = vld [vmem:[%s1 + $0x1e0] sm:$0xf]
      %v668 = vld [vmem:[%s1 + $0x1e4] sm:$0xf]
      %v669 = vld [vmem:[%s1 + $0x1e8] sm:$0xf]
      %v670 = vld [vmem:[%s1 + $0x1ec] sm:$0xf]
      %v671 = vld [vmem:[%s1 + $0x1f0] sm:$0xf]
      %v672 = vld [vmem:[%s1 + $0x1f4] sm:$0xf]
      %v673 = vld [vmem:[%s1 + $0x1f8] sm:$0xf]
      %v674 = vld [vmem:[%s1 + $0x1fc] sm:$0xf]
      %v675 = vld [vmem:[%s1 + $0x200] sm:$0xf]
      %v676 = vld [vmem:[%s1 + $0x204] sm:$0xf]
      %v677 = vld [vmem:[%s1 + $0x208] sm:$0xf]
      %v678 = vld [vmem:[%s1 + $0x20c] sm:$0xf]
      %v679 = vld [vmem:[%s1 + $0x210] sm:$0xf]
      %v680 = vld [vmem:[%s1 + $0x214] sm:$0xf]
      %v681 = vld [vmem:[%s1 + $0x218] sm:$0xf]
      %v682 = vld [vmem:[%s1 + $0x21c] sm:$0xf]
      %v683 = vld [vmem:[%s1 + $0x220] sm:$0xf]
      %v684 = vld [vmem:[%s1 + $0x224] sm:$0xf]
      %v685 = vld [vmem:[%s1 + $0x228] sm:$0xf]
      %v686 = vld [vmem:[%s1 + $0x22c] sm:$0xf]
      %v687 = vld [vmem:[%s1 + $0x230] sm:$0xf]
      %v688 = vld [vmem:[%s1 + $0x234] sm:$0xf]
      %v689 = vld [vmem:[%s1 + $0x238] sm:$0xf]
      %v690 = vld [vmem:[%s1 + $0x23c] sm:$0xf]
      %v691 = vld [vmem:[%s2] sm:$0x1]
      %v693 = vlaneseq
      %v694 = vshrl.u32 %v693, 7
      %v695 = vsub.s32 0, %v694
      %v696 = vrot.slane %v691, %v695
      %v698 = vcombine.low %v399, %v440
      %v699 = vcombine.high %v399, %v440
      %v700 = vcombine.low %v481, %v522
      %v701 = vcombine.high %v481, %v522
      %v703 = vunpack.c.l.s4 1983009808
      %v704 = vunpack.c.0.s8 %v703
      %v705 = vlaneseq
      %v706 = vshrl.u32 %v705, 7
      %v707 = vsub.s32 %v704, %v706
      %v708 = vrot.slane %v698, %v707
      %v710 = vunpack.c.l.s4 1983009808
      %v711 = vunpack.c.0.s8 %v710
      %v712 = vlaneseq
      %v713 = vshrl.u32 %v712, 7
      %v714 = vsub.s32 %v711, %v713
      %v715 = vrot.slane %v699, %v714
      %v717 = vunpack.c.l.s4 1983009808
      %v718 = vunpack.c.0.s8 %v717
      %v719 = vlaneseq
      %v720 = vshrl.u32 %v719, 7
      %v721 = vsub.s32 %v718, %v720
      %v722 = vrot.slane %v700, %v721
      %v724 = vunpack.c.l.s4 1983009808
      %v725 = vunpack.c.0.s8 %v724
      %v726 = vlaneseq
      %v727 = vshrl.u32 %v726, 7
      %v728 = vsub.s32 %v725, %v727
      %v729 = vrot.slane %v701, %v728
      %v730 = vcombine.low %v708, %v722
      %v731 = vcombine.high %v708, %v722
      %v732 = vcombine.low %v715, %v729
      %v733 = vcombine.high %v715, %v729
      %v734 = vcombine.low %v416, %v457
      %v735 = vcombine.high %v416, %v457
      %v736 = vcombine.low %v498, %v539
      %v737 = vcombine.high %v498, %v539
      %v739 = vunpack.c.l.s4 1983009808
      %v740 = vunpack.c.0.s8 %v739
      %v741 = vlaneseq
      %v742 = vshrl.u32 %v741, 7
      %v743 = vsub.s32 %v740, %v742
      %v744 = vrot.slane %v734, %v743
      %v746 = vunpack.c.l.s4 1983009808
      %v747 = vunpack.c.0.s8 %v746
      %v748 = vlaneseq
      %v749 = vshrl.u32 %v748, 7
      %v750 = vsub.s32 %v747, %v749
      %v751 = vrot.slane %v735, %v750
      %v753 = vunpack.c.l.s4 1983009808
      %v754 = vunpack.c.0.s8 %v753
      %v755 = vlaneseq
      %v756 = vshrl.u32 %v755, 7
      %v757 = vsub.s32 %v754, %v756
      %v758 = vrot.slane %v736, %v757
      %v760 = vunpack.c.l.s4 1983009808
      %v761 = vunpack.c.0.s8 %v760
      %v762 = vlaneseq
      %v763 = vshrl.u32 %v762, 7
      %v764 = vsub.s32 %v761, %v763
      %v765 = vrot.slane %v737, %v764
      %v766 = vcombine.low %v744, %v758
      %v767 = vcombine.high %v744, %v758
      %v768 = vcombine.low %v751, %v765
      %v769 = vcombine.high %v751, %v765
      %v770 = vcombine.low %v423, %v464
      %v771 = vcombine.low %v505, %v546
      %v773 = vunpack.c.l.s4 1983009808
      %v774 = vunpack.c.0.s8 %v773
      %v775 = vlaneseq
      %v776 = vshrl.u32 %v775, 7
      %v777 = vsub.s32 %v774, %v776
      %v778 = vrot.slane %v770, %v777
      %v780 = vunpack.c.l.s4 1983009808
      %v781 = vunpack.c.0.s8 %v780
      %v782 = vlaneseq
      %v783 = vshrl.u32 %v782, 7
      %v784 = vsub.s32 %v781, %v783
      %v785 = vrot.slane %v771, %v784
      %v786 = vcombine.low %v778, %v785
      %v940 = vunpack.c.l.b16 %v547
      %v941 = vunpack.c.l.b16 %v548
      %v942 = vunpack.c.l.b16 %v549
      %v943 = vunpack.c.l.b16 %v550
      %v944 = vunpack.c.l.b16 %v551
      %v945 = vunpack.c.l.b16 %v552
      %v946 = vunpack.c.l.b16 %v553
      %v947 = vunpack.c.l.b16 %v554
      %v948 = vunpack.c.l.b16 %v555
      %v949 = vunpack.c.l.b16 %v556
      %v950 = vunpack.c.l.b16 %v557
      %v951 = vunpack.c.l.b16 %v558
      %v952 = vunpack.c.l.b16 %v559
      %v953 = vunpack.c.l.b16 %v560
      %v954 = vunpack.c.l.b16 %v561
      %v955 = vunpack.c.l.b16 %v562
      %v956 = vunpack.c.l.b16 %v563
      %v957 = vunpack.c.l.b16 %v564
      %v958 = vunpack.c.l.b16 %v565
      %v959 = vunpack.c.l.b16 %v566
      %v960 = vunpack.c.l.b16 %v567
      %v961 = vunpack.c.l.b16 %v568
      %v962 = vunpack.c.l.b16 %v569
      %v963 = vunpack.c.l.b16 %v570
      %v964 = vunpack.c.l.b16 %v571
      %v965 = vunpack.c.l.b16 %v572
      %v966 = vunpack.c.l.b16 %v573
      %v967 = vunpack.c.l.b16 %v574
      %v968 = vunpack.c.l.b16 %v575
      %v969 = vunpack.c.l.b16 %v576
      %v970 = vunpack.c.l.b16 %v577
      %v971 = vunpack.c.l.b16 %v578
      %v972 = vunpack.c.l.b16 %v579
      %v973 = vunpack.c.l.b16 %v580
      %v974 = vunpack.c.l.b16 %v581
      %v975 = vunpack.c.l.b16 %v582
      %v976 = vunpack.c.l.b16 %v583
      %v977 = vunpack.c.l.b16 %v584
      %v978 = vunpack.c.l.b16 %v585
      %v979 = vunpack.c.l.b16 %v586
      %v980 = vunpack.c.l.b16 %v587
      %v981 = vunpack.c.l.b16 %v588
      %v982 = vunpack.c.l.b16 %v589
      %v983 = vunpack.c.l.b16 %v590
      %v984 = vunpack.c.l.b16 %v591
      %v985 = vunpack.c.l.b16 %v592
      %v986 = vunpack.c.l.b16 %v593
      %v987 = vunpack.c.l.b16 %v594
      %v988 = vunpack.c.l.b16 %v595
      %v989 = vunpack.c.l.b16 %v596
      %v990 = vunpack.c.l.b16 %v597
      %v991 = vunpack.c.l.b16 %v598
      %v992 = vunpack.c.l.b16 %v599
      %v993 = vunpack.c.l.b16 %v600
      %v994 = vunpack.c.l.b16 %v601
      %v995 = vunpack.c.l.b16 %v602
      %v996 = vunpack.c.l.b16 %v603
      %v997 = vunpack.c.l.b16 %v604
      %v998 = vunpack.c.l.b16 %v605
      %v999 = vunpack.c.l.b16 %v606
      %v1000 = vunpack.c.l.b16 %v607
      %v1001 = vunpack.c.l.b16 %v608
      %v1002 = vunpack.c.l.b16 %v609
      %v1003 = vunpack.c.l.b16 %v610
      %v1004 = vunpack.c.l.b16 %v611
      %v1005 = vunpack.c.l.b16 %v612
      %v1006 = vunpack.c.l.b16 %v613
      %v1007 = vunpack.c.l.b16 %v614
      %v1008 = vunpack.c.l.b16 %v615
      %v1009 = vunpack.c.l.b16 %v616
      %v1010 = vunpack.c.l.b16 %v617
      %v1011 = vunpack.c.l.b16 %v618
      %v1012 = vunpack.c.l.b16 %v619
      %v1013 = vunpack.c.l.b16 %v620
      %v1014 = vunpack.c.l.b16 %v621
      %v1015 = vunpack.c.l.b16 %v622
      %v1016 = vunpack.c.l.b16 %v623
      %v1017 = vunpack.c.l.b16 %v624
      %v1018 = vunpack.c.l.b16 %v625
      %v1019 = vunpack.c.l.b16 %v626
      %v1020 = vunpack.c.l.b16 %v627
      %v1021 = vunpack.c.l.b16 %v628
      %v1022 = vunpack.c.l.b16 %v629
      %v1023 = vunpack.c.l.b16 %v630
      %v1024 = vunpack.c.l.b16 %v631
      %v1025 = vunpack.c.l.b16 %v632
      %v1026 = vunpack.c.l.b16 %v633
      %v1027 = vunpack.c.l.b16 %v634
      %v1028 = vunpack.c.l.b16 %v635
      %v1029 = vunpack.c.l.b16 %v636
      %v1030 = vunpack.c.l.b16 %v637
      %v1031 = vunpack.c.l.b16 %v638
      %v1032 = vunpack.c.l.b16 %v639
      %v1033 = vunpack.c.l.b16 %v640
      %v1034 = vunpack.c.l.b16 %v641
      %v1035 = vunpack.c.l.b16 %v642
      %v1036 = vunpack.c.l.b16 %v643
      %v1037 = vunpack.c.l.b16 %v644
      %v1038 = vunpack.c.l.b16 %v645
      %v1039 = vunpack.c.l.b16 %v646
      %v1040 = vunpack.c.l.b16 %v647
      %v1041 = vunpack.c.l.b16 %v648
      %v1042 = vunpack.c.l.b16 %v649
      %v1043 = vunpack.c.l.b16 %v650
      %v1044 = vunpack.c.l.b16 %v651
      %v1045 = vunpack.c.l.b16 %v652
      %v1046 = vunpack.c.l.b16 %v653
      %v1047 = vunpack.c.l.b16 %v654
      %v1048 = vunpack.c.l.b16 %v655
      %v1049 = vunpack.c.l.b16 %v656
      %v1050 = vunpack.c.l.b16 %v657
      %v1051 = vunpack.c.l.b16 %v658
      %v1052 = vunpack.c.l.b16 %v659
      %v1053 = vunpack.c.l.b16 %v660
      %v1054 = vunpack.c.l.b16 %v661
      %v1055 = vunpack.c.l.b16 %v662
      %v1056 = vunpack.c.l.b16 %v663
      %v1057 = vunpack.c.l.b16 %v664
      %v1058 = vunpack.c.l.b16 %v665
      %v1059 = vunpack.c.l.b16 %v666
      %v1060 = vunpack.c.l.b16 %v667
      %v1061 = vunpack.c.l.b16 %v668
      %v1062 = vunpack.c.l.b16 %v669
      %v1063 = vunpack.c.l.b16 %v670
      %v1064 = vunpack.c.l.b16 %v671
      %v1065 = vunpack.c.l.b16 %v672
      %v1066 = vunpack.c.l.b16 %v673
      %v1067 = vunpack.c.l.b16 %v674
      %v1068 = vunpack.c.l.b16 %v675
      %v1069 = vunpack.c.l.b16 %v676
      %v1070 = vunpack.c.l.b16 %v677
      %v1071 = vunpack.c.l.b16 %v678
      %v1072 = vunpack.c.l.b16 %v679
      %v1073 = vunpack.c.l.b16 %v680
      %v1074 = vunpack.c.l.b16 %v681
      %v1075 = vunpack.c.l.b16 %v682
      %v1076 = vunpack.c.l.b16 %v683
      %v1077 = vunpack.c.l.b16 %v684
      %v1078 = vunpack.c.l.b16 %v685
      %v1079 = vunpack.c.l.b16 %v686
      %v1080 = vunpack.c.l.b16 %v687
      %v1081 = vunpack.c.l.b16 %v688
      %v1082 = vunpack.c.l.b16 %v689
      %v1083 = vunpack.c.l.b16 %v690
      %v1084 = vpack.c.b16 %v941, %v940
      %v1085 = vpack.c.b16 %v943, %v942
      %v1086 = vpack.c.b16 %v945, %v944
      %v1087 = vpack.c.b16 %v947, %v946
      %v1088 = vpack.c.b16 %v949, %v948
      %v1089 = vpack.c.b16 %v951, %v950
      %v1090 = vpack.c.b16 %v953, %v952
      %v1091 = vpack.c.b16 %v955, %v954
      %v1092 = vpack.c.b16 %v957, %v956
      %v1093 = vpack.c.b16 %v959, %v958
      %v1094 = vpack.c.b16 %v961, %v960
      %v1095 = vpack.c.b16 %v963, %v962
      %v1096 = vpack.c.b16 %v965, %v964
      %v1097 = vpack.c.b16 %v967, %v966
      %v1098 = vpack.c.b16 %v969, %v968
      %v1099 = vpack.c.b16 %v971, %v970
      %v1100 = vpack.c.b16 %v973, %v972
      %v1101 = vpack.c.b16 %v975, %v974
      %v1102 = vpack.c.b16 %v977, %v976
      %v1103 = vpack.c.b16 %v979, %v978
      %v1104 = vpack.c.b16 %v981, %v980
      %v1105 = vpack.c.b16 %v983, %v982
      %v1106 = vpack.c.b16 %v985, %v984
      %v1107 = vpack.c.b16 %v987, %v986
      %v1108 = vpack.c.b16 %v989, %v988
      %v1109 = vpack.c.b16 %v991, %v990
      %v1110 = vpack.c.b16 %v993, %v992
      %v1111 = vpack.c.b16 %v995, %v994
      %v1112 = vpack.c.b16 %v997, %v996
      %v1113 = vpack.c.b16 %v999, %v998
      %v1114 = vpack.c.b16 %v1001, %v1000
      %v1115 = vpack.c.b16 %v1003, %v1002
      %v1116 = vpack.c.b16 %v1005, %v1004
      %v1117 = vpack.c.b16 %v1007, %v1006
      %v1118 = vpack.c.b16 %v1009, %v1008
      %v1119 = vpack.c.b16 %v1011, %v1010
      %v1120 = vpack.c.b16 %v1013, %v1012
      %v1121 = vpack.c.b16 %v1015, %v1014
      %v1122 = vpack.c.b16 %v1017, %v1016
      %v1123 = vpack.c.b16 %v1019, %v1018
      %v1124 = vpack.c.b16 %v1021, %v1020
      %v1125 = vpack.c.b16 %v1023, %v1022
      %v1126 = vpack.c.b16 %v1025, %v1024
      %v1127 = vpack.c.b16 %v1027, %v1026
      %v1128 = vpack.c.b16 %v1029, %v1028
      %v1129 = vpack.c.b16 %v1031, %v1030
      %v1130 = vpack.c.b16 %v1033, %v1032
      %v1131 = vpack.c.b16 %v1035, %v1034
      %v1132 = vpack.c.b16 %v1037, %v1036
      %v1133 = vpack.c.b16 %v1039, %v1038
      %v1134 = vpack.c.b16 %v1041, %v1040
      %v1135 = vpack.c.b16 %v1043, %v1042
      %v1136 = vpack.c.b16 %v1045, %v1044
      %v1137 = vpack.c.b16 %v1047, %v1046
      %v1138 = vpack.c.b16 %v1049, %v1048
      %v1139 = vpack.c.b16 %v1051, %v1050
      %v1140 = vpack.c.b16 %v1053, %v1052
      %v1141 = vpack.c.b16 %v1055, %v1054
      %v1142 = vpack.c.b16 %v1057, %v1056
      %v1143 = vpack.c.b16 %v1059, %v1058
      %v1144 = vpack.c.b16 %v1061, %v1060
      %v1145 = vpack.c.b16 %v1063, %v1062
      %v1146 = vpack.c.b16 %v1065, %v1064
      %v1147 = vpack.c.b16 %v1067, %v1066
      %v1148 = vpack.c.b16 %v1069, %v1068
      %v1149 = vpack.c.b16 %v1071, %v1070
      %v1150 = vpack.c.b16 %v1073, %v1072
      %v1151 = vpack.c.b16 %v1075, %v1074
      %v1152 = vpack.c.b16 %v1077, %v1076
      %v1153 = vpack.c.b16 %v1079, %v1078
      %v1154 = vpack.c.b16 %v1081, %v1080
      %v1155 = vpack.c.b16 %v1083, %v1082
      %1228 = vmatprep.subr.bf16.mxu0 0
      %1229 = vmatpush1.bf16.msra.mxu0 %v1084
      %1230 = vmatprep.subr.bf16.mxu0 0
      %1231 = vmatpush1.bf16.msra.mxu0 %v1085
      %1232 = vmatprep.subr.bf16.mxu0 0
      %1233 = vmatpush1.bf16.msra.mxu0 %v1086
      %1234 = vmatprep.subr.bf16.mxu0 0
      %1235 = vmatpush1.bf16.msra.mxu0 %v1087
      %1236 = vmatprep.subr.bf16.mxu0 0
      %1237 = vmatpush1.bf16.msra.mxu0 %v1088
      %1238 = vmatprep.subr.bf16.mxu0 0
      %1239 = vmatpush1.bf16.msra.mxu0 %v1089
      %1240 = vmatprep.subr.bf16.mxu0 0
      %1241 = vmatpush1.bf16.msra.mxu0 %v1090
      %1242 = vmatprep.subr.bf16.mxu0 0
      %1243 = vmatpush1.bf16.msra.mxu0 %v1091
      %1244 = vmatprep.subr.bf16.mxu0 0
      %1245 = vmatpush1.bf16.msra.mxu0 %v1092
      %1246 = vmatprep.subr.bf16.mxu0 0
      %1247 = vmatpush1.bf16.msra.mxu0 %v1093
      %1248 = vmatprep.subr.bf16.mxu0 0
      %1249 = vmatpush1.bf16.msra.mxu0 %v1094
      %1250 = vmatprep.subr.bf16.mxu0 0
      %1251 = vmatpush1.bf16.msra.mxu0 %v1095
      %1252 = vmatprep.subr.bf16.mxu0 0
      %1253 = vmatpush1.bf16.msra.mxu0 %v1096
      %1254 = vmatprep.subr.bf16.mxu0 0
      %1255 = vmatpush1.bf16.msra.mxu0 %v1097
      %1256 = vmatprep.subr.bf16.mxu0 0
      %1257 = vmatpush1.bf16.msra.mxu0 %v1098
      %1258 = vmatprep.subr.bf16.mxu0 0
      %1259 = vmatpush1.bf16.msra.mxu0 %v1099
      %1260 = vmatprep.mubr.bf16.mxu0 %v731
      %1261 = vmatmul.mubr.bf16.gmra.mrb[0].mxu0 %v730
      %v1262 = vpop.f32.mrb[0].mxu0
      %v1263 = vadd.f32 %v696, %v1262
      %v1264 = vpop.f32.mrb[0].mxu0
      %v1265 = vpop.f32.mrb[0].mxu0
      %v1266 = vadd.f32 %v696, %v1265
      %v1267 = vpop.f32.mrb[0].mxu0
      %1268 = vdwg.mxu0
      %1269 = vmatprep.subr.bf16.mxu0 0
      %1270 = vmatpush1.bf16.msra.mxu0 %v1100
      %1271 = vmatprep.subr.bf16.mxu0 0
      %1272 = vmatpush1.bf16.msra.mxu0 %v1101
      %1273 = vmatprep.subr.bf16.mxu0 0
      %1274 = vmatpush1.bf16.msra.mxu0 %v1102
      %1275 = vmatprep.subr.bf16.mxu0 0
      %1276 = vmatpush1.bf16.msra.mxu0 %v1103
      %1277 = vmatprep.subr.bf16.mxu0 0
      %1278 = vmatpush1.bf16.msra.mxu0 %v1104
      %1279 = vmatprep.subr.bf16.mxu0 0
      %1280 = vmatpush1.bf16.msra.mxu0 %v1105
      %1281 = vmatprep.subr.bf16.mxu0 0
      %1282 = vmatpush1.bf16.msra.mxu0 %v1106
      %1283 = vmatprep.subr.bf16.mxu0 0
      %1284 = vmatpush1.bf16.msra.mxu0 %v1107
      %1285 = vmatprep.subr.bf16.mxu0 0
      %1286 = vmatpush1.bf16.msra.mxu0 %v1108
      %1287 = vmatprep.subr.bf16.mxu0 0
      %1288 = vmatpush1.bf16.msra.mxu0 %v1109
      %1289 = vmatprep.subr.bf16.mxu0 0
      %1290 = vmatpush1.bf16.msra.mxu0 %v1110
      %1291 = vmatprep.subr.bf16.mxu0 0
      %1292 = vmatpush1.bf16.msra.mxu0 %v1111
      %1293 = vmatprep.subr.bf16.mxu0 0
      %1294 = vmatpush1.bf16.msra.mxu0 %v1112
      %1295 = vmatprep.subr.bf16.mxu0 0
      %1296 = vmatpush1.bf16.msra.mxu0 %v1113
      %1297 = vmatprep.subr.bf16.mxu0 0
      %1298 = vmatpush1.bf16.msra.mxu0 %v1114
      %1299 = vmatprep.subr.bf16.mxu0 0
      %1300 = vmatpush1.bf16.msra.mxu0 %v1115
      %1301 = vmatprep.mubr.bf16.mxu0 %v733
      %1302 = vmatmul.mubr.bf16.gmra.mrb[0].mxu0 %v732
      %v1303 = vpop.f32.mrb[0].mxu0
      %v1304 = vadd.f32 %v1263, %v1303
      %v1305 = vpop.f32.mrb[0].mxu0
      %v1306 = vpop.f32.mrb[0].mxu0
      %v1307 = vadd.f32 %v1266, %v1306
      %v1308 = vpop.f32.mrb[0].mxu0
      %1309 = vdwg.mxu0
      %1310 = vmatprep.subr.bf16.mxu0 0
      %1311 = vmatpush1.bf16.msra.mxu0 %v1116
      %1312 = vmatprep.subr.bf16.mxu0 0
      %1313 = vmatpush1.bf16.msra.mxu0 %v1117
      %1314 = vmatprep.subr.bf16.mxu0 0
      %1315 = vmatpush1.bf16.msra.mxu0 %v1118
      %1316 = vmatprep.subr.bf16.mxu0 0
      %1317 = vmatpush1.bf16.msra.mxu0 %v1119
      %1318 = vmatprep.subr.bf16.mxu0 0
      %1319 = vmatpush1.bf16.msra.mxu0 %v1120
      %1320 = vmatprep.subr.bf16.mxu0 0
      %1321 = vmatpush1.bf16.msra.mxu0 %v1121
      %1322 = vmatprep.subr.bf16.mxu0 0
      %1323 = vmatpush1.bf16.msra.mxu0 %v1122
      %1324 = vmatprep.subr.bf16.mxu0 0
      %1325 = vmatpush1.bf16.msra.mxu0 %v1123
      %1326 = vmatprep.subr.bf16.mxu0 0
      %1327 = vmatpush1.bf16.msra.mxu0 %v1124
      %1328 = vmatprep.subr.bf16.mxu0 0
      %1329 = vmatpush1.bf16.msra.mxu0 %v1125
      %1330 = vmatprep.subr.bf16.mxu0 0
      %1331 = vmatpush1.bf16.msra.mxu0 %v1126
      %1332 = vmatprep.subr.bf16.mxu0 0
      %1333 = vmatpush1.bf16.msra.mxu0 %v1127
      %1334 = vmatprep.subr.bf16.mxu0 0
      %1335 = vmatpush1.bf16.msra.mxu0 %v1128
      %1336 = vmatprep.subr.bf16.mxu0 0
      %1337 = vmatpush1.bf16.msra.mxu0 %v1129
      %1338 = vmatprep.subr.bf16.mxu0 0
      %1339 = vmatpush1.bf16.msra.mxu0 %v1130
      %1340 = vmatprep.subr.bf16.mxu0 0
      %1341 = vmatpush1.bf16.msra.mxu0 %v1131
      %1342 = vmatprep.mubr.bf16.mxu0 %v767
      %1343 = vmatmul.mubr.bf16.gmra.mrb[0].mxu0 %v766
      %v1344 = vpop.f32.mrb[0].mxu0
      %v1345 = vadd.f32 %v1304, %v1344
      %v1346 = vpop.f32.mrb[0].mxu0
      %v1347 = vpop.f32.mrb[0].mxu0
      %v1348 = vadd.f32 %v1307, %v1347
      %v1349 = vpop.f32.mrb[0].mxu0
      %1350 = vdwg.mxu0
      %1351 = vmatprep.subr.bf16.mxu0 0
      %1352 = vmatpush1.bf16.msra.mxu0 %v1132
      %1353 = vmatprep.subr.bf16.mxu0 0
      %1354 = vmatpush1.bf16.msra.mxu0 %v1133
      %1355 = vmatprep.subr.bf16.mxu0 0
      %1356 = vmatpush1.bf16.msra.mxu0 %v1134
      %1357 = vmatprep.subr.bf16.mxu0 0
      %1358 = vmatpush1.bf16.msra.mxu0 %v1135
      %1359 = vmatprep.subr.bf16.mxu0 0
      %1360 = vmatpush1.bf16.msra.mxu0 %v1136
      %1361 = vmatprep.subr.bf16.mxu0 0
      %1362 = vmatpush1.bf16.msra.mxu0 %v1137
      %1363 = vmatprep.subr.bf16.mxu0 0
      %1364 = vmatpush1.bf16.msra.mxu0 %v1138
      %1365 = vmatprep.subr.bf16.mxu0 0
      %1366 = vmatpush1.bf16.msra.mxu0 %v1139
      %1367 = vmatprep.subr.bf16.mxu0 0
      %1368 = vmatpush1.bf16.msra.mxu0 %v1140
      %1369 = vmatprep.subr.bf16.mxu0 0
      %1370 = vmatpush1.bf16.msra.mxu0 %v1141
      %1371 = vmatprep.subr.bf16.mxu0 0
      %1372 = vmatpush1.bf16.msra.mxu0 %v1142
      %1373 = vmatprep.subr.bf16.mxu0 0
      %1374 = vmatpush1.bf16.msra.mxu0 %v1143
      %1375 = vmatprep.subr.bf16.mxu0 0
      %1376 = vmatpush1.bf16.msra.mxu0 %v1144
      %1377 = vmatprep.subr.bf16.mxu0 0
      %1378 = vmatpush1.bf16.msra.mxu0 %v1145
      %1379 = vmatprep.subr.bf16.mxu0 0
      %1380 = vmatpush1.bf16.msra.mxu0 %v1146
      %1381 = vmatprep.subr.bf16.mxu0 0
      %1382 = vmatpush1.bf16.msra.mxu0 %v1147
      %1383 = vmatprep.mubr.bf16.mxu0 %v769
      %1384 = vmatmul.mubr.bf16.gmra.mrb[0].mxu0 %v768
      %v1385 = vpop.f32.mrb[0].mxu0
      %v1386 = vadd.f32 %v1345, %v1385
      %v1387 = vpop.f32.mrb[0].mxu0
      %v1388 = vpop.f32.mrb[0].mxu0
      %v1389 = vadd.f32 %v1348, %v1388
      %v1390 = vpop.f32.mrb[0].mxu0
      %1391 = vdwg.mxu0
      %1392 = vmatprep.subr.bf16.mxu0 0
      %1393 = vmatpush1.bf16.msra.mxu0 %v1148
      %1394 = vmatprep.subr.bf16.mxu0 0
      %1395 = vmatpush1.bf16.msra.mxu0 %v1149
      %1396 = vmatprep.subr.bf16.mxu0 0
      %1397 = vmatpush1.bf16.msra.mxu0 %v1150
      %1398 = vmatprep.subr.bf16.mxu0 0
      %1399 = vmatpush1.bf16.msra.mxu0 %v1151
      %1400 = vmatprep.subr.bf16.mxu0 0
      %1401 = vmatpush1.bf16.msra.mxu0 %v1152
      %1402 = vmatprep.subr.bf16.mxu0 0
      %1403 = vmatpush1.bf16.msra.mxu0 %v1153
      %1404 = vmatprep.subr.bf16.mxu0 0
      %1405 = vmatpush1.bf16.msra.mxu0 %v1154
      %1406 = vmatprep.subr.bf16.mxu0 0
      %1407 = vmatpush1.bf16.msra.mxu0 %v1155
      %1408 = vmatprep.subr.bf16.mxu0 0
      %1409 = vmatpush1.bf16.msra.mxu0 0
      %1410 = vmatprep.subr.bf16.mxu0 0
      %1411 = vmatpush1.bf16.msra.mxu0 0
      %1412 = vmatprep.subr.bf16.mxu0 0
      %1413 = vmatpush1.bf16.msra.mxu0 0
      %1414 = vmatprep.subr.bf16.mxu0 0
      %1415 = vmatpush1.bf16.msra.mxu0 0
      %1416 = vmatprep.subr.bf16.mxu0 0
      %1417 = vmatpush1.bf16.msra.mxu0 0
      %1418 = vmatprep.subr.bf16.mxu0 0
      %1419 = vmatpush1.bf16.msra.mxu0 0
      %1420 = vmatprep.subr.bf16.mxu0 0
      %1421 = vmatpush1.bf16.msra.mxu0 0
      %1422 = vmatprep.subr.bf16.mxu0 0
      %1423 = vmatpush1.bf16.msra.mxu0 0
      %1424 = vmatprep.mubr.bf16.mxu0 0
      %1425 = vmatmul.mubr.bf16.gmra.mrb[0].mxu0 %v786
      %v1426 = vpop.f32.mrb[0].mxu0
      %v1427 = vadd.f32 %v1386, %v1426
      %v1428 = vpop.f32.mrb[0].mxu0
      %v1429 = vpop.f32.mrb[0].mxu0
      %v1430 = vadd.f32 %v1389, %v1429
      %v1431 = vpop.f32.mrb[0].mxu0
      %1432 = vdwg.mxu0
      %v1433 = vmax.f32 %v1427, 0.0
      %v1434 = vmax.f32 %v1430, 0.0
      %v1437 = vcombine.high %v1433, %v1433
      %v1438 = vcombine.high %v1434, %v1434
      %v1441 = vpack.c.bf16 %v1433, %v1433
      %v1442 = vpack.c.bf16 %v1437, %v1437
      %v1443 = vpack.c.bf16 %v1434, %v1434
      %v1444 = vpack.c.bf16 %v1438, %v1438
      %1445 = vst [vmem:[%s192] sm:$0x3] %v1441
      %1446 = vst [vmem:[%s192 + $0x2] sm:$0x3] %v1442
      %1447 = vst [vmem:[%s192 + $0x4] sm:$0x3] %v1443
      %1448 = vst [vmem:[%s192 + $0x6] sm:$0x3] %v1444
      %s1449 = smul.u32 4, %s19
      %p1450 = scmp.lt.s32.totalorder %s18, 1
      %s1451 = scalar_select %p1450, %s18, 1
      %p1452 = scmp.lt.s32.totalorder %s1449, 3
      %s1453 = scalar_select %p1452, %s1449, 3
      %s1454 = smul.addr %s1451, 4
      %s1455 = sadd.s32 %s1453, %s1454
      %s1456 = smul.addr %s1455, 2
      %s1457 = scalar_lea.vmem %s3, %s1456
      // Predicated region
      $region33: #{forward.7} parent=31 // pred_check
        %p1458 = pneg %p114
      $region34: #{forward.7} parent=31 // pred_check_branch
        %1460 = sbr.rel (%p1458) target = $region36
      $region35: #{forward.7} parent=31 // pred_region
        %s1461 = smul.u32 4, %s19
      $region36: #{forward.7} parent=31 // pred_fallthru
        _
    $region32: #{forward.7} parent=5 // pred_fallthru
      _
    %p1462 = scmp.le.s32.totalorder 2, %s9
    // Predicated region
    $region37: #{forward.7} parent=5 // pred_check
      %p1463 = pneg %p1462
    $region38: #{forward.7} parent=5 // pred_check_branch
      %1465 = sbr.rel (%p1463) target = $region40
    $region39: #{forward.7} parent=5 // pred_region
      %s1466 = ssub.s32 %s9, 2
      // Predicated region
      $region41: #{forward.7} parent=39 // pred_check
        %p1467 = pneg %p120
      $region42: #{forward.7} parent=39 // pred_check_branch
        %1469 = sbr.rel (%p1467) target = $region44
      $region43: #{forward.7} parent=39 // pred_region
        %s1470 = smul.u32 4, %s21
        %p1471 = scmp.lt.s32.totalorder %s20, 1
        %s1472 = scalar_select %p1471, %s20, 1
        %p1473 = scmp.lt.s32.totalorder %s1470, 3
        %s1474 = scalar_select %p1473, %s1470, 3
        %s1475 = smul.addr %s1472, 4
        %s1476 = sadd.s32 %s1474, %s1475
        %s1477 = smul.addr %s1476, 2
        %s1478 = scalar_lea.vmem %s3, %s1477
      $region44: #{forward.7} parent=39 // pred_fallthru
        _
    $region40: #{forward.7} parent=5 // pred_fallthru
      _
  $region6: #{forward.7} parent=0 // loop_footer
    %s13 = sadd.s32 1, %s9
  $region7: #{forward.7} parent=0 // loop_footer_branch
    %8 = sbr.rel target = $region3
  $region8: #{forward.7} parent=0 // loop_exit
    _

</llo_original>
